<compile_context>
chip_gen: v6e
topology: v6e:2x2x1
jax: 0.10.0
libtpu: 0.0.40
codegen_flags: <defaults>
</compile_context>

<pallas_src>
import jax
import jax.numpy as jnp
from jax import lax
from jax.experimental import pallas as pl
from jax.experimental.pallas import tpu as pltpu


def att_kernel(x_ref, mask_ref,
               win_f_ref, cin_f_ref, bih_f_ref, whh_f_ref, bhh_f_ref,
               win_b_ref, cin_b_ref, bih_b_ref, whh_b_ref, bhh_b_ref,
               w3f_ref, w3b_ref, b3_ref,
               out_ref):
    f32 = jnp.float32
    Rb, D = x_ref.shape                 # Rb = block_b * N rows
    N = mask_ref.shape[1]               # n_node (= timesteps per sequence)
    TB = Rb // N                        # batches in this block
    Hh = whh_f_ref.shape[1]             # hidden_dim // 2 (per direction)

    x = x_ref[...].astype(f32)          # (Rb, D): row c*N + t  == x[batch c, node t]
    mask = mask_ref[...].astype(f32)    # (Rb, N): row c*N + i  == mask[c, i, :]

    # ---- fused fc1 + GRU input projection: once per gate / direction --------
    # G[g][c, t, :] = x[c, t, :] @ (W1 @ W_ih_g) + b1 @ W_ih_g   (mask applied later)
    def input_proj(win_ref, cin_ref):
        return [
            (jnp.dot(x, win_ref[g], preferred_element_type=f32) + cin_ref[g]
             ).reshape(TB, N, Hh)
            for g in range(3)
        ]

    Gf = input_proj(win_f_ref, cin_f_ref)      # gates [r, z, n], forward
    Gb = input_proj(win_b_ref, cin_b_ref)      # gates [r, z, n], backward

    # ---- hoist loop-invariant loads / compares -------------------------------
    whh_f = [whh_f_ref[g] for g in range(3)]
    whh_b = [whh_b_ref[g] for g in range(3)]
    bhh_f = [bhh_f_ref[g] for g in range(3)]
    bhh_b = [bhh_b_ref[g] for g in range(3)]
    bih_f = [bih_f_ref[g] for g in range(3)]
    bih_b = [bih_b_ref[g] for g in range(3)]

    row_i = lax.broadcasted_iota(jnp.int32, (Rb, 1), 0) % N      # agent id per row
    sel = [row_i == t for t in range(N)]                         # hoisted one-hots

    def expand_time(G_g, t):
        # (TB, N_t, Hh)[:, t, :] broadcast over the N_i rows of each batch -> (Rb, Hh)
        g_t = G_g[:, t:t + 1, :]                                  # (TB, 1, Hh)
        return jnp.broadcast_to(g_t, (TB, N, Hh)).reshape(Rb, Hh)

    def gru_step(h, G, bih, whh, bhh, t):
        m = mask[:, t:t + 1]                                      # (Rb, 1)
        gi_r = m * expand_time(G[0], t) + bih[0]
        gi_z = m * expand_time(G[1], t) + bih[1]
        gi_n = m * expand_time(G[2], t) + bih[2]
        gh_r = jnp.dot(h, whh[0], preferred_element_type=f32) + bhh[0]
        gh_z = jnp.dot(h, whh[1], preferred_element_type=f32) + bhh[1]
        gh_n = jnp.dot(h, whh[2], preferred_element_type=f32) + bhh[2]
        r = jax.nn.sigmoid(gi_r + gh_r)
        z = jax.nn.sigmoid(gi_z + gh_z)
        n = jnp.tanh(gi_n + r * gh_n)
        return (1.0 - z) * n + z * h

    hf = jnp.zeros((Rb, Hh), f32)
    hb = jnp.zeros((Rb, Hh), f32)
    sel_f = jnp.zeros((Rb, Hh), f32)
    sel_b = jnp.zeros((Rb, Hh), f32)

    # Both directions advance inside the same unrolled step -> serialized chain
    # length N (not 2N).  N is small here; for large N switch this to
    # lax.fori_loop(..., unroll=k) to bound vreg live ranges.
    for s in range(N):
        tf, tb = s, N - 1 - s
        hf = gru_step(hf, Gf, bih_f, whh_f, bhh_f, tf)
        hb = gru_step(hb, Gb, bih_b, whh_b, bhh_b, tb)
        sel_f = jnp.where(sel[tf], hf, sel_f)     # row (c, i) keeps h_f at t == i
        sel_b = jnp.where(sel[tb], hb, sel_b)     # row (c, i) keeps h_b at t == i

    # ---- fc3 + sigmoid (gate-split w3 avoids a lane-concat of sel_f/sel_b) ---
    logits = (jnp.dot(sel_f, w3f_ref[...], preferred_element_type=f32)
              + jnp.dot(sel_b, w3b_ref[...], preferred_element_type=f32)
              + b3_ref[...])
    out_ref[...] = jax.nn.sigmoid(logits).reshape(TB, N, 1)


def _prepare_weights(params):
    """Host/XLA-side (free) preprocessing: fuse fc1 into the GRU input
    projection and pre-split the r/z/n gates, per direction."""
    w1, b1 = params["w1"], params["b1"]
    Hh = params["whh_f"].shape[0]

    def split3(w):
        return [w[..., g * Hh:(g + 1) * Hh] for g in range(3)]

    def pack(d):
        wih_g = split3(params[f"wih_{d}"])                   # 3 x (H, Hh)
        win = jnp.stack([w1 @ s for s in wih_g])             # (3, D, Hh) fc1 fused
        cin = jnp.stack([b1 @ s for s in wih_g])             # (3, 1, Hh) masked bias
        bih = jnp.stack(split3(params[f"bih_{d}"]))          # (3, 1, Hh)
        whh = jnp.stack(split3(params[f"whh_{d}"]))          # (3, Hh, Hh)
        bhh = jnp.stack(split3(params[f"bhh_{d}"]))          # (3, 1, Hh)
        return win, cin, bih, whh, bhh

    w3 = params["w3"]
    return pack("f") + pack("b") + (w3[:Hh], w3[Hh:], params["b3"])


def att_forward(x, mask, params, *, block_b=1):
    B, N, D = x.shape
    assert B % block_b == 0, "batch must be divisible by the batch tile"
    x_flat = x.reshape(B * N, D)                       # row b*N + t
    mask_flat = mask.reshape(B * N, N).astype(x.dtype)  # row b*N + i
    weights = _prepare_weights(params)
    Rb = block_b * N

    def full_spec(a):
        return pl.BlockSpec(a.shape, lambda i, n=a.ndim: (0,) * n)

    in_specs = ([pl.BlockSpec((Rb, D), lambda i: (i, 0)),
                 pl.BlockSpec((Rb, N), lambda i: (i, 0))]
                + [full_spec(w) for w in weights])
    out_specs = pl.BlockSpec((block_b, N, 1), lambda i: (i, 0, 0))

    return pl.pallas_call(
        att_kernel,
        grid=(B // block_b,),
        in_specs=in_specs,
        out_specs=out_specs,
        out_shape=jax.ShapeDtypeStruct((B, N, 1), jnp.float32),
        compiler_params=pltpu.CompilerParams(
            dimension_semantics=("parallel",)),
    )(x_flat, mask_flat, *weights)


def att_reference(x, mask, params):
    """Pure-JAX mirror of the PyTorch forward, for validation."""
    B, N, D = x.shape
    H = params["w1"].shape[1]
    Hh = params["whh_f"].shape[0]
    R = B * N
    h1 = x.reshape(R, D) @ params["w1"] + params["b1"]
    h1 = h1.reshape(B, N, H)
    seq = (h1[:, None, :, :] * mask[:, :, :, None]).reshape(R, N, H)

    def gru(wih, whh, bih, bhh, order):
        h = jnp.zeros((R, Hh), jnp.float32)
        outs = [None] * N
        for t in order:
            gi = seq[:, t, :] @ wih + bih
            gh = h @ whh + bhh
            r = jax.nn.sigmoid(gi[:, :Hh] + gh[:, :Hh])
            z = jax.nn.sigmoid(gi[:, Hh:2 * Hh] + gh[:, Hh:2 * Hh])
            n = jnp.tanh(gi[:, 2 * Hh:] + r * gh[:, 2 * Hh:])
            h = (1.0 - z) * n + z * h
            outs[t] = h
        return jnp.stack(outs, axis=1)  # (R, N, Hh)

    of = gru(params["wih_f"], params["whh_f"], params["bih_f"], params["bhh_f"],
             list(range(N)))
    ob = gru(params["wih_b"], params["whh_b"], params["bih_b"], params["bhh_b"],
             list(reversed(range(N))))
    rnn_out = jnp.concatenate([of, ob], axis=-1)          # (R, N, H)
    idx = jnp.arange(R) % N
    picked = rnn_out[jnp.arange(R), idx, :]               # bmm with one-hot rows
    y = jax.nn.sigmoid(picked @ params["w3"] + params["b3"])
    return y.reshape(B, N, 1)


def init_params(key, din, hidden_dim):
    assert hidden_dim % 2 == 0
    Hh = hidden_dim // 2
    ks = jax.random.split(key, 14)
    g = lambda k, s: 0.1 * jax.random.normal(k, s, jnp.float32)
    return {
        "w1": g(ks[0], (din, hidden_dim)),     "b1": g(ks[1], (1, hidden_dim)),
        "wih_f": g(ks[2], (hidden_dim, 3 * Hh)), "whh_f": g(ks[3], (Hh, 3 * Hh)),
        "bih_f": g(ks[4], (1, 3 * Hh)),          "bhh_f": g(ks[5], (1, 3 * Hh)),
        "wih_b": g(ks[6], (hidden_dim, 3 * Hh)), "whh_b": g(ks[7], (Hh, 3 * Hh)),
        "bih_b": g(ks[8], (1, 3 * Hh)),          "bhh_b": g(ks[9], (1, 3 * Hh)),
        "w3": g(ks[10], (hidden_dim, 1)),        "b3": g(ks[11], (1, 1)),
    }


if __name__ == "__main__":
    B, N, DIN, H = 2, 8, 16, 32   # batch, n_node, din, hidden_dim (even)

    key = jax.random.PRNGKey(0)
    kx, km, kp = jax.random.split(key, 3)
    x = jax.random.normal(kx, (B, N, DIN), jnp.float32)
    mask = jax.random.bernoulli(km, 0.7, (B, N, N)).astype(jnp.float32)
    params = init_params(kp, DIN, H)

    y = jax.block_until_ready(att_forward(x, mask, params, block_b=1))
    y_ref = jax.block_until_ready(att_reference(x, mask, params))

    assert y.shape == (B, N, 1)
    # fc1/GRU weight fusion reorders f32 contractions -> allow small slack.
    assert jnp.allclose(y, y_ref, atol=5e-5, rtol=5e-5), "mismatch vs reference"

    print("KERNEL_OK")
</pallas_src>

<mosaic_0001>
module attributes {stable_mosaic.version = 11 : i64} {
  func.func @att_kernel(%arg0: i32, %arg1: memref<8x16xf32, #tpu.memory_space<vmem>>, %arg2: memref<8x8xf32, #tpu.memory_space<vmem>>, %arg3: memref<3x16x16xf32, #tpu.memory_space<vmem>>, %arg4: memref<3x1x16xf32, #tpu.memory_space<vmem>>, %arg5: memref<3x1x16xf32, #tpu.memory_space<vmem>>, %arg6: memref<3x16x16xf32, #tpu.memory_space<vmem>>, %arg7: memref<3x1x16xf32, #tpu.memory_space<vmem>>, %arg8: memref<3x16x16xf32, #tpu.memory_space<vmem>>, %arg9: memref<3x1x16xf32, #tpu.memory_space<vmem>>, %arg10: memref<3x1x16xf32, #tpu.memory_space<vmem>>, %arg11: memref<3x16x16xf32, #tpu.memory_space<vmem>>, %arg12: memref<3x1x16xf32, #tpu.memory_space<vmem>>, %arg13: memref<16x1xf32, #tpu.memory_space<vmem>>, %arg14: memref<16x1xf32, #tpu.memory_space<vmem>>, %arg15: memref<1x1xf32, #tpu.memory_space<vmem>>, %arg16: memref<1x8x1xf32, #tpu.memory_space<vmem>>) attributes {dimension_semantics = [#tpu.dimension_semantics<parallel>], iteration_bounds = array<i64: 2>, scalar_prefetch = 0 : i64, scratch_operands = 0 : i64, tpu.core_type = #tpu.core_type<tc>, window_params = [{transform_indices = @transform_0, window_bounds = array<i64: 8, 16>}, {transform_indices = @transform_1, window_bounds = array<i64: 8, 8>}, {pipeline_mode = #tpu.pipeline_mode<synchronous>, transform_indices = @transform_2, window_bounds = array<i64: 3, 16, 16>}, {pipeline_mode = #tpu.pipeline_mode<synchronous>, transform_indices = @transform_3, window_bounds = array<i64: 3, 1, 16>}, {pipeline_mode = #tpu.pipeline_mode<synchronous>, transform_indices = @transform_4, window_bounds = array<i64: 3, 1, 16>}, {pipeline_mode = #tpu.pipeline_mode<synchronous>, transform_indices = @transform_5, window_bounds = array<i64: 3, 16, 16>}, {pipeline_mode = #tpu.pipeline_mode<synchronous>, transform_indices = @transform_6, window_bounds = array<i64: 3, 1, 16>}, {pipeline_mode = #tpu.pipeline_mode<synchronous>, transform_indices = @transform_7, window_bounds = array<i64: 3, 16, 16>}, {pipeline_mode = #tpu.pipeline_mode<synchronous>, transform_indices = @transform_8, window_bounds = array<i64: 3, 1, 16>}, {pipeline_mode = #tpu.pipeline_mode<synchronous>, transform_indices = @transform_9, window_bounds = array<i64: 3, 1, 16>}, {pipeline_mode = #tpu.pipeline_mode<synchronous>, transform_indices = @transform_10, window_bounds = array<i64: 3, 16, 16>}, {pipeline_mode = #tpu.pipeline_mode<synchronous>, transform_indices = @transform_11, window_bounds = array<i64: 3, 1, 16>}, {pipeline_mode = #tpu.pipeline_mode<synchronous>, transform_indices = @transform_12, window_bounds = array<i64: 16, 1>}, {pipeline_mode = #tpu.pipeline_mode<synchronous>, transform_indices = @transform_13, window_bounds = array<i64: 16, 1>}, {pipeline_mode = #tpu.pipeline_mode<synchronous>, transform_indices = @transform_14, window_bounds = array<i64: 1, 1>}, {transform_indices = @transform_15, window_bounds = array<i64: 1, 8, 1>}]} {
    %c0 = arith.constant 0 : index
    %c0_0 = arith.constant 0 : index
    %0 = vector.load %arg1[%c0, %c0_0] : memref<8x16xf32, #tpu.memory_space<vmem>>, vector<8x16xf32>
    %c0_1 = arith.constant 0 : index
    %c0_2 = arith.constant 0 : index
    %1 = vector.load %arg2[%c0_1, %c0_2] : memref<8x8xf32, #tpu.memory_space<vmem>>, vector<8x8xf32>
    %c0_3 = arith.constant 0 : index
    %c0_4 = arith.constant 0 : index
    %c0_5 = arith.constant 0 : index
    %2 = vector.load %arg3[%c0_3, %c0_4, %c0_5] : memref<3x16x16xf32, #tpu.memory_space<vmem>>, vector<1x16x16xf32>
    %3 = vector.shape_cast %2 : vector<1x16x16xf32> to vector<16x16xf32>
    %cst = arith.constant dense<0.000000e+00> : vector<8x16xf32>
    %4 = tpu.matmul %0, %3, %cst {dimension_numbers = #tpu.dot_dimension_numbers<[1], [0], [0], [1], [0, 0, 1, 1], [], []>} : vector<8x16xf32>, vector<16x16xf32>, vector<8x16xf32> -> vector<8x16xf32>
    %c0_6 = arith.constant 0 : index
    %c0_7 = arith.constant 0 : index
    %c0_8 = arith.constant 0 : index
    %5 = vector.load %arg4[%c0_6, %c0_7, %c0_8] : memref<3x1x16xf32, #tpu.memory_space<vmem>>, vector<1x1x16xf32>
    %6 = vector.shape_cast %5 : vector<1x1x16xf32> to vector<1x16xf32>
    %7 = vector.broadcast %6 : vector<1x16xf32> to vector<8x16xf32>
    %8 = arith.addf %4, %7 : vector<8x16xf32>
    %9 = vector.shape_cast %8 : vector<8x16xf32> to vector<1x8x16xf32>
    %c1 = arith.constant 1 : index
    %c0_9 = arith.constant 0 : index
    %c0_10 = arith.constant 0 : index
    %10 = vector.load %arg3[%c1, %c0_9, %c0_10] : memref<3x16x16xf32, #tpu.memory_space<vmem>>, vector<1x16x16xf32>
    %11 = vector.shape_cast %10 : vector<1x16x16xf32> to vector<16x16xf32>
    %cst_11 = arith.constant dense<0.000000e+00> : vector<8x16xf32>
    %12 = tpu.matmul %0, %11, %cst_11 {dimension_numbers = #tpu.dot_dimension_numbers<[1], [0], [0], [1], [0, 0, 1, 1], [], []>} : vector<8x16xf32>, vector<16x16xf32>, vector<8x16xf32> -> vector<8x16xf32>
    %c1_12 = arith.constant 1 : index
    %c0_13 = arith.constant 0 : index
    %c0_14 = arith.constant 0 : index
    %13 = vector.load %arg4[%c1_12, %c0_13, %c0_14] : memref<3x1x16xf32, #tpu.memory_space<vmem>>, vector<1x1x16xf32>
    %14 = vector.shape_cast %13 : vector<1x1x16xf32> to vector<1x16xf32>
    %15 = vector.broadcast %14 : vector<1x16xf32> to vector<8x16xf32>
    %16 = arith.addf %12, %15 : vector<8x16xf32>
    %17 = vector.shape_cast %16 : vector<8x16xf32> to vector<1x8x16xf32>
    %c2 = arith.constant 2 : index
    %c0_15 = arith.constant 0 : index
    %c0_16 = arith.constant 0 : index
    %18 = vector.load %arg3[%c2, %c0_15, %c0_16] : memref<3x16x16xf32, #tpu.memory_space<vmem>>, vector<1x16x16xf32>
    %19 = vector.shape_cast %18 : vector<1x16x16xf32> to vector<16x16xf32>
    %cst_17 = arith.constant dense<0.000000e+00> : vector<8x16xf32>
    %20 = tpu.matmul %0, %19, %cst_17 {dimension_numbers = #tpu.dot_dimension_numbers<[1], [0], [0], [1], [0, 0, 1, 1], [], []>} : vector<8x16xf32>, vector<16x16xf32>, vector<8x16xf32> -> vector<8x16xf32>
    %c2_18 = arith.constant 2 : index
    %c0_19 = arith.constant 0 : index
    %c0_20 = arith.constant 0 : index
    %21 = vector.load %arg4[%c2_18, %c0_19, %c0_20] : memref<3x1x16xf32, #tpu.memory_space<vmem>>, vector<1x1x16xf32>
    %22 = vector.shape_cast %21 : vector<1x1x16xf32> to vector<1x16xf32>
    %23 = vector.broadcast %22 : vector<1x16xf32> to vector<8x16xf32>
    %24 = arith.addf %20, %23 : vector<8x16xf32>
    %25 = vector.shape_cast %24 : vector<8x16xf32> to vector<1x8x16xf32>
    %c0_21 = arith.constant 0 : index
    %c0_22 = arith.constant 0 : index
    %c0_23 = arith.constant 0 : index
    %26 = vector.load %arg8[%c0_21, %c0_22, %c0_23] : memref<3x16x16xf32, #tpu.memory_space<vmem>>, vector<1x16x16xf32>
    %27 = vector.shape_cast %26 : vector<1x16x16xf32> to vector<16x16xf32>
    %cst_24 = arith.constant dense<0.000000e+00> : vector<8x16xf32>
    %28 = tpu.matmul %0, %27, %cst_24 {dimension_numbers = #tpu.dot_dimension_numbers<[1], [0], [0], [1], [0, 0, 1, 1], [], []>} : vector<8x16xf32>, vector<16x16xf32>, vector<8x16xf32> -> vector<8x16xf32>
    %c0_25 = arith.constant 0 : index
    %c0_26 = arith.constant 0 : index
    %c0_27 = arith.constant 0 : index
    %29 = vector.load %arg9[%c0_25, %c0_26, %c0_27] : memref<3x1x16xf32, #tpu.memory_space<vmem>>, vector<1x1x16xf32>
    %30 = vector.shape_cast %29 : vector<1x1x16xf32> to vector<1x16xf32>
    %31 = vector.broadcast %30 : vector<1x16xf32> to vector<8x16xf32>
    %32 = arith.addf %28, %31 : vector<8x16xf32>
    %33 = vector.shape_cast %32 : vector<8x16xf32> to vector<1x8x16xf32>
    %c1_28 = arith.constant 1 : index
    %c0_29 = arith.constant 0 : index
    %c0_30 = arith.constant 0 : index
    %34 = vector.load %arg8[%c1_28, %c0_29, %c0_30] : memref<3x16x16xf32, #tpu.memory_space<vmem>>, vector<1x16x16xf32>
    %35 = vector.shape_cast %34 : vector<1x16x16xf32> to vector<16x16xf32>
    %cst_31 = arith.constant dense<0.000000e+00> : vector<8x16xf32>
    %36 = tpu.matmul %0, %35, %cst_31 {dimension_numbers = #tpu.dot_dimension_numbers<[1], [0], [0], [1], [0, 0, 1, 1], [], []>} : vector<8x16xf32>, vector<16x16xf32>, vector<8x16xf32> -> vector<8x16xf32>
    %c1_32 = arith.constant 1 : index
    %c0_33 = arith.constant 0 : index
    %c0_34 = arith.constant 0 : index
    %37 = vector.load %arg9[%c1_32, %c0_33, %c0_34] : memref<3x1x16xf32, #tpu.memory_space<vmem>>, vector<1x1x16xf32>
    %38 = vector.shape_cast %37 : vector<1x1x16xf32> to vector<1x16xf32>
    %39 = vector.broadcast %38 : vector<1x16xf32> to vector<8x16xf32>
    %40 = arith.addf %36, %39 : vector<8x16xf32>
    %41 = vector.shape_cast %40 : vector<8x16xf32> to vector<1x8x16xf32>
    %c2_35 = arith.constant 2 : index
    %c0_36 = arith.constant 0 : index
    %c0_37 = arith.constant 0 : index
    %42 = vector.load %arg8[%c2_35, %c0_36, %c0_37] : memref<3x16x16xf32, #tpu.memory_space<vmem>>, vector<1x16x16xf32>
    %43 = vector.shape_cast %42 : vector<1x16x16xf32> to vector<16x16xf32>
    %cst_38 = arith.constant dense<0.000000e+00> : vector<8x16xf32>
    %44 = tpu.matmul %0, %43, %cst_38 {dimension_numbers = #tpu.dot_dimension_numbers<[1], [0], [0], [1], [0, 0, 1, 1], [], []>} : vector<8x16xf32>, vector<16x16xf32>, vector<8x16xf32> -> vector<8x16xf32>
    %c2_39 = arith.constant 2 : index
    %c0_40 = arith.constant 0 : index
    %c0_41 = arith.constant 0 : index
    %45 = vector.load %arg9[%c2_39, %c0_40, %c0_41] : memref<3x1x16xf32, #tpu.memory_space<vmem>>, vector<1x1x16xf32>
    %46 = vector.shape_cast %45 : vector<1x1x16xf32> to vector<1x16xf32>
    %47 = vector.broadcast %46 : vector<1x16xf32> to vector<8x16xf32>
    %48 = arith.addf %44, %47 : vector<8x16xf32>
    %49 = vector.shape_cast %48 : vector<8x16xf32> to vector<1x8x16xf32>
    %c0_42 = arith.constant 0 : index
    %c0_43 = arith.constant 0 : index
    %c0_44 = arith.constant 0 : index
    %50 = vector.load %arg6[%c0_42, %c0_43, %c0_44] : memref<3x16x16xf32, #tpu.memory_space<vmem>>, vector<1x16x16xf32>
    %51 = vector.shape_cast %50 : vector<1x16x16xf32> to vector<16x16xf32>
    %c1_45 = arith.constant 1 : index
    %c0_46 = arith.constant 0 : index
    %c0_47 = arith.constant 0 : index
    %52 = vector.load %arg6[%c1_45, %c0_46, %c0_47] : memref<3x16x16xf32, #tpu.memory_space<vmem>>, vector<1x16x16xf32>
    %53 = vector.shape_cast %52 : vector<1x16x16xf32> to vector<16x16xf32>
    %c2_48 = arith.constant 2 : index
    %c0_49 = arith.constant 0 : index
    %c0_50 = arith.constant 0 : index
    %54 = vector.load %arg6[%c2_48, %c0_49, %c0_50] : memref<3x16x16xf32, #tpu.memory_space<vmem>>, vector<1x16x16xf32>
    %55 = vector.shape_cast %54 : vector<1x16x16xf32> to vector<16x16xf32>
    %c0_51 = arith.constant 0 : index
    %c0_52 = arith.constant 0 : index
    %c0_53 = arith.constant 0 : index
    %56 = vector.load %arg11[%c0_51, %c0_52, %c0_53] : memref<3x16x16xf32, #tpu.memory_space<vmem>>, vector<1x16x16xf32>
    %57 = vector.shape_cast %56 : vector<1x16x16xf32> to vector<16x16xf32>
    %c1_54 = arith.constant 1 : index
    %c0_55 = arith.constant 0 : index
    %c0_56 = arith.constant 0 : index
    %58 = vector.load %arg11[%c1_54, %c0_55, %c0_56] : memref<3x16x16xf32, #tpu.memory_space<vmem>>, vector<1x16x16xf32>
    %59 = vector.shape_cast %58 : vector<1x16x16xf32> to vector<16x16xf32>
    %c2_57 = arith.constant 2 : index
    %c0_58 = arith.constant 0 : index
    %c0_59 = arith.constant 0 : index
    %60 = vector.load %arg11[%c2_57, %c0_58, %c0_59] : memref<3x16x16xf32, #tpu.memory_space<vmem>>, vector<1x16x16xf32>
    %61 = vector.shape_cast %60 : vector<1x16x16xf32> to vector<16x16xf32>
    %c0_60 = arith.constant 0 : index
    %c0_61 = arith.constant 0 : index
    %c0_62 = arith.constant 0 : index
    %62 = vector.load %arg7[%c0_60, %c0_61, %c0_62] : memref<3x1x16xf32, #tpu.memory_space<vmem>>, vector<1x1x16xf32>
    %63 = vector.shape_cast %62 : vector<1x1x16xf32> to vector<1x16xf32>
    %c1_63 = arith.constant 1 : index
    %c0_64 = arith.constant 0 : index
    %c0_65 = arith.constant 0 : index
    %64 = vector.load %arg7[%c1_63, %c0_64, %c0_65] : memref<3x1x16xf32, #tpu.memory_space<vmem>>, vector<1x1x16xf32>
    %65 = vector.shape_cast %64 : vector<1x1x16xf32> to vector<1x16xf32>
    %c2_66 = arith.constant 2 : index
    %c0_67 = arith.constant 0 : index
    %c0_68 = arith.constant 0 : index
    %66 = vector.load %arg7[%c2_66, %c0_67, %c0_68] : memref<3x1x16xf32, #tpu.memory_space<vmem>>, vector<1x1x16xf32>
    %67 = vector.shape_cast %66 : vector<1x1x16xf32> to vector<1x16xf32>
    %c0_69 = arith.constant 0 : index
    %c0_70 = arith.constant 0 : index
    %c0_71 = arith.constant 0 : index
    %68 = vector.load %arg12[%c0_69, %c0_70, %c0_71] : memref<3x1x16xf32, #tpu.memory_space<vmem>>, vector<1x1x16xf32>
    %69 = vector.shape_cast %68 : vector<1x1x16xf32> to vector<1x16xf32>
    %c1_72 = arith.constant 1 : index
    %c0_73 = arith.constant 0 : index
    %c0_74 = arith.constant 0 : index
    %70 = vector.load %arg12[%c1_72, %c0_73, %c0_74] : memref<3x1x16xf32, #tpu.memory_space<vmem>>, vector<1x1x16xf32>
    %71 = vector.shape_cast %70 : vector<1x1x16xf32> to vector<1x16xf32>
    %c2_75 = arith.constant 2 : index
    %c0_76 = arith.constant 0 : index
    %c0_77 = arith.constant 0 : index
    %72 = vector.load %arg12[%c2_75, %c0_76, %c0_77] : memref<3x1x16xf32, #tpu.memory_space<vmem>>, vector<1x1x16xf32>
    %73 = vector.shape_cast %72 : vector<1x1x16xf32> to vector<1x16xf32>
    %c0_78 = arith.constant 0 : index
    %c0_79 = arith.constant 0 : index
    %c0_80 = arith.constant 0 : index
    %74 = vector.load %arg5[%c0_78, %c0_79, %c0_80] : memref<3x1x16xf32, #tpu.memory_space<vmem>>, vector<1x1x16xf32>
    %75 = vector.shape_cast %74 : vector<1x1x16xf32> to vector<1x16xf32>
    %c1_81 = arith.constant 1 : index
    %c0_82 = arith.constant 0 : index
    %c0_83 = arith.constant 0 : index
    %76 = vector.load %arg5[%c1_81, %c0_82, %c0_83] : memref<3x1x16xf32, #tpu.memory_space<vmem>>, vector<1x1x16xf32>
    %77 = vector.shape_cast %76 : vector<1x1x16xf32> to vector<1x16xf32>
    %c2_84 = arith.constant 2 : index
    %c0_85 = arith.constant 0 : index
    %c0_86 = arith.constant 0 : index
    %78 = vector.load %arg5[%c2_84, %c0_85, %c0_86] : memref<3x1x16xf32, #tpu.memory_space<vmem>>, vector<1x1x16xf32>
    %79 = vector.shape_cast %78 : vector<1x1x16xf32> to vector<1x16xf32>
    %c0_87 = arith.constant 0 : index
    %c0_88 = arith.constant 0 : index
    %c0_89 = arith.constant 0 : index
    %80 = vector.load %arg10[%c0_87, %c0_88, %c0_89] : memref<3x1x16xf32, #tpu.memory_space<vmem>>, vector<1x1x16xf32>
    %81 = vector.shape_cast %80 : vector<1x1x16xf32> to vector<1x16xf32>
    %c1_90 = arith.constant 1 : index
    %c0_91 = arith.constant 0 : index
    %c0_92 = arith.constant 0 : index
    %82 = vector.load %arg10[%c1_90, %c0_91, %c0_92] : memref<3x1x16xf32, #tpu.memory_space<vmem>>, vector<1x1x16xf32>
    %83 = vector.shape_cast %82 : vector<1x1x16xf32> to vector<1x16xf32>
    %c2_93 = arith.constant 2 : index
    %c0_94 = arith.constant 0 : index
    %c0_95 = arith.constant 0 : index
    %84 = vector.load %arg10[%c2_93, %c0_94, %c0_95] : memref<3x1x16xf32, #tpu.memory_space<vmem>>, vector<1x1x16xf32>
    %85 = vector.shape_cast %84 : vector<1x1x16xf32> to vector<1x16xf32>
    %86 = tpu.iota {dimensions = array<i32: 0>} : vector<8x1xi32>
    %c8_i32 = arith.constant 8 : i32
    %c0_i32 = arith.constant 0 : i32
    %87 = arith.cmpi eq, %c8_i32, %c0_i32 : i32
    %c1_i32 = arith.constant 1 : i32
    %88 = arith.select %87, %c1_i32, %c8_i32 : i32
    %89 = vector.broadcast %88 : i32 to vector<8x1xi32>
    %90 = arith.remsi %86, %89 : vector<8x1xi32>
    %c0_i32_96 = arith.constant 0 : i32
    %91 = vector.broadcast %c0_i32_96 : i32 to vector<8x1xi32>
    %92 = arith.cmpi ne, %90, %91 : vector<8x1xi32>
    %c0_i32_97 = arith.constant 0 : i32
    %93 = vector.broadcast %c0_i32_97 : i32 to vector<8x1xi32>
    %94 = arith.cmpi slt, %90, %93 : vector<8x1xi32>
    %c0_i32_98 = arith.constant 0 : i32
    %95 = arith.cmpi slt, %88, %c0_i32_98 : i32
    %96 = vector.broadcast %95 : i1 to vector<8x1xi1>
    %97 = vector.broadcast %96 : vector<8x1xi1> to vector<8x1xi1>
    %98 = arith.xori %94, %97 : vector<8x1xi1>
    %99 = arith.andi %98, %92 : vector<8x1xi1>
    %100 = vector.broadcast %88 : i32 to vector<8x1xi32>
    %101 = arith.addi %90, %100 : vector<8x1xi32>
    %102 = arith.select %99, %101, %90 : vector<8x1xi1>, vector<8x1xi32>
    %c0_i32_99 = arith.constant 0 : i32
    %103 = vector.broadcast %c0_i32_99 : i32 to vector<8x1xi32>
    %104 = arith.cmpi eq, %102, %103 : vector<8x1xi32>
    %c1_i32_100 = arith.constant 1 : i32
    %105 = vector.broadcast %c1_i32_100 : i32 to vector<8x1xi32>
    %106 = arith.cmpi eq, %102, %105 : vector<8x1xi32>
    %c2_i32 = arith.constant 2 : i32
    %107 = vector.broadcast %c2_i32 : i32 to vector<8x1xi32>
    %108 = arith.cmpi eq, %102, %107 : vector<8x1xi32>
    %c3_i32 = arith.constant 3 : i32
    %109 = vector.broadcast %c3_i32 : i32 to vector<8x1xi32>
    %110 = arith.cmpi eq, %102, %109 : vector<8x1xi32>
    %c4_i32 = arith.constant 4 : i32
    %111 = vector.broadcast %c4_i32 : i32 to vector<8x1xi32>
    %112 = arith.cmpi eq, %102, %111 : vector<8x1xi32>
    %c5_i32 = arith.constant 5 : i32
    %113 = vector.broadcast %c5_i32 : i32 to vector<8x1xi32>
    %114 = arith.cmpi eq, %102, %113 : vector<8x1xi32>
    %c6_i32 = arith.constant 6 : i32
    %115 = vector.broadcast %c6_i32 : i32 to vector<8x1xi32>
    %116 = arith.cmpi eq, %102, %115 : vector<8x1xi32>
    %c7_i32 = arith.constant 7 : i32
    %117 = vector.broadcast %c7_i32 : i32 to vector<8x1xi32>
    %118 = arith.cmpi eq, %102, %117 : vector<8x1xi32>
    %cst_101 = arith.constant 0.000000e+00 : f32
    %119 = vector.broadcast %cst_101 : f32 to vector<8x16xf32>
    %cst_102 = arith.constant 0.000000e+00 : f32
    %120 = vector.broadcast %cst_102 : f32 to vector<8x16xf32>
    %cst_103 = arith.constant 0.000000e+00 : f32
    %121 = vector.broadcast %cst_103 : f32 to vector<8x16xf32>
    %cst_104 = arith.constant 0.000000e+00 : f32
    %122 = vector.broadcast %cst_104 : f32 to vector<8x16xf32>
    %123 = vector.extract_strided_slice %1 {offsets = [0, 0], sizes = [8, 1], strides = [1, 1]} : vector<8x8xf32> to vector<8x1xf32>
    %124 = vector.extract_strided_slice %9 {offsets = [0, 0, 0], sizes = [1, 1, 16], strides = [1, 1, 1]} : vector<1x8x16xf32> to vector<1x1x16xf32>
    %125 = vector.shape_cast %124 : vector<1x1x16xf32> to vector<1x1x16xf32>
    %126 = vector.broadcast %125 : vector<1x1x16xf32> to vector<1x8x16xf32>
    %127 = vector.shape_cast %126 : vector<1x8x16xf32> to vector<8x16xf32>
    %128 = vector.broadcast %123 : vector<8x1xf32> to vector<8x16xf32>
    %129 = arith.mulf %128, %127 : vector<8x16xf32>
    %130 = vector.broadcast %75 : vector<1x16xf32> to vector<8x16xf32>
    %131 = arith.addf %129, %130 : vector<8x16xf32>
    %132 = vector.extract_strided_slice %17 {offsets = [0, 0, 0], sizes = [1, 1, 16], strides = [1, 1, 1]} : vector<1x8x16xf32> to vector<1x1x16xf32>
    %133 = vector.shape_cast %132 : vector<1x1x16xf32> to vector<1x1x16xf32>
    %134 = vector.broadcast %133 : vector<1x1x16xf32> to vector<1x8x16xf32>
    %135 = vector.shape_cast %134 : vector<1x8x16xf32> to vector<8x16xf32>
    %136 = vector.broadcast %123 : vector<8x1xf32> to vector<8x16xf32>
    %137 = arith.mulf %136, %135 : vector<8x16xf32>
    %138 = vector.broadcast %77 : vector<1x16xf32> to vector<8x16xf32>
    %139 = arith.addf %137, %138 : vector<8x16xf32>
    %140 = vector.extract_strided_slice %25 {offsets = [0, 0, 0], sizes = [1, 1, 16], strides = [1, 1, 1]} : vector<1x8x16xf32> to vector<1x1x16xf32>
    %141 = vector.shape_cast %140 : vector<1x1x16xf32> to vector<1x1x16xf32>
    %142 = vector.broadcast %141 : vector<1x1x16xf32> to vector<1x8x16xf32>
    %143 = vector.shape_cast %142 : vector<1x8x16xf32> to vector<8x16xf32>
    %144 = vector.broadcast %123 : vector<8x1xf32> to vector<8x16xf32>
    %145 = arith.mulf %144, %143 : vector<8x16xf32>
    %146 = vector.broadcast %79 : vector<1x16xf32> to vector<8x16xf32>
    %147 = arith.addf %145, %146 : vector<8x16xf32>
    %cst_105 = arith.constant dense<0.000000e+00> : vector<8x16xf32>
    %148 = tpu.matmul %119, %51, %cst_105 {dimension_numbers = #tpu.dot_dimension_numbers<[1], [0], [0], [1], [0, 0, 1, 1], [], []>} : vector<8x16xf32>, vector<16x16xf32>, vector<8x16xf32> -> vector<8x16xf32>
    %149 = vector.broadcast %63 : vector<1x16xf32> to vector<8x16xf32>
    %150 = arith.addf %148, %149 : vector<8x16xf32>
    %cst_106 = arith.constant dense<0.000000e+00> : vector<8x16xf32>
    %151 = tpu.matmul %119, %53, %cst_106 {dimension_numbers = #tpu.dot_dimension_numbers<[1], [0], [0], [1], [0, 0, 1, 1], [], []>} : vector<8x16xf32>, vector<16x16xf32>, vector<8x16xf32> -> vector<8x16xf32>
    %152 = vector.broadcast %65 : vector<1x16xf32> to vector<8x16xf32>
    %153 = arith.addf %151, %152 : vector<8x16xf32>
    %cst_107 = arith.constant dense<0.000000e+00> : vector<8x16xf32>
    %154 = tpu.matmul %119, %55, %cst_107 {dimension_numbers = #tpu.dot_dimension_numbers<[1], [0], [0], [1], [0, 0, 1, 1], [], []>} : vector<8x16xf32>, vector<16x16xf32>, vector<8x16xf32> -> vector<8x16xf32>
    %155 = vector.broadcast %67 : vector<1x16xf32> to vector<8x16xf32>
    %156 = arith.addf %154, %155 : vector<8x16xf32>
    %157 = arith.addf %131, %150 : vector<8x16xf32>
    %158 = arith.negf %157 : vector<8x16xf32>
    %159 = math.exp %158 : vector<8x16xf32>
    %cst_108 = arith.constant 1.000000e+00 : f32
    %160 = vector.broadcast %cst_108 : f32 to vector<8x16xf32>
    %161 = arith.addf %160, %159 : vector<8x16xf32>
    %162 = arith.divf %160, %161 : vector<8x16xf32>
    %163 = arith.addf %139, %153 : vector<8x16xf32>
    %164 = arith.negf %163 : vector<8x16xf32>
    %165 = math.exp %164 : vector<8x16xf32>
    %cst_109 = arith.constant 1.000000e+00 : f32
    %166 = vector.broadcast %cst_109 : f32 to vector<8x16xf32>
    %167 = arith.addf %166, %165 : vector<8x16xf32>
    %168 = arith.divf %166, %167 : vector<8x16xf32>
    %169 = arith.mulf %162, %156 : vector<8x16xf32>
    %170 = arith.addf %147, %169 : vector<8x16xf32>
    %171 = math.tanh %170 : vector<8x16xf32>
    %cst_110 = arith.constant 1.000000e+00 : f32
    %172 = vector.broadcast %cst_110 : f32 to vector<8x16xf32>
    %173 = arith.subf %172, %168 : vector<8x16xf32>
    %174 = arith.mulf %173, %171 : vector<8x16xf32>
    %175 = arith.mulf %168, %119 : vector<8x16xf32>
    %176 = arith.addf %174, %175 : vector<8x16xf32>
    %177 = vector.extract_strided_slice %1 {offsets = [0, 7], sizes = [8, 1], strides = [1, 1]} : vector<8x8xf32> to vector<8x1xf32>
    %178 = vector.extract_strided_slice %33 {offsets = [0, 7, 0], sizes = [1, 1, 16], strides = [1, 1, 1]} : vector<1x8x16xf32> to vector<1x1x16xf32>
    %179 = vector.shape_cast %178 : vector<1x1x16xf32> to vector<1x1x16xf32>
    %180 = vector.broadcast %179 : vector<1x1x16xf32> to vector<1x8x16xf32>
    %181 = vector.shape_cast %180 : vector<1x8x16xf32> to vector<8x16xf32>
    %182 = vector.broadcast %177 : vector<8x1xf32> to vector<8x16xf32>
    %183 = arith.mulf %182, %181 : vector<8x16xf32>
    %184 = vector.broadcast %81 : vector<1x16xf32> to vector<8x16xf32>
    %185 = arith.addf %183, %184 : vector<8x16xf32>
    %186 = vector.extract_strided_slice %41 {offsets = [0, 7, 0], sizes = [1, 1, 16], strides = [1, 1, 1]} : vector<1x8x16xf32> to vector<1x1x16xf32>
    %187 = vector.shape_cast %186 : vector<1x1x16xf32> to vector<1x1x16xf32>
    %188 = vector.broadcast %187 : vector<1x1x16xf32> to vector<1x8x16xf32>
    %189 = vector.shape_cast %188 : vector<1x8x16xf32> to vector<8x16xf32>
    %190 = vector.broadcast %177 : vector<8x1xf32> to vector<8x16xf32>
    %191 = arith.mulf %190, %189 : vector<8x16xf32>
    %192 = vector.broadcast %83 : vector<1x16xf32> to vector<8x16xf32>
    %193 = arith.addf %191, %192 : vector<8x16xf32>
    %194 = vector.extract_strided_slice %49 {offsets = [0, 7, 0], sizes = [1, 1, 16], strides = [1, 1, 1]} : vector<1x8x16xf32> to vector<1x1x16xf32>
    %195 = vector.shape_cast %194 : vector<1x1x16xf32> to vector<1x1x16xf32>
    %196 = vector.broadcast %195 : vector<1x1x16xf32> to vector<1x8x16xf32>
    %197 = vector.shape_cast %196 : vector<1x8x16xf32> to vector<8x16xf32>
    %198 = vector.broadcast %177 : vector<8x1xf32> to vector<8x16xf32>
    %199 = arith.mulf %198, %197 : vector<8x16xf32>
    %200 = vector.broadcast %85 : vector<1x16xf32> to vector<8x16xf32>
    %201 = arith.addf %199, %200 : vector<8x16xf32>
    %cst_111 = arith.constant dense<0.000000e+00> : vector<8x16xf32>
    %202 = tpu.matmul %120, %57, %cst_111 {dimension_numbers = #tpu.dot_dimension_numbers<[1], [0], [0], [1], [0, 0, 1, 1], [], []>} : vector<8x16xf32>, vector<16x16xf32>, vector<8x16xf32> -> vector<8x16xf32>
    %203 = vector.broadcast %69 : vector<1x16xf32> to vector<8x16xf32>
    %204 = arith.addf %202, %203 : vector<8x16xf32>
    %cst_112 = arith.constant dense<0.000000e+00> : vector<8x16xf32>
    %205 = tpu.matmul %120, %59, %cst_112 {dimension_numbers = #tpu.dot_dimension_numbers<[1], [0], [0], [1], [0, 0, 1, 1], [], []>} : vector<8x16xf32>, vector<16x16xf32>, vector<8x16xf32> -> vector<8x16xf32>
    %206 = vector.broadcast %71 : vector<1x16xf32> to vector<8x16xf32>
    %207 = arith.addf %205, %206 : vector<8x16xf32>
    %cst_113 = arith.constant dense<0.000000e+00> : vector<8x16xf32>
    %208 = tpu.matmul %120, %61, %cst_113 {dimension_numbers = #tpu.dot_dimension_numbers<[1], [0], [0], [1], [0, 0, 1, 1], [], []>} : vector<8x16xf32>, vector<16x16xf32>, vector<8x16xf32> -> vector<8x16xf32>
    %209 = vector.broadcast %73 : vector<1x16xf32> to vector<8x16xf32>
    %210 = arith.addf %208, %209 : vector<8x16xf32>
    %211 = arith.addf %185, %204 : vector<8x16xf32>
    %212 = arith.negf %211 : vector<8x16xf32>
    %213 = math.exp %212 : vector<8x16xf32>
    %cst_114 = arith.constant 1.000000e+00 : f32
    %214 = vector.broadcast %cst_114 : f32 to vector<8x16xf32>
    %215 = arith.addf %214, %213 : vector<8x16xf32>
    %216 = arith.divf %214, %215 : vector<8x16xf32>
    %217 = arith.addf %193, %207 : vector<8x16xf32>
    %218 = arith.negf %217 : vector<8x16xf32>
    %219 = math.exp %218 : vector<8x16xf32>
    %cst_115 = arith.constant 1.000000e+00 : f32
    %220 = vector.broadcast %cst_115 : f32 to vector<8x16xf32>
    %221 = arith.addf %220, %219 : vector<8x16xf32>
    %222 = arith.divf %220, %221 : vector<8x16xf32>
    %223 = arith.mulf %216, %210 : vector<8x16xf32>
    %224 = arith.addf %201, %223 : vector<8x16xf32>
    %225 = math.tanh %224 : vector<8x16xf32>
    %cst_116 = arith.constant 1.000000e+00 : f32
    %226 = vector.broadcast %cst_116 : f32 to vector<8x16xf32>
    %227 = arith.subf %226, %222 : vector<8x16xf32>
    %228 = arith.mulf %227, %225 : vector<8x16xf32>
    %229 = arith.mulf %222, %120 : vector<8x16xf32>
    %230 = arith.addf %228, %229 : vector<8x16xf32>
    %231 = vector.shape_cast %104 : vector<8x1xi1> to vector<8x1xi1>
    %232 = vector.broadcast %231 : vector<8x1xi1> to vector<8x16xi1>
    %233 = arith.select %232, %176, %121 : vector<8x16xi1>, vector<8x16xf32>
    %234 = vector.shape_cast %118 : vector<8x1xi1> to vector<8x1xi1>
    %235 = vector.broadcast %234 : vector<8x1xi1> to vector<8x16xi1>
    %236 = arith.select %235, %230, %122 : vector<8x16xi1>, vector<8x16xf32>
    %237 = vector.extract_strided_slice %1 {offsets = [0, 1], sizes = [8, 1], strides = [1, 1]} : vector<8x8xf32> to vector<8x1xf32>
    %238 = vector.extract_strided_slice %9 {offsets = [0, 1, 0], sizes = [1, 1, 16], strides = [1, 1, 1]} : vector<1x8x16xf32> to vector<1x1x16xf32>
    %239 = vector.shape_cast %238 : vector<1x1x16xf32> to vector<1x1x16xf32>
    %240 = vector.broadcast %239 : vector<1x1x16xf32> to vector<1x8x16xf32>
    %241 = vector.shape_cast %240 : vector<1x8x16xf32> to vector<8x16xf32>
    %242 = vector.broadcast %237 : vector<8x1xf32> to vector<8x16xf32>
    %243 = arith.mulf %242, %241 : vector<8x16xf32>
    %244 = vector.broadcast %75 : vector<1x16xf32> to vector<8x16xf32>
    %245 = arith.addf %243, %244 : vector<8x16xf32>
    %246 = vector.extract_strided_slice %17 {offsets = [0, 1, 0], sizes = [1, 1, 16], strides = [1, 1, 1]} : vector<1x8x16xf32> to vector<1x1x16xf32>
    %247 = vector.shape_cast %246 : vector<1x1x16xf32> to vector<1x1x16xf32>
    %248 = vector.broadcast %247 : vector<1x1x16xf32> to vector<1x8x16xf32>
    %249 = vector.shape_cast %248 : vector<1x8x16xf32> to vector<8x16xf32>
    %250 = vector.broadcast %237 : vector<8x1xf32> to vector<8x16xf32>
    %251 = arith.mulf %250, %249 : vector<8x16xf32>
    %252 = vector.broadcast %77 : vector<1x16xf32> to vector<8x16xf32>
    %253 = arith.addf %251, %252 : vector<8x16xf32>
    %254 = vector.extract_strided_slice %25 {offsets = [0, 1, 0], sizes = [1, 1, 16], strides = [1, 1, 1]} : vector<1x8x16xf32> to vector<1x1x16xf32>
    %255 = vector.shape_cast %254 : vector<1x1x16xf32> to vector<1x1x16xf32>
    %256 = vector.broadcast %255 : vector<1x1x16xf32> to vector<1x8x16xf32>
    %257 = vector.shape_cast %256 : vector<1x8x16xf32> to vector<8x16xf32>
    %258 = vector.broadcast %237 : vector<8x1xf32> to vector<8x16xf32>
    %259 = arith.mulf %258, %257 : vector<8x16xf32>
    %260 = vector.broadcast %79 : vector<1x16xf32> to vector<8x16xf32>
    %261 = arith.addf %259, %260 : vector<8x16xf32>
    %cst_117 = arith.constant dense<0.000000e+00> : vector<8x16xf32>
    %262 = tpu.matmul %176, %51, %cst_117 {dimension_numbers = #tpu.dot_dimension_numbers<[1], [0], [0], [1], [0, 0, 1, 1], [], []>} : vector<8x16xf32>, vector<16x16xf32>, vector<8x16xf32> -> vector<8x16xf32>
    %263 = vector.broadcast %63 : vector<1x16xf32> to vector<8x16xf32>
    %264 = arith.addf %262, %263 : vector<8x16xf32>
    %cst_118 = arith.constant dense<0.000000e+00> : vector<8x16xf32>
    %265 = tpu.matmul %176, %53, %cst_118 {dimension_numbers = #tpu.dot_dimension_numbers<[1], [0], [0], [1], [0, 0, 1, 1], [], []>} : vector<8x16xf32>, vector<16x16xf32>, vector<8x16xf32> -> vector<8x16xf32>
    %266 = vector.broadcast %65 : vector<1x16xf32> to vector<8x16xf32>
    %267 = arith.addf %265, %266 : vector<8x16xf32>
    %cst_119 = arith.constant dense<0.000000e+00> : vector<8x16xf32>
    %268 = tpu.matmul %176, %55, %cst_119 {dimension_numbers = #tpu.dot_dimension_numbers<[1], [0], [0], [1], [0, 0, 1, 1], [], []>} : vector<8x16xf32>, vector<16x16xf32>, vector<8x16xf32> -> vector<8x16xf32>
    %269 = vector.broadcast %67 : vector<1x16xf32> to vector<8x16xf32>
    %270 = arith.addf %268, %269 : vector<8x16xf32>
    %271 = arith.addf %245, %264 : vector<8x16xf32>
    %272 = arith.negf %271 : vector<8x16xf32>
    %273 = math.exp %272 : vector<8x16xf32>
    %cst_120 = arith.constant 1.000000e+00 : f32
    %274 = vector.broadcast %cst_120 : f32 to vector<8x16xf32>
    %275 = arith.addf %274, %273 : vector<8x16xf32>
    %276 = arith.divf %274, %275 : vector<8x16xf32>
    %277 = arith.addf %253, %267 : vector<8x16xf32>
    %278 = arith.negf %277 : vector<8x16xf32>
    %279 = math.exp %278 : vector<8x16xf32>
    %cst_121 = arith.constant 1.000000e+00 : f32
    %280 = vector.broadcast %cst_121 : f32 to vector<8x16xf32>
    %281 = arith.addf %280, %279 : vector<8x16xf32>
    %282 = arith.divf %280, %281 : vector<8x16xf32>
    %283 = arith.mulf %276, %270 : vector<8x16xf32>
    %284 = arith.addf %261, %283 : vector<8x16xf32>
    %285 = math.tanh %284 : vector<8x16xf32>
    %cst_122 = arith.constant 1.000000e+00 : f32
    %286 = vector.broadcast %cst_122 : f32 to vector<8x16xf32>
    %287 = arith.subf %286, %282 : vector<8x16xf32>
    %288 = arith.mulf %287, %285 : vector<8x16xf32>
    %289 = arith.mulf %282, %176 : vector<8x16xf32>
    %290 = arith.addf %288, %289 : vector<8x16xf32>
    %291 = vector.extract_strided_slice %1 {offsets = [0, 6], sizes = [8, 1], strides = [1, 1]} : vector<8x8xf32> to vector<8x1xf32>
    %292 = vector.extract_strided_slice %33 {offsets = [0, 6, 0], sizes = [1, 1, 16], strides = [1, 1, 1]} : vector<1x8x16xf32> to vector<1x1x16xf32>
    %293 = vector.shape_cast %292 : vector<1x1x16xf32> to vector<1x1x16xf32>
    %294 = vector.broadcast %293 : vector<1x1x16xf32> to vector<1x8x16xf32>
    %295 = vector.shape_cast %294 : vector<1x8x16xf32> to vector<8x16xf32>
    %296 = vector.broadcast %291 : vector<8x1xf32> to vector<8x16xf32>
    %297 = arith.mulf %296, %295 : vector<8x16xf32>
    %298 = vector.broadcast %81 : vector<1x16xf32> to vector<8x16xf32>
    %299 = arith.addf %297, %298 : vector<8x16xf32>
    %300 = vector.extract_strided_slice %41 {offsets = [0, 6, 0], sizes = [1, 1, 16], strides = [1, 1, 1]} : vector<1x8x16xf32> to vector<1x1x16xf32>
    %301 = vector.shape_cast %300 : vector<1x1x16xf32> to vector<1x1x16xf32>
    %302 = vector.broadcast %301 : vector<1x1x16xf32> to vector<1x8x16xf32>
    %303 = vector.shape_cast %302 : vector<1x8x16xf32> to vector<8x16xf32>
    %304 = vector.broadcast %291 : vector<8x1xf32> to vector<8x16xf32>
    %305 = arith.mulf %304, %303 : vector<8x16xf32>
    %306 = vector.broadcast %83 : vector<1x16xf32> to vector<8x16xf32>
    %307 = arith.addf %305, %306 : vector<8x16xf32>
    %308 = vector.extract_strided_slice %49 {offsets = [0, 6, 0], sizes = [1, 1, 16], strides = [1, 1, 1]} : vector<1x8x16xf32> to vector<1x1x16xf32>
    %309 = vector.shape_cast %308 : vector<1x1x16xf32> to vector<1x1x16xf32>
    %310 = vector.broadcast %309 : vector<1x1x16xf32> to vector<1x8x16xf32>
    %311 = vector.shape_cast %310 : vector<1x8x16xf32> to vector<8x16xf32>
    %312 = vector.broadcast %291 : vector<8x1xf32> to vector<8x16xf32>
    %313 = arith.mulf %312, %311 : vector<8x16xf32>
    %314 = vector.broadcast %85 : vector<1x16xf32> to vector<8x16xf32>
    %315 = arith.addf %313, %314 : vector<8x16xf32>
    %cst_123 = arith.constant dense<0.000000e+00> : vector<8x16xf32>
    %316 = tpu.matmul %230, %57, %cst_123 {dimension_numbers = #tpu.dot_dimension_numbers<[1], [0], [0], [1], [0, 0, 1, 1], [], []>} : vector<8x16xf32>, vector<16x16xf32>, vector<8x16xf32> -> vector<8x16xf32>
    %317 = vector.broadcast %69 : vector<1x16xf32> to vector<8x16xf32>
    %318 = arith.addf %316, %317 : vector<8x16xf32>
    %cst_124 = arith.constant dense<0.000000e+00> : vector<8x16xf32>
    %319 = tpu.matmul %230, %59, %cst_124 {dimension_numbers = #tpu.dot_dimension_numbers<[1], [0], [0], [1], [0, 0, 1, 1], [], []>} : vector<8x16xf32>, vector<16x16xf32>, vector<8x16xf32> -> vector<8x16xf32>
    %320 = vector.broadcast %71 : vector<1x16xf32> to vector<8x16xf32>
    %321 = arith.addf %319, %320 : vector<8x16xf32>
    %cst_125 = arith.constant dense<0.000000e+00> : vector<8x16xf32>
    %322 = tpu.matmul %230, %61, %cst_125 {dimension_numbers = #tpu.dot_dimension_numbers<[1], [0], [0], [1], [0, 0, 1, 1], [], []>} : vector<8x16xf32>, vector<16x16xf32>, vector<8x16xf32> -> vector<8x16xf32>
    %323 = vector.broadcast %73 : vector<1x16xf32> to vector<8x16xf32>
    %324 = arith.addf %322, %323 : vector<8x16xf32>
    %325 = arith.addf %299, %318 : vector<8x16xf32>
    %326 = arith.negf %325 : vector<8x16xf32>
    %327 = math.exp %326 : vector<8x16xf32>
    %cst_126 = arith.constant 1.000000e+00 : f32
    %328 = vector.broadcast %cst_126 : f32 to vector<8x16xf32>
    %329 = arith.addf %328, %327 : vector<8x16xf32>
    %330 = arith.divf %328, %329 : vector<8x16xf32>
    %331 = arith.addf %307, %321 : vector<8x16xf32>
    %332 = arith.negf %331 : vector<8x16xf32>
    %333 = math.exp %332 : vector<8x16xf32>
    %cst_127 = arith.constant 1.000000e+00 : f32
    %334 = vector.broadcast %cst_127 : f32 to vector<8x16xf32>
    %335 = arith.addf %334, %333 : vector<8x16xf32>
    %336 = arith.divf %334, %335 : vector<8x16xf32>
    %337 = arith.mulf %330, %324 : vector<8x16xf32>
    %338 = arith.addf %315, %337 : vector<8x16xf32>
    %339 = math.tanh %338 : vector<8x16xf32>
    %cst_128 = arith.constant 1.000000e+00 : f32
    %340 = vector.broadcast %cst_128 : f32 to vector<8x16xf32>
    %341 = arith.subf %340, %336 : vector<8x16xf32>
    %342 = arith.mulf %341, %339 : vector<8x16xf32>
    %343 = arith.mulf %336, %230 : vector<8x16xf32>
    %344 = arith.addf %342, %343 : vector<8x16xf32>
    %345 = vector.shape_cast %106 : vector<8x1xi1> to vector<8x1xi1>
    %346 = vector.broadcast %345 : vector<8x1xi1> to vector<8x16xi1>
    %347 = arith.select %346, %290, %233 : vector<8x16xi1>, vector<8x16xf32>
    %348 = vector.shape_cast %116 : vector<8x1xi1> to vector<8x1xi1>
    %349 = vector.broadcast %348 : vector<8x1xi1> to vector<8x16xi1>
    %350 = arith.select %349, %344, %236 : vector<8x16xi1>, vector<8x16xf32>
    %351 = vector.extract_strided_slice %1 {offsets = [0, 2], sizes = [8, 1], strides = [1, 1]} : vector<8x8xf32> to vector<8x1xf32>
    %352 = vector.extract_strided_slice %9 {offsets = [0, 2, 0], sizes = [1, 1, 16], strides = [1, 1, 1]} : vector<1x8x16xf32> to vector<1x1x16xf32>
    %353 = vector.shape_cast %352 : vector<1x1x16xf32> to vector<1x1x16xf32>
    %354 = vector.broadcast %353 : vector<1x1x16xf32> to vector<1x8x16xf32>
    %355 = vector.shape_cast %354 : vector<1x8x16xf32> to vector<8x16xf32>
    %356 = vector.broadcast %351 : vector<8x1xf32> to vector<8x16xf32>
    %357 = arith.mulf %356, %355 : vector<8x16xf32>
    %358 = vector.broadcast %75 : vector<1x16xf32> to vector<8x16xf32>
    %359 = arith.addf %357, %358 : vector<8x16xf32>
    %360 = vector.extract_strided_slice %17 {offsets = [0, 2, 0], sizes = [1, 1, 16], strides = [1, 1, 1]} : vector<1x8x16xf32> to vector<1x1x16xf32>
    %361 = vector.shape_cast %360 : vector<1x1x16xf32> to vector<1x1x16xf32>
    %362 = vector.broadcast %361 : vector<1x1x16xf32> to vector<1x8x16xf32>
    %363 = vector.shape_cast %362 : vector<1x8x16xf32> to vector<8x16xf32>
    %364 = vector.broadcast %351 : vector<8x1xf32> to vector<8x16xf32>
    %365 = arith.mulf %364, %363 : vector<8x16xf32>
    %366 = vector.broadcast %77 : vector<1x16xf32> to vector<8x16xf32>
    %367 = arith.addf %365, %366 : vector<8x16xf32>
    %368 = vector.extract_strided_slice %25 {offsets = [0, 2, 0], sizes = [1, 1, 16], strides = [1, 1, 1]} : vector<1x8x16xf32> to vector<1x1x16xf32>
    %369 = vector.shape_cast %368 : vector<1x1x16xf32> to vector<1x1x16xf32>
    %370 = vector.broadcast %369 : vector<1x1x16xf32> to vector<1x8x16xf32>
    %371 = vector.shape_cast %370 : vector<1x8x16xf32> to vector<8x16xf32>
    %372 = vector.broadcast %351 : vector<8x1xf32> to vector<8x16xf32>
    %373 = arith.mulf %372, %371 : vector<8x16xf32>
    %374 = vector.broadcast %79 : vector<1x16xf32> to vector<8x16xf32>
    %375 = arith.addf %373, %374 : vector<8x16xf32>
    %cst_129 = arith.constant dense<0.000000e+00> : vector<8x16xf32>
    %376 = tpu.matmul %290, %51, %cst_129 {dimension_numbers = #tpu.dot_dimension_numbers<[1], [0], [0], [1], [0, 0, 1, 1], [], []>} : vector<8x16xf32>, vector<16x16xf32>, vector<8x16xf32> -> vector<8x16xf32>
    %377 = vector.broadcast %63 : vector<1x16xf32> to vector<8x16xf32>
    %378 = arith.addf %376, %377 : vector<8x16xf32>
    %cst_130 = arith.constant dense<0.000000e+00> : vector<8x16xf32>
    %379 = tpu.matmul %290, %53, %cst_130 {dimension_numbers = #tpu.dot_dimension_numbers<[1], [0], [0], [1], [0, 0, 1, 1], [], []>} : vector<8x16xf32>, vector<16x16xf32>, vector<8x16xf32> -> vector<8x16xf32>
    %380 = vector.broadcast %65 : vector<1x16xf32> to vector<8x16xf32>
    %381 = arith.addf %379, %380 : vector<8x16xf32>
    %cst_131 = arith.constant dense<0.000000e+00> : vector<8x16xf32>
    %382 = tpu.matmul %290, %55, %cst_131 {dimension_numbers = #tpu.dot_dimension_numbers<[1], [0], [0], [1], [0, 0, 1, 1], [], []>} : vector<8x16xf32>, vector<16x16xf32>, vector<8x16xf32> -> vector<8x16xf32>
    %383 = vector.broadcast %67 : vector<1x16xf32> to vector<8x16xf32>
    %384 = arith.addf %382, %383 : vector<8x16xf32>
    %385 = arith.addf %359, %378 : vector<8x16xf32>
    %386 = arith.negf %385 : vector<8x16xf32>
    %387 = math.exp %386 : vector<8x16xf32>
    %cst_132 = arith.constant 1.000000e+00 : f32
    %388 = vector.broadcast %cst_132 : f32 to vector<8x16xf32>
    %389 = arith.addf %388, %387 : vector<8x16xf32>
    %390 = arith.divf %388, %389 : vector<8x16xf32>
    %391 = arith.addf %367, %381 : vector<8x16xf32>
    %392 = arith.negf %391 : vector<8x16xf32>
    %393 = math.exp %392 : vector<8x16xf32>
    %cst_133 = arith.constant 1.000000e+00 : f32
    %394 = vector.broadcast %cst_133 : f32 to vector<8x16xf32>
    %395 = arith.addf %394, %393 : vector<8x16xf32>
    %396 = arith.divf %394, %395 : vector<8x16xf32>
    %397 = arith.mulf %390, %384 : vector<8x16xf32>
    %398 = arith.addf %375, %397 : vector<8x16xf32>
    %399 = math.tanh %398 : vector<8x16xf32>
    %cst_134 = arith.constant 1.000000e+00 : f32
    %400 = vector.broadcast %cst_134 : f32 to vector<8x16xf32>
    %401 = arith.subf %400, %396 : vector<8x16xf32>
    %402 = arith.mulf %401, %399 : vector<8x16xf32>
    %403 = arith.mulf %396, %290 : vector<8x16xf32>
    %404 = arith.addf %402, %403 : vector<8x16xf32>
    %405 = vector.extract_strided_slice %1 {offsets = [0, 5], sizes = [8, 1], strides = [1, 1]} : vector<8x8xf32> to vector<8x1xf32>
    %406 = vector.extract_strided_slice %33 {offsets = [0, 5, 0], sizes = [1, 1, 16], strides = [1, 1, 1]} : vector<1x8x16xf32> to vector<1x1x16xf32>
    %407 = vector.shape_cast %406 : vector<1x1x16xf32> to vector<1x1x16xf32>
    %408 = vector.broadcast %407 : vector<1x1x16xf32> to vector<1x8x16xf32>
    %409 = vector.shape_cast %408 : vector<1x8x16xf32> to vector<8x16xf32>
    %410 = vector.broadcast %405 : vector<8x1xf32> to vector<8x16xf32>
    %411 = arith.mulf %410, %409 : vector<8x16xf32>
    %412 = vector.broadcast %81 : vector<1x16xf32> to vector<8x16xf32>
    %413 = arith.addf %411, %412 : vector<8x16xf32>
    %414 = vector.extract_strided_slice %41 {offsets = [0, 5, 0], sizes = [1, 1, 16], strides = [1, 1, 1]} : vector<1x8x16xf32> to vector<1x1x16xf32>
    %415 = vector.shape_cast %414 : vector<1x1x16xf32> to vector<1x1x16xf32>
    %416 = vector.broadcast %415 : vector<1x1x16xf32> to vector<1x8x16xf32>
    %417 = vector.shape_cast %416 : vector<1x8x16xf32> to vector<8x16xf32>
    %418 = vector.broadcast %405 : vector<8x1xf32> to vector<8x16xf32>
    %419 = arith.mulf %418, %417 : vector<8x16xf32>
    %420 = vector.broadcast %83 : vector<1x16xf32> to vector<8x16xf32>
    %421 = arith.addf %419, %420 : vector<8x16xf32>
    %422 = vector.extract_strided_slice %49 {offsets = [0, 5, 0], sizes = [1, 1, 16], strides = [1, 1, 1]} : vector<1x8x16xf32> to vector<1x1x16xf32>
    %423 = vector.shape_cast %422 : vector<1x1x16xf32> to vector<1x1x16xf32>
    %424 = vector.broadcast %423 : vector<1x1x16xf32> to vector<1x8x16xf32>
    %425 = vector.shape_cast %424 : vector<1x8x16xf32> to vector<8x16xf32>
    %426 = vector.broadcast %405 : vector<8x1xf32> to vector<8x16xf32>
    %427 = arith.mulf %426, %425 : vector<8x16xf32>
    %428 = vector.broadcast %85 : vector<1x16xf32> to vector<8x16xf32>
    %429 = arith.addf %427, %428 : vector<8x16xf32>
    %cst_135 = arith.constant dense<0.000000e+00> : vector<8x16xf32>
    %430 = tpu.matmul %344, %57, %cst_135 {dimension_numbers = #tpu.dot_dimension_numbers<[1], [0], [0], [1], [0, 0, 1, 1], [], []>} : vector<8x16xf32>, vector<16x16xf32>, vector<8x16xf32> -> vector<8x16xf32>
    %431 = vector.broadcast %69 : vector<1x16xf32> to vector<8x16xf32>
    %432 = arith.addf %430, %431 : vector<8x16xf32>
    %cst_136 = arith.constant dense<0.000000e+00> : vector<8x16xf32>
    %433 = tpu.matmul %344, %59, %cst_136 {dimension_numbers = #tpu.dot_dimension_numbers<[1], [0], [0], [1], [0, 0, 1, 1], [], []>} : vector<8x16xf32>, vector<16x16xf32>, vector<8x16xf32> -> vector<8x16xf32>
    %434 = vector.broadcast %71 : vector<1x16xf32> to vector<8x16xf32>
    %435 = arith.addf %433, %434 : vector<8x16xf32>
    %cst_137 = arith.constant dense<0.000000e+00> : vector<8x16xf32>
    %436 = tpu.matmul %344, %61, %cst_137 {dimension_numbers = #tpu.dot_dimension_numbers<[1], [0], [0], [1], [0, 0, 1, 1], [], []>} : vector<8x16xf32>, vector<16x16xf32>, vector<8x16xf32> -> vector<8x16xf32>
    %437 = vector.broadcast %73 : vector<1x16xf32> to vector<8x16xf32>
    %438 = arith.addf %436, %437 : vector<8x16xf32>
    %439 = arith.addf %413, %432 : vector<8x16xf32>
    %440 = arith.negf %439 : vector<8x16xf32>
    %441 = math.exp %440 : vector<8x16xf32>
    %cst_138 = arith.constant 1.000000e+00 : f32
    %442 = vector.broadcast %cst_138 : f32 to vector<8x16xf32>
    %443 = arith.addf %442, %441 : vector<8x16xf32>
    %444 = arith.divf %442, %443 : vector<8x16xf32>
    %445 = arith.addf %421, %435 : vector<8x16xf32>
    %446 = arith.negf %445 : vector<8x16xf32>
    %447 = math.exp %446 : vector<8x16xf32>
    %cst_139 = arith.constant 1.000000e+00 : f32
    %448 = vector.broadcast %cst_139 : f32 to vector<8x16xf32>
    %449 = arith.addf %448, %447 : vector<8x16xf32>
    %450 = arith.divf %448, %449 : vector<8x16xf32>
    %451 = arith.mulf %444, %438 : vector<8x16xf32>
    %452 = arith.addf %429, %451 : vector<8x16xf32>
    %453 = math.tanh %452 : vector<8x16xf32>
    %cst_140 = arith.constant 1.000000e+00 : f32
    %454 = vector.broadcast %cst_140 : f32 to vector<8x16xf32>
    %455 = arith.subf %454, %450 : vector<8x16xf32>
    %456 = arith.mulf %455, %453 : vector<8x16xf32>
    %457 = arith.mulf %450, %344 : vector<8x16xf32>
    %458 = arith.addf %456, %457 : vector<8x16xf32>
    %459 = vector.shape_cast %108 : vector<8x1xi1> to vector<8x1xi1>
    %460 = vector.broadcast %459 : vector<8x1xi1> to vector<8x16xi1>
    %461 = arith.select %460, %404, %347 : vector<8x16xi1>, vector<8x16xf32>
    %462 = vector.shape_cast %114 : vector<8x1xi1> to vector<8x1xi1>
    %463 = vector.broadcast %462 : vector<8x1xi1> to vector<8x16xi1>
    %464 = arith.select %463, %458, %350 : vector<8x16xi1>, vector<8x16xf32>
    %465 = vector.extract_strided_slice %1 {offsets = [0, 3], sizes = [8, 1], strides = [1, 1]} : vector<8x8xf32> to vector<8x1xf32>
    %466 = vector.extract_strided_slice %9 {offsets = [0, 3, 0], sizes = [1, 1, 16], strides = [1, 1, 1]} : vector<1x8x16xf32> to vector<1x1x16xf32>
    %467 = vector.shape_cast %466 : vector<1x1x16xf32> to vector<1x1x16xf32>
    %468 = vector.broadcast %467 : vector<1x1x16xf32> to vector<1x8x16xf32>
    %469 = vector.shape_cast %468 : vector<1x8x16xf32> to vector<8x16xf32>
    %470 = vector.broadcast %465 : vector<8x1xf32> to vector<8x16xf32>
    %471 = arith.mulf %470, %469 : vector<8x16xf32>
    %472 = vector.broadcast %75 : vector<1x16xf32> to vector<8x16xf32>
    %473 = arith.addf %471, %472 : vector<8x16xf32>
    %474 = vector.extract_strided_slice %17 {offsets = [0, 3, 0], sizes = [1, 1, 16], strides = [1, 1, 1]} : vector<1x8x16xf32> to vector<1x1x16xf32>
    %475 = vector.shape_cast %474 : vector<1x1x16xf32> to vector<1x1x16xf32>
    %476 = vector.broadcast %475 : vector<1x1x16xf32> to vector<1x8x16xf32>
    %477 = vector.shape_cast %476 : vector<1x8x16xf32> to vector<8x16xf32>
    %478 = vector.broadcast %465 : vector<8x1xf32> to vector<8x16xf32>
    %479 = arith.mulf %478, %477 : vector<8x16xf32>
    %480 = vector.broadcast %77 : vector<1x16xf32> to vector<8x16xf32>
    %481 = arith.addf %479, %480 : vector<8x16xf32>
    %482 = vector.extract_strided_slice %25 {offsets = [0, 3, 0], sizes = [1, 1, 16], strides = [1, 1, 1]} : vector<1x8x16xf32> to vector<1x1x16xf32>
    %483 = vector.shape_cast %482 : vector<1x1x16xf32> to vector<1x1x16xf32>
    %484 = vector.broadcast %483 : vector<1x1x16xf32> to vector<1x8x16xf32>
    %485 = vector.shape_cast %484 : vector<1x8x16xf32> to vector<8x16xf32>
    %486 = vector.broadcast %465 : vector<8x1xf32> to vector<8x16xf32>
    %487 = arith.mulf %486, %485 : vector<8x16xf32>
    %488 = vector.broadcast %79 : vector<1x16xf32> to vector<8x16xf32>
    %489 = arith.addf %487, %488 : vector<8x16xf32>
    %cst_141 = arith.constant dense<0.000000e+00> : vector<8x16xf32>
    %490 = tpu.matmul %404, %51, %cst_141 {dimension_numbers = #tpu.dot_dimension_numbers<[1], [0], [0], [1], [0, 0, 1, 1], [], []>} : vector<8x16xf32>, vector<16x16xf32>, vector<8x16xf32> -> vector<8x16xf32>
    %491 = vector.broadcast %63 : vector<1x16xf32> to vector<8x16xf32>
    %492 = arith.addf %490, %491 : vector<8x16xf32>
    %cst_142 = arith.constant dense<0.000000e+00> : vector<8x16xf32>
    %493 = tpu.matmul %404, %53, %cst_142 {dimension_numbers = #tpu.dot_dimension_numbers<[1], [0], [0], [1], [0, 0, 1, 1], [], []>} : vector<8x16xf32>, vector<16x16xf32>, vector<8x16xf32> -> vector<8x16xf32>
    %494 = vector.broadcast %65 : vector<1x16xf32> to vector<8x16xf32>
    %495 = arith.addf %493, %494 : vector<8x16xf32>
    %cst_143 = arith.constant dense<0.000000e+00> : vector<8x16xf32>
    %496 = tpu.matmul %404, %55, %cst_143 {dimension_numbers = #tpu.dot_dimension_numbers<[1], [0], [0], [1], [0, 0, 1, 1], [], []>} : vector<8x16xf32>, vector<16x16xf32>, vector<8x16xf32> -> vector<8x16xf32>
    %497 = vector.broadcast %67 : vector<1x16xf32> to vector<8x16xf32>
    %498 = arith.addf %496, %497 : vector<8x16xf32>
    %499 = arith.addf %473, %492 : vector<8x16xf32>
    %500 = arith.negf %499 : vector<8x16xf32>
    %501 = math.exp %500 : vector<8x16xf32>
    %cst_144 = arith.constant 1.000000e+00 : f32
    %502 = vector.broadcast %cst_144 : f32 to vector<8x16xf32>
    %503 = arith.addf %502, %501 : vector<8x16xf32>
    %504 = arith.divf %502, %503 : vector<8x16xf32>
    %505 = arith.addf %481, %495 : vector<8x16xf32>
    %506 = arith.negf %505 : vector<8x16xf32>
    %507 = math.exp %506 : vector<8x16xf32>
    %cst_145 = arith.constant 1.000000e+00 : f32
    %508 = vector.broadcast %cst_145 : f32 to vector<8x16xf32>
    %509 = arith.addf %508, %507 : vector<8x16xf32>
    %510 = arith.divf %508, %509 : vector<8x16xf32>
    %511 = arith.mulf %504, %498 : vector<8x16xf32>
    %512 = arith.addf %489, %511 : vector<8x16xf32>
    %513 = math.tanh %512 : vector<8x16xf32>
    %cst_146 = arith.constant 1.000000e+00 : f32
    %514 = vector.broadcast %cst_146 : f32 to vector<8x16xf32>
    %515 = arith.subf %514, %510 : vector<8x16xf32>
    %516 = arith.mulf %515, %513 : vector<8x16xf32>
    %517 = arith.mulf %510, %404 : vector<8x16xf32>
    %518 = arith.addf %516, %517 : vector<8x16xf32>
    %519 = vector.extract_strided_slice %1 {offsets = [0, 4], sizes = [8, 1], strides = [1, 1]} : vector<8x8xf32> to vector<8x1xf32>
    %520 = vector.extract_strided_slice %33 {offsets = [0, 4, 0], sizes = [1, 1, 16], strides = [1, 1, 1]} : vector<1x8x16xf32> to vector<1x1x16xf32>
    %521 = vector.shape_cast %520 : vector<1x1x16xf32> to vector<1x1x16xf32>
    %522 = vector.broadcast %521 : vector<1x1x16xf32> to vector<1x8x16xf32>
    %523 = vector.shape_cast %522 : vector<1x8x16xf32> to vector<8x16xf32>
    %524 = vector.broadcast %519 : vector<8x1xf32> to vector<8x16xf32>
    %525 = arith.mulf %524, %523 : vector<8x16xf32>
    %526 = vector.broadcast %81 : vector<1x16xf32> to vector<8x16xf32>
    %527 = arith.addf %525, %526 : vector<8x16xf32>
    %528 = vector.extract_strided_slice %41 {offsets = [0, 4, 0], sizes = [1, 1, 16], strides = [1, 1, 1]} : vector<1x8x16xf32> to vector<1x1x16xf32>
    %529 = vector.shape_cast %528 : vector<1x1x16xf32> to vector<1x1x16xf32>
    %530 = vector.broadcast %529 : vector<1x1x16xf32> to vector<1x8x16xf32>
    %531 = vector.shape_cast %530 : vector<1x8x16xf32> to vector<8x16xf32>
    %532 = vector.broadcast %519 : vector<8x1xf32> to vector<8x16xf32>
    %533 = arith.mulf %532, %531 : vector<8x16xf32>
    %534 = vector.broadcast %83 : vector<1x16xf32> to vector<8x16xf32>
    %535 = arith.addf %533, %534 : vector<8x16xf32>
    %536 = vector.extract_strided_slice %49 {offsets = [0, 4, 0], sizes = [1, 1, 16], strides = [1, 1, 1]} : vector<1x8x16xf32> to vector<1x1x16xf32>
    %537 = vector.shape_cast %536 : vector<1x1x16xf32> to vector<1x1x16xf32>
    %538 = vector.broadcast %537 : vector<1x1x16xf32> to vector<1x8x16xf32>
    %539 = vector.shape_cast %538 : vector<1x8x16xf32> to vector<8x16xf32>
    %540 = vector.broadcast %519 : vector<8x1xf32> to vector<8x16xf32>
    %541 = arith.mulf %540, %539 : vector<8x16xf32>
    %542 = vector.broadcast %85 : vector<1x16xf32> to vector<8x16xf32>
    %543 = arith.addf %541, %542 : vector<8x16xf32>
    %cst_147 = arith.constant dense<0.000000e+00> : vector<8x16xf32>
    %544 = tpu.matmul %458, %57, %cst_147 {dimension_numbers = #tpu.dot_dimension_numbers<[1], [0], [0], [1], [0, 0, 1, 1], [], []>} : vector<8x16xf32>, vector<16x16xf32>, vector<8x16xf32> -> vector<8x16xf32>
    %545 = vector.broadcast %69 : vector<1x16xf32> to vector<8x16xf32>
    %546 = arith.addf %544, %545 : vector<8x16xf32>
    %cst_148 = arith.constant dense<0.000000e+00> : vector<8x16xf32>
    %547 = tpu.matmul %458, %59, %cst_148 {dimension_numbers = #tpu.dot_dimension_numbers<[1], [0], [0], [1], [0, 0, 1, 1], [], []>} : vector<8x16xf32>, vector<16x16xf32>, vector<8x16xf32> -> vector<8x16xf32>
    %548 = vector.broadcast %71 : vector<1x16xf32> to vector<8x16xf32>
    %549 = arith.addf %547, %548 : vector<8x16xf32>
    %cst_149 = arith.constant dense<0.000000e+00> : vector<8x16xf32>
    %550 = tpu.matmul %458, %61, %cst_149 {dimension_numbers = #tpu.dot_dimension_numbers<[1], [0], [0], [1], [0, 0, 1, 1], [], []>} : vector<8x16xf32>, vector<16x16xf32>, vector<8x16xf32> -> vector<8x16xf32>
    %551 = vector.broadcast %73 : vector<1x16xf32> to vector<8x16xf32>
    %552 = arith.addf %550, %551 : vector<8x16xf32>
    %553 = arith.addf %527, %546 : vector<8x16xf32>
    %554 = arith.negf %553 : vector<8x16xf32>
    %555 = math.exp %554 : vector<8x16xf32>
    %cst_150 = arith.constant 1.000000e+00 : f32
    %556 = vector.broadcast %cst_150 : f32 to vector<8x16xf32>
    %557 = arith.addf %556, %555 : vector<8x16xf32>
    %558 = arith.divf %556, %557 : vector<8x16xf32>
    %559 = arith.addf %535, %549 : vector<8x16xf32>
    %560 = arith.negf %559 : vector<8x16xf32>
    %561 = math.exp %560 : vector<8x16xf32>
    %cst_151 = arith.constant 1.000000e+00 : f32
    %562 = vector.broadcast %cst_151 : f32 to vector<8x16xf32>
    %563 = arith.addf %562, %561 : vector<8x16xf32>
    %564 = arith.divf %562, %563 : vector<8x16xf32>
    %565 = arith.mulf %558, %552 : vector<8x16xf32>
    %566 = arith.addf %543, %565 : vector<8x16xf32>
    %567 = math.tanh %566 : vector<8x16xf32>
    %cst_152 = arith.constant 1.000000e+00 : f32
    %568 = vector.broadcast %cst_152 : f32 to vector<8x16xf32>
    %569 = arith.subf %568, %564 : vector<8x16xf32>
    %570 = arith.mulf %569, %567 : vector<8x16xf32>
    %571 = arith.mulf %564, %458 : vector<8x16xf32>
    %572 = arith.addf %570, %571 : vector<8x16xf32>
    %573 = vector.shape_cast %110 : vector<8x1xi1> to vector<8x1xi1>
    %574 = vector.broadcast %573 : vector<8x1xi1> to vector<8x16xi1>
    %575 = arith.select %574, %518, %461 : vector<8x16xi1>, vector<8x16xf32>
    %576 = vector.shape_cast %112 : vector<8x1xi1> to vector<8x1xi1>
    %577 = vector.broadcast %576 : vector<8x1xi1> to vector<8x16xi1>
    %578 = arith.select %577, %572, %464 : vector<8x16xi1>, vector<8x16xf32>
    %579 = vector.extract_strided_slice %1 {offsets = [0, 4], sizes = [8, 1], strides = [1, 1]} : vector<8x8xf32> to vector<8x1xf32>
    %580 = vector.extract_strided_slice %9 {offsets = [0, 4, 0], sizes = [1, 1, 16], strides = [1, 1, 1]} : vector<1x8x16xf32> to vector<1x1x16xf32>
    %581 = vector.shape_cast %580 : vector<1x1x16xf32> to vector<1x1x16xf32>
    %582 = vector.broadcast %581 : vector<1x1x16xf32> to vector<1x8x16xf32>
    %583 = vector.shape_cast %582 : vector<1x8x16xf32> to vector<8x16xf32>
    %584 = vector.broadcast %579 : vector<8x1xf32> to vector<8x16xf32>
    %585 = arith.mulf %584, %583 : vector<8x16xf32>
    %586 = vector.broadcast %75 : vector<1x16xf32> to vector<8x16xf32>
    %587 = arith.addf %585, %586 : vector<8x16xf32>
    %588 = vector.extract_strided_slice %17 {offsets = [0, 4, 0], sizes = [1, 1, 16], strides = [1, 1, 1]} : vector<1x8x16xf32> to vector<1x1x16xf32>
    %589 = vector.shape_cast %588 : vector<1x1x16xf32> to vector<1x1x16xf32>
    %590 = vector.broadcast %589 : vector<1x1x16xf32> to vector<1x8x16xf32>
    %591 = vector.shape_cast %590 : vector<1x8x16xf32> to vector<8x16xf32>
    %592 = vector.broadcast %579 : vector<8x1xf32> to vector<8x16xf32>
    %593 = arith.mulf %592, %591 : vector<8x16xf32>
    %594 = vector.broadcast %77 : vector<1x16xf32> to vector<8x16xf32>
    %595 = arith.addf %593, %594 : vector<8x16xf32>
    %596 = vector.extract_strided_slice %25 {offsets = [0, 4, 0], sizes = [1, 1, 16], strides = [1, 1, 1]} : vector<1x8x16xf32> to vector<1x1x16xf32>
    %597 = vector.shape_cast %596 : vector<1x1x16xf32> to vector<1x1x16xf32>
    %598 = vector.broadcast %597 : vector<1x1x16xf32> to vector<1x8x16xf32>
    %599 = vector.shape_cast %598 : vector<1x8x16xf32> to vector<8x16xf32>
    %600 = vector.broadcast %579 : vector<8x1xf32> to vector<8x16xf32>
    %601 = arith.mulf %600, %599 : vector<8x16xf32>
    %602 = vector.broadcast %79 : vector<1x16xf32> to vector<8x16xf32>
    %603 = arith.addf %601, %602 : vector<8x16xf32>
    %cst_153 = arith.constant dense<0.000000e+00> : vector<8x16xf32>
    %604 = tpu.matmul %518, %51, %cst_153 {dimension_numbers = #tpu.dot_dimension_numbers<[1], [0], [0], [1], [0, 0, 1, 1], [], []>} : vector<8x16xf32>, vector<16x16xf32>, vector<8x16xf32> -> vector<8x16xf32>
    %605 = vector.broadcast %63 : vector<1x16xf32> to vector<8x16xf32>
    %606 = arith.addf %604, %605 : vector<8x16xf32>
    %cst_154 = arith.constant dense<0.000000e+00> : vector<8x16xf32>
    %607 = tpu.matmul %518, %53, %cst_154 {dimension_numbers = #tpu.dot_dimension_numbers<[1], [0], [0], [1], [0, 0, 1, 1], [], []>} : vector<8x16xf32>, vector<16x16xf32>, vector<8x16xf32> -> vector<8x16xf32>
    %608 = vector.broadcast %65 : vector<1x16xf32> to vector<8x16xf32>
    %609 = arith.addf %607, %608 : vector<8x16xf32>
    %cst_155 = arith.constant dense<0.000000e+00> : vector<8x16xf32>
    %610 = tpu.matmul %518, %55, %cst_155 {dimension_numbers = #tpu.dot_dimension_numbers<[1], [0], [0], [1], [0, 0, 1, 1], [], []>} : vector<8x16xf32>, vector<16x16xf32>, vector<8x16xf32> -> vector<8x16xf32>
    %611 = vector.broadcast %67 : vector<1x16xf32> to vector<8x16xf32>
    %612 = arith.addf %610, %611 : vector<8x16xf32>
    %613 = arith.addf %587, %606 : vector<8x16xf32>
    %614 = arith.negf %613 : vector<8x16xf32>
    %615 = math.exp %614 : vector<8x16xf32>
    %cst_156 = arith.constant 1.000000e+00 : f32
    %616 = vector.broadcast %cst_156 : f32 to vector<8x16xf32>
    %617 = arith.addf %616, %615 : vector<8x16xf32>
    %618 = arith.divf %616, %617 : vector<8x16xf32>
    %619 = arith.addf %595, %609 : vector<8x16xf32>
    %620 = arith.negf %619 : vector<8x16xf32>
    %621 = math.exp %620 : vector<8x16xf32>
    %cst_157 = arith.constant 1.000000e+00 : f32
    %622 = vector.broadcast %cst_157 : f32 to vector<8x16xf32>
    %623 = arith.addf %622, %621 : vector<8x16xf32>
    %624 = arith.divf %622, %623 : vector<8x16xf32>
    %625 = arith.mulf %618, %612 : vector<8x16xf32>
    %626 = arith.addf %603, %625 : vector<8x16xf32>
    %627 = math.tanh %626 : vector<8x16xf32>
    %cst_158 = arith.constant 1.000000e+00 : f32
    %628 = vector.broadcast %cst_158 : f32 to vector<8x16xf32>
    %629 = arith.subf %628, %624 : vector<8x16xf32>
    %630 = arith.mulf %629, %627 : vector<8x16xf32>
    %631 = arith.mulf %624, %518 : vector<8x16xf32>
    %632 = arith.addf %630, %631 : vector<8x16xf32>
    %633 = vector.extract_strided_slice %1 {offsets = [0, 3], sizes = [8, 1], strides = [1, 1]} : vector<8x8xf32> to vector<8x1xf32>
    %634 = vector.extract_strided_slice %33 {offsets = [0, 3, 0], sizes = [1, 1, 16], strides = [1, 1, 1]} : vector<1x8x16xf32> to vector<1x1x16xf32>
    %635 = vector.shape_cast %634 : vector<1x1x16xf32> to vector<1x1x16xf32>
    %636 = vector.broadcast %635 : vector<1x1x16xf32> to vector<1x8x16xf32>
    %637 = vector.shape_cast %636 : vector<1x8x16xf32> to vector<8x16xf32>
    %638 = vector.broadcast %633 : vector<8x1xf32> to vector<8x16xf32>
    %639 = arith.mulf %638, %637 : vector<8x16xf32>
    %640 = vector.broadcast %81 : vector<1x16xf32> to vector<8x16xf32>
    %641 = arith.addf %639, %640 : vector<8x16xf32>
    %642 = vector.extract_strided_slice %41 {offsets = [0, 3, 0], sizes = [1, 1, 16], strides = [1, 1, 1]} : vector<1x8x16xf32> to vector<1x1x16xf32>
    %643 = vector.shape_cast %642 : vector<1x1x16xf32> to vector<1x1x16xf32>
    %644 = vector.broadcast %643 : vector<1x1x16xf32> to vector<1x8x16xf32>
    %645 = vector.shape_cast %644 : vector<1x8x16xf32> to vector<8x16xf32>
    %646 = vector.broadcast %633 : vector<8x1xf32> to vector<8x16xf32>
    %647 = arith.mulf %646, %645 : vector<8x16xf32>
    %648 = vector.broadcast %83 : vector<1x16xf32> to vector<8x16xf32>
    %649 = arith.addf %647, %648 : vector<8x16xf32>
    %650 = vector.extract_strided_slice %49 {offsets = [0, 3, 0], sizes = [1, 1, 16], strides = [1, 1, 1]} : vector<1x8x16xf32> to vector<1x1x16xf32>
    %651 = vector.shape_cast %650 : vector<1x1x16xf32> to vector<1x1x16xf32>
    %652 = vector.broadcast %651 : vector<1x1x16xf32> to vector<1x8x16xf32>
    %653 = vector.shape_cast %652 : vector<1x8x16xf32> to vector<8x16xf32>
    %654 = vector.broadcast %633 : vector<8x1xf32> to vector<8x16xf32>
    %655 = arith.mulf %654, %653 : vector<8x16xf32>
    %656 = vector.broadcast %85 : vector<1x16xf32> to vector<8x16xf32>
    %657 = arith.addf %655, %656 : vector<8x16xf32>
    %cst_159 = arith.constant dense<0.000000e+00> : vector<8x16xf32>
    %658 = tpu.matmul %572, %57, %cst_159 {dimension_numbers = #tpu.dot_dimension_numbers<[1], [0], [0], [1], [0, 0, 1, 1], [], []>} : vector<8x16xf32>, vector<16x16xf32>, vector<8x16xf32> -> vector<8x16xf32>
    %659 = vector.broadcast %69 : vector<1x16xf32> to vector<8x16xf32>
    %660 = arith.addf %658, %659 : vector<8x16xf32>
    %cst_160 = arith.constant dense<0.000000e+00> : vector<8x16xf32>
    %661 = tpu.matmul %572, %59, %cst_160 {dimension_numbers = #tpu.dot_dimension_numbers<[1], [0], [0], [1], [0, 0, 1, 1], [], []>} : vector<8x16xf32>, vector<16x16xf32>, vector<8x16xf32> -> vector<8x16xf32>
    %662 = vector.broadcast %71 : vector<1x16xf32> to vector<8x16xf32>
    %663 = arith.addf %661, %662 : vector<8x16xf32>
    %cst_161 = arith.constant dense<0.000000e+00> : vector<8x16xf32>
    %664 = tpu.matmul %572, %61, %cst_161 {dimension_numbers = #tpu.dot_dimension_numbers<[1], [0], [0], [1], [0, 0, 1, 1], [], []>} : vector<8x16xf32>, vector<16x16xf32>, vector<8x16xf32> -> vector<8x16xf32>
    %665 = vector.broadcast %73 : vector<1x16xf32> to vector<8x16xf32>
    %666 = arith.addf %664, %665 : vector<8x16xf32>
    %667 = arith.addf %641, %660 : vector<8x16xf32>
    %668 = arith.negf %667 : vector<8x16xf32>
    %669 = math.exp %668 : vector<8x16xf32>
    %cst_162 = arith.constant 1.000000e+00 : f32
    %670 = vector.broadcast %cst_162 : f32 to vector<8x16xf32>
    %671 = arith.addf %670, %669 : vector<8x16xf32>
    %672 = arith.divf %670, %671 : vector<8x16xf32>
    %673 = arith.addf %649, %663 : vector<8x16xf32>
    %674 = arith.negf %673 : vector<8x16xf32>
    %675 = math.exp %674 : vector<8x16xf32>
    %cst_163 = arith.constant 1.000000e+00 : f32
    %676 = vector.broadcast %cst_163 : f32 to vector<8x16xf32>
    %677 = arith.addf %676, %675 : vector<8x16xf32>
    %678 = arith.divf %676, %677 : vector<8x16xf32>
    %679 = arith.mulf %672, %666 : vector<8x16xf32>
    %680 = arith.addf %657, %679 : vector<8x16xf32>
    %681 = math.tanh %680 : vector<8x16xf32>
    %cst_164 = arith.constant 1.000000e+00 : f32
    %682 = vector.broadcast %cst_164 : f32 to vector<8x16xf32>
    %683 = arith.subf %682, %678 : vector<8x16xf32>
    %684 = arith.mulf %683, %681 : vector<8x16xf32>
    %685 = arith.mulf %678, %572 : vector<8x16xf32>
    %686 = arith.addf %684, %685 : vector<8x16xf32>
    %687 = vector.shape_cast %112 : vector<8x1xi1> to vector<8x1xi1>
    %688 = vector.broadcast %687 : vector<8x1xi1> to vector<8x16xi1>
    %689 = arith.select %688, %632, %575 : vector<8x16xi1>, vector<8x16xf32>
    %690 = vector.shape_cast %110 : vector<8x1xi1> to vector<8x1xi1>
    %691 = vector.broadcast %690 : vector<8x1xi1> to vector<8x16xi1>
    %692 = arith.select %691, %686, %578 : vector<8x16xi1>, vector<8x16xf32>
    %693 = vector.extract_strided_slice %1 {offsets = [0, 5], sizes = [8, 1], strides = [1, 1]} : vector<8x8xf32> to vector<8x1xf32>
    %694 = vector.extract_strided_slice %9 {offsets = [0, 5, 0], sizes = [1, 1, 16], strides = [1, 1, 1]} : vector<1x8x16xf32> to vector<1x1x16xf32>
    %695 = vector.shape_cast %694 : vector<1x1x16xf32> to vector<1x1x16xf32>
    %696 = vector.broadcast %695 : vector<1x1x16xf32> to vector<1x8x16xf32>
    %697 = vector.shape_cast %696 : vector<1x8x16xf32> to vector<8x16xf32>
    %698 = vector.broadcast %693 : vector<8x1xf32> to vector<8x16xf32>
    %699 = arith.mulf %698, %697 : vector<8x16xf32>
    %700 = vector.broadcast %75 : vector<1x16xf32> to vector<8x16xf32>
    %701 = arith.addf %699, %700 : vector<8x16xf32>
    %702 = vector.extract_strided_slice %17 {offsets = [0, 5, 0], sizes = [1, 1, 16], strides = [1, 1, 1]} : vector<1x8x16xf32> to vector<1x1x16xf32>
    %703 = vector.shape_cast %702 : vector<1x1x16xf32> to vector<1x1x16xf32>
    %704 = vector.broadcast %703 : vector<1x1x16xf32> to vector<1x8x16xf32>
    %705 = vector.shape_cast %704 : vector<1x8x16xf32> to vector<8x16xf32>
    %706 = vector.broadcast %693 : vector<8x1xf32> to vector<8x16xf32>
    %707 = arith.mulf %706, %705 : vector<8x16xf32>
    %708 = vector.broadcast %77 : vector<1x16xf32> to vector<8x16xf32>
    %709 = arith.addf %707, %708 : vector<8x16xf32>
    %710 = vector.extract_strided_slice %25 {offsets = [0, 5, 0], sizes = [1, 1, 16], strides = [1, 1, 1]} : vector<1x8x16xf32> to vector<1x1x16xf32>
    %711 = vector.shape_cast %710 : vector<1x1x16xf32> to vector<1x1x16xf32>
    %712 = vector.broadcast %711 : vector<1x1x16xf32> to vector<1x8x16xf32>
    %713 = vector.shape_cast %712 : vector<1x8x16xf32> to vector<8x16xf32>
    %714 = vector.broadcast %693 : vector<8x1xf32> to vector<8x16xf32>
    %715 = arith.mulf %714, %713 : vector<8x16xf32>
    %716 = vector.broadcast %79 : vector<1x16xf32> to vector<8x16xf32>
    %717 = arith.addf %715, %716 : vector<8x16xf32>
    %cst_165 = arith.constant dense<0.000000e+00> : vector<8x16xf32>
    %718 = tpu.matmul %632, %51, %cst_165 {dimension_numbers = #tpu.dot_dimension_numbers<[1], [0], [0], [1], [0, 0, 1, 1], [], []>} : vector<8x16xf32>, vector<16x16xf32>, vector<8x16xf32> -> vector<8x16xf32>
    %719 = vector.broadcast %63 : vector<1x16xf32> to vector<8x16xf32>
    %720 = arith.addf %718, %719 : vector<8x16xf32>
    %cst_166 = arith.constant dense<0.000000e+00> : vector<8x16xf32>
    %721 = tpu.matmul %632, %53, %cst_166 {dimension_numbers = #tpu.dot_dimension_numbers<[1], [0], [0], [1], [0, 0, 1, 1], [], []>} : vector<8x16xf32>, vector<16x16xf32>, vector<8x16xf32> -> vector<8x16xf32>
    %722 = vector.broadcast %65 : vector<1x16xf32> to vector<8x16xf32>
    %723 = arith.addf %721, %722 : vector<8x16xf32>
    %cst_167 = arith.constant dense<0.000000e+00> : vector<8x16xf32>
    %724 = tpu.matmul %632, %55, %cst_167 {dimension_numbers = #tpu.dot_dimension_numbers<[1], [0], [0], [1], [0, 0, 1, 1], [], []>} : vector<8x16xf32>, vector<16x16xf32>, vector<8x16xf32> -> vector<8x16xf32>
    %725 = vector.broadcast %67 : vector<1x16xf32> to vector<8x16xf32>
    %726 = arith.addf %724, %725 : vector<8x16xf32>
    %727 = arith.addf %701, %720 : vector<8x16xf32>
    %728 = arith.negf %727 : vector<8x16xf32>
    %729 = math.exp %728 : vector<8x16xf32>
    %cst_168 = arith.constant 1.000000e+00 : f32
    %730 = vector.broadcast %cst_168 : f32 to vector<8x16xf32>
    %731 = arith.addf %730, %729 : vector<8x16xf32>
    %732 = arith.divf %730, %731 : vector<8x16xf32>
    %733 = arith.addf %709, %723 : vector<8x16xf32>
    %734 = arith.negf %733 : vector<8x16xf32>
    %735 = math.exp %734 : vector<8x16xf32>
    %cst_169 = arith.constant 1.000000e+00 : f32
    %736 = vector.broadcast %cst_169 : f32 to vector<8x16xf32>
    %737 = arith.addf %736, %735 : vector<8x16xf32>
    %738 = arith.divf %736, %737 : vector<8x16xf32>
    %739 = arith.mulf %732, %726 : vector<8x16xf32>
    %740 = arith.addf %717, %739 : vector<8x16xf32>
    %741 = math.tanh %740 : vector<8x16xf32>
    %cst_170 = arith.constant 1.000000e+00 : f32
    %742 = vector.broadcast %cst_170 : f32 to vector<8x16xf32>
    %743 = arith.subf %742, %738 : vector<8x16xf32>
    %744 = arith.mulf %743, %741 : vector<8x16xf32>
    %745 = arith.mulf %738, %632 : vector<8x16xf32>
    %746 = arith.addf %744, %745 : vector<8x16xf32>
    %747 = vector.extract_strided_slice %1 {offsets = [0, 2], sizes = [8, 1], strides = [1, 1]} : vector<8x8xf32> to vector<8x1xf32>
    %748 = vector.extract_strided_slice %33 {offsets = [0, 2, 0], sizes = [1, 1, 16], strides = [1, 1, 1]} : vector<1x8x16xf32> to vector<1x1x16xf32>
    %749 = vector.shape_cast %748 : vector<1x1x16xf32> to vector<1x1x16xf32>
    %750 = vector.broadcast %749 : vector<1x1x16xf32> to vector<1x8x16xf32>
    %751 = vector.shape_cast %750 : vector<1x8x16xf32> to vector<8x16xf32>
    %752 = vector.broadcast %747 : vector<8x1xf32> to vector<8x16xf32>
    %753 = arith.mulf %752, %751 : vector<8x16xf32>
    %754 = vector.broadcast %81 : vector<1x16xf32> to vector<8x16xf32>
    %755 = arith.addf %753, %754 : vector<8x16xf32>
    %756 = vector.extract_strided_slice %41 {offsets = [0, 2, 0], sizes = [1, 1, 16], strides = [1, 1, 1]} : vector<1x8x16xf32> to vector<1x1x16xf32>
    %757 = vector.shape_cast %756 : vector<1x1x16xf32> to vector<1x1x16xf32>
    %758 = vector.broadcast %757 : vector<1x1x16xf32> to vector<1x8x16xf32>
    %759 = vector.shape_cast %758 : vector<1x8x16xf32> to vector<8x16xf32>
    %760 = vector.broadcast %747 : vector<8x1xf32> to vector<8x16xf32>
    %761 = arith.mulf %760, %759 : vector<8x16xf32>
    %762 = vector.broadcast %83 : vector<1x16xf32> to vector<8x16xf32>
    %763 = arith.addf %761, %762 : vector<8x16xf32>
    %764 = vector.extract_strided_slice %49 {offsets = [0, 2, 0], sizes = [1, 1, 16], strides = [1, 1, 1]} : vector<1x8x16xf32> to vector<1x1x16xf32>
    %765 = vector.shape_cast %764 : vector<1x1x16xf32> to vector<1x1x16xf32>
    %766 = vector.broadcast %765 : vector<1x1x16xf32> to vector<1x8x16xf32>
    %767 = vector.shape_cast %766 : vector<1x8x16xf32> to vector<8x16xf32>
    %768 = vector.broadcast %747 : vector<8x1xf32> to vector<8x16xf32>
    %769 = arith.mulf %768, %767 : vector<8x16xf32>
    %770 = vector.broadcast %85 : vector<1x16xf32> to vector<8x16xf32>
    %771 = arith.addf %769, %770 : vector<8x16xf32>
    %cst_171 = arith.constant dense<0.000000e+00> : vector<8x16xf32>
    %772 = tpu.matmul %686, %57, %cst_171 {dimension_numbers = #tpu.dot_dimension_numbers<[1], [0], [0], [1], [0, 0, 1, 1], [], []>} : vector<8x16xf32>, vector<16x16xf32>, vector<8x16xf32> -> vector<8x16xf32>
    %773 = vector.broadcast %69 : vector<1x16xf32> to vector<8x16xf32>
    %774 = arith.addf %772, %773 : vector<8x16xf32>
    %cst_172 = arith.constant dense<0.000000e+00> : vector<8x16xf32>
    %775 = tpu.matmul %686, %59, %cst_172 {dimension_numbers = #tpu.dot_dimension_numbers<[1], [0], [0], [1], [0, 0, 1, 1], [], []>} : vector<8x16xf32>, vector<16x16xf32>, vector<8x16xf32> -> vector<8x16xf32>
    %776 = vector.broadcast %71 : vector<1x16xf32> to vector<8x16xf32>
    %777 = arith.addf %775, %776 : vector<8x16xf32>
    %cst_173 = arith.constant dense<0.000000e+00> : vector<8x16xf32>
    %778 = tpu.matmul %686, %61, %cst_173 {dimension_numbers = #tpu.dot_dimension_numbers<[1], [0], [0], [1], [0, 0, 1, 1], [], []>} : vector<8x16xf32>, vector<16x16xf32>, vector<8x16xf32> -> vector<8x16xf32>
    %779 = vector.broadcast %73 : vector<1x16xf32> to vector<8x16xf32>
    %780 = arith.addf %778, %779 : vector<8x16xf32>
    %781 = arith.addf %755, %774 : vector<8x16xf32>
    %782 = arith.negf %781 : vector<8x16xf32>
    %783 = math.exp %782 : vector<8x16xf32>
    %cst_174 = arith.constant 1.000000e+00 : f32
    %784 = vector.broadcast %cst_174 : f32 to vector<8x16xf32>
    %785 = arith.addf %784, %783 : vector<8x16xf32>
    %786 = arith.divf %784, %785 : vector<8x16xf32>
    %787 = arith.addf %763, %777 : vector<8x16xf32>
    %788 = arith.negf %787 : vector<8x16xf32>
    %789 = math.exp %788 : vector<8x16xf32>
    %cst_175 = arith.constant 1.000000e+00 : f32
    %790 = vector.broadcast %cst_175 : f32 to vector<8x16xf32>
    %791 = arith.addf %790, %789 : vector<8x16xf32>
    %792 = arith.divf %790, %791 : vector<8x16xf32>
    %793 = arith.mulf %786, %780 : vector<8x16xf32>
    %794 = arith.addf %771, %793 : vector<8x16xf32>
    %795 = math.tanh %794 : vector<8x16xf32>
    %cst_176 = arith.constant 1.000000e+00 : f32
    %796 = vector.broadcast %cst_176 : f32 to vector<8x16xf32>
    %797 = arith.subf %796, %792 : vector<8x16xf32>
    %798 = arith.mulf %797, %795 : vector<8x16xf32>
    %799 = arith.mulf %792, %686 : vector<8x16xf32>
    %800 = arith.addf %798, %799 : vector<8x16xf32>
    %801 = vector.shape_cast %114 : vector<8x1xi1> to vector<8x1xi1>
    %802 = vector.broadcast %801 : vector<8x1xi1> to vector<8x16xi1>
    %803 = arith.select %802, %746, %689 : vector<8x16xi1>, vector<8x16xf32>
    %804 = vector.shape_cast %108 : vector<8x1xi1> to vector<8x1xi1>
    %805 = vector.broadcast %804 : vector<8x1xi1> to vector<8x16xi1>
    %806 = arith.select %805, %800, %692 : vector<8x16xi1>, vector<8x16xf32>
    %807 = vector.extract_strided_slice %1 {offsets = [0, 6], sizes = [8, 1], strides = [1, 1]} : vector<8x8xf32> to vector<8x1xf32>
    %808 = vector.extract_strided_slice %9 {offsets = [0, 6, 0], sizes = [1, 1, 16], strides = [1, 1, 1]} : vector<1x8x16xf32> to vector<1x1x16xf32>
    %809 = vector.shape_cast %808 : vector<1x1x16xf32> to vector<1x1x16xf32>
    %810 = vector.broadcast %809 : vector<1x1x16xf32> to vector<1x8x16xf32>
    %811 = vector.shape_cast %810 : vector<1x8x16xf32> to vector<8x16xf32>
    %812 = vector.broadcast %807 : vector<8x1xf32> to vector<8x16xf32>
    %813 = arith.mulf %812, %811 : vector<8x16xf32>
    %814 = vector.broadcast %75 : vector<1x16xf32> to vector<8x16xf32>
    %815 = arith.addf %813, %814 : vector<8x16xf32>
    %816 = vector.extract_strided_slice %17 {offsets = [0, 6, 0], sizes = [1, 1, 16], strides = [1, 1, 1]} : vector<1x8x16xf32> to vector<1x1x16xf32>
    %817 = vector.shape_cast %816 : vector<1x1x16xf32> to vector<1x1x16xf32>
    %818 = vector.broadcast %817 : vector<1x1x16xf32> to vector<1x8x16xf32>
    %819 = vector.shape_cast %818 : vector<1x8x16xf32> to vector<8x16xf32>
    %820 = vector.broadcast %807 : vector<8x1xf32> to vector<8x16xf32>
    %821 = arith.mulf %820, %819 : vector<8x16xf32>
    %822 = vector.broadcast %77 : vector<1x16xf32> to vector<8x16xf32>
    %823 = arith.addf %821, %822 : vector<8x16xf32>
    %824 = vector.extract_strided_slice %25 {offsets = [0, 6, 0], sizes = [1, 1, 16], strides = [1, 1, 1]} : vector<1x8x16xf32> to vector<1x1x16xf32>
    %825 = vector.shape_cast %824 : vector<1x1x16xf32> to vector<1x1x16xf32>
    %826 = vector.broadcast %825 : vector<1x1x16xf32> to vector<1x8x16xf32>
    %827 = vector.shape_cast %826 : vector<1x8x16xf32> to vector<8x16xf32>
    %828 = vector.broadcast %807 : vector<8x1xf32> to vector<8x16xf32>
    %829 = arith.mulf %828, %827 : vector<8x16xf32>
    %830 = vector.broadcast %79 : vector<1x16xf32> to vector<8x16xf32>
    %831 = arith.addf %829, %830 : vector<8x16xf32>
    %cst_177 = arith.constant dense<0.000000e+00> : vector<8x16xf32>
    %832 = tpu.matmul %746, %51, %cst_177 {dimension_numbers = #tpu.dot_dimension_numbers<[1], [0], [0], [1], [0, 0, 1, 1], [], []>} : vector<8x16xf32>, vector<16x16xf32>, vector<8x16xf32> -> vector<8x16xf32>
    %833 = vector.broadcast %63 : vector<1x16xf32> to vector<8x16xf32>
    %834 = arith.addf %832, %833 : vector<8x16xf32>
    %cst_178 = arith.constant dense<0.000000e+00> : vector<8x16xf32>
    %835 = tpu.matmul %746, %53, %cst_178 {dimension_numbers = #tpu.dot_dimension_numbers<[1], [0], [0], [1], [0, 0, 1, 1], [], []>} : vector<8x16xf32>, vector<16x16xf32>, vector<8x16xf32> -> vector<8x16xf32>
    %836 = vector.broadcast %65 : vector<1x16xf32> to vector<8x16xf32>
    %837 = arith.addf %835, %836 : vector<8x16xf32>
    %cst_179 = arith.constant dense<0.000000e+00> : vector<8x16xf32>
    %838 = tpu.matmul %746, %55, %cst_179 {dimension_numbers = #tpu.dot_dimension_numbers<[1], [0], [0], [1], [0, 0, 1, 1], [], []>} : vector<8x16xf32>, vector<16x16xf32>, vector<8x16xf32> -> vector<8x16xf32>
    %839 = vector.broadcast %67 : vector<1x16xf32> to vector<8x16xf32>
    %840 = arith.addf %838, %839 : vector<8x16xf32>
    %841 = arith.addf %815, %834 : vector<8x16xf32>
    %842 = arith.negf %841 : vector<8x16xf32>
    %843 = math.exp %842 : vector<8x16xf32>
    %cst_180 = arith.constant 1.000000e+00 : f32
    %844 = vector.broadcast %cst_180 : f32 to vector<8x16xf32>
    %845 = arith.addf %844, %843 : vector<8x16xf32>
    %846 = arith.divf %844, %845 : vector<8x16xf32>
    %847 = arith.addf %823, %837 : vector<8x16xf32>
    %848 = arith.negf %847 : vector<8x16xf32>
    %849 = math.exp %848 : vector<8x16xf32>
    %cst_181 = arith.constant 1.000000e+00 : f32
    %850 = vector.broadcast %cst_181 : f32 to vector<8x16xf32>
    %851 = arith.addf %850, %849 : vector<8x16xf32>
    %852 = arith.divf %850, %851 : vector<8x16xf32>
    %853 = arith.mulf %846, %840 : vector<8x16xf32>
    %854 = arith.addf %831, %853 : vector<8x16xf32>
    %855 = math.tanh %854 : vector<8x16xf32>
    %cst_182 = arith.constant 1.000000e+00 : f32
    %856 = vector.broadcast %cst_182 : f32 to vector<8x16xf32>
    %857 = arith.subf %856, %852 : vector<8x16xf32>
    %858 = arith.mulf %857, %855 : vector<8x16xf32>
    %859 = arith.mulf %852, %746 : vector<8x16xf32>
    %860 = arith.addf %858, %859 : vector<8x16xf32>
    %861 = vector.extract_strided_slice %1 {offsets = [0, 1], sizes = [8, 1], strides = [1, 1]} : vector<8x8xf32> to vector<8x1xf32>
    %862 = vector.extract_strided_slice %33 {offsets = [0, 1, 0], sizes = [1, 1, 16], strides = [1, 1, 1]} : vector<1x8x16xf32> to vector<1x1x16xf32>
    %863 = vector.shape_cast %862 : vector<1x1x16xf32> to vector<1x1x16xf32>
    %864 = vector.broadcast %863 : vector<1x1x16xf32> to vector<1x8x16xf32>
    %865 = vector.shape_cast %864 : vector<1x8x16xf32> to vector<8x16xf32>
    %866 = vector.broadcast %861 : vector<8x1xf32> to vector<8x16xf32>
    %867 = arith.mulf %866, %865 : vector<8x16xf32>
    %868 = vector.broadcast %81 : vector<1x16xf32> to vector<8x16xf32>
    %869 = arith.addf %867, %868 : vector<8x16xf32>
    %870 = vector.extract_strided_slice %41 {offsets = [0, 1, 0], sizes = [1, 1, 16], strides = [1, 1, 1]} : vector<1x8x16xf32> to vector<1x1x16xf32>
    %871 = vector.shape_cast %870 : vector<1x1x16xf32> to vector<1x1x16xf32>
    %872 = vector.broadcast %871 : vector<1x1x16xf32> to vector<1x8x16xf32>
    %873 = vector.shape_cast %872 : vector<1x8x16xf32> to vector<8x16xf32>
    %874 = vector.broadcast %861 : vector<8x1xf32> to vector<8x16xf32>
    %875 = arith.mulf %874, %873 : vector<8x16xf32>
    %876 = vector.broadcast %83 : vector<1x16xf32> to vector<8x16xf32>
    %877 = arith.addf %875, %876 : vector<8x16xf32>
    %878 = vector.extract_strided_slice %49 {offsets = [0, 1, 0], sizes = [1, 1, 16], strides = [1, 1, 1]} : vector<1x8x16xf32> to vector<1x1x16xf32>
    %879 = vector.shape_cast %878 : vector<1x1x16xf32> to vector<1x1x16xf32>
    %880 = vector.broadcast %879 : vector<1x1x16xf32> to vector<1x8x16xf32>
    %881 = vector.shape_cast %880 : vector<1x8x16xf32> to vector<8x16xf32>
    %882 = vector.broadcast %861 : vector<8x1xf32> to vector<8x16xf32>
    %883 = arith.mulf %882, %881 : vector<8x16xf32>
    %884 = vector.broadcast %85 : vector<1x16xf32> to vector<8x16xf32>
    %885 = arith.addf %883, %884 : vector<8x16xf32>
    %cst_183 = arith.constant dense<0.000000e+00> : vector<8x16xf32>
    %886 = tpu.matmul %800, %57, %cst_183 {dimension_numbers = #tpu.dot_dimension_numbers<[1], [0], [0], [1], [0, 0, 1, 1], [], []>} : vector<8x16xf32>, vector<16x16xf32>, vector<8x16xf32> -> vector<8x16xf32>
    %887 = vector.broadcast %69 : vector<1x16xf32> to vector<8x16xf32>
    %888 = arith.addf %886, %887 : vector<8x16xf32>
    %cst_184 = arith.constant dense<0.000000e+00> : vector<8x16xf32>
    %889 = tpu.matmul %800, %59, %cst_184 {dimension_numbers = #tpu.dot_dimension_numbers<[1], [0], [0], [1], [0, 0, 1, 1], [], []>} : vector<8x16xf32>, vector<16x16xf32>, vector<8x16xf32> -> vector<8x16xf32>
    %890 = vector.broadcast %71 : vector<1x16xf32> to vector<8x16xf32>
    %891 = arith.addf %889, %890 : vector<8x16xf32>
    %cst_185 = arith.constant dense<0.000000e+00> : vector<8x16xf32>
    %892 = tpu.matmul %800, %61, %cst_185 {dimension_numbers = #tpu.dot_dimension_numbers<[1], [0], [0], [1], [0, 0, 1, 1], [], []>} : vector<8x16xf32>, vector<16x16xf32>, vector<8x16xf32> -> vector<8x16xf32>
    %893 = vector.broadcast %73 : vector<1x16xf32> to vector<8x16xf32>
    %894 = arith.addf %892, %893 : vector<8x16xf32>
    %895 = arith.addf %869, %888 : vector<8x16xf32>
    %896 = arith.negf %895 : vector<8x16xf32>
    %897 = math.exp %896 : vector<8x16xf32>
    %cst_186 = arith.constant 1.000000e+00 : f32
    %898 = vector.broadcast %cst_186 : f32 to vector<8x16xf32>
    %899 = arith.addf %898, %897 : vector<8x16xf32>
    %900 = arith.divf %898, %899 : vector<8x16xf32>
    %901 = arith.addf %877, %891 : vector<8x16xf32>
    %902 = arith.negf %901 : vector<8x16xf32>
    %903 = math.exp %902 : vector<8x16xf32>
    %cst_187 = arith.constant 1.000000e+00 : f32
    %904 = vector.broadcast %cst_187 : f32 to vector<8x16xf32>
    %905 = arith.addf %904, %903 : vector<8x16xf32>
    %906 = arith.divf %904, %905 : vector<8x16xf32>
    %907 = arith.mulf %900, %894 : vector<8x16xf32>
    %908 = arith.addf %885, %907 : vector<8x16xf32>
    %909 = math.tanh %908 : vector<8x16xf32>
    %cst_188 = arith.constant 1.000000e+00 : f32
    %910 = vector.broadcast %cst_188 : f32 to vector<8x16xf32>
    %911 = arith.subf %910, %906 : vector<8x16xf32>
    %912 = arith.mulf %911, %909 : vector<8x16xf32>
    %913 = arith.mulf %906, %800 : vector<8x16xf32>
    %914 = arith.addf %912, %913 : vector<8x16xf32>
    %915 = vector.shape_cast %116 : vector<8x1xi1> to vector<8x1xi1>
    %916 = vector.broadcast %915 : vector<8x1xi1> to vector<8x16xi1>
    %917 = arith.select %916, %860, %803 : vector<8x16xi1>, vector<8x16xf32>
    %918 = vector.shape_cast %106 : vector<8x1xi1> to vector<8x1xi1>
    %919 = vector.broadcast %918 : vector<8x1xi1> to vector<8x16xi1>
    %920 = arith.select %919, %914, %806 : vector<8x16xi1>, vector<8x16xf32>
    %921 = vector.extract_strided_slice %1 {offsets = [0, 7], sizes = [8, 1], strides = [1, 1]} : vector<8x8xf32> to vector<8x1xf32>
    %922 = vector.extract_strided_slice %9 {offsets = [0, 7, 0], sizes = [1, 1, 16], strides = [1, 1, 1]} : vector<1x8x16xf32> to vector<1x1x16xf32>
    %923 = vector.shape_cast %922 : vector<1x1x16xf32> to vector<1x1x16xf32>
    %924 = vector.broadcast %923 : vector<1x1x16xf32> to vector<1x8x16xf32>
    %925 = vector.shape_cast %924 : vector<1x8x16xf32> to vector<8x16xf32>
    %926 = vector.broadcast %921 : vector<8x1xf32> to vector<8x16xf32>
    %927 = arith.mulf %926, %925 : vector<8x16xf32>
    %928 = vector.broadcast %75 : vector<1x16xf32> to vector<8x16xf32>
    %929 = arith.addf %927, %928 : vector<8x16xf32>
    %930 = vector.extract_strided_slice %17 {offsets = [0, 7, 0], sizes = [1, 1, 16], strides = [1, 1, 1]} : vector<1x8x16xf32> to vector<1x1x16xf32>
    %931 = vector.shape_cast %930 : vector<1x1x16xf32> to vector<1x1x16xf32>
    %932 = vector.broadcast %931 : vector<1x1x16xf32> to vector<1x8x16xf32>
    %933 = vector.shape_cast %932 : vector<1x8x16xf32> to vector<8x16xf32>
    %934 = vector.broadcast %921 : vector<8x1xf32> to vector<8x16xf32>
    %935 = arith.mulf %934, %933 : vector<8x16xf32>
    %936 = vector.broadcast %77 : vector<1x16xf32> to vector<8x16xf32>
    %937 = arith.addf %935, %936 : vector<8x16xf32>
    %938 = vector.extract_strided_slice %25 {offsets = [0, 7, 0], sizes = [1, 1, 16], strides = [1, 1, 1]} : vector<1x8x16xf32> to vector<1x1x16xf32>
    %939 = vector.shape_cast %938 : vector<1x1x16xf32> to vector<1x1x16xf32>
    %940 = vector.broadcast %939 : vector<1x1x16xf32> to vector<1x8x16xf32>
    %941 = vector.shape_cast %940 : vector<1x8x16xf32> to vector<8x16xf32>
    %942 = vector.broadcast %921 : vector<8x1xf32> to vector<8x16xf32>
    %943 = arith.mulf %942, %941 : vector<8x16xf32>
    %944 = vector.broadcast %79 : vector<1x16xf32> to vector<8x16xf32>
    %945 = arith.addf %943, %944 : vector<8x16xf32>
    %cst_189 = arith.constant dense<0.000000e+00> : vector<8x16xf32>
    %946 = tpu.matmul %860, %51, %cst_189 {dimension_numbers = #tpu.dot_dimension_numbers<[1], [0], [0], [1], [0, 0, 1, 1], [], []>} : vector<8x16xf32>, vector<16x16xf32>, vector<8x16xf32> -> vector<8x16xf32>
    %947 = vector.broadcast %63 : vector<1x16xf32> to vector<8x16xf32>
    %948 = arith.addf %946, %947 : vector<8x16xf32>
    %cst_190 = arith.constant dense<0.000000e+00> : vector<8x16xf32>
    %949 = tpu.matmul %860, %53, %cst_190 {dimension_numbers = #tpu.dot_dimension_numbers<[1], [0], [0], [1], [0, 0, 1, 1], [], []>} : vector<8x16xf32>, vector<16x16xf32>, vector<8x16xf32> -> vector<8x16xf32>
    %950 = vector.broadcast %65 : vector<1x16xf32> to vector<8x16xf32>
    %951 = arith.addf %949, %950 : vector<8x16xf32>
    %cst_191 = arith.constant dense<0.000000e+00> : vector<8x16xf32>
    %952 = tpu.matmul %860, %55, %cst_191 {dimension_numbers = #tpu.dot_dimension_numbers<[1], [0], [0], [1], [0, 0, 1, 1], [], []>} : vector<8x16xf32>, vector<16x16xf32>, vector<8x16xf32> -> vector<8x16xf32>
    %953 = vector.broadcast %67 : vector<1x16xf32> to vector<8x16xf32>
    %954 = arith.addf %952, %953 : vector<8x16xf32>
    %955 = arith.addf %929, %948 : vector<8x16xf32>
    %956 = arith.negf %955 : vector<8x16xf32>
    %957 = math.exp %956 : vector<8x16xf32>
    %cst_192 = arith.constant 1.000000e+00 : f32
    %958 = vector.broadcast %cst_192 : f32 to vector<8x16xf32>
    %959 = arith.addf %958, %957 : vector<8x16xf32>
    %960 = arith.divf %958, %959 : vector<8x16xf32>
    %961 = arith.addf %937, %951 : vector<8x16xf32>
    %962 = arith.negf %961 : vector<8x16xf32>
    %963 = math.exp %962 : vector<8x16xf32>
    %cst_193 = arith.constant 1.000000e+00 : f32
    %964 = vector.broadcast %cst_193 : f32 to vector<8x16xf32>
    %965 = arith.addf %964, %963 : vector<8x16xf32>
    %966 = arith.divf %964, %965 : vector<8x16xf32>
    %967 = arith.mulf %960, %954 : vector<8x16xf32>
    %968 = arith.addf %945, %967 : vector<8x16xf32>
    %969 = math.tanh %968 : vector<8x16xf32>
    %cst_194 = arith.constant 1.000000e+00 : f32
    %970 = vector.broadcast %cst_194 : f32 to vector<8x16xf32>
    %971 = arith.subf %970, %966 : vector<8x16xf32>
    %972 = arith.mulf %971, %969 : vector<8x16xf32>
    %973 = arith.mulf %966, %860 : vector<8x16xf32>
    %974 = arith.addf %972, %973 : vector<8x16xf32>
    %975 = vector.extract_strided_slice %1 {offsets = [0, 0], sizes = [8, 1], strides = [1, 1]} : vector<8x8xf32> to vector<8x1xf32>
    %976 = vector.extract_strided_slice %33 {offsets = [0, 0, 0], sizes = [1, 1, 16], strides = [1, 1, 1]} : vector<1x8x16xf32> to vector<1x1x16xf32>
    %977 = vector.shape_cast %976 : vector<1x1x16xf32> to vector<1x1x16xf32>
    %978 = vector.broadcast %977 : vector<1x1x16xf32> to vector<1x8x16xf32>
    %979 = vector.shape_cast %978 : vector<1x8x16xf32> to vector<8x16xf32>
    %980 = vector.broadcast %975 : vector<8x1xf32> to vector<8x16xf32>
    %981 = arith.mulf %980, %979 : vector<8x16xf32>
    %982 = vector.broadcast %81 : vector<1x16xf32> to vector<8x16xf32>
    %983 = arith.addf %981, %982 : vector<8x16xf32>
    %984 = vector.extract_strided_slice %41 {offsets = [0, 0, 0], sizes = [1, 1, 16], strides = [1, 1, 1]} : vector<1x8x16xf32> to vector<1x1x16xf32>
    %985 = vector.shape_cast %984 : vector<1x1x16xf32> to vector<1x1x16xf32>
    %986 = vector.broadcast %985 : vector<1x1x16xf32> to vector<1x8x16xf32>
    %987 = vector.shape_cast %986 : vector<1x8x16xf32> to vector<8x16xf32>
    %988 = vector.broadcast %975 : vector<8x1xf32> to vector<8x16xf32>
    %989 = arith.mulf %988, %987 : vector<8x16xf32>
    %990 = vector.broadcast %83 : vector<1x16xf32> to vector<8x16xf32>
    %991 = arith.addf %989, %990 : vector<8x16xf32>
    %992 = vector.extract_strided_slice %49 {offsets = [0, 0, 0], sizes = [1, 1, 16], strides = [1, 1, 1]} : vector<1x8x16xf32> to vector<1x1x16xf32>
    %993 = vector.shape_cast %992 : vector<1x1x16xf32> to vector<1x1x16xf32>
    %994 = vector.broadcast %993 : vector<1x1x16xf32> to vector<1x8x16xf32>
    %995 = vector.shape_cast %994 : vector<1x8x16xf32> to vector<8x16xf32>
    %996 = vector.broadcast %975 : vector<8x1xf32> to vector<8x16xf32>
    %997 = arith.mulf %996, %995 : vector<8x16xf32>
    %998 = vector.broadcast %85 : vector<1x16xf32> to vector<8x16xf32>
    %999 = arith.addf %997, %998 : vector<8x16xf32>
    %cst_195 = arith.constant dense<0.000000e+00> : vector<8x16xf32>
    %1000 = tpu.matmul %914, %57, %cst_195 {dimension_numbers = #tpu.dot_dimension_numbers<[1], [0], [0], [1], [0, 0, 1, 1], [], []>} : vector<8x16xf32>, vector<16x16xf32>, vector<8x16xf32> -> vector<8x16xf32>
    %1001 = vector.broadcast %69 : vector<1x16xf32> to vector<8x16xf32>
    %1002 = arith.addf %1000, %1001 : vector<8x16xf32>
    %cst_196 = arith.constant dense<0.000000e+00> : vector<8x16xf32>
    %1003 = tpu.matmul %914, %59, %cst_196 {dimension_numbers = #tpu.dot_dimension_numbers<[1], [0], [0], [1], [0, 0, 1, 1], [], []>} : vector<8x16xf32>, vector<16x16xf32>, vector<8x16xf32> -> vector<8x16xf32>
    %1004 = vector.broadcast %71 : vector<1x16xf32> to vector<8x16xf32>
    %1005 = arith.addf %1003, %1004 : vector<8x16xf32>
    %cst_197 = arith.constant dense<0.000000e+00> : vector<8x16xf32>
    %1006 = tpu.matmul %914, %61, %cst_197 {dimension_numbers = #tpu.dot_dimension_numbers<[1], [0], [0], [1], [0, 0, 1, 1], [], []>} : vector<8x16xf32>, vector<16x16xf32>, vector<8x16xf32> -> vector<8x16xf32>
    %1007 = vector.broadcast %73 : vector<1x16xf32> to vector<8x16xf32>
    %1008 = arith.addf %1006, %1007 : vector<8x16xf32>
    %1009 = arith.addf %983, %1002 : vector<8x16xf32>
    %1010 = arith.negf %1009 : vector<8x16xf32>
    %1011 = math.exp %1010 : vector<8x16xf32>
    %cst_198 = arith.constant 1.000000e+00 : f32
    %1012 = vector.broadcast %cst_198 : f32 to vector<8x16xf32>
    %1013 = arith.addf %1012, %1011 : vector<8x16xf32>
    %1014 = arith.divf %1012, %1013 : vector<8x16xf32>
    %1015 = arith.addf %991, %1005 : vector<8x16xf32>
    %1016 = arith.negf %1015 : vector<8x16xf32>
    %1017 = math.exp %1016 : vector<8x16xf32>
    %cst_199 = arith.constant 1.000000e+00 : f32
    %1018 = vector.broadcast %cst_199 : f32 to vector<8x16xf32>
    %1019 = arith.addf %1018, %1017 : vector<8x16xf32>
    %1020 = arith.divf %1018, %1019 : vector<8x16xf32>
    %1021 = arith.mulf %1014, %1008 : vector<8x16xf32>
    %1022 = arith.addf %999, %1021 : vector<8x16xf32>
    %1023 = math.tanh %1022 : vector<8x16xf32>
    %cst_200 = arith.constant 1.000000e+00 : f32
    %1024 = vector.broadcast %cst_200 : f32 to vector<8x16xf32>
    %1025 = arith.subf %1024, %1020 : vector<8x16xf32>
    %1026 = arith.mulf %1025, %1023 : vector<8x16xf32>
    %1027 = arith.mulf %1020, %914 : vector<8x16xf32>
    %1028 = arith.addf %1026, %1027 : vector<8x16xf32>
    %1029 = vector.shape_cast %118 : vector<8x1xi1> to vector<8x1xi1>
    %1030 = vector.broadcast %1029 : vector<8x1xi1> to vector<8x16xi1>
    %1031 = arith.select %1030, %974, %917 : vector<8x16xi1>, vector<8x16xf32>
    %1032 = vector.shape_cast %104 : vector<8x1xi1> to vector<8x1xi1>
    %1033 = vector.broadcast %1032 : vector<8x1xi1> to vector<8x16xi1>
    %1034 = arith.select %1033, %1028, %920 : vector<8x16xi1>, vector<8x16xf32>
    %c0_201 = arith.constant 0 : index
    %c0_202 = arith.constant 0 : index
    %1035 = vector.load %arg13[%c0_201, %c0_202] : memref<16x1xf32, #tpu.memory_space<vmem>>, vector<16x1xf32>
    %cst_203 = arith.constant dense<0.000000e+00> : vector<8x1xf32>
    %1036 = tpu.matmul %1031, %1035, %cst_203 {dimension_numbers = #tpu.dot_dimension_numbers<[1], [0], [0], [1], [0, 0, 1, 1], [], []>} : vector<8x16xf32>, vector<16x1xf32>, vector<8x1xf32> -> vector<8x1xf32>
    %c0_204 = arith.constant 0 : index
    %c0_205 = arith.constant 0 : index
    %1037 = vector.load %arg14[%c0_204, %c0_205] : memref<16x1xf32, #tpu.memory_space<vmem>>, vector<16x1xf32>
    %cst_206 = arith.constant dense<0.000000e+00> : vector<8x1xf32>
    %1038 = tpu.matmul %1034, %1037, %cst_206 {dimension_numbers = #tpu.dot_dimension_numbers<[1], [0], [0], [1], [0, 0, 1, 1], [], []>} : vector<8x16xf32>, vector<16x1xf32>, vector<8x1xf32> -> vector<8x1xf32>
    %1039 = arith.addf %1036, %1038 : vector<8x1xf32>
    %c0_207 = arith.constant 0 : index
    %c0_208 = arith.constant 0 : index
    %1040 = vector.load %arg15[%c0_207, %c0_208] : memref<1x1xf32, #tpu.memory_space<vmem>>, vector<1x1xf32>
    %1041 = vector.broadcast %1040 : vector<1x1xf32> to vector<8x1xf32>
    %1042 = arith.addf %1039, %1041 : vector<8x1xf32>
    %1043 = arith.negf %1042 : vector<8x1xf32>
    %1044 = math.exp %1043 : vector<8x1xf32>
    %cst_209 = arith.constant 1.000000e+00 : f32
    %1045 = vector.broadcast %cst_209 : f32 to vector<8x1xf32>
    %1046 = arith.addf %1045, %1044 : vector<8x1xf32>
    %1047 = arith.divf %1045, %1046 : vector<8x1xf32>
    %1048 = vector.shape_cast %1047 : vector<8x1xf32> to vector<1x8x1xf32>
    %c0_210 = arith.constant 0 : index
    %c0_211 = arith.constant 0 : index
    %c0_212 = arith.constant 0 : index
    %1049 = vector.load %arg16[%c0_210, %c0_211, %c0_212] : memref<1x8x1xf32, #tpu.memory_space<vmem>>, vector<1x8x1xf32>
    tpu.vector_store %arg16[%c0_210, %c0_211, %c0_212], %1048 {strides = array<i32>} : memref<1x8x1xf32, #tpu.memory_space<vmem>>, vector<1x8x1xf32>,
    return
  }
  func.func @transform_0(%arg0: i32) -> (i32, i32) {
    %c0_i32 = arith.constant 0 : i32
    %c0_i32_0 = arith.constant 0 : i32
    return %arg0, %c0_i32 : i32, i32
  }
  func.func @transform_1(%arg0: i32) -> (i32, i32) {
    %c0_i32 = arith.constant 0 : i32
    %c0_i32_0 = arith.constant 0 : i32
    return %arg0, %c0_i32 : i32, i32
  }
  func.func @transform_2(%arg0: i32) -> (i32, i32, i32) {
    %c0_i32 = arith.constant 0 : i32
    %c0_i32_0 = arith.constant 0 : i32
    %c0_i32_1 = arith.constant 0 : i32
    %c0_i32_2 = arith.constant 0 : i32
    return %c0_i32, %c0_i32_0, %c0_i32_1 : i32, i32, i32
  }
  func.func @transform_3(%arg0: i32) -> (i32, i32, i32) {
    %c0_i32 = arith.constant 0 : i32
    %c0_i32_0 = arith.constant 0 : i32
    %c0_i32_1 = arith.constant 0 : i32
    %c0_i32_2 = arith.constant 0 : i32
    return %c0_i32, %c0_i32_0, %c0_i32_1 : i32, i32, i32
  }
  func.func @transform_4(%arg0: i32) -> (i32, i32, i32) {
    %c0_i32 = arith.constant 0 : i32
    %c0_i32_0 = arith.constant 0 : i32
    %c0_i32_1 = arith.constant 0 : i32
    %c0_i32_2 = arith.constant 0 : i32
    return %c0_i32, %c0_i32_0, %c0_i32_1 : i32, i32, i32
  }
  func.func @transform_5(%arg0: i32) -> (i32, i32, i32) {
    %c0_i32 = arith.constant 0 : i32
    %c0_i32_0 = arith.constant 0 : i32
    %c0_i32_1 = arith.constant 0 : i32
    %c0_i32_2 = arith.constant 0 : i32
    return %c0_i32, %c0_i32_0, %c0_i32_1 : i32, i32, i32
  }
  func.func @transform_6(%arg0: i32) -> (i32, i32, i32) {
    %c0_i32 = arith.constant 0 : i32
    %c0_i32_0 = arith.constant 0 : i32
    %c0_i32_1 = arith.constant 0 : i32
    %c0_i32_2 = arith.constant 0 : i32
    return %c0_i32, %c0_i32_0, %c0_i32_1 : i32, i32, i32
  }
  func.func @transform_7(%arg0: i32) -> (i32, i32, i32) {
    %c0_i32 = arith.constant 0 : i32
    %c0_i32_0 = arith.constant 0 : i32
    %c0_i32_1 = arith.constant 0 : i32
    %c0_i32_2 = arith.constant 0 : i32
    return %c0_i32, %c0_i32_0, %c0_i32_1 : i32, i32, i32
  }
  func.func @transform_8(%arg0: i32) -> (i32, i32, i32) {
    %c0_i32 = arith.constant 0 : i32
    %c0_i32_0 = arith.constant 0 : i32
    %c0_i32_1 = arith.constant 0 : i32
    %c0_i32_2 = arith.constant 0 : i32
    return %c0_i32, %c0_i32_0, %c0_i32_1 : i32, i32, i32
  }
  func.func @transform_9(%arg0: i32) -> (i32, i32, i32) {
    %c0_i32 = arith.constant 0 : i32
    %c0_i32_0 = arith.constant 0 : i32
    %c0_i32_1 = arith.constant 0 : i32
    %c0_i32_2 = arith.constant 0 : i32
    return %c0_i32, %c0_i32_0, %c0_i32_1 : i32, i32, i32
  }
  func.func @transform_10(%arg0: i32) -> (i32, i32, i32) {
    %c0_i32 = arith.constant 0 : i32
    %c0_i32_0 = arith.constant 0 : i32
    %c0_i32_1 = arith.constant 0 : i32
    %c0_i32_2 = arith.constant 0 : i32
    return %c0_i32, %c0_i32_0, %c0_i32_1 : i32, i32, i32
  }
  func.func @transform_11(%arg0: i32) -> (i32, i32, i32) {
    %c0_i32 = arith.constant 0 : i32
    %c0_i32_0 = arith.constant 0 : i32
    %c0_i32_1 = arith.constant 0 : i32
    %c0_i32_2 = arith.constant 0 : i32
    return %c0_i32, %c0_i32_0, %c0_i32_1 : i32, i32, i32
  }
  func.func @transform_12(%arg0: i32) -> (i32, i32) {
    %c0_i32 = arith.constant 0 : i32
    %c0_i32_0 = arith.constant 0 : i32
    %c0_i32_1 = arith.constant 0 : i32
    return %c0_i32, %c0_i32_0 : i32, i32
  }
  func.func @transform_13(%arg0: i32) -> (i32, i32) {
    %c0_i32 = arith.constant 0 : i32
    %c0_i32_0 = arith.constant 0 : i32
    %c0_i32_1 = arith.constant 0 : i32
    return %c0_i32, %c0_i32_0 : i32, i32
  }
  func.func @transform_14(%arg0: i32) -> (i32, i32) {
    %c0_i32 = arith.constant 0 : i32
    %c0_i32_0 = arith.constant 0 : i32
    %c0_i32_1 = arith.constant 0 : i32
    return %c0_i32, %c0_i32_0 : i32, i32
  }
  func.func @transform_15(%arg0: i32) -> (i32, i32, i32) {
    %c0_i32 = arith.constant 0 : i32
    %c0_i32_0 = arith.constant 0 : i32
    %c0_i32_1 = arith.constant 0 : i32
    return %arg0, %c0_i32, %c0_i32_0 : i32, i32, i32
  }
}

</mosaic_0001>

<llo_original>
// kernel: tpu_custom_call.1
$region0: #{tpu_custom_call.1}
  #allocation0 [shape = 'u32[]', space=smem, size = 0x4, offset = 0x4, fixed_abs, tag = 'smem constant byte address 0x4 - core index']
  #allocation1 [shape = 'u32[144,128]{1,0:T(1,128)}', space=vmem, size = 0x12000, scoped, tag = 'internal scratch']
  #allocation2 [shape = 'f32[1,1]{1,0:T(1,128)S(1)}', space=vmem, size = 0x200, scoped, tag = 'scoped memory for tpu_custom_call.1']
  %s0 = inlined_call_operand.hbm [shape: f32[16,16], index: 0, kind: input, shape index: {}]
  %s1 = inlined_call_operand.vmem [shape: f32[16,8], index: 1, kind: input, shape index: {}]
  %s2 = inlined_call_operand.vmem [shape: f32[3,16,16], index: 2, kind: input, shape index: {}]
  %s3 = inlined_call_operand.vmem [shape: f32[3,1,16], index: 3, kind: input, shape index: {}]
  %s4 = inlined_call_operand.vmem [shape: f32[3,1,16], index: 4, kind: input, shape index: {}]
  %s5 = inlined_call_operand.hbm [shape: f32[3,16,16], index: 5, kind: input, shape index: {}]
  %s6 = inlined_call_operand.vmem [shape: f32[3,1,16], index: 6, kind: input, shape index: {}]
  %s7 = inlined_call_operand.hbm [shape: f32[3,16,16], index: 7, kind: input, shape index: {}]
  %s8 = inlined_call_operand.vmem [shape: f32[3,1,16], index: 8, kind: input, shape index: {}]
  %s9 = inlined_call_operand.vmem [shape: f32[3,1,16], index: 9, kind: input, shape index: {}]
  %s10 = inlined_call_operand.hbm [shape: f32[3,16,16], index: 10, kind: input, shape index: {}]
  %s11 = inlined_call_operand.vmem [shape: f32[3,1,16], index: 11, kind: input, shape index: {}]
  %s12 = inlined_call_operand.vmem [shape: f32[16,1], index: 12, kind: input, shape index: {}]
  %s13 = inlined_call_operand.vmem [shape: f32[16,1], index: 13, kind: input, shape index: {}]
  %s14 = inlined_call_operand.<no memory space> [shape: f32[1,1], index: 14, kind: input, shape index: {}]
  %s15 = inlined_call_operand.vmem [shape: f32[2,8,1], index: 15, kind: output, shape index: {}]
  %s16 = sld [smem:[#allocation0]]
  $region109: #{tpu_custom_call.1} parent=0
    _
  %s18 = ssub.s32 1, %s16
  %s19 = scalar_select 0, %s18, %s16
  %v20 = vstv %s14
  %21 = vst [vmem:[#allocation2] sm:$0x1] %v20
  $region1: #{tpu_custom_call.1} parent=0
    #allocation3 [shape = 'u8[8192]{0}', space=vmem, size = 0x2000, scoped, tag = 'input window, operand 0']
    #allocation4 [shape = 's32[2]{0}', space=sflag, size = 0x8, scoped, tag = 'scoped memory for tpu_custom_call.1']
    #allocation5 [shape = 'u8[24576]{0}', space=vmem, size = 0x6000, scoped, tag = 'input window, operand 5, single buffered']
    #allocation6 [shape = 's32[1]{0}', space=sflag, size = 0x4, scoped, tag = 'scoped memory for tpu_custom_call.1']
    #allocation7 [shape = 'u8[24576]{0}', space=vmem, size = 0x6000, scoped, tag = 'input window, operand 7, single buffered']
    #allocation8 [shape = 'u8[24576]{0}', space=vmem, size = 0x6000, scoped, tag = 'input window, operand 10, single buffered']
    #allocation9 [shape = 's32[1]{0}', space=sflag, size = 0x4, scoped, tag = 'scoped memory for tpu_custom_call.1']
    %22 = vsyncpa [#allocation4], 0
    %s23 = scalar_lea.sflag [#allocation4], 1
    %24 = vsyncpa %s23, 0
    %25 = vsyncpa [#allocation6], 0
    %26 = vsyncpa [#allocation9], 0
    loop: start=0, step=1, limit=4
    $region2: #{tpu_custom_call.1} parent=1 // loop_pre_header
      _
    $region3: #{tpu_custom_call.1} parent=1 // loop_header
      %s28 = sphi 0, %s32
      %p29 = scmp.ge.s32.totalorder %s28, 4
      %s38 = sphi 0, %s40
      %s41 = sphi 0, %s38
      %s42 = sphi 0, %s41
      %s58 = sphi 0, %s42
      %s64 = sphi 0, %s66
      %s67 = sphi 0, %s64
      %s68 = sphi 0, %s67
      %s84 = sphi 0, %s68
      %s88 = sphi 0, %s88
      %s90 = sphi 0, %s88
      %s91 = sphi 0, %s90
      %s105 = sphi 0, %s91
      %s109 = sphi 0, %s109
      %s111 = sphi 0, %s109
      %s112 = sphi 0, %s111
      %s126 = sphi 0, %s112
      %s130 = sphi 0, %s130
      %s132 = sphi 0, %s130
      %s133 = sphi 0, %s132
      %s147 = sphi 0, %s133
      %s151 = sphi 0, %s151
      %s153 = sphi 0, %s151
      %s154 = sphi 0, %s153
      %s168 = sphi 0, %s154
      %s172 = sphi 0, %s172
      %s174 = sphi 0, %s172
      %s175 = sphi 0, %s174
      %s189 = sphi 0, %s175
      %s193 = sphi 0, %s193
      %s195 = sphi 0, %s193
      %s196 = sphi 0, %s195
      %s210 = sphi 0, %s196
      %s214 = sphi 0, %s214
      %s216 = sphi 0, %s214
      %s217 = sphi 0, %s216
      %s231 = sphi 0, %s217
      %s235 = sphi 0, %s235
      %s237 = sphi 0, %s235
      %s238 = sphi 0, %s237
      %s252 = sphi 0, %s238
      %s256 = sphi 0, %s256
      %s258 = sphi 0, %s256
      %s259 = sphi 0, %s258
      %s273 = sphi 0, %s259
      %s277 = sphi 0, %s277
      %s279 = sphi 0, %s277
      %s280 = sphi 0, %s279
      %s294 = sphi 0, %s280
      %s298 = sphi 0, %s298
      %s300 = sphi 0, %s298
      %s301 = sphi 0, %s300
      %s315 = sphi 0, %s301
      %s319 = sphi 0, %s319
      %s321 = sphi 0, %s319
      %s322 = sphi 0, %s321
      %s336 = sphi 0, %s322
      %s340 = sphi 0, %s340
      %s342 = sphi 0, %s340
      %s343 = sphi 0, %s342
      %s357 = sphi 0, %s343
      %s363 = sphi 0, %s365
      %s366 = sphi 0, %s363
      %s367 = sphi 0, %s366
      %s383 = sphi 0, %s367
    $region4: #{tpu_custom_call.1} parent=1 // loop_header_branch
      %31 = sbr.rel (%p29) target = $region8
    $region5: #{tpu_custom_call.1} parent=1 // loop_body
      %s33 = ssub.s32 %s28, 1
      %s34 = ssub.s32 %s28, 2
      %s35 = sadd.s32 %s28, 1
      %s36 = ssub.s32 %s28, %s35
      %p37 = scmp.eq.s32.totalorder %s36, 0
      %s39 = sadd.s32 %s38, 1
      %s40 = scalar_select %p37, %s38, %s39
      %p43 = pneg %p37
      %p44 = scmp.eq.s32.totalorder %s28, 1
      %p45 = por %p43, %p44
      %p46 = scmp.ne.s32.totalorder %s38, %s41
      %p47 = scmp.eq.s32.totalorder %s28, 0
      %p48 = por %p46, %p47
      %p49 = scmp.ne.s32.totalorder %s38, %s41
      %p50 = scmp.eq.s32.totalorder %s33, 1
      %p51 = por %p49, %p50
      %p52 = scmp.ne.s32.totalorder %s41, %s42
      %p53 = scmp.eq.s32.totalorder %s33, 0
      %p54 = por %p52, %p53
      %p55 = scmp.ne.s32.totalorder %s41, %s42
      %p56 = scmp.eq.s32.totalorder %s34, 1
      %p57 = por %p55, %p56
      %p59 = scmp.ne.s32.totalorder %s42, %s58
      %p60 = scmp.eq.s32.totalorder %s34, 0
      %p61 = por %p59, %p60
      %s62 = ssub.s32 %s28, %s35
      %p63 = scmp.eq.s32.totalorder %s62, 0
      %s65 = sadd.s32 %s64, 1
      %s66 = scalar_select %p63, %s64, %s65
      %p69 = pneg %p63
      %p70 = scmp.eq.s32.totalorder %s28, 1
      %p71 = por %p69, %p70
      %p72 = scmp.ne.s32.totalorder %s64, %s67
      %p73 = scmp.eq.s32.totalorder %s28, 0
      %p74 = por %p72, %p73
      %p75 = scmp.ne.s32.totalorder %s64, %s67
      %p76 = scmp.eq.s32.totalorder %s33, 1
      %p77 = por %p75, %p76
      %p78 = scmp.ne.s32.totalorder %s67, %s68
      %p79 = scmp.eq.s32.totalorder %s33, 0
      %p80 = por %p78, %p79
      %p81 = scmp.ne.s32.totalorder %s67, %s68
      %p82 = scmp.eq.s32.totalorder %s34, 1
      %p83 = por %p81, %p82
      %p85 = scmp.ne.s32.totalorder %s68, %s84
      %p86 = scmp.eq.s32.totalorder %s34, 0
      %p87 = por %p85, %p86
      %s89 = sadd.s32 %s88, 1
      %p92 = scmp.eq.s32.totalorder %s28, 1
      %p93 = scmp.ne.s32.totalorder %s88, %s90
      %p94 = scmp.eq.s32.totalorder %s28, 0
      %p95 = por %p93, %p94
      %p96 = scmp.ne.s32.totalorder %s88, %s90
      %p97 = scmp.eq.s32.totalorder %s33, 1
      %p98 = por %p96, %p97
      %p99 = scmp.ne.s32.totalorder %s90, %s91
      %p100 = scmp.eq.s32.totalorder %s33, 0
      %p101 = por %p99, %p100
      %p102 = scmp.ne.s32.totalorder %s90, %s91
      %p103 = scmp.eq.s32.totalorder %s34, 1
      %p104 = por %p102, %p103
      %p106 = scmp.ne.s32.totalorder %s91, %s105
      %p107 = scmp.eq.s32.totalorder %s34, 0
      %p108 = por %p106, %p107
      %s110 = sadd.s32 %s109, 1
      %p113 = scmp.eq.s32.totalorder %s28, 1
      %p114 = scmp.ne.s32.totalorder %s109, %s111
      %p115 = scmp.eq.s32.totalorder %s28, 0
      %p116 = por %p114, %p115
      %p117 = scmp.ne.s32.totalorder %s109, %s111
      %p118 = scmp.eq.s32.totalorder %s33, 1
      %p119 = por %p117, %p118
      %p120 = scmp.ne.s32.totalorder %s111, %s112
      %p121 = scmp.eq.s32.totalorder %s33, 0
      %p122 = por %p120, %p121
      %p123 = scmp.ne.s32.totalorder %s111, %s112
      %p124 = scmp.eq.s32.totalorder %s34, 1
      %p125 = por %p123, %p124
      %p127 = scmp.ne.s32.totalorder %s112, %s126
      %p128 = scmp.eq.s32.totalorder %s34, 0
      %p129 = por %p127, %p128
      %s131 = sadd.s32 %s130, 1
      %p134 = scmp.eq.s32.totalorder %s28, 1
      %p135 = scmp.ne.s32.totalorder %s130, %s132
      %p136 = scmp.eq.s32.totalorder %s28, 0
      %p137 = por %p135, %p136
      %p138 = scmp.ne.s32.totalorder %s130, %s132
      %p139 = scmp.eq.s32.totalorder %s33, 1
      %p140 = por %p138, %p139
      %p141 = scmp.ne.s32.totalorder %s132, %s133
      %p142 = scmp.eq.s32.totalorder %s33, 0
      %p143 = por %p141, %p142
      %p144 = scmp.ne.s32.totalorder %s132, %s133
      %p145 = scmp.eq.s32.totalorder %s34, 1
      %p146 = por %p144, %p145
      %p148 = scmp.ne.s32.totalorder %s133, %s147
      %p149 = scmp.eq.s32.totalorder %s34, 0
      %p150 = por %p148, %p149
      %s152 = sadd.s32 %s151, 1
      %p155 = scmp.eq.s32.totalorder %s28, 1
      %p156 = scmp.ne.s32.totalorder %s151, %s153
      %p157 = scmp.eq.s32.totalorder %s28, 0
      %p158 = por %p156, %p157
      %p159 = scmp.ne.s32.totalorder %s151, %s153
      %p160 = scmp.eq.s32.totalorder %s33, 1
      %p161 = por %p159, %p160
      %p162 = scmp.ne.s32.totalorder %s153, %s154
      %p163 = scmp.eq.s32.totalorder %s33, 0
      %p164 = por %p162, %p163
      %p165 = scmp.ne.s32.totalorder %s153, %s154
      %p166 = scmp.eq.s32.totalorder %s34, 1
      %p167 = por %p165, %p166
      %p169 = scmp.ne.s32.totalorder %s154, %s168
      %p170 = scmp.eq.s32.totalorder %s34, 0
      %p171 = por %p169, %p170
      %s173 = sadd.s32 %s172, 1
      %p176 = scmp.eq.s32.totalorder %s28, 1
      %p177 = scmp.ne.s32.totalorder %s172, %s174
      %p178 = scmp.eq.s32.totalorder %s28, 0
      %p179 = por %p177, %p178
      %p180 = scmp.ne.s32.totalorder %s172, %s174
      %p181 = scmp.eq.s32.totalorder %s33, 1
      %p182 = por %p180, %p181
      %p183 = scmp.ne.s32.totalorder %s174, %s175
      %p184 = scmp.eq.s32.totalorder %s33, 0
      %p185 = por %p183, %p184
      %p186 = scmp.ne.s32.totalorder %s174, %s175
      %p187 = scmp.eq.s32.totalorder %s34, 1
      %p188 = por %p186, %p187
      %p190 = scmp.ne.s32.totalorder %s175, %s189
      %p191 = scmp.eq.s32.totalorder %s34, 0
      %p192 = por %p190, %p191
      %s194 = sadd.s32 %s193, 1
      %p197 = scmp.eq.s32.totalorder %s28, 1
      %p198 = scmp.ne.s32.totalorder %s193, %s195
      %p199 = scmp.eq.s32.totalorder %s28, 0
      %p200 = por %p198, %p199
      %p201 = scmp.ne.s32.totalorder %s193, %s195
      %p202 = scmp.eq.s32.totalorder %s33, 1
      %p203 = por %p201, %p202
      %p204 = scmp.ne.s32.totalorder %s195, %s196
      %p205 = scmp.eq.s32.totalorder %s33, 0
      %p206 = por %p204, %p205
      %p207 = scmp.ne.s32.totalorder %s195, %s196
      %p208 = scmp.eq.s32.totalorder %s34, 1
      %p209 = por %p207, %p208
      %p211 = scmp.ne.s32.totalorder %s196, %s210
      %p212 = scmp.eq.s32.totalorder %s34, 0
      %p213 = por %p211, %p212
      %s215 = sadd.s32 %s214, 1
      %p218 = scmp.eq.s32.totalorder %s28, 1
      %p219 = scmp.ne.s32.totalorder %s214, %s216
      %p220 = scmp.eq.s32.totalorder %s28, 0
      %p221 = por %p219, %p220
      %p222 = scmp.ne.s32.totalorder %s214, %s216
      %p223 = scmp.eq.s32.totalorder %s33, 1
      %p224 = por %p222, %p223
      %p225 = scmp.ne.s32.totalorder %s216, %s217
      %p226 = scmp.eq.s32.totalorder %s33, 0
      %p227 = por %p225, %p226
      %p228 = scmp.ne.s32.totalorder %s216, %s217
      %p229 = scmp.eq.s32.totalorder %s34, 1
      %p230 = por %p228, %p229
      %p232 = scmp.ne.s32.totalorder %s217, %s231
      %p233 = scmp.eq.s32.totalorder %s34, 0
      %p234 = por %p232, %p233
      %s236 = sadd.s32 %s235, 1
      %p239 = scmp.eq.s32.totalorder %s28, 1
      %p240 = scmp.ne.s32.totalorder %s235, %s237
      %p241 = scmp.eq.s32.totalorder %s28, 0
      %p242 = por %p240, %p241
      %p243 = scmp.ne.s32.totalorder %s235, %s237
      %p244 = scmp.eq.s32.totalorder %s33, 1
      %p245 = por %p243, %p244
      %p246 = scmp.ne.s32.totalorder %s237, %s238
      %p247 = scmp.eq.s32.totalorder %s33, 0
      %p248 = por %p246, %p247
      %p249 = scmp.ne.s32.totalorder %s237, %s238
      %p250 = scmp.eq.s32.totalorder %s34, 1
      %p251 = por %p249, %p250
      %p253 = scmp.ne.s32.totalorder %s238, %s252
      %p254 = scmp.eq.s32.totalorder %s34, 0
      %p255 = por %p253, %p254
      %s257 = sadd.s32 %s256, 1
      %p260 = scmp.eq.s32.totalorder %s28, 1
      %p261 = scmp.ne.s32.totalorder %s256, %s258
      %p262 = scmp.eq.s32.totalorder %s28, 0
      %p263 = por %p261, %p262
      %p264 = scmp.ne.s32.totalorder %s256, %s258
      %p265 = scmp.eq.s32.totalorder %s33, 1
      %p266 = por %p264, %p265
      %p267 = scmp.ne.s32.totalorder %s258, %s259
      %p268 = scmp.eq.s32.totalorder %s33, 0
      %p269 = por %p267, %p268
      %p270 = scmp.ne.s32.totalorder %s258, %s259
      %p271 = scmp.eq.s32.totalorder %s34, 1
      %p272 = por %p270, %p271
      %p274 = scmp.ne.s32.totalorder %s259, %s273
      %p275 = scmp.eq.s32.totalorder %s34, 0
      %p276 = por %p274, %p275
      %s278 = sadd.s32 %s277, 1
      %p281 = scmp.eq.s32.totalorder %s28, 1
      %p282 = scmp.ne.s32.totalorder %s277, %s279
      %p283 = scmp.eq.s32.totalorder %s28, 0
      %p284 = por %p282, %p283
      %p285 = scmp.ne.s32.totalorder %s277, %s279
      %p286 = scmp.eq.s32.totalorder %s33, 1
      %p287 = por %p285, %p286
      %p288 = scmp.ne.s32.totalorder %s279, %s280
      %p289 = scmp.eq.s32.totalorder %s33, 0
      %p290 = por %p288, %p289
      %p291 = scmp.ne.s32.totalorder %s279, %s280
      %p292 = scmp.eq.s32.totalorder %s34, 1
      %p293 = por %p291, %p292
      %p295 = scmp.ne.s32.totalorder %s280, %s294
      %p296 = scmp.eq.s32.totalorder %s34, 0
      %p297 = por %p295, %p296
      %s299 = sadd.s32 %s298, 1
      %p302 = scmp.eq.s32.totalorder %s28, 1
      %p303 = scmp.ne.s32.totalorder %s298, %s300
      %p304 = scmp.eq.s32.totalorder %s28, 0
      %p305 = por %p303, %p304
      %p306 = scmp.ne.s32.totalorder %s298, %s300
      %p307 = scmp.eq.s32.totalorder %s33, 1
      %p308 = por %p306, %p307
      %p309 = scmp.ne.s32.totalorder %s300, %s301
      %p310 = scmp.eq.s32.totalorder %s33, 0
      %p311 = por %p309, %p310
      %p312 = scmp.ne.s32.totalorder %s300, %s301
      %p313 = scmp.eq.s32.totalorder %s34, 1
      %p314 = por %p312, %p313
      %p316 = scmp.ne.s32.totalorder %s301, %s315
      %p317 = scmp.eq.s32.totalorder %s34, 0
      %p318 = por %p316, %p317
      %s320 = sadd.s32 %s319, 1
      %p323 = scmp.eq.s32.totalorder %s28, 1
      %p324 = scmp.ne.s32.totalorder %s319, %s321
      %p325 = scmp.eq.s32.totalorder %s28, 0
      %p326 = por %p324, %p325
      %p327 = scmp.ne.s32.totalorder %s319, %s321
      %p328 = scmp.eq.s32.totalorder %s33, 1
      %p329 = por %p327, %p328
      %p330 = scmp.ne.s32.totalorder %s321, %s322
      %p331 = scmp.eq.s32.totalorder %s33, 0
      %p332 = por %p330, %p331
      %p333 = scmp.ne.s32.totalorder %s321, %s322
      %p334 = scmp.eq.s32.totalorder %s34, 1
      %p335 = por %p333, %p334
      %p337 = scmp.ne.s32.totalorder %s322, %s336
      %p338 = scmp.eq.s32.totalorder %s34, 0
      %p339 = por %p337, %p338
      %s341 = sadd.s32 %s340, 1
      %p344 = scmp.eq.s32.totalorder %s28, 1
      %p345 = scmp.ne.s32.totalorder %s340, %s342
      %p346 = scmp.eq.s32.totalorder %s28, 0
      %p347 = por %p345, %p346
      %p348 = scmp.ne.s32.totalorder %s340, %s342
      %p349 = scmp.eq.s32.totalorder %s33, 1
      %p350 = por %p348, %p349
      %p351 = scmp.ne.s32.totalorder %s342, %s343
      %p352 = scmp.eq.s32.totalorder %s33, 0
      %p353 = por %p351, %p352
      %p354 = scmp.ne.s32.totalorder %s342, %s343
      %p355 = scmp.eq.s32.totalorder %s34, 1
      %p356 = por %p354, %p355
      %p358 = scmp.ne.s32.totalorder %s343, %s357
      %p359 = scmp.eq.s32.totalorder %s34, 0
      %p360 = por %p358, %p359
      %s361 = ssub.s32 %s28, %s35
      %p362 = scmp.eq.s32.totalorder %s361, 0
      %s364 = sadd.s32 %s363, 1
      %s365 = scalar_select %p362, %s363, %s364
      %p368 = pneg %p362
      %p369 = scmp.eq.s32.totalorder %s28, 1
      %p370 = por %p368, %p369
      %p371 = scmp.ne.s32.totalorder %s363, %s366
      %p372 = scmp.eq.s32.totalorder %s28, 0
      %p373 = por %p371, %p372
      %p374 = scmp.ne.s32.totalorder %s363, %s366
      %p375 = scmp.eq.s32.totalorder %s33, 1
      %p376 = por %p374, %p375
      %p377 = scmp.ne.s32.totalorder %s366, %s367
      %p378 = scmp.eq.s32.totalorder %s33, 0
      %p379 = por %p377, %p378
      %p380 = scmp.ne.s32.totalorder %s366, %s367
      %p381 = scmp.eq.s32.totalorder %s34, 1
      %p382 = por %p380, %p381
      %p384 = scmp.ne.s32.totalorder %s367, %s383
      %p385 = scmp.eq.s32.totalorder %s34, 0
      %p386 = por %p384, %p385
      %p387 = scmp.le.s32.totalorder 1, %s28
      %p388 = scmp.lt.s32.totalorder %s28, 3
      %p389 = pnand %p387, %p388
      %p390 = pneg %p389
      // Predicated region
      $region9: #{tpu_custom_call.1} parent=5 // pred_check
        _
      $region10: #{tpu_custom_call.1} parent=5 // pred_check_branch
        %392 = sbr.rel (%p389) target = $region12
      $region11: #{tpu_custom_call.1} parent=5 // pred_region
        %s393 = ssub.s32 %s28, 1
        // Predicated region
        $region13: #{tpu_custom_call.1} parent=11 // pred_check
          %p394 = pneg %p101
        $region14: #{tpu_custom_call.1} parent=11 // pred_check_branch
          %396 = sbr.rel (%p394) target = $region16
        $region15: #{tpu_custom_call.1} parent=11 // pred_region
          _
        $region16: #{tpu_custom_call.1} parent=11 // pred_fallthru
          _
        // Predicated region
        $region17: #{tpu_custom_call.1} parent=11 // pred_check
          %p397 = pneg %p122
        $region18: #{tpu_custom_call.1} parent=11 // pred_check_branch
          %399 = sbr.rel (%p397) target = $region20
        $region19: #{tpu_custom_call.1} parent=11 // pred_region
          _
        $region20: #{tpu_custom_call.1} parent=11 // pred_fallthru
          _
        // Predicated region
        $region21: #{tpu_custom_call.1} parent=11 // pred_check
          %p400 = pneg %p143
        $region22: #{tpu_custom_call.1} parent=11 // pred_check_branch
          %402 = sbr.rel (%p400) target = $region24
        $region23: #{tpu_custom_call.1} parent=11 // pred_region
          _
        $region24: #{tpu_custom_call.1} parent=11 // pred_fallthru
          _
        // Predicated region
        $region25: #{tpu_custom_call.1} parent=11 // pred_check
          %p403 = pneg %p164
        $region26: #{tpu_custom_call.1} parent=11 // pred_check_branch
          %405 = sbr.rel (%p403) target = $region28
        $region27: #{tpu_custom_call.1} parent=11 // pred_region
          %s407 = ssub.s32 768, 768
          %408 = vsyncadd [#allocation6], %s407
          %s409 = sshll.u32 [#allocation5], 4
          %s410 = int_to_ptr.vmem [resolvable:$true] %s409
          %415 = dma.hbm_to_vmem [thread:$0]  %s5, 768, %s410, [#allocation6], 128, 128, 8
        $region28: #{tpu_custom_call.1} parent=11 // pred_fallthru
          _
        // Predicated region
        $region29: #{tpu_custom_call.1} parent=11 // pred_check
          %p416 = pneg %p185
        $region30: #{tpu_custom_call.1} parent=11 // pred_check_branch
          %418 = sbr.rel (%p416) target = $region32
        $region31: #{tpu_custom_call.1} parent=11 // pred_region
          _
        $region32: #{tpu_custom_call.1} parent=11 // pred_fallthru
          _
        // Predicated region
        $region33: #{tpu_custom_call.1} parent=11 // pred_check
          %p419 = pneg %p206
        $region34: #{tpu_custom_call.1} parent=11 // pred_check_branch
          %421 = sbr.rel (%p419) target = $region36
        $region35: #{tpu_custom_call.1} parent=11 // pred_region
          %s423 = ssub.s32 768, 768
          %424 = vsyncadd [#allocation6], %s423
          %s425 = sshll.u32 [#allocation7], 4
          %s426 = int_to_ptr.vmem [resolvable:$true] %s425
          %431 = dma.hbm_to_vmem [thread:$0]  %s7, 768, %s426, [#allocation6], 128, 128, 8
        $region36: #{tpu_custom_call.1} parent=11 // pred_fallthru
          _
        // Predicated region
        $region37: #{tpu_custom_call.1} parent=11 // pred_check
          %p432 = pneg %p227
        $region38: #{tpu_custom_call.1} parent=11 // pred_check_branch
          %434 = sbr.rel (%p432) target = $region40
        $region39: #{tpu_custom_call.1} parent=11 // pred_region
          _
        $region40: #{tpu_custom_call.1} parent=11 // pred_fallthru
          _
        // Predicated region
        $region41: #{tpu_custom_call.1} parent=11 // pred_check
          %p435 = pneg %p248
        $region42: #{tpu_custom_call.1} parent=11 // pred_check_branch
          %437 = sbr.rel (%p435) target = $region44
        $region43: #{tpu_custom_call.1} parent=11 // pred_region
          _
        $region44: #{tpu_custom_call.1} parent=11 // pred_fallthru
          _
        // Predicated region
        $region45: #{tpu_custom_call.1} parent=11 // pred_check
          %p438 = pneg %p269
        $region46: #{tpu_custom_call.1} parent=11 // pred_check_branch
          %440 = sbr.rel (%p438) target = $region48
        $region47: #{tpu_custom_call.1} parent=11 // pred_region
          %s442 = ssub.s32 768, 768
          %443 = vsyncadd [#allocation9], %s442
          %s444 = sshll.u32 [#allocation8], 4
          %s445 = int_to_ptr.vmem [resolvable:$true] %s444
          %450 = dma.hbm_to_vmem [thread:$0]  %s10, 768, %s445, [#allocation9], 128, 128, 8
        $region48: #{tpu_custom_call.1} parent=11 // pred_fallthru
          _
        // Predicated region
        $region49: #{tpu_custom_call.1} parent=11 // pred_check
          %p451 = pneg %p290
        $region50: #{tpu_custom_call.1} parent=11 // pred_check_branch
          %453 = sbr.rel (%p451) target = $region52
        $region51: #{tpu_custom_call.1} parent=11 // pred_region
          _
        $region52: #{tpu_custom_call.1} parent=11 // pred_fallthru
          _
        // Predicated region
        $region53: #{tpu_custom_call.1} parent=11 // pred_check
          %p454 = pneg %p311
        $region54: #{tpu_custom_call.1} parent=11 // pred_check_branch
          %456 = sbr.rel (%p454) target = $region56
        $region55: #{tpu_custom_call.1} parent=11 // pred_region
          _
        $region56: #{tpu_custom_call.1} parent=11 // pred_fallthru
          _
        // Predicated region
        $region57: #{tpu_custom_call.1} parent=11 // pred_check
          %p457 = pneg %p332
        $region58: #{tpu_custom_call.1} parent=11 // pred_check_branch
          %459 = sbr.rel (%p457) target = $region60
        $region59: #{tpu_custom_call.1} parent=11 // pred_region
          _
        $region60: #{tpu_custom_call.1} parent=11 // pred_fallthru
          _
        // Predicated region
        $region61: #{tpu_custom_call.1} parent=11 // pred_check
          %p460 = pneg %p353
        $region62: #{tpu_custom_call.1} parent=11 // pred_check_branch
          %462 = sbr.rel (%p460) target = $region64
        $region63: #{tpu_custom_call.1} parent=11 // pred_region
          _
        $region64: #{tpu_custom_call.1} parent=11 // pred_fallthru
          _
      $region12: #{tpu_custom_call.1} parent=5 // pred_fallthru
        _
      %p463 = scmp.lt.s32.totalorder %s28, 2
      // Predicated region
      $region65: #{tpu_custom_call.1} parent=5 // pred_check
        %p464 = pneg %p463
      $region66: #{tpu_custom_call.1} parent=5 // pred_check_branch
        %466 = sbr.rel (%p464) target = $region68
      $region67: #{tpu_custom_call.1} parent=5 // pred_region
        // Predicated region
        $region69: #{tpu_custom_call.1} parent=67 // pred_check
          %p467 = pneg %p48
        $region70: #{tpu_custom_call.1} parent=67 // pred_check_branch
          %469 = sbr.rel (%p467) target = $region72
        $region71: #{tpu_custom_call.1} parent=67 // pred_region
          %s470 = sand.u32 %s38, 1
          %s471 = scalar_lea.sflag [#allocation4], %s470
          %s472 = sand.u32 %s38, 1
          %s473 = smul.addr %s472, 8
          %s474 = scalar_lea.vmem [#allocation3], %s473
          %s476 = ssub.s32 128, 128
          %477 = vsyncadd %s471, %s476
          %s478 = smul.addr %s28, 128
          %s479 = scalar_lea.hbm %s0, %s478
          %s481 = sshll.u32 %s474, 4
          %s482 = int_to_ptr.vmem [resolvable:$true] %s481
          %484 = dma.hbm_to_vmem [thread:$0]  %s479, 128, %s482, %s471
        $region72: #{tpu_custom_call.1} parent=67 // pred_fallthru
          _
        // Predicated region
        $region73: #{tpu_custom_call.1} parent=67 // pred_check
          %p485 = pneg %p74
        $region74: #{tpu_custom_call.1} parent=67 // pred_check_branch
          %487 = sbr.rel (%p485) target = $region76
        $region75: #{tpu_custom_call.1} parent=67 // pred_region
          %p488 = scmp.lt.s32.totalorder %s28, 1
          %s489 = scalar_select %p488, %s28, 1
          %s490 = smul.addr %s489, 8
          %s491 = scalar_lea.vmem %s1, %s490
        $region76: #{tpu_custom_call.1} parent=67 // pred_fallthru
          _
      $region68: #{tpu_custom_call.1} parent=5 // pred_fallthru
        _
      %p492 = scmp.le.s32.totalorder 1, %s28
      %p493 = scmp.lt.s32.totalorder %s28, 3
      %p494 = pnand %p492, %p493
      %p495 = pneg %p494
      // Predicated region
      $region77: #{tpu_custom_call.1} parent=5 // pred_check
        _
      $region78: #{tpu_custom_call.1} parent=5 // pred_check_branch
        %497 = sbr.rel (%p494) target = $region80
      $region79: #{tpu_custom_call.1} parent=5 // pred_region
        %s498 = ssub.s32 %s28, 1
        %s499 = sand.u32 %s41, 1
        %s500 = scalar_lea.sflag [#allocation4], %s499
        %s501 = sand.u32 %s41, 1
        %s502 = smul.addr %s501, 8
        %s503 = scalar_lea.vmem [#allocation3], %s502
        // Predicated region
        $region81: #{tpu_custom_call.1} parent=79 // pred_check
          %p504 = pneg %p54
        $region82: #{tpu_custom_call.1} parent=79 // pred_check_branch
          %506 = sbr.rel (%p504) target = $region84
        $region83: #{tpu_custom_call.1} parent=79 // pred_region
          %507 = dma.done %s500, 128
        $region84: #{tpu_custom_call.1} parent=79 // pred_fallthru
          _
        // Predicated region
        $region85: #{tpu_custom_call.1} parent=79 // pred_check
          %p508 = pneg %p164
        $region86: #{tpu_custom_call.1} parent=79 // pred_check_branch
          %510 = sbr.rel (%p508) target = $region88
        $region87: #{tpu_custom_call.1} parent=79 // pred_region
          %511 = dma.done [#allocation6], 768
        $region88: #{tpu_custom_call.1} parent=79 // pred_fallthru
          _
        // Predicated region
        $region89: #{tpu_custom_call.1} parent=79 // pred_check
          %p512 = pneg %p206
        $region90: #{tpu_custom_call.1} parent=79 // pred_check_branch
          %514 = sbr.rel (%p512) target = $region92
        $region91: #{tpu_custom_call.1} parent=79 // pred_region
          %515 = dma.done [#allocation6], 768
        $region92: #{tpu_custom_call.1} parent=79 // pred_fallthru
          _
        // Predicated region
        $region93: #{tpu_custom_call.1} parent=79 // pred_check
          %p516 = pneg %p269
        $region94: #{tpu_custom_call.1} parent=79 // pred_check_branch
          %518 = sbr.rel (%p516) target = $region96
        $region95: #{tpu_custom_call.1} parent=79 // pred_region
          %519 = dma.done [#allocation9], 768
        $region96: #{tpu_custom_call.1} parent=79 // pred_fallthru
          _
        %s520 = sand.u32 %s41, 1
        %s521 = scalar_lea.sflag [#allocation4], %s520
        %s522 = sand.u32 %s41, 1
        %s523 = smul.addr %s522, 8
        %s524 = scalar_lea.vmem [#allocation3], %s523
        %p525 = pneg %p54
        %p526 = pneg %p51
        %p527 = scmp.lt.s32.totalorder %s33, 1
        %s528 = scalar_select %p527, %s33, 1
        %s529 = smul.addr %s528, 8
        %s530 = scalar_lea.vmem %s1, %s529
        %p531 = pneg %p80
        %p532 = pneg %p77
        %p533 = pneg %p101
        %p534 = pneg %p98
        %p535 = pneg %p122
        %p536 = pneg %p119
        %p537 = pneg %p143
        %p538 = pneg %p140
        %p539 = pneg %p164
        %p540 = pneg %p161
        %p541 = pneg %p185
        %p542 = pneg %p182
        %p543 = pneg %p206
        %p544 = pneg %p203
        %p545 = pneg %p227
        %p546 = pneg %p224
        %p547 = pneg %p248
        %p548 = pneg %p245
        %p549 = pneg %p269
        %p550 = pneg %p266
        %p551 = pneg %p290
        %p552 = pneg %p287
        %p553 = pneg %p311
        %p554 = pneg %p308
        %p555 = pneg %p332
        %p556 = pneg %p329
        %p557 = pneg %p353
        %p558 = pneg %p350
        %p559 = pneg %p379
        %p560 = pneg %p376
        %p561 = scmp.lt.s32.totalorder %s33, 1
        %s562 = scalar_select %p561, %s33, 1
        %s563 = smul.addr %s562, 8
        %s564 = scalar_lea.vmem %s15, %s563
        %p565 = scmp.lt.s32.totalorder %s33, 1
        %s566 = scalar_select %p565, %s33, 1
        %s567 = smul.addr %s566, 8
        %s568 = scalar_lea.vmem %s1, %s567
        %p569 = scmp.lt.s32.totalorder %s33, 1
        %s570 = scalar_select %p569, %s33, 1
        %s571 = smul.addr %s570, 8
        %s572 = scalar_lea.vmem %s15, %s571
        %v573 = vld [vmem:[%s503] sm:$0xff]
        %v574 = vld [vmem:[%s568] sm:$0xff]
        %v575 = vld [vmem:[%s2] sm:$0xff]
        %v576 = vld [vmem:[%s2 + $0x8] sm:$0xff]
        %v577 = vld [vmem:[%s3] sm:$0x1]
        %v579 = vlaneseq
        %v580 = vshrl.u32 %v579, 7
        %v581 = vsub.s32 0, %v580
        %v582 = vrot.slane %v577, %v581
        %vm584 = vcmask 130048
        %v586 = vsel %vm584, %v573, 0
        %588 = vmatprep.subr.mxu0 0.0
        %589 = vmatpush1.msra.mxu0 0.0
        %590 = vmatprep.subr.mxu0 0.0
        %591 = vmatpush1.msra.mxu0 0.0
        %592 = vmatprep.subr.mxu0 0.0
        %593 = vmatpush1.msra.mxu0 0.0
        %594 = vmatprep.subr.mxu0 0.0
        %595 = vmatpush1.msra.mxu0 0.0
        %596 = vmatprep.subr.mxu0 0.0
        %597 = vmatpush1.msra.mxu0 0.0
        %598 = vmatprep.subr.mxu0 0.0
        %599 = vmatpush1.msra.mxu0 0.0
        %600 = vmatprep.subr.mxu0 0.0
        %601 = vmatpush1.msra.mxu0 0.0
        %602 = vmatprep.subr.mxu0 0.0
        %603 = vmatpush1.msra.mxu0 0.0
        %604 = vmatprep.subr.mxu0 0.0
        %605 = vmatpush1.msra.mxu0 0.0
        %606 = vmatprep.subr.mxu0 0.0
        %607 = vmatpush1.msra.mxu0 0.0
        %608 = vmatprep.subr.mxu0 0.0
        %609 = vmatpush1.msra.mxu0 0.0
        %610 = vmatprep.subr.mxu0 0.0
        %611 = vmatpush1.msra.mxu0 0.0
        %612 = vmatprep.subr.mxu0 0.0
        %613 = vmatpush1.msra.mxu0 0.0
        %614 = vmatprep.subr.mxu0 0.0
        %615 = vmatpush1.msra.mxu0 0.0
        %616 = vmatprep.subr.mxu0 0.0
        %617 = vmatpush1.msra.mxu0 %v576
        %618 = vmatprep.subr.mxu0 0.0
        %619 = vmatpush1.msra.mxu0 %v575
        %620 = vmatprep.subr.mxu0 0.0
        %621 = vmatpush2.msra.mxu0 0.0
        %622 = vmatprep.subr.mxu0 0.0
        %623 = vmatpush2.msra.mxu0 0.0
        %624 = vmatprep.subr.mxu0 0.0
        %625 = vmatpush2.msra.mxu0 0.0
        %626 = vmatprep.subr.mxu0 0.0
        %627 = vmatpush2.msra.mxu0 0.0
        %628 = vmatprep.subr.mxu0 0.0
        %629 = vmatpush2.msra.mxu0 0.0
        %630 = vmatprep.subr.mxu0 0.0
        %631 = vmatpush2.msra.mxu0 0.0
        %632 = vmatprep.subr.mxu0 0.0
        %633 = vmatpush2.msra.mxu0 0.0
        %634 = vmatprep.subr.mxu0 0.0
        %635 = vmatpush2.msra.mxu0 0.0
        %636 = vmatprep.subr.mxu0 0.0
        %637 = vmatpush2.msra.mxu0 0.0
        %638 = vmatprep.subr.mxu0 0.0
        %639 = vmatpush2.msra.mxu0 0.0
        %640 = vmatprep.subr.mxu0 0.0
        %641 = vmatpush2.msra.mxu0 0.0
        %642 = vmatprep.subr.mxu0 0.0
        %643 = vmatpush2.msra.mxu0 0.0
        %644 = vmatprep.subr.mxu0 0.0
        %645 = vmatpush2.msra.mxu0 0.0
        %646 = vmatprep.subr.mxu0 0.0
        %647 = vmatpush2.msra.mxu0 0.0
        %648 = vmatprep.subr.mxu0 0.0
        %649 = vmatpush2.msra.mxu0 0.0
        %650 = vmatprep.subr.mxu0 0.0
        %651 = vmatpush2.msra.mxu0 0.0
        %652 = vmatprep.mubr.f32.mxu0 0.0
        %653 = vmatmul.mubr.f32.gmra.mxu0 %v586
        %v654 = vpop.f32.mrf.mxu0
        %v655 = vadd.f32 %v582, %v654
        %v656 = vpop.f32.mrf.mxu0
        %657 = vdwg.mxu0
        %s658 = scalar_lea.vmem %s2, 16
        %v659 = vld [vmem:[%s658] sm:$0xff]
        %v660 = vld [vmem:[%s658 + $0x8] sm:$0xff]
        %s661 = scalar_lea.vmem %s3, 1
        %v662 = vld [vmem:[%s661] sm:$0x1]
        %v664 = vlaneseq
        %v665 = vshrl.u32 %v664, 7
        %v666 = vsub.s32 0, %v665
        %v667 = vrot.slane %v662, %v666
        %669 = vmatprep.subr.mxu0 0.0
        %670 = vmatpush1.msra.mxu0 0.0
        %671 = vmatprep.subr.mxu0 0.0
        %672 = vmatpush1.msra.mxu0 0.0
        %673 = vmatprep.subr.mxu0 0.0
        %674 = vmatpush1.msra.mxu0 0.0
        %675 = vmatprep.subr.mxu0 0.0
        %676 = vmatpush1.msra.mxu0 0.0
        %677 = vmatprep.subr.mxu0 0.0
        %678 = vmatpush1.msra.mxu0 0.0
        %679 = vmatprep.subr.mxu0 0.0
        %680 = vmatpush1.msra.mxu0 0.0
        %681 = vmatprep.subr.mxu0 0.0
        %682 = vmatpush1.msra.mxu0 0.0
        %683 = vmatprep.subr.mxu0 0.0
        %684 = vmatpush1.msra.mxu0 0.0
        %685 = vmatprep.subr.mxu0 0.0
        %686 = vmatpush1.msra.mxu0 0.0
        %687 = vmatprep.subr.mxu0 0.0
        %688 = vmatpush1.msra.mxu0 0.0
        %689 = vmatprep.subr.mxu0 0.0
        %690 = vmatpush1.msra.mxu0 0.0
        %691 = vmatprep.subr.mxu0 0.0
        %692 = vmatpush1.msra.mxu0 0.0
        %693 = vmatprep.subr.mxu0 0.0
        %694 = vmatpush1.msra.mxu0 0.0
        %695 = vmatprep.subr.mxu0 0.0
        %696 = vmatpush1.msra.mxu0 0.0
        %697 = vmatprep.subr.mxu0 0.0
        %698 = vmatpush1.msra.mxu0 %v660
        %699 = vmatprep.subr.mxu0 0.0
        %700 = vmatpush1.msra.mxu0 %v659
        %701 = vmatprep.subr.mxu0 0.0
        %702 = vmatpush2.msra.mxu0 0.0
        %703 = vmatprep.subr.mxu0 0.0
        %704 = vmatpush2.msra.mxu0 0.0
        %705 = vmatprep.subr.mxu0 0.0
        %706 = vmatpush2.msra.mxu0 0.0
        %707 = vmatprep.subr.mxu0 0.0
        %708 = vmatpush2.msra.mxu0 0.0
        %709 = vmatprep.subr.mxu0 0.0
        %710 = vmatpush2.msra.mxu0 0.0
        %711 = vmatprep.subr.mxu0 0.0
        %712 = vmatpush2.msra.mxu0 0.0
        %713 = vmatprep.subr.mxu0 0.0
        %714 = vmatpush2.msra.mxu0 0.0
        %715 = vmatprep.subr.mxu0 0.0
        %716 = vmatpush2.msra.mxu0 0.0
        %717 = vmatprep.subr.mxu0 0.0
        %718 = vmatpush2.msra.mxu0 0.0
        %719 = vmatprep.subr.mxu0 0.0
        %720 = vmatpush2.msra.mxu0 0.0
        %721 = vmatprep.subr.mxu0 0.0
        %722 = vmatpush2.msra.mxu0 0.0
        %723 = vmatprep.subr.mxu0 0.0
        %724 = vmatpush2.msra.mxu0 0.0
        %725 = vmatprep.subr.mxu0 0.0
        %726 = vmatpush2.msra.mxu0 0.0
        %727 = vmatprep.subr.mxu0 0.0
        %728 = vmatpush2.msra.mxu0 0.0
        %729 = vmatprep.subr.mxu0 0.0
        %730 = vmatpush2.msra.mxu0 0.0
        %731 = vmatprep.subr.mxu0 0.0
        %732 = vmatpush2.msra.mxu0 0.0
        %733 = vmatprep.mubr.f32.mxu0 0.0
        %734 = vmatmul.mubr.f32.gmra.mxu0 %v586
        %v735 = vpop.f32.mrf.mxu0
        %v736 = vadd.f32 %v667, %v735
        %v737 = vpop.f32.mrf.mxu0
        %738 = vdwg.mxu0
        %s739 = scalar_lea.vmem %s2, 32
        %v740 = vld [vmem:[%s739] sm:$0xff]
        %v741 = vld [vmem:[%s739 + $0x8] sm:$0xff]
        %s742 = scalar_lea.vmem %s3, 2
        %v743 = vld [vmem:[%s742] sm:$0x1]
        %v745 = vlaneseq
        %v746 = vshrl.u32 %v745, 7
        %v747 = vsub.s32 0, %v746
        %v748 = vrot.slane %v743, %v747
        %750 = vmatprep.subr.mxu0 0.0
        %751 = vmatpush1.msra.mxu0 0.0
        %752 = vmatprep.subr.mxu0 0.0
        %753 = vmatpush1.msra.mxu0 0.0
        %754 = vmatprep.subr.mxu0 0.0
        %755 = vmatpush1.msra.mxu0 0.0
        %756 = vmatprep.subr.mxu0 0.0
        %757 = vmatpush1.msra.mxu0 0.0
        %758 = vmatprep.subr.mxu0 0.0
        %759 = vmatpush1.msra.mxu0 0.0
        %760 = vmatprep.subr.mxu0 0.0
        %761 = vmatpush1.msra.mxu0 0.0
        %762 = vmatprep.subr.mxu0 0.0
        %763 = vmatpush1.msra.mxu0 0.0
        %764 = vmatprep.subr.mxu0 0.0
        %765 = vmatpush1.msra.mxu0 0.0
        %766 = vmatprep.subr.mxu0 0.0
        %767 = vmatpush1.msra.mxu0 0.0
        %768 = vmatprep.subr.mxu0 0.0
        %769 = vmatpush1.msra.mxu0 0.0
        %770 = vmatprep.subr.mxu0 0.0
        %771 = vmatpush1.msra.mxu0 0.0
        %772 = vmatprep.subr.mxu0 0.0
        %773 = vmatpush1.msra.mxu0 0.0
        %774 = vmatprep.subr.mxu0 0.0
        %775 = vmatpush1.msra.mxu0 0.0
        %776 = vmatprep.subr.mxu0 0.0
        %777 = vmatpush1.msra.mxu0 0.0
        %778 = vmatprep.subr.mxu0 0.0
        %779 = vmatpush1.msra.mxu0 %v741
        %780 = vmatprep.subr.mxu0 0.0
        %781 = vmatpush1.msra.mxu0 %v740
        %782 = vmatprep.subr.mxu0 0.0
        %783 = vmatpush2.msra.mxu0 0.0
        %784 = vmatprep.subr.mxu0 0.0
        %785 = vmatpush2.msra.mxu0 0.0
        %786 = vmatprep.subr.mxu0 0.0
        %787 = vmatpush2.msra.mxu0 0.0
        %788 = vmatprep.subr.mxu0 0.0
        %789 = vmatpush2.msra.mxu0 0.0
        %790 = vmatprep.subr.mxu0 0.0
        %791 = vmatpush2.msra.mxu0 0.0
        %792 = vmatprep.subr.mxu0 0.0
        %793 = vmatpush2.msra.mxu0 0.0
        %794 = vmatprep.subr.mxu0 0.0
        %795 = vmatpush2.msra.mxu0 0.0
        %796 = vmatprep.subr.mxu0 0.0
        %797 = vmatpush2.msra.mxu0 0.0
        %798 = vmatprep.subr.mxu0 0.0
        %799 = vmatpush2.msra.mxu0 0.0
        %800 = vmatprep.subr.mxu0 0.0
        %801 = vmatpush2.msra.mxu0 0.0
        %802 = vmatprep.subr.mxu0 0.0
        %803 = vmatpush2.msra.mxu0 0.0
        %804 = vmatprep.subr.mxu0 0.0
        %805 = vmatpush2.msra.mxu0 0.0
        %806 = vmatprep.subr.mxu0 0.0
        %807 = vmatpush2.msra.mxu0 0.0
        %808 = vmatprep.subr.mxu0 0.0
        %809 = vmatpush2.msra.mxu0 0.0
        %810 = vmatprep.subr.mxu0 0.0
        %811 = vmatpush2.msra.mxu0 0.0
        %812 = vmatprep.subr.mxu0 0.0
        %813 = vmatpush2.msra.mxu0 0.0
        %814 = vmatprep.mubr.f32.mxu0 0.0
        %815 = vmatmul.mubr.f32.gmra.mxu0 %v586
        %v816 = vpop.f32.mrf.mxu0
        %v817 = vadd.f32 %v748, %v816
        %v818 = vpop.f32.mrf.mxu0
        %819 = vdwg.mxu0
        %v820 = vld [vmem:[#allocation7] sm:$0xff]
        %v821 = vld [vmem:[#allocation7 + $0x8] sm:$0xff]
        %v822 = vld [vmem:[%s8] sm:$0x1]
        %v824 = vlaneseq
        %v825 = vshrl.u32 %v824, 7
        %v826 = vsub.s32 0, %v825
        %v827 = vrot.slane %v822, %v826
        %829 = vmatprep.subr.mxu0 0.0
        %830 = vmatpush1.msra.mxu0 0.0
        %831 = vmatprep.subr.mxu0 0.0
        %832 = vmatpush1.msra.mxu0 0.0
        %833 = vmatprep.subr.mxu0 0.0
        %834 = vmatpush1.msra.mxu0 0.0
        %835 = vmatprep.subr.mxu0 0.0
        %836 = vmatpush1.msra.mxu0 0.0
        %837 = vmatprep.subr.mxu0 0.0
        %838 = vmatpush1.msra.mxu0 0.0
        %839 = vmatprep.subr.mxu0 0.0
        %840 = vmatpush1.msra.mxu0 0.0
        %841 = vmatprep.subr.mxu0 0.0
        %842 = vmatpush1.msra.mxu0 0.0
        %843 = vmatprep.subr.mxu0 0.0
        %844 = vmatpush1.msra.mxu0 0.0
        %845 = vmatprep.subr.mxu0 0.0
        %846 = vmatpush1.msra.mxu0 0.0
        %847 = vmatprep.subr.mxu0 0.0
        %848 = vmatpush1.msra.mxu0 0.0
        %849 = vmatprep.subr.mxu0 0.0
        %850 = vmatpush1.msra.mxu0 0.0
        %851 = vmatprep.subr.mxu0 0.0
        %852 = vmatpush1.msra.mxu0 0.0
        %853 = vmatprep.subr.mxu0 0.0
        %854 = vmatpush1.msra.mxu0 0.0
        %855 = vmatprep.subr.mxu0 0.0
        %856 = vmatpush1.msra.mxu0 0.0
        %857 = vmatprep.subr.mxu0 0.0
        %858 = vmatpush1.msra.mxu0 %v821
        %859 = vmatprep.subr.mxu0 0.0
        %860 = vmatpush1.msra.mxu0 %v820
        %861 = vmatprep.subr.mxu0 0.0
        %862 = vmatpush2.msra.mxu0 0.0
        %863 = vmatprep.subr.mxu0 0.0
        %864 = vmatpush2.msra.mxu0 0.0
        %865 = vmatprep.subr.mxu0 0.0
        %866 = vmatpush2.msra.mxu0 0.0
        %867 = vmatprep.subr.mxu0 0.0
        %868 = vmatpush2.msra.mxu0 0.0
        %869 = vmatprep.subr.mxu0 0.0
        %870 = vmatpush2.msra.mxu0 0.0
        %871 = vmatprep.subr.mxu0 0.0
        %872 = vmatpush2.msra.mxu0 0.0
        %873 = vmatprep.subr.mxu0 0.0
        %874 = vmatpush2.msra.mxu0 0.0
        %875 = vmatprep.subr.mxu0 0.0
        %876 = vmatpush2.msra.mxu0 0.0
        %877 = vmatprep.subr.mxu0 0.0
        %878 = vmatpush2.msra.mxu0 0.0
        %879 = vmatprep.subr.mxu0 0.0
        %880 = vmatpush2.msra.mxu0 0.0
        %881 = vmatprep.subr.mxu0 0.0
        %882 = vmatpush2.msra.mxu0 0.0
        %883 = vmatprep.subr.mxu0 0.0
        %884 = vmatpush2.msra.mxu0 0.0
        %885 = vmatprep.subr.mxu0 0.0
        %886 = vmatpush2.msra.mxu0 0.0
        %887 = vmatprep.subr.mxu0 0.0
        %888 = vmatpush2.msra.mxu0 0.0
        %889 = vmatprep.subr.mxu0 0.0
        %890 = vmatpush2.msra.mxu0 0.0
        %891 = vmatprep.subr.mxu0 0.0
        %892 = vmatpush2.msra.mxu0 0.0
        %893 = vmatprep.mubr.f32.mxu0 0.0
        %894 = vmatmul.mubr.f32.gmra.mxu0 %v586
        %v895 = vpop.f32.mrf.mxu0
        %v896 = vadd.f32 %v827, %v895
        %v897 = vpop.f32.mrf.mxu0
        %898 = vdwg.mxu0
        %s899 = scalar_lea.vmem [#allocation7], 16
        %v900 = vld [vmem:[%s899] sm:$0xff]
        %v901 = vld [vmem:[%s899 + $0x8] sm:$0xff]
        %s902 = scalar_lea.vmem %s8, 1
        %v903 = vld [vmem:[%s902] sm:$0x1]
        %v905 = vlaneseq
        %v906 = vshrl.u32 %v905, 7
        %v907 = vsub.s32 0, %v906
        %v908 = vrot.slane %v903, %v907
        %910 = vmatprep.subr.mxu0 0.0
        %911 = vmatpush1.msra.mxu0 0.0
        %912 = vmatprep.subr.mxu0 0.0
        %913 = vmatpush1.msra.mxu0 0.0
        %914 = vmatprep.subr.mxu0 0.0
        %915 = vmatpush1.msra.mxu0 0.0
        %916 = vmatprep.subr.mxu0 0.0
        %917 = vmatpush1.msra.mxu0 0.0
        %918 = vmatprep.subr.mxu0 0.0
        %919 = vmatpush1.msra.mxu0 0.0
        %920 = vmatprep.subr.mxu0 0.0
        %921 = vmatpush1.msra.mxu0 0.0
        %922 = vmatprep.subr.mxu0 0.0
        %923 = vmatpush1.msra.mxu0 0.0
        %924 = vmatprep.subr.mxu0 0.0
        %925 = vmatpush1.msra.mxu0 0.0
        %926 = vmatprep.subr.mxu0 0.0
        %927 = vmatpush1.msra.mxu0 0.0
        %928 = vmatprep.subr.mxu0 0.0
        %929 = vmatpush1.msra.mxu0 0.0
        %930 = vmatprep.subr.mxu0 0.0
        %931 = vmatpush1.msra.mxu0 0.0
        %932 = vmatprep.subr.mxu0 0.0
        %933 = vmatpush1.msra.mxu0 0.0
        %934 = vmatprep.subr.mxu0 0.0
        %935 = vmatpush1.msra.mxu0 0.0
        %936 = vmatprep.subr.mxu0 0.0
        %937 = vmatpush1.msra.mxu0 0.0
        %938 = vmatprep.subr.mxu0 0.0
        %939 = vmatpush1.msra.mxu0 %v901
        %940 = vmatprep.subr.mxu0 0.0
        %941 = vmatpush1.msra.mxu0 %v900
        %942 = vmatprep.subr.mxu0 0.0
        %943 = vmatpush2.msra.mxu0 0.0
        %944 = vmatprep.subr.mxu0 0.0
        %945 = vmatpush2.msra.mxu0 0.0
        %946 = vmatprep.subr.mxu0 0.0
        %947 = vmatpush2.msra.mxu0 0.0
        %948 = vmatprep.subr.mxu0 0.0
        %949 = vmatpush2.msra.mxu0 0.0
        %950 = vmatprep.subr.mxu0 0.0
        %951 = vmatpush2.msra.mxu0 0.0
        %952 = vmatprep.subr.mxu0 0.0
        %953 = vmatpush2.msra.mxu0 0.0
        %954 = vmatprep.subr.mxu0 0.0
        %955 = vmatpush2.msra.mxu0 0.0
        %956 = vmatprep.subr.mxu0 0.0
        %957 = vmatpush2.msra.mxu0 0.0
        %958 = vmatprep.subr.mxu0 0.0
        %959 = vmatpush2.msra.mxu0 0.0
        %960 = vmatprep.subr.mxu0 0.0
        %961 = vmatpush2.msra.mxu0 0.0
        %962 = vmatprep.subr.mxu0 0.0
        %963 = vmatpush2.msra.mxu0 0.0
        %964 = vmatprep.subr.mxu0 0.0
        %965 = vmatpush2.msra.mxu0 0.0
        %966 = vmatprep.subr.mxu0 0.0
        %967 = vmatpush2.msra.mxu0 0.0
        %968 = vmatprep.subr.mxu0 0.0
        %969 = vmatpush2.msra.mxu0 0.0
        %970 = vmatprep.subr.mxu0 0.0
        %971 = vmatpush2.msra.mxu0 0.0
        %972 = vmatprep.subr.mxu0 0.0
        %973 = vmatpush2.msra.mxu0 0.0
        %974 = vmatprep.mubr.f32.mxu0 0.0
        %975 = vmatmul.mubr.f32.gmra.mxu0 %v586
        %v976 = vpop.f32.mrf.mxu0
        %v977 = vadd.f32 %v908, %v976
        %v978 = vpop.f32.mrf.mxu0
        %979 = vdwg.mxu0
        %s980 = scalar_lea.vmem [#allocation7], 32
        %v981 = vld [vmem:[%s980] sm:$0xff]
        %v982 = vld [vmem:[%s980 + $0x8] sm:$0xff]
        %s983 = scalar_lea.vmem %s8, 2
        %v984 = vld [vmem:[%s983] sm:$0x1]
        %v986 = vlaneseq
        %v987 = vshrl.u32 %v986, 7
        %v988 = vsub.s32 0, %v987
        %v989 = vrot.slane %v984, %v988
        %991 = vmatprep.subr.mxu0 0.0
        %992 = vmatpush1.msra.mxu0 0.0
        %993 = vmatprep.subr.mxu0 0.0
        %994 = vmatpush1.msra.mxu0 0.0
        %995 = vmatprep.subr.mxu0 0.0
        %996 = vmatpush1.msra.mxu0 0.0
        %997 = vmatprep.subr.mxu0 0.0
        %998 = vmatpush1.msra.mxu0 0.0
        %999 = vmatprep.subr.mxu0 0.0
        %1000 = vmatpush1.msra.mxu0 0.0
        %1001 = vmatprep.subr.mxu0 0.0
        %1002 = vmatpush1.msra.mxu0 0.0
        %1003 = vmatprep.subr.mxu0 0.0
        %1004 = vmatpush1.msra.mxu0 0.0
        %1005 = vmatprep.subr.mxu0 0.0
        %1006 = vmatpush1.msra.mxu0 0.0
        %1007 = vmatprep.subr.mxu0 0.0
        %1008 = vmatpush1.msra.mxu0 0.0
        %1009 = vmatprep.subr.mxu0 0.0
        %1010 = vmatpush1.msra.mxu0 0.0
        %1011 = vmatprep.subr.mxu0 0.0
        %1012 = vmatpush1.msra.mxu0 0.0
        %1013 = vmatprep.subr.mxu0 0.0
        %1014 = vmatpush1.msra.mxu0 0.0
        %1015 = vmatprep.subr.mxu0 0.0
        %1016 = vmatpush1.msra.mxu0 0.0
        %1017 = vmatprep.subr.mxu0 0.0
        %1018 = vmatpush1.msra.mxu0 0.0
        %1019 = vmatprep.subr.mxu0 0.0
        %1020 = vmatpush1.msra.mxu0 %v982
        %1021 = vmatprep.subr.mxu0 0.0
        %1022 = vmatpush1.msra.mxu0 %v981
        %1023 = vmatprep.subr.mxu0 0.0
        %1024 = vmatpush2.msra.mxu0 0.0
        %1025 = vmatprep.subr.mxu0 0.0
        %1026 = vmatpush2.msra.mxu0 0.0
        %1027 = vmatprep.subr.mxu0 0.0
        %1028 = vmatpush2.msra.mxu0 0.0
        %1029 = vmatprep.subr.mxu0 0.0
        %1030 = vmatpush2.msra.mxu0 0.0
        %1031 = vmatprep.subr.mxu0 0.0
        %1032 = vmatpush2.msra.mxu0 0.0
        %1033 = vmatprep.subr.mxu0 0.0
        %1034 = vmatpush2.msra.mxu0 0.0
        %1035 = vmatprep.subr.mxu0 0.0
        %1036 = vmatpush2.msra.mxu0 0.0
        %1037 = vmatprep.subr.mxu0 0.0
        %1038 = vmatpush2.msra.mxu0 0.0
        %1039 = vmatprep.subr.mxu0 0.0
        %1040 = vmatpush2.msra.mxu0 0.0
        %1041 = vmatprep.subr.mxu0 0.0
        %1042 = vmatpush2.msra.mxu0 0.0
        %1043 = vmatprep.subr.mxu0 0.0
        %1044 = vmatpush2.msra.mxu0 0.0
        %1045 = vmatprep.subr.mxu0 0.0
        %1046 = vmatpush2.msra.mxu0 0.0
        %1047 = vmatprep.subr.mxu0 0.0
        %1048 = vmatpush2.msra.mxu0 0.0
        %1049 = vmatprep.subr.mxu0 0.0
        %1050 = vmatpush2.msra.mxu0 0.0
        %1051 = vmatprep.subr.mxu0 0.0
        %1052 = vmatpush2.msra.mxu0 0.0
        %1053 = vmatprep.subr.mxu0 0.0
        %1054 = vmatpush2.msra.mxu0 0.0
        %1055 = vmatprep.mubr.f32.mxu0 0.0
        %1056 = vmatmul.mubr.f32.gmra.mxu0 %v586
        %v1057 = vpop.f32.mrf.mxu0
        %v1058 = vadd.f32 %v989, %v1057
        %v1059 = vpop.f32.mrf.mxu0
        %1060 = vdwg.mxu0
        %v1061 = vld [vmem:[#allocation5] sm:$0xff]
        %v1062 = vld [vmem:[#allocation5 + $0x8] sm:$0xff]
        %s1063 = scalar_lea.vmem [#allocation5], 16
        %v1064 = vld [vmem:[%s1063] sm:$0xff]
        %v1065 = vld [vmem:[%s1063 + $0x8] sm:$0xff]
        %s1066 = scalar_lea.vmem [#allocation5], 32
        %v1067 = vld [vmem:[%s1066] sm:$0xff]
        %v1068 = vld [vmem:[%s1066 + $0x8] sm:$0xff]
        %v1069 = vld [vmem:[#allocation8] sm:$0xff]
        %v1070 = vld [vmem:[#allocation8 + $0x8] sm:$0xff]
        %s1071 = scalar_lea.vmem [#allocation8], 16
        %v1072 = vld [vmem:[%s1071] sm:$0xff]
        %v1073 = vld [vmem:[%s1071 + $0x8] sm:$0xff]
        %s1074 = scalar_lea.vmem [#allocation8], 32
        %v1075 = vld [vmem:[%s1074] sm:$0xff]
        %v1076 = vld [vmem:[%s1074 + $0x8] sm:$0xff]
        %v1077 = vld [vmem:[%s6] sm:$0x1]
        %s1078 = scalar_lea.vmem %s6, 1
        %v1079 = vld [vmem:[%s1078] sm:$0x1]
        %s1080 = scalar_lea.vmem %s6, 2
        %v1081 = vld [vmem:[%s1080] sm:$0x1]
        %v1082 = vld [vmem:[%s11] sm:$0x1]
        %s1083 = scalar_lea.vmem %s11, 1
        %v1084 = vld [vmem:[%s1083] sm:$0x1]
        %s1085 = scalar_lea.vmem %s11, 2
        %v1086 = vld [vmem:[%s1085] sm:$0x1]
        %v1087 = vld [vmem:[%s4] sm:$0x1]
        %s1088 = scalar_lea.vmem %s4, 1
        %v1089 = vld [vmem:[%s1088] sm:$0x1]
        %s1090 = scalar_lea.vmem %s4, 2
        %v1091 = vld [vmem:[%s1090] sm:$0x1]
        %v1092 = vld [vmem:[%s9] sm:$0x1]
        %s1093 = scalar_lea.vmem %s9, 1
        %v1094 = vld [vmem:[%s1093] sm:$0x1]
        %s1095 = scalar_lea.vmem %s9, 2
        %v1096 = vld [vmem:[%s1095] sm:$0x1]
        %v1097 = vlaneseq
        %v1098 = vshrl.u32 %v1097, 7
        %vm1099 = vcmp.lt.s32.totalorder %v1098, 0
        %v1100 = vsub.s32 0, %v1098
        %v1101 = vsel %vm1099, %v1100, %v1098
        %v1102 = vshrl.u32 %v1101, 3
        %v1103 = vand.u32 %v1101, 7
        %v1104 = vsub.s32 0, %v1103
        %v1105 = vsel %vm1099, %v1104, %v1103
        %vm1106 = vcmp.ne.s32.totalorder %v1105, 0
        %vm1107 = vcmp.lt.s32.totalorder %v1105, 0
        %vm1108 = vmand %vm1107, %vm1106
        %v1109 = vadd.s32 %v1105, 8
        %v1110 = vsel %vm1108, %v1109, %v1105
        %vm1111 = vcmp.eq.s32.totalorder %v1110, 0
        %vm1112 = vcmp.eq.s32.totalorder %v1110, 1
        %vm1113 = vcmp.eq.s32.totalorder %v1110, 2
        %vm1114 = vcmp.eq.s32.totalorder %v1110, 3
        %vm1115 = vcmp.eq.s32.totalorder %v1110, 4
        %vm1116 = vcmp.eq.s32.totalorder %v1110, 5
        %vm1117 = vcmp.eq.s32.totalorder %v1110, 6
        %vm1118 = vcmp.eq.s32.totalorder %v1110, 7
        %v1119 = vlaneseq
        %v1120 = vshrl.u32 %v1119, 7
        %v1121 = vsub.s32 0, %v1120
        %v1122 = vrot.slane %v655, %v1121
        %1124 = vset.pattern.permute.xlu0 0
        %1125 = vperm.xlu0 %1124, %v574
        %v1126 = vpop.permute.xlu0 %1125
        %v1128 = vmul.f32 %v1126, %v1122
        %v1130 = vlaneseq
        %v1131 = vshrl.u32 %v1130, 7
        %v1132 = vsub.s32 0, %v1131
        %v1133 = vrot.slane %v1087, %v1132
        %v1135 = vadd.f32 %v1128, %v1133
        %v1136 = vlaneseq
        %v1137 = vshrl.u32 %v1136, 7
        %v1138 = vsub.s32 0, %v1137
        %v1139 = vrot.slane %v736, %v1138
        %v1140 = vmul.f32 %v1126, %v1139
        %v1142 = vlaneseq
        %v1143 = vshrl.u32 %v1142, 7
        %v1144 = vsub.s32 0, %v1143
        %v1145 = vrot.slane %v1089, %v1144
        %v1147 = vadd.f32 %v1140, %v1145
        %v1148 = vlaneseq
        %v1149 = vshrl.u32 %v1148, 7
        %v1150 = vsub.s32 0, %v1149
        %v1151 = vrot.slane %v817, %v1150
        %v1152 = vmul.f32 %v1126, %v1151
        %v1154 = vlaneseq
        %v1155 = vshrl.u32 %v1154, 7
        %v1156 = vsub.s32 0, %v1155
        %v1157 = vrot.slane %v1091, %v1156
        %v1159 = vadd.f32 %v1152, %v1157
        %v1161 = vlaneseq
        %v1162 = vshrl.u32 %v1161, 7
        %v1163 = vsub.s32 0, %v1162
        %v1164 = vrot.slane %v1077, %v1163
        %v1167 = vsel %vm584, 0.0, 0
        %1169 = vmatprep.subr.mxu0 0.0
        %1170 = vmatpush1.msra.mxu0 0.0
        %1171 = vmatprep.subr.mxu0 0.0
        %1172 = vmatpush1.msra.mxu0 0.0
        %1173 = vmatprep.subr.mxu0 0.0
        %1174 = vmatpush1.msra.mxu0 0.0
        %1175 = vmatprep.subr.mxu0 0.0
        %1176 = vmatpush1.msra.mxu0 0.0
        %1177 = vmatprep.subr.mxu0 0.0
        %1178 = vmatpush1.msra.mxu0 0.0
        %1179 = vmatprep.subr.mxu0 0.0
        %1180 = vmatpush1.msra.mxu0 0.0
        %1181 = vmatprep.subr.mxu0 0.0
        %1182 = vmatpush1.msra.mxu0 0.0
        %1183 = vmatprep.subr.mxu0 0.0
        %1184 = vmatpush1.msra.mxu0 0.0
        %1185 = vmatprep.subr.mxu0 0.0
        %1186 = vmatpush1.msra.mxu0 0.0
        %1187 = vmatprep.subr.mxu0 0.0
        %1188 = vmatpush1.msra.mxu0 0.0
        %1189 = vmatprep.subr.mxu0 0.0
        %1190 = vmatpush1.msra.mxu0 0.0
        %1191 = vmatprep.subr.mxu0 0.0
        %1192 = vmatpush1.msra.mxu0 0.0
        %1193 = vmatprep.subr.mxu0 0.0
        %1194 = vmatpush1.msra.mxu0 0.0
        %1195 = vmatprep.subr.mxu0 0.0
        %1196 = vmatpush1.msra.mxu0 0.0
        %1197 = vmatprep.subr.mxu0 0.0
        %1198 = vmatpush1.msra.mxu0 %v1062
        %1199 = vmatprep.subr.mxu0 0.0
        %1200 = vmatpush1.msra.mxu0 %v1061
        %1201 = vmatprep.subr.mxu0 0.0
        %1202 = vmatpush2.msra.mxu0 0.0
        %1203 = vmatprep.subr.mxu0 0.0
        %1204 = vmatpush2.msra.mxu0 0.0
        %1205 = vmatprep.subr.mxu0 0.0
        %1206 = vmatpush2.msra.mxu0 0.0
        %1207 = vmatprep.subr.mxu0 0.0
        %1208 = vmatpush2.msra.mxu0 0.0
        %1209 = vmatprep.subr.mxu0 0.0
        %1210 = vmatpush2.msra.mxu0 0.0
        %1211 = vmatprep.subr.mxu0 0.0
        %1212 = vmatpush2.msra.mxu0 0.0
        %1213 = vmatprep.subr.mxu0 0.0
        %1214 = vmatpush2.msra.mxu0 0.0
        %1215 = vmatprep.subr.mxu0 0.0
        %1216 = vmatpush2.msra.mxu0 0.0
        %1217 = vmatprep.subr.mxu0 0.0
        %1218 = vmatpush2.msra.mxu0 0.0
        %1219 = vmatprep.subr.mxu0 0.0
        %1220 = vmatpush2.msra.mxu0 0.0
        %1221 = vmatprep.subr.mxu0 0.0
        %1222 = vmatpush2.msra.mxu0 0.0
        %1223 = vmatprep.subr.mxu0 0.0
        %1224 = vmatpush2.msra.mxu0 0.0
        %1225 = vmatprep.subr.mxu0 0.0
        %1226 = vmatpush2.msra.mxu0 0.0
        %1227 = vmatprep.subr.mxu0 0.0
        %1228 = vmatpush2.msra.mxu0 0.0
        %1229 = vmatprep.subr.mxu0 0.0
        %1230 = vmatpush2.msra.mxu0 0.0
        %1231 = vmatprep.subr.mxu0 0.0
        %1232 = vmatpush2.msra.mxu0 0.0
        %1233 = vmatprep.mubr.f32.mxu0 0.0
        %1234 = vmatmul.mubr.f32.gmra.mxu0 %v1167
        %v1235 = vpop.f32.mrf.mxu0
        %v1236 = vadd.f32 %v1164, %v1235
        %v1237 = vpop.f32.mrf.mxu0
        %1238 = vdwg.mxu0
        %v1240 = vlaneseq
        %v1241 = vshrl.u32 %v1240, 7
        %v1242 = vsub.s32 0, %v1241
        %v1243 = vrot.slane %v1079, %v1242
        %1245 = vmatprep.subr.mxu0 0.0
        %1246 = vmatpush1.msra.mxu0 0.0
        %1247 = vmatprep.subr.mxu0 0.0
        %1248 = vmatpush1.msra.mxu0 0.0
        %1249 = vmatprep.subr.mxu0 0.0
        %1250 = vmatpush1.msra.mxu0 0.0
        %1251 = vmatprep.subr.mxu0 0.0
        %1252 = vmatpush1.msra.mxu0 0.0
        %1253 = vmatprep.subr.mxu0 0.0
        %1254 = vmatpush1.msra.mxu0 0.0
        %1255 = vmatprep.subr.mxu0 0.0
        %1256 = vmatpush1.msra.mxu0 0.0
        %1257 = vmatprep.subr.mxu0 0.0
        %1258 = vmatpush1.msra.mxu0 0.0
        %1259 = vmatprep.subr.mxu0 0.0
        %1260 = vmatpush1.msra.mxu0 0.0
        %1261 = vmatprep.subr.mxu0 0.0
        %1262 = vmatpush1.msra.mxu0 0.0
        %1263 = vmatprep.subr.mxu0 0.0
        %1264 = vmatpush1.msra.mxu0 0.0
        %1265 = vmatprep.subr.mxu0 0.0
        %1266 = vmatpush1.msra.mxu0 0.0
        %1267 = vmatprep.subr.mxu0 0.0
        %1268 = vmatpush1.msra.mxu0 0.0
        %1269 = vmatprep.subr.mxu0 0.0
        %1270 = vmatpush1.msra.mxu0 0.0
        %1271 = vmatprep.subr.mxu0 0.0
        %1272 = vmatpush1.msra.mxu0 0.0
        %1273 = vmatprep.subr.mxu0 0.0
        %1274 = vmatpush1.msra.mxu0 %v1065
        %1275 = vmatprep.subr.mxu0 0.0
        %1276 = vmatpush1.msra.mxu0 %v1064
        %1277 = vmatprep.subr.mxu0 0.0
        %1278 = vmatpush2.msra.mxu0 0.0
        %1279 = vmatprep.subr.mxu0 0.0
        %1280 = vmatpush2.msra.mxu0 0.0
        %1281 = vmatprep.subr.mxu0 0.0
        %1282 = vmatpush2.msra.mxu0 0.0
        %1283 = vmatprep.subr.mxu0 0.0
        %1284 = vmatpush2.msra.mxu0 0.0
        %1285 = vmatprep.subr.mxu0 0.0
        %1286 = vmatpush2.msra.mxu0 0.0
        %1287 = vmatprep.subr.mxu0 0.0
        %1288 = vmatpush2.msra.mxu0 0.0
        %1289 = vmatprep.subr.mxu0 0.0
        %1290 = vmatpush2.msra.mxu0 0.0
        %1291 = vmatprep.subr.mxu0 0.0
        %1292 = vmatpush2.msra.mxu0 0.0
        %1293 = vmatprep.subr.mxu0 0.0
        %1294 = vmatpush2.msra.mxu0 0.0
        %1295 = vmatprep.subr.mxu0 0.0
        %1296 = vmatpush2.msra.mxu0 0.0
        %1297 = vmatprep.subr.mxu0 0.0
        %1298 = vmatpush2.msra.mxu0 0.0
        %1299 = vmatprep.subr.mxu0 0.0
        %1300 = vmatpush2.msra.mxu0 0.0
        %1301 = vmatprep.subr.mxu0 0.0
        %1302 = vmatpush2.msra.mxu0 0.0
        %1303 = vmatprep.subr.mxu0 0.0
        %1304 = vmatpush2.msra.mxu0 0.0
        %1305 = vmatprep.subr.mxu0 0.0
        %1306 = vmatpush2.msra.mxu0 0.0
        %1307 = vmatprep.subr.mxu0 0.0
        %1308 = vmatpush2.msra.mxu0 0.0
        %1309 = vmatprep.mubr.f32.mxu0 0.0
        %1310 = vmatmul.mubr.f32.gmra.mxu0 %v1167
        %v1311 = vpop.f32.mrf.mxu0
        %v1312 = vadd.f32 %v1243, %v1311
        %v1313 = vpop.f32.mrf.mxu0
        %1314 = vdwg.mxu0
        %v1316 = vlaneseq
        %v1317 = vshrl.u32 %v1316, 7
        %v1318 = vsub.s32 0, %v1317
        %v1319 = vrot.slane %v1081, %v1318
        %1321 = vmatprep.subr.mxu0 0.0
        %1322 = vmatpush1.msra.mxu0 0.0
        %1323 = vmatprep.subr.mxu0 0.0
        %1324 = vmatpush1.msra.mxu0 0.0
        %1325 = vmatprep.subr.mxu0 0.0
        %1326 = vmatpush1.msra.mxu0 0.0
        %1327 = vmatprep.subr.mxu0 0.0
        %1328 = vmatpush1.msra.mxu0 0.0
        %1329 = vmatprep.subr.mxu0 0.0
        %1330 = vmatpush1.msra.mxu0 0.0
        %1331 = vmatprep.subr.mxu0 0.0
        %1332 = vmatpush1.msra.mxu0 0.0
        %1333 = vmatprep.subr.mxu0 0.0
        %1334 = vmatpush1.msra.mxu0 0.0
        %1335 = vmatprep.subr.mxu0 0.0
        %1336 = vmatpush1.msra.mxu0 0.0
        %1337 = vmatprep.subr.mxu0 0.0
        %1338 = vmatpush1.msra.mxu0 0.0
        %1339 = vmatprep.subr.mxu0 0.0
        %1340 = vmatpush1.msra.mxu0 0.0
        %1341 = vmatprep.subr.mxu0 0.0
        %1342 = vmatpush1.msra.mxu0 0.0
        %1343 = vmatprep.subr.mxu0 0.0
        %1344 = vmatpush1.msra.mxu0 0.0
        %1345 = vmatprep.subr.mxu0 0.0
        %1346 = vmatpush1.msra.mxu0 0.0
        %1347 = vmatprep.subr.mxu0 0.0
        %1348 = vmatpush1.msra.mxu0 0.0
        %1349 = vmatprep.subr.mxu0 0.0
        %1350 = vmatpush1.msra.mxu0 %v1068
        %1351 = vmatprep.subr.mxu0 0.0
        %1352 = vmatpush1.msra.mxu0 %v1067
        %1353 = vmatprep.subr.mxu0 0.0
        %1354 = vmatpush2.msra.mxu0 0.0
        %1355 = vmatprep.subr.mxu0 0.0
        %1356 = vmatpush2.msra.mxu0 0.0
        %1357 = vmatprep.subr.mxu0 0.0
        %1358 = vmatpush2.msra.mxu0 0.0
        %1359 = vmatprep.subr.mxu0 0.0
        %1360 = vmatpush2.msra.mxu0 0.0
        %1361 = vmatprep.subr.mxu0 0.0
        %1362 = vmatpush2.msra.mxu0 0.0
        %1363 = vmatprep.subr.mxu0 0.0
        %1364 = vmatpush2.msra.mxu0 0.0
        %1365 = vmatprep.subr.mxu0 0.0
        %1366 = vmatpush2.msra.mxu0 0.0
        %1367 = vmatprep.subr.mxu0 0.0
        %1368 = vmatpush2.msra.mxu0 0.0
        %1369 = vmatprep.subr.mxu0 0.0
        %1370 = vmatpush2.msra.mxu0 0.0
        %1371 = vmatprep.subr.mxu0 0.0
        %1372 = vmatpush2.msra.mxu0 0.0
        %1373 = vmatprep.subr.mxu0 0.0
        %1374 = vmatpush2.msra.mxu0 0.0
        %1375 = vmatprep.subr.mxu0 0.0
        %1376 = vmatpush2.msra.mxu0 0.0
        %1377 = vmatprep.subr.mxu0 0.0
        %1378 = vmatpush2.msra.mxu0 0.0
        %1379 = vmatprep.subr.mxu0 0.0
        %1380 = vmatpush2.msra.mxu0 0.0
        %1381 = vmatprep.subr.mxu0 0.0
        %1382 = vmatpush2.msra.mxu0 0.0
        %1383 = vmatprep.subr.mxu0 0.0
        %1384 = vmatpush2.msra.mxu0 0.0
        %1385 = vmatprep.mubr.f32.mxu0 0.0
        %1386 = vmatmul.mubr.f32.gmra.mxu0 %v1167
        %v1387 = vpop.f32.mrf.mxu0
        %v1388 = vadd.f32 %v1319, %v1387
        %v1389 = vpop.f32.mrf.mxu0
        %1390 = vdwg.mxu0
        %v1391 = vadd.f32 %v1135, %v1236
        %v1392 = vxor.u32 %v1391, 2147483648
        %v1393 = vmul.f32 %v1392, 1.442695
        %v1394 = vpow.pop %v1393
        %v1395 = vadd.f32 %v1394, 1.0
        %v1396 = vrcp.pop %v1395
        %v1397 = vmul.f32 1.0, %v1396
        %v1398 = vadd.f32 %v1147, %v1312
        %v1399 = vxor.u32 %v1398, 2147483648
        %v1400 = vmul.f32 %v1399, 1.442695
        %v1401 = vpow.pop %v1400
        %v1402 = vadd.f32 %v1401, 1.0
        %v1403 = vrcp.pop %v1402
        %v1404 = vmul.f32 1.0, %v1403
        %v1405 = vmul.f32 %v1397, %v1388
        %v1406 = vadd.f32 %v1159, %v1405
        %v1407 = vtanh.pop %v1406
        %v1408 = vsub.f32 1.0, %v1404
        %v1409 = vmul.f32 %v1408, %v1407
        %v1410 = vmul.f32 %v1404, 0.0
        %v1411 = vadd.f32 %v1409, %v1410
        %v1412 = vlaneseq
        %v1413 = vshrl.u32 %v1412, 7
        %v1414 = vsub.s32 7, %v1413
        %v1415 = vrot.slane %v896, %v1414
        %1416 = vset.pattern.permute.xlu0 7
        %1417 = vperm.xlu0 %1416, %v574
        %v1418 = vpop.permute.xlu0 %1417
        %v1420 = vmul.f32 %v1418, %v1415
        %v1422 = vlaneseq
        %v1423 = vshrl.u32 %v1422, 7
        %v1424 = vsub.s32 0, %v1423
        %v1425 = vrot.slane %v1092, %v1424
        %v1427 = vadd.f32 %v1420, %v1425
        %v1428 = vlaneseq
        %v1429 = vshrl.u32 %v1428, 7
        %v1430 = vsub.s32 7, %v1429
        %v1431 = vrot.slane %v977, %v1430
        %v1432 = vmul.f32 %v1418, %v1431
        %v1434 = vlaneseq
        %v1435 = vshrl.u32 %v1434, 7
        %v1436 = vsub.s32 0, %v1435
        %v1437 = vrot.slane %v1094, %v1436
        %v1439 = vadd.f32 %v1432, %v1437
        %v1440 = vlaneseq
        %v1441 = vshrl.u32 %v1440, 7
        %v1442 = vsub.s32 7, %v1441
        %v1443 = vrot.slane %v1058, %v1442
        %v1444 = vmul.f32 %v1418, %v1443
        %v1446 = vlaneseq
        %v1447 = vshrl.u32 %v1446, 7
        %v1448 = vsub.s32 0, %v1447
        %v1449 = vrot.slane %v1096, %v1448
        %v1451 = vadd.f32 %v1444, %v1449
        %v1453 = vlaneseq
        %v1454 = vshrl.u32 %v1453, 7
        %v1455 = vsub.s32 0, %v1454
        %v1456 = vrot.slane %v1082, %v1455
        %1458 = vmatprep.subr.mxu0 0.0
        %1459 = vmatpush1.msra.mxu0 0.0
        %1460 = vmatprep.subr.mxu0 0.0
        %1461 = vmatpush1.msra.mxu0 0.0
        %1462 = vmatprep.subr.mxu0 0.0
        %1463 = vmatpush1.msra.mxu0 0.0
        %1464 = vmatprep.subr.mxu0 0.0
        %1465 = vmatpush1.msra.mxu0 0.0
        %1466 = vmatprep.subr.mxu0 0.0
        %1467 = vmatpush1.msra.mxu0 0.0
        %1468 = vmatprep.subr.mxu0 0.0
        %1469 = vmatpush1.msra.mxu0 0.0
        %1470 = vmatprep.subr.mxu0 0.0
        %1471 = vmatpush1.msra.mxu0 0.0
        %1472 = vmatprep.subr.mxu0 0.0
        %1473 = vmatpush1.msra.mxu0 0.0
        %1474 = vmatprep.subr.mxu0 0.0
        %1475 = vmatpush1.msra.mxu0 0.0
        %1476 = vmatprep.subr.mxu0 0.0
        %1477 = vmatpush1.msra.mxu0 0.0
        %1478 = vmatprep.subr.mxu0 0.0
        %1479 = vmatpush1.msra.mxu0 0.0
        %1480 = vmatprep.subr.mxu0 0.0
        %1481 = vmatpush1.msra.mxu0 0.0
        %1482 = vmatprep.subr.mxu0 0.0
        %1483 = vmatpush1.msra.mxu0 0.0
        %1484 = vmatprep.subr.mxu0 0.0
        %1485 = vmatpush1.msra.mxu0 0.0
        %1486 = vmatprep.subr.mxu0 0.0
        %1487 = vmatpush1.msra.mxu0 %v1070
        %1488 = vmatprep.subr.mxu0 0.0
        %1489 = vmatpush1.msra.mxu0 %v1069
        %1490 = vmatprep.subr.mxu0 0.0
        %1491 = vmatpush2.msra.mxu0 0.0
        %1492 = vmatprep.subr.mxu0 0.0
        %1493 = vmatpush2.msra.mxu0 0.0
        %1494 = vmatprep.subr.mxu0 0.0
        %1495 = vmatpush2.msra.mxu0 0.0
        %1496 = vmatprep.subr.mxu0 0.0
        %1497 = vmatpush2.msra.mxu0 0.0
        %1498 = vmatprep.subr.mxu0 0.0
        %1499 = vmatpush2.msra.mxu0 0.0
        %1500 = vmatprep.subr.mxu0 0.0
        %1501 = vmatpush2.msra.mxu0 0.0
        %1502 = vmatprep.subr.mxu0 0.0
        %1503 = vmatpush2.msra.mxu0 0.0
        %1504 = vmatprep.subr.mxu0 0.0
        %1505 = vmatpush2.msra.mxu0 0.0
        %1506 = vmatprep.subr.mxu0 0.0
        %1507 = vmatpush2.msra.mxu0 0.0
        %1508 = vmatprep.subr.mxu0 0.0
        %1509 = vmatpush2.msra.mxu0 0.0
        %1510 = vmatprep.subr.mxu0 0.0
        %1511 = vmatpush2.msra.mxu0 0.0
        %1512 = vmatprep.subr.mxu0 0.0
        %1513 = vmatpush2.msra.mxu0 0.0
        %1514 = vmatprep.subr.mxu0 0.0
        %1515 = vmatpush2.msra.mxu0 0.0
        %1516 = vmatprep.subr.mxu0 0.0
        %1517 = vmatpush2.msra.mxu0 0.0
        %1518 = vmatprep.subr.mxu0 0.0
        %1519 = vmatpush2.msra.mxu0 0.0
        %1520 = vmatprep.subr.mxu0 0.0
        %1521 = vmatpush2.msra.mxu0 0.0
        %1522 = vmatprep.mubr.f32.mxu0 0.0
        %1523 = vmatmul.mubr.f32.gmra.mxu0 %v1167
        %v1524 = vpop.f32.mrf.mxu0
        %v1525 = vadd.f32 %v1456, %v1524
        %v1526 = vpop.f32.mrf.mxu0
        %1527 = vdwg.mxu0
        %v1529 = vlaneseq
        %v1530 = vshrl.u32 %v1529, 7
        %v1531 = vsub.s32 0, %v1530
        %v1532 = vrot.slane %v1084, %v1531
        %1534 = vmatprep.subr.mxu0 0.0
        %1535 = vmatpush1.msra.mxu0 0.0
        %1536 = vmatprep.subr.mxu0 0.0
        %1537 = vmatpush1.msra.mxu0 0.0
        %1538 = vmatprep.subr.mxu0 0.0
        %1539 = vmatpush1.msra.mxu0 0.0
        %1540 = vmatprep.subr.mxu0 0.0
        %1541 = vmatpush1.msra.mxu0 0.0
        %1542 = vmatprep.subr.mxu0 0.0
        %1543 = vmatpush1.msra.mxu0 0.0
        %1544 = vmatprep.subr.mxu0 0.0
        %1545 = vmatpush1.msra.mxu0 0.0
        %1546 = vmatprep.subr.mxu0 0.0
        %1547 = vmatpush1.msra.mxu0 0.0
        %1548 = vmatprep.subr.mxu0 0.0
        %1549 = vmatpush1.msra.mxu0 0.0
        %1550 = vmatprep.subr.mxu0 0.0
        %1551 = vmatpush1.msra.mxu0 0.0
        %1552 = vmatprep.subr.mxu0 0.0
        %1553 = vmatpush1.msra.mxu0 0.0
        %1554 = vmatprep.subr.mxu0 0.0
        %1555 = vmatpush1.msra.mxu0 0.0
        %1556 = vmatprep.subr.mxu0 0.0
        %1557 = vmatpush1.msra.mxu0 0.0
        %1558 = vmatprep.subr.mxu0 0.0
        %1559 = vmatpush1.msra.mxu0 0.0
        %1560 = vmatprep.subr.mxu0 0.0
        %1561 = vmatpush1.msra.mxu0 0.0
        %1562 = vmatprep.subr.mxu0 0.0
        %1563 = vmatpush1.msra.mxu0 %v1073
        %1564 = vmatprep.subr.mxu0 0.0
        %1565 = vmatpush1.msra.mxu0 %v1072
        %1566 = vmatprep.subr.mxu0 0.0
        %1567 = vmatpush2.msra.mxu0 0.0
        %1568 = vmatprep.subr.mxu0 0.0
        %1569 = vmatpush2.msra.mxu0 0.0
        %1570 = vmatprep.subr.mxu0 0.0
        %1571 = vmatpush2.msra.mxu0 0.0
        %1572 = vmatprep.subr.mxu0 0.0
        %1573 = vmatpush2.msra.mxu0 0.0
        %1574 = vmatprep.subr.mxu0 0.0
        %1575 = vmatpush2.msra.mxu0 0.0
        %1576 = vmatprep.subr.mxu0 0.0
        %1577 = vmatpush2.msra.mxu0 0.0
        %1578 = vmatprep.subr.mxu0 0.0
        %1579 = vmatpush2.msra.mxu0 0.0
        %1580 = vmatprep.subr.mxu0 0.0
        %1581 = vmatpush2.msra.mxu0 0.0
        %1582 = vmatprep.subr.mxu0 0.0
        %1583 = vmatpush2.msra.mxu0 0.0
        %1584 = vmatprep.subr.mxu0 0.0
        %1585 = vmatpush2.msra.mxu0 0.0
        %1586 = vmatprep.subr.mxu0 0.0
        %1587 = vmatpush2.msra.mxu0 0.0
        %1588 = vmatprep.subr.mxu0 0.0
        %1589 = vmatpush2.msra.mxu0 0.0
        %1590 = vmatprep.subr.mxu0 0.0
        %1591 = vmatpush2.msra.mxu0 0.0
        %1592 = vmatprep.subr.mxu0 0.0
        %1593 = vmatpush2.msra.mxu0 0.0
        %1594 = vmatprep.subr.mxu0 0.0
        %1595 = vmatpush2.msra.mxu0 0.0
        %1596 = vmatprep.subr.mxu0 0.0
        %1597 = vmatpush2.msra.mxu0 0.0
        %1598 = vmatprep.mubr.f32.mxu0 0.0
        %1599 = vmatmul.mubr.f32.gmra.mxu0 %v1167
        %v1600 = vpop.f32.mrf.mxu0
        %v1601 = vadd.f32 %v1532, %v1600
        %v1602 = vpop.f32.mrf.mxu0
        %1603 = vdwg.mxu0
        %v1605 = vlaneseq
        %v1606 = vshrl.u32 %v1605, 7
        %v1607 = vsub.s32 0, %v1606
        %v1608 = vrot.slane %v1086, %v1607
        %1610 = vmatprep.subr.mxu0 0.0
        %1611 = vmatpush1.msra.mxu0 0.0
        %1612 = vmatprep.subr.mxu0 0.0
        %1613 = vmatpush1.msra.mxu0 0.0
        %1614 = vmatprep.subr.mxu0 0.0
        %1615 = vmatpush1.msra.mxu0 0.0
        %1616 = vmatprep.subr.mxu0 0.0
        %1617 = vmatpush1.msra.mxu0 0.0
        %1618 = vmatprep.subr.mxu0 0.0
        %1619 = vmatpush1.msra.mxu0 0.0
        %1620 = vmatprep.subr.mxu0 0.0
        %1621 = vmatpush1.msra.mxu0 0.0
        %1622 = vmatprep.subr.mxu0 0.0
        %1623 = vmatpush1.msra.mxu0 0.0
        %1624 = vmatprep.subr.mxu0 0.0
        %1625 = vmatpush1.msra.mxu0 0.0
        %1626 = vmatprep.subr.mxu0 0.0
        %1627 = vmatpush1.msra.mxu0 0.0
        %1628 = vmatprep.subr.mxu0 0.0
        %1629 = vmatpush1.msra.mxu0 0.0
        %1630 = vmatprep.subr.mxu0 0.0
        %1631 = vmatpush1.msra.mxu0 0.0
        %1632 = vmatprep.subr.mxu0 0.0
        %1633 = vmatpush1.msra.mxu0 0.0
        %1634 = vmatprep.subr.mxu0 0.0
        %1635 = vmatpush1.msra.mxu0 0.0
        %1636 = vmatprep.subr.mxu0 0.0
        %1637 = vmatpush1.msra.mxu0 0.0
        %1638 = vmatprep.subr.mxu0 0.0
        %1639 = vmatpush1.msra.mxu0 %v1076
        %1640 = vmatprep.subr.mxu0 0.0
        %1641 = vmatpush1.msra.mxu0 %v1075
        %1642 = vmatprep.subr.mxu0 0.0
        %1643 = vmatpush2.msra.mxu0 0.0
        %1644 = vmatprep.subr.mxu0 0.0
        %1645 = vmatpush2.msra.mxu0 0.0
        %1646 = vmatprep.subr.mxu0 0.0
        %1647 = vmatpush2.msra.mxu0 0.0
        %1648 = vmatprep.subr.mxu0 0.0
        %1649 = vmatpush2.msra.mxu0 0.0
        %1650 = vmatprep.subr.mxu0 0.0
        %1651 = vmatpush2.msra.mxu0 0.0
        %1652 = vmatprep.subr.mxu0 0.0
        %1653 = vmatpush2.msra.mxu0 0.0
        %1654 = vmatprep.subr.mxu0 0.0
        %1655 = vmatpush2.msra.mxu0 0.0
        %1656 = vmatprep.subr.mxu0 0.0
        %1657 = vmatpush2.msra.mxu0 0.0
        %1658 = vmatprep.subr.mxu0 0.0
        %1659 = vmatpush2.msra.mxu0 0.0
        %1660 = vmatprep.subr.mxu0 0.0
        %1661 = vmatpush2.msra.mxu0 0.0
        %1662 = vmatprep.subr.mxu0 0.0
        %1663 = vmatpush2.msra.mxu0 0.0
        %1664 = vmatprep.subr.mxu0 0.0
        %1665 = vmatpush2.msra.mxu0 0.0
        %1666 = vmatprep.subr.mxu0 0.0
        %1667 = vmatpush2.msra.mxu0 0.0
        %1668 = vmatprep.subr.mxu0 0.0
        %1669 = vmatpush2.msra.mxu0 0.0
        %1670 = vmatprep.subr.mxu0 0.0
        %1671 = vmatpush2.msra.mxu0 0.0
        %1672 = vmatprep.subr.mxu0 0.0
        %1673 = vmatpush2.msra.mxu0 0.0
        %1674 = vmatprep.mubr.f32.mxu0 0.0
        %1675 = vmatmul.mubr.f32.gmra.mxu0 %v1167
        %v1676 = vpop.f32.mrf.mxu0
        %v1677 = vadd.f32 %v1608, %v1676
        %v1678 = vpop.f32.mrf.mxu0
        %1679 = vdwg.mxu0
        %v1680 = vadd.f32 %v1427, %v1525
        %v1681 = vxor.u32 %v1680, 2147483648
        %v1682 = vmul.f32 %v1681, 1.442695
        %v1683 = vpow.pop %v1682
        %v1684 = vadd.f32 %v1683, 1.0
        %v1685 = vrcp.pop %v1684
        %v1686 = vmul.f32 1.0, %v1685
        %v1687 = vadd.f32 %v1439, %v1601
        %v1688 = vxor.u32 %v1687, 2147483648
        %v1689 = vmul.f32 %v1688, 1.442695
        %v1690 = vpow.pop %v1689
        %v1691 = vadd.f32 %v1690, 1.0
        %v1692 = vrcp.pop %v1691
        %v1693 = vmul.f32 1.0, %v1692
        %v1694 = vmul.f32 %v1686, %v1677
        %v1695 = vadd.f32 %v1451, %v1694
        %v1696 = vtanh.pop %v1695
        %v1697 = vsub.f32 1.0, %v1693
        %v1698 = vmul.f32 %v1697, %v1696
        %v1699 = vmul.f32 %v1693, 0.0
        %v1700 = vadd.f32 %v1698, %v1699
        %v1701 = vsel %vm1111, 1, 0
        %vm1702 = vcmp.eq.s32.totalorder %v1701, 1
        %v1703 = vsel %vm1702, %v1411, 0.0
        %v1704 = vsel %vm1118, 1, 0
        %vm1705 = vcmp.eq.s32.totalorder %v1704, 1
        %v1706 = vsel %vm1705, %v1700, 0.0
        %v1707 = vlaneseq
        %v1708 = vshrl.u32 %v1707, 7
        %v1709 = vsub.s32 1, %v1708
        %v1710 = vrot.slane %v655, %v1709
        %1711 = vset.pattern.permute.xlu0 1
        %1712 = vperm.xlu0 %1711, %v574
        %v1713 = vpop.permute.xlu0 %1712
        %v1715 = vmul.f32 %v1713, %v1710
        %v1716 = vadd.f32 %v1715, %v1133
        %v1717 = vlaneseq
        %v1718 = vshrl.u32 %v1717, 7
        %v1719 = vsub.s32 1, %v1718
        %v1720 = vrot.slane %v736, %v1719
        %v1721 = vmul.f32 %v1713, %v1720
        %v1722 = vadd.f32 %v1721, %v1145
        %v1723 = vlaneseq
        %v1724 = vshrl.u32 %v1723, 7
        %v1725 = vsub.s32 1, %v1724
        %v1726 = vrot.slane %v817, %v1725
        %v1727 = vmul.f32 %v1713, %v1726
        %v1728 = vadd.f32 %v1727, %v1157
        %v1730 = vsel %vm584, %v1411, 0
        %1732 = vmatprep.subr.mxu0 0.0
        %1733 = vmatpush1.msra.mxu0 0.0
        %1734 = vmatprep.subr.mxu0 0.0
        %1735 = vmatpush1.msra.mxu0 0.0
        %1736 = vmatprep.subr.mxu0 0.0
        %1737 = vmatpush1.msra.mxu0 0.0
        %1738 = vmatprep.subr.mxu0 0.0
        %1739 = vmatpush1.msra.mxu0 0.0
        %1740 = vmatprep.subr.mxu0 0.0
        %1741 = vmatpush1.msra.mxu0 0.0
        %1742 = vmatprep.subr.mxu0 0.0
        %1743 = vmatpush1.msra.mxu0 0.0
        %1744 = vmatprep.subr.mxu0 0.0
        %1745 = vmatpush1.msra.mxu0 0.0
        %1746 = vmatprep.subr.mxu0 0.0
        %1747 = vmatpush1.msra.mxu0 0.0
        %1748 = vmatprep.subr.mxu0 0.0
        %1749 = vmatpush1.msra.mxu0 0.0
        %1750 = vmatprep.subr.mxu0 0.0
        %1751 = vmatpush1.msra.mxu0 0.0
        %1752 = vmatprep.subr.mxu0 0.0
        %1753 = vmatpush1.msra.mxu0 0.0
        %1754 = vmatprep.subr.mxu0 0.0
        %1755 = vmatpush1.msra.mxu0 0.0
        %1756 = vmatprep.subr.mxu0 0.0
        %1757 = vmatpush1.msra.mxu0 0.0
        %1758 = vmatprep.subr.mxu0 0.0
        %1759 = vmatpush1.msra.mxu0 0.0
        %1760 = vmatprep.subr.mxu0 0.0
        %1761 = vmatpush1.msra.mxu0 %v1062
        %1762 = vmatprep.subr.mxu0 0.0
        %1763 = vmatpush1.msra.mxu0 %v1061
        %1764 = vmatprep.subr.mxu0 0.0
        %1765 = vmatpush2.msra.mxu0 0.0
        %1766 = vmatprep.subr.mxu0 0.0
        %1767 = vmatpush2.msra.mxu0 0.0
        %1768 = vmatprep.subr.mxu0 0.0
        %1769 = vmatpush2.msra.mxu0 0.0
        %1770 = vmatprep.subr.mxu0 0.0
        %1771 = vmatpush2.msra.mxu0 0.0
        %1772 = vmatprep.subr.mxu0 0.0
        %1773 = vmatpush2.msra.mxu0 0.0
        %1774 = vmatprep.subr.mxu0 0.0
        %1775 = vmatpush2.msra.mxu0 0.0
        %1776 = vmatprep.subr.mxu0 0.0
        %1777 = vmatpush2.msra.mxu0 0.0
        %1778 = vmatprep.subr.mxu0 0.0
        %1779 = vmatpush2.msra.mxu0 0.0
        %1780 = vmatprep.subr.mxu0 0.0
        %1781 = vmatpush2.msra.mxu0 0.0
        %1782 = vmatprep.subr.mxu0 0.0
        %1783 = vmatpush2.msra.mxu0 0.0
        %1784 = vmatprep.subr.mxu0 0.0
        %1785 = vmatpush2.msra.mxu0 0.0
        %1786 = vmatprep.subr.mxu0 0.0
        %1787 = vmatpush2.msra.mxu0 0.0
        %1788 = vmatprep.subr.mxu0 0.0
        %1789 = vmatpush2.msra.mxu0 0.0
        %1790 = vmatprep.subr.mxu0 0.0
        %1791 = vmatpush2.msra.mxu0 0.0
        %1792 = vmatprep.subr.mxu0 0.0
        %1793 = vmatpush2.msra.mxu0 0.0
        %1794 = vmatprep.subr.mxu0 0.0
        %1795 = vmatpush2.msra.mxu0 0.0
        %1796 = vmatprep.mubr.f32.mxu0 0.0
        %1797 = vmatmul.mubr.f32.gmra.mxu0 %v1730
        %v1798 = vpop.f32.mrf.mxu0
        %v1799 = vadd.f32 %v1164, %v1798
        %v1800 = vpop.f32.mrf.mxu0
        %1801 = vdwg.mxu0
        %1802 = vmatprep.subr.mxu0 0.0
        %1803 = vmatpush1.msra.mxu0 0.0
        %1804 = vmatprep.subr.mxu0 0.0
        %1805 = vmatpush1.msra.mxu0 0.0
        %1806 = vmatprep.subr.mxu0 0.0
        %1807 = vmatpush1.msra.mxu0 0.0
        %1808 = vmatprep.subr.mxu0 0.0
        %1809 = vmatpush1.msra.mxu0 0.0
        %1810 = vmatprep.subr.mxu0 0.0
        %1811 = vmatpush1.msra.mxu0 0.0
        %1812 = vmatprep.subr.mxu0 0.0
        %1813 = vmatpush1.msra.mxu0 0.0
        %1814 = vmatprep.subr.mxu0 0.0
        %1815 = vmatpush1.msra.mxu0 0.0
        %1816 = vmatprep.subr.mxu0 0.0
        %1817 = vmatpush1.msra.mxu0 0.0
        %1818 = vmatprep.subr.mxu0 0.0
        %1819 = vmatpush1.msra.mxu0 0.0
        %1820 = vmatprep.subr.mxu0 0.0
        %1821 = vmatpush1.msra.mxu0 0.0
        %1822 = vmatprep.subr.mxu0 0.0
        %1823 = vmatpush1.msra.mxu0 0.0
        %1824 = vmatprep.subr.mxu0 0.0
        %1825 = vmatpush1.msra.mxu0 0.0
        %1826 = vmatprep.subr.mxu0 0.0
        %1827 = vmatpush1.msra.mxu0 0.0
        %1828 = vmatprep.subr.mxu0 0.0
        %1829 = vmatpush1.msra.mxu0 0.0
        %1830 = vmatprep.subr.mxu0 0.0
        %1831 = vmatpush1.msra.mxu0 %v1065
        %1832 = vmatprep.subr.mxu0 0.0
        %1833 = vmatpush1.msra.mxu0 %v1064
        %1834 = vmatprep.subr.mxu0 0.0
        %1835 = vmatpush2.msra.mxu0 0.0
        %1836 = vmatprep.subr.mxu0 0.0
        %1837 = vmatpush2.msra.mxu0 0.0
        %1838 = vmatprep.subr.mxu0 0.0
        %1839 = vmatpush2.msra.mxu0 0.0
        %1840 = vmatprep.subr.mxu0 0.0
        %1841 = vmatpush2.msra.mxu0 0.0
        %1842 = vmatprep.subr.mxu0 0.0
        %1843 = vmatpush2.msra.mxu0 0.0
        %1844 = vmatprep.subr.mxu0 0.0
        %1845 = vmatpush2.msra.mxu0 0.0
        %1846 = vmatprep.subr.mxu0 0.0
        %1847 = vmatpush2.msra.mxu0 0.0
        %1848 = vmatprep.subr.mxu0 0.0
        %1849 = vmatpush2.msra.mxu0 0.0
        %1850 = vmatprep.subr.mxu0 0.0
        %1851 = vmatpush2.msra.mxu0 0.0
        %1852 = vmatprep.subr.mxu0 0.0
        %1853 = vmatpush2.msra.mxu0 0.0
        %1854 = vmatprep.subr.mxu0 0.0
        %1855 = vmatpush2.msra.mxu0 0.0
        %1856 = vmatprep.subr.mxu0 0.0
        %1857 = vmatpush2.msra.mxu0 0.0
        %1858 = vmatprep.subr.mxu0 0.0
        %1859 = vmatpush2.msra.mxu0 0.0
        %1860 = vmatprep.subr.mxu0 0.0
        %1861 = vmatpush2.msra.mxu0 0.0
        %1862 = vmatprep.subr.mxu0 0.0
        %1863 = vmatpush2.msra.mxu0 0.0
        %1864 = vmatprep.subr.mxu0 0.0
        %1865 = vmatpush2.msra.mxu0 0.0
        %1866 = vmatprep.mubr.f32.mxu0 0.0
        %1867 = vmatmul.mubr.f32.gmra.mxu0 %v1730
        %v1868 = vpop.f32.mrf.mxu0
        %v1869 = vadd.f32 %v1243, %v1868
        %v1870 = vpop.f32.mrf.mxu0
        %1871 = vdwg.mxu0
        %1872 = vmatprep.subr.mxu0 0.0
        %1873 = vmatpush1.msra.mxu0 0.0
        %1874 = vmatprep.subr.mxu0 0.0
        %1875 = vmatpush1.msra.mxu0 0.0
        %1876 = vmatprep.subr.mxu0 0.0
        %1877 = vmatpush1.msra.mxu0 0.0
        %1878 = vmatprep.subr.mxu0 0.0
        %1879 = vmatpush1.msra.mxu0 0.0
        %1880 = vmatprep.subr.mxu0 0.0
        %1881 = vmatpush1.msra.mxu0 0.0
        %1882 = vmatprep.subr.mxu0 0.0
        %1883 = vmatpush1.msra.mxu0 0.0
        %1884 = vmatprep.subr.mxu0 0.0
        %1885 = vmatpush1.msra.mxu0 0.0
        %1886 = vmatprep.subr.mxu0 0.0
        %1887 = vmatpush1.msra.mxu0 0.0
        %1888 = vmatprep.subr.mxu0 0.0
        %1889 = vmatpush1.msra.mxu0 0.0
        %1890 = vmatprep.subr.mxu0 0.0
        %1891 = vmatpush1.msra.mxu0 0.0
        %1892 = vmatprep.subr.mxu0 0.0
        %1893 = vmatpush1.msra.mxu0 0.0
        %1894 = vmatprep.subr.mxu0 0.0
        %1895 = vmatpush1.msra.mxu0 0.0
        %1896 = vmatprep.subr.mxu0 0.0
        %1897 = vmatpush1.msra.mxu0 0.0
        %1898 = vmatprep.subr.mxu0 0.0
        %1899 = vmatpush1.msra.mxu0 0.0
        %1900 = vmatprep.subr.mxu0 0.0
        %1901 = vmatpush1.msra.mxu0 %v1068
        %1902 = vmatprep.subr.mxu0 0.0
        %1903 = vmatpush1.msra.mxu0 %v1067
        %1904 = vmatprep.subr.mxu0 0.0
        %1905 = vmatpush2.msra.mxu0 0.0
        %1906 = vmatprep.subr.mxu0 0.0
        %1907 = vmatpush2.msra.mxu0 0.0
        %1908 = vmatprep.subr.mxu0 0.0
        %1909 = vmatpush2.msra.mxu0 0.0
        %1910 = vmatprep.subr.mxu0 0.0
        %1911 = vmatpush2.msra.mxu0 0.0
        %1912 = vmatprep.subr.mxu0 0.0
        %1913 = vmatpush2.msra.mxu0 0.0
        %1914 = vmatprep.subr.mxu0 0.0
        %1915 = vmatpush2.msra.mxu0 0.0
        %1916 = vmatprep.subr.mxu0 0.0
        %1917 = vmatpush2.msra.mxu0 0.0
        %1918 = vmatprep.subr.mxu0 0.0
        %1919 = vmatpush2.msra.mxu0 0.0
        %1920 = vmatprep.subr.mxu0 0.0
        %1921 = vmatpush2.msra.mxu0 0.0
        %1922 = vmatprep.subr.mxu0 0.0
        %1923 = vmatpush2.msra.mxu0 0.0
        %1924 = vmatprep.subr.mxu0 0.0
        %1925 = vmatpush2.msra.mxu0 0.0
        %1926 = vmatprep.subr.mxu0 0.0
        %1927 = vmatpush2.msra.mxu0 0.0
        %1928 = vmatprep.subr.mxu0 0.0
        %1929 = vmatpush2.msra.mxu0 0.0
        %1930 = vmatprep.subr.mxu0 0.0
        %1931 = vmatpush2.msra.mxu0 0.0
        %1932 = vmatprep.subr.mxu0 0.0
        %1933 = vmatpush2.msra.mxu0 0.0
        %1934 = vmatprep.subr.mxu0 0.0
        %1935 = vmatpush2.msra.mxu0 0.0
        %1936 = vmatprep.mubr.f32.mxu0 0.0
        %1937 = vmatmul.mubr.f32.gmra.mxu0 %v1730
        %v1938 = vpop.f32.mrf.mxu0
        %v1939 = vadd.f32 %v1319, %v1938
        %v1940 = vpop.f32.mrf.mxu0
        %1941 = vdwg.mxu0
        %v1942 = vadd.f32 %v1716, %v1799
        %v1943 = vxor.u32 %v1942, 2147483648
        %v1944 = vmul.f32 %v1943, 1.442695
        %v1945 = vpow.pop %v1944
        %v1946 = vadd.f32 %v1945, 1.0
        %v1947 = vrcp.pop %v1946
        %v1948 = vmul.f32 1.0, %v1947
        %v1949 = vadd.f32 %v1722, %v1869
        %v1950 = vxor.u32 %v1949, 2147483648
        %v1951 = vmul.f32 %v1950, 1.442695
        %v1952 = vpow.pop %v1951
        %v1953 = vadd.f32 %v1952, 1.0
        %v1954 = vrcp.pop %v1953
        %v1955 = vmul.f32 1.0, %v1954
        %v1956 = vmul.f32 %v1948, %v1939
        %v1957 = vadd.f32 %v1728, %v1956
        %v1958 = vtanh.pop %v1957
        %v1959 = vsub.f32 1.0, %v1955
        %v1960 = vmul.f32 %v1959, %v1958
        %v1961 = vmul.f32 %v1955, %v1411
        %v1962 = vadd.f32 %v1960, %v1961
        %v1963 = vlaneseq
        %v1964 = vshrl.u32 %v1963, 7
        %v1965 = vsub.s32 6, %v1964
        %v1966 = vrot.slane %v896, %v1965
        %1967 = vset.pattern.permute.xlu0 6
        %1968 = vperm.xlu0 %1967, %v574
        %v1969 = vpop.permute.xlu0 %1968
        %v1971 = vmul.f32 %v1969, %v1966
        %v1972 = vadd.f32 %v1971, %v1425
        %v1973 = vlaneseq
        %v1974 = vshrl.u32 %v1973, 7
        %v1975 = vsub.s32 6, %v1974
        %v1976 = vrot.slane %v977, %v1975
        %v1977 = vmul.f32 %v1969, %v1976
        %v1978 = vadd.f32 %v1977, %v1437
        %v1979 = vlaneseq
        %v1980 = vshrl.u32 %v1979, 7
        %v1981 = vsub.s32 6, %v1980
        %v1982 = vrot.slane %v1058, %v1981
        %v1983 = vmul.f32 %v1969, %v1982
        %v1984 = vadd.f32 %v1983, %v1449
        %v1986 = vsel %vm584, %v1700, 0
        %1988 = vmatprep.subr.mxu0 0.0
        %1989 = vmatpush1.msra.mxu0 0.0
        %1990 = vmatprep.subr.mxu0 0.0
        %1991 = vmatpush1.msra.mxu0 0.0
        %1992 = vmatprep.subr.mxu0 0.0
        %1993 = vmatpush1.msra.mxu0 0.0
        %1994 = vmatprep.subr.mxu0 0.0
        %1995 = vmatpush1.msra.mxu0 0.0
        %1996 = vmatprep.subr.mxu0 0.0
        %1997 = vmatpush1.msra.mxu0 0.0
        %1998 = vmatprep.subr.mxu0 0.0
        %1999 = vmatpush1.msra.mxu0 0.0
        %2000 = vmatprep.subr.mxu0 0.0
        %2001 = vmatpush1.msra.mxu0 0.0
        %2002 = vmatprep.subr.mxu0 0.0
        %2003 = vmatpush1.msra.mxu0 0.0
        %2004 = vmatprep.subr.mxu0 0.0
        %2005 = vmatpush1.msra.mxu0 0.0
        %2006 = vmatprep.subr.mxu0 0.0
        %2007 = vmatpush1.msra.mxu0 0.0
        %2008 = vmatprep.subr.mxu0 0.0
        %2009 = vmatpush1.msra.mxu0 0.0
        %2010 = vmatprep.subr.mxu0 0.0
        %2011 = vmatpush1.msra.mxu0 0.0
        %2012 = vmatprep.subr.mxu0 0.0
        %2013 = vmatpush1.msra.mxu0 0.0
        %2014 = vmatprep.subr.mxu0 0.0
        %2015 = vmatpush1.msra.mxu0 0.0
        %2016 = vmatprep.subr.mxu0 0.0
        %2017 = vmatpush1.msra.mxu0 %v1070
        %2018 = vmatprep.subr.mxu0 0.0
        %2019 = vmatpush1.msra.mxu0 %v1069
        %2020 = vmatprep.subr.mxu0 0.0
        %2021 = vmatpush2.msra.mxu0 0.0
        %2022 = vmatprep.subr.mxu0 0.0
        %2023 = vmatpush2.msra.mxu0 0.0
        %2024 = vmatprep.subr.mxu0 0.0
        %2025 = vmatpush2.msra.mxu0 0.0
        %2026 = vmatprep.subr.mxu0 0.0
        %2027 = vmatpush2.msra.mxu0 0.0
        %2028 = vmatprep.subr.mxu0 0.0
        %2029 = vmatpush2.msra.mxu0 0.0
        %2030 = vmatprep.subr.mxu0 0.0
        %2031 = vmatpush2.msra.mxu0 0.0
        %2032 = vmatprep.subr.mxu0 0.0
        %2033 = vmatpush2.msra.mxu0 0.0
        %2034 = vmatprep.subr.mxu0 0.0
        %2035 = vmatpush2.msra.mxu0 0.0
        %2036 = vmatprep.subr.mxu0 0.0
        %2037 = vmatpush2.msra.mxu0 0.0
        %2038 = vmatprep.subr.mxu0 0.0
        %2039 = vmatpush2.msra.mxu0 0.0
        %2040 = vmatprep.subr.mxu0 0.0
        %2041 = vmatpush2.msra.mxu0 0.0
        %2042 = vmatprep.subr.mxu0 0.0
        %2043 = vmatpush2.msra.mxu0 0.0
        %2044 = vmatprep.subr.mxu0 0.0
        %2045 = vmatpush2.msra.mxu0 0.0
        %2046 = vmatprep.subr.mxu0 0.0
        %2047 = vmatpush2.msra.mxu0 0.0
        %2048 = vmatprep.subr.mxu0 0.0
        %2049 = vmatpush2.msra.mxu0 0.0
        %2050 = vmatprep.subr.mxu0 0.0
        %2051 = vmatpush2.msra.mxu0 0.0
        %2052 = vmatprep.mubr.f32.mxu0 0.0
        %2053 = vmatmul.mubr.f32.gmra.mxu0 %v1986
        %v2054 = vpop.f32.mrf.mxu0
        %v2055 = vadd.f32 %v1456, %v2054
        %v2056 = vpop.f32.mrf.mxu0
        %2057 = vdwg.mxu0
        %2058 = vmatprep.subr.mxu0 0.0
        %2059 = vmatpush1.msra.mxu0 0.0
        %2060 = vmatprep.subr.mxu0 0.0
        %2061 = vmatpush1.msra.mxu0 0.0
        %2062 = vmatprep.subr.mxu0 0.0
        %2063 = vmatpush1.msra.mxu0 0.0
        %2064 = vmatprep.subr.mxu0 0.0
        %2065 = vmatpush1.msra.mxu0 0.0
        %2066 = vmatprep.subr.mxu0 0.0
        %2067 = vmatpush1.msra.mxu0 0.0
        %2068 = vmatprep.subr.mxu0 0.0
        %2069 = vmatpush1.msra.mxu0 0.0
        %2070 = vmatprep.subr.mxu0 0.0
        %2071 = vmatpush1.msra.mxu0 0.0
        %2072 = vmatprep.subr.mxu0 0.0
        %2073 = vmatpush1.msra.mxu0 0.0
        %2074 = vmatprep.subr.mxu0 0.0
        %2075 = vmatpush1.msra.mxu0 0.0
        %2076 = vmatprep.subr.mxu0 0.0
        %2077 = vmatpush1.msra.mxu0 0.0
        %2078 = vmatprep.subr.mxu0 0.0
        %2079 = vmatpush1.msra.mxu0 0.0
        %2080 = vmatprep.subr.mxu0 0.0
        %2081 = vmatpush1.msra.mxu0 0.0
        %2082 = vmatprep.subr.mxu0 0.0
        %2083 = vmatpush1.msra.mxu0 0.0
        %2084 = vmatprep.subr.mxu0 0.0
        %2085 = vmatpush1.msra.mxu0 0.0
        %2086 = vmatprep.subr.mxu0 0.0
        %2087 = vmatpush1.msra.mxu0 %v1073
        %2088 = vmatprep.subr.mxu0 0.0
        %2089 = vmatpush1.msra.mxu0 %v1072
        %2090 = vmatprep.subr.mxu0 0.0
        %2091 = vmatpush2.msra.mxu0 0.0
        %2092 = vmatprep.subr.mxu0 0.0
        %2093 = vmatpush2.msra.mxu0 0.0
        %2094 = vmatprep.subr.mxu0 0.0
        %2095 = vmatpush2.msra.mxu0 0.0
        %2096 = vmatprep.subr.mxu0 0.0
        %2097 = vmatpush2.msra.mxu0 0.0
        %2098 = vmatprep.subr.mxu0 0.0
        %2099 = vmatpush2.msra.mxu0 0.0
        %2100 = vmatprep.subr.mxu0 0.0
        %2101 = vmatpush2.msra.mxu0 0.0
        %2102 = vmatprep.subr.mxu0 0.0
        %2103 = vmatpush2.msra.mxu0 0.0
        %2104 = vmatprep.subr.mxu0 0.0
        %2105 = vmatpush2.msra.mxu0 0.0
        %2106 = vmatprep.subr.mxu0 0.0
        %2107 = vmatpush2.msra.mxu0 0.0
        %2108 = vmatprep.subr.mxu0 0.0
        %2109 = vmatpush2.msra.mxu0 0.0
        %2110 = vmatprep.subr.mxu0 0.0
        %2111 = vmatpush2.msra.mxu0 0.0
        %2112 = vmatprep.subr.mxu0 0.0
        %2113 = vmatpush2.msra.mxu0 0.0
        %2114 = vmatprep.subr.mxu0 0.0
        %2115 = vmatpush2.msra.mxu0 0.0
        %2116 = vmatprep.subr.mxu0 0.0
        %2117 = vmatpush2.msra.mxu0 0.0
        %2118 = vmatprep.subr.mxu0 0.0
        %2119 = vmatpush2.msra.mxu0 0.0
        %2120 = vmatprep.subr.mxu0 0.0
        %2121 = vmatpush2.msra.mxu0 0.0
        %2122 = vmatprep.mubr.f32.mxu0 0.0
        %2123 = vmatmul.mubr.f32.gmra.mxu0 %v1986
        %v2124 = vpop.f32.mrf.mxu0
        %v2125 = vadd.f32 %v1532, %v2124
        %v2126 = vpop.f32.mrf.mxu0
        %2127 = vdwg.mxu0
        %2128 = vmatprep.subr.mxu0 0.0
        %2129 = vmatpush1.msra.mxu0 0.0
        %2130 = vmatprep.subr.mxu0 0.0
        %2131 = vmatpush1.msra.mxu0 0.0
        %2132 = vmatprep.subr.mxu0 0.0
        %2133 = vmatpush1.msra.mxu0 0.0
        %2134 = vmatprep.subr.mxu0 0.0
        %2135 = vmatpush1.msra.mxu0 0.0
        %2136 = vmatprep.subr.mxu0 0.0
        %2137 = vmatpush1.msra.mxu0 0.0
        %2138 = vmatprep.subr.mxu0 0.0
        %2139 = vmatpush1.msra.mxu0 0.0
        %2140 = vmatprep.subr.mxu0 0.0
        %2141 = vmatpush1.msra.mxu0 0.0
        %2142 = vmatprep.subr.mxu0 0.0
        %2143 = vmatpush1.msra.mxu0 0.0
        %2144 = vmatprep.subr.mxu0 0.0
        %2145 = vmatpush1.msra.mxu0 0.0
        %2146 = vmatprep.subr.mxu0 0.0
        %2147 = vmatpush1.msra.mxu0 0.0
        %2148 = vmatprep.subr.mxu0 0.0
        %2149 = vmatpush1.msra.mxu0 0.0
        %2150 = vmatprep.subr.mxu0 0.0
        %2151 = vmatpush1.msra.mxu0 0.0
        %2152 = vmatprep.subr.mxu0 0.0
        %2153 = vmatpush1.msra.mxu0 0.0
        %2154 = vmatprep.subr.mxu0 0.0
        %2155 = vmatpush1.msra.mxu0 0.0
        %2156 = vmatprep.subr.mxu0 0.0
        %2157 = vmatpush1.msra.mxu0 %v1076
        %2158 = vmatprep.subr.mxu0 0.0
        %2159 = vmatpush1.msra.mxu0 %v1075
        %2160 = vmatprep.subr.mxu0 0.0
        %2161 = vmatpush2.msra.mxu0 0.0
        %2162 = vmatprep.subr.mxu0 0.0
        %2163 = vmatpush2.msra.mxu0 0.0
        %2164 = vmatprep.subr.mxu0 0.0
        %2165 = vmatpush2.msra.mxu0 0.0
        %2166 = vmatprep.subr.mxu0 0.0
        %2167 = vmatpush2.msra.mxu0 0.0
        %2168 = vmatprep.subr.mxu0 0.0
        %2169 = vmatpush2.msra.mxu0 0.0
        %2170 = vmatprep.subr.mxu0 0.0
        %2171 = vmatpush2.msra.mxu0 0.0
        %2172 = vmatprep.subr.mxu0 0.0
        %2173 = vmatpush2.msra.mxu0 0.0
        %2174 = vmatprep.subr.mxu0 0.0
        %2175 = vmatpush2.msra.mxu0 0.0
        %2176 = vmatprep.subr.mxu0 0.0
        %2177 = vmatpush2.msra.mxu0 0.0
        %2178 = vmatprep.subr.mxu0 0.0
        %2179 = vmatpush2.msra.mxu0 0.0
        %2180 = vmatprep.subr.mxu0 0.0
        %2181 = vmatpush2.msra.mxu0 0.0
        %2182 = vmatprep.subr.mxu0 0.0
        %2183 = vmatpush2.msra.mxu0 0.0
        %2184 = vmatprep.subr.mxu0 0.0
        %2185 = vmatpush2.msra.mxu0 0.0
        %2186 = vmatprep.subr.mxu0 0.0
        %2187 = vmatpush2.msra.mxu0 0.0
        %2188 = vmatprep.subr.mxu0 0.0
        %2189 = vmatpush2.msra.mxu0 0.0
        %2190 = vmatprep.subr.mxu0 0.0
        %2191 = vmatpush2.msra.mxu0 0.0
        %2192 = vmatprep.mubr.f32.mxu0 0.0
        %2193 = vmatmul.mubr.f32.gmra.mxu0 %v1986
        %v2194 = vpop.f32.mrf.mxu0
        %v2195 = vadd.f32 %v1608, %v2194
        %v2196 = vpop.f32.mrf.mxu0
        %2197 = vdwg.mxu0
        %v2198 = vadd.f32 %v1972, %v2055
        %v2199 = vxor.u32 %v2198, 2147483648
        %v2200 = vmul.f32 %v2199, 1.442695
        %v2201 = vpow.pop %v2200
        %v2202 = vadd.f32 %v2201, 1.0
        %v2203 = vrcp.pop %v2202
        %v2204 = vmul.f32 1.0, %v2203
        %v2205 = vadd.f32 %v1978, %v2125
        %v2206 = vxor.u32 %v2205, 2147483648
        %v2207 = vmul.f32 %v2206, 1.442695
        %v2208 = vpow.pop %v2207
        %v2209 = vadd.f32 %v2208, 1.0
        %v2210 = vrcp.pop %v2209
        %v2211 = vmul.f32 1.0, %v2210
        %v2212 = vmul.f32 %v2204, %v2195
        %v2213 = vadd.f32 %v1984, %v2212
        %v2214 = vtanh.pop %v2213
        %v2215 = vsub.f32 1.0, %v2211
        %v2216 = vmul.f32 %v2215, %v2214
        %v2217 = vmul.f32 %v2211, %v1700
        %v2218 = vadd.f32 %v2216, %v2217
        %v2219 = vsel %vm1112, 1, 0
        %vm2220 = vcmp.eq.s32.totalorder %v2219, 1
        %v2221 = vsel %vm2220, %v1962, %v1703
        %v2222 = vsel %vm1117, 1, 0
        %vm2223 = vcmp.eq.s32.totalorder %v2222, 1
        %v2224 = vsel %vm2223, %v2218, %v1706
        %v2225 = vlaneseq
        %v2226 = vshrl.u32 %v2225, 7
        %v2227 = vsub.s32 2, %v2226
        %v2228 = vrot.slane %v655, %v2227
        %2229 = vset.pattern.permute.xlu0 2
        %2230 = vperm.xlu0 %2229, %v574
        %v2231 = vpop.permute.xlu0 %2230
        %v2233 = vmul.f32 %v2231, %v2228
        %v2234 = vadd.f32 %v2233, %v1133
        %v2235 = vlaneseq
        %v2236 = vshrl.u32 %v2235, 7
        %v2237 = vsub.s32 2, %v2236
        %v2238 = vrot.slane %v736, %v2237
        %v2239 = vmul.f32 %v2231, %v2238
        %v2240 = vadd.f32 %v2239, %v1145
        %v2241 = vlaneseq
        %v2242 = vshrl.u32 %v2241, 7
        %v2243 = vsub.s32 2, %v2242
        %v2244 = vrot.slane %v817, %v2243
        %v2245 = vmul.f32 %v2231, %v2244
        %v2246 = vadd.f32 %v2245, %v1157
        %v2248 = vsel %vm584, %v1962, 0
        %2250 = vmatprep.subr.mxu0 0.0
        %2251 = vmatpush1.msra.mxu0 0.0
        %2252 = vmatprep.subr.mxu0 0.0
        %2253 = vmatpush1.msra.mxu0 0.0
        %2254 = vmatprep.subr.mxu0 0.0
        %2255 = vmatpush1.msra.mxu0 0.0
        %2256 = vmatprep.subr.mxu0 0.0
        %2257 = vmatpush1.msra.mxu0 0.0
        %2258 = vmatprep.subr.mxu0 0.0
        %2259 = vmatpush1.msra.mxu0 0.0
        %2260 = vmatprep.subr.mxu0 0.0
        %2261 = vmatpush1.msra.mxu0 0.0
        %2262 = vmatprep.subr.mxu0 0.0
        %2263 = vmatpush1.msra.mxu0 0.0
        %2264 = vmatprep.subr.mxu0 0.0
        %2265 = vmatpush1.msra.mxu0 0.0
        %2266 = vmatprep.subr.mxu0 0.0
        %2267 = vmatpush1.msra.mxu0 0.0
        %2268 = vmatprep.subr.mxu0 0.0
        %2269 = vmatpush1.msra.mxu0 0.0
        %2270 = vmatprep.subr.mxu0 0.0
        %2271 = vmatpush1.msra.mxu0 0.0
        %2272 = vmatprep.subr.mxu0 0.0
        %2273 = vmatpush1.msra.mxu0 0.0
        %2274 = vmatprep.subr.mxu0 0.0
        %2275 = vmatpush1.msra.mxu0 0.0
        %2276 = vmatprep.subr.mxu0 0.0
        %2277 = vmatpush1.msra.mxu0 0.0
        %2278 = vmatprep.subr.mxu0 0.0
        %2279 = vmatpush1.msra.mxu0 %v1062
        %2280 = vmatprep.subr.mxu0 0.0
        %2281 = vmatpush1.msra.mxu0 %v1061
        %2282 = vmatprep.subr.mxu0 0.0
        %2283 = vmatpush2.msra.mxu0 0.0
        %2284 = vmatprep.subr.mxu0 0.0
        %2285 = vmatpush2.msra.mxu0 0.0
        %2286 = vmatprep.subr.mxu0 0.0
        %2287 = vmatpush2.msra.mxu0 0.0
        %2288 = vmatprep.subr.mxu0 0.0
        %2289 = vmatpush2.msra.mxu0 0.0
        %2290 = vmatprep.subr.mxu0 0.0
        %2291 = vmatpush2.msra.mxu0 0.0
        %2292 = vmatprep.subr.mxu0 0.0
        %2293 = vmatpush2.msra.mxu0 0.0
        %2294 = vmatprep.subr.mxu0 0.0
        %2295 = vmatpush2.msra.mxu0 0.0
        %2296 = vmatprep.subr.mxu0 0.0
        %2297 = vmatpush2.msra.mxu0 0.0
        %2298 = vmatprep.subr.mxu0 0.0
        %2299 = vmatpush2.msra.mxu0 0.0
        %2300 = vmatprep.subr.mxu0 0.0
        %2301 = vmatpush2.msra.mxu0 0.0
        %2302 = vmatprep.subr.mxu0 0.0
        %2303 = vmatpush2.msra.mxu0 0.0
        %2304 = vmatprep.subr.mxu0 0.0
        %2305 = vmatpush2.msra.mxu0 0.0
        %2306 = vmatprep.subr.mxu0 0.0
        %2307 = vmatpush2.msra.mxu0 0.0
        %2308 = vmatprep.subr.mxu0 0.0
        %2309 = vmatpush2.msra.mxu0 0.0
        %2310 = vmatprep.subr.mxu0 0.0
        %2311 = vmatpush2.msra.mxu0 0.0
        %2312 = vmatprep.subr.mxu0 0.0
        %2313 = vmatpush2.msra.mxu0 0.0
        %2314 = vmatprep.mubr.f32.mxu0 0.0
        %2315 = vmatmul.mubr.f32.gmra.mxu0 %v2248
        %v2316 = vpop.f32.mrf.mxu0
        %v2317 = vadd.f32 %v1164, %v2316
        %v2318 = vpop.f32.mrf.mxu0
        %2319 = vdwg.mxu0
        %2320 = vmatprep.subr.mxu0 0.0
        %2321 = vmatpush1.msra.mxu0 0.0
        %2322 = vmatprep.subr.mxu0 0.0
        %2323 = vmatpush1.msra.mxu0 0.0
        %2324 = vmatprep.subr.mxu0 0.0
        %2325 = vmatpush1.msra.mxu0 0.0
        %2326 = vmatprep.subr.mxu0 0.0
        %2327 = vmatpush1.msra.mxu0 0.0
        %2328 = vmatprep.subr.mxu0 0.0
        %2329 = vmatpush1.msra.mxu0 0.0
        %2330 = vmatprep.subr.mxu0 0.0
        %2331 = vmatpush1.msra.mxu0 0.0
        %2332 = vmatprep.subr.mxu0 0.0
        %2333 = vmatpush1.msra.mxu0 0.0
        %2334 = vmatprep.subr.mxu0 0.0
        %2335 = vmatpush1.msra.mxu0 0.0
        %2336 = vmatprep.subr.mxu0 0.0
        %2337 = vmatpush1.msra.mxu0 0.0
        %2338 = vmatprep.subr.mxu0 0.0
        %2339 = vmatpush1.msra.mxu0 0.0
        %2340 = vmatprep.subr.mxu0 0.0
        %2341 = vmatpush1.msra.mxu0 0.0
        %2342 = vmatprep.subr.mxu0 0.0
        %2343 = vmatpush1.msra.mxu0 0.0
        %2344 = vmatprep.subr.mxu0 0.0
        %2345 = vmatpush1.msra.mxu0 0.0
        %2346 = vmatprep.subr.mxu0 0.0
        %2347 = vmatpush1.msra.mxu0 0.0
        %2348 = vmatprep.subr.mxu0 0.0
        %2349 = vmatpush1.msra.mxu0 %v1065
        %2350 = vmatprep.subr.mxu0 0.0
        %2351 = vmatpush1.msra.mxu0 %v1064
        %2352 = vmatprep.subr.mxu0 0.0
        %2353 = vmatpush2.msra.mxu0 0.0
        %2354 = vmatprep.subr.mxu0 0.0
        %2355 = vmatpush2.msra.mxu0 0.0
        %2356 = vmatprep.subr.mxu0 0.0
        %2357 = vmatpush2.msra.mxu0 0.0
        %2358 = vmatprep.subr.mxu0 0.0
        %2359 = vmatpush2.msra.mxu0 0.0
        %2360 = vmatprep.subr.mxu0 0.0
        %2361 = vmatpush2.msra.mxu0 0.0
        %2362 = vmatprep.subr.mxu0 0.0
        %2363 = vmatpush2.msra.mxu0 0.0
        %2364 = vmatprep.subr.mxu0 0.0
        %2365 = vmatpush2.msra.mxu0 0.0
        %2366 = vmatprep.subr.mxu0 0.0
        %2367 = vmatpush2.msra.mxu0 0.0
        %2368 = vmatprep.subr.mxu0 0.0
        %2369 = vmatpush2.msra.mxu0 0.0
        %2370 = vmatprep.subr.mxu0 0.0
        %2371 = vmatpush2.msra.mxu0 0.0
        %2372 = vmatprep.subr.mxu0 0.0
        %2373 = vmatpush2.msra.mxu0 0.0
        %2374 = vmatprep.subr.mxu0 0.0
        %2375 = vmatpush2.msra.mxu0 0.0
        %2376 = vmatprep.subr.mxu0 0.0
        %2377 = vmatpush2.msra.mxu0 0.0
        %2378 = vmatprep.subr.mxu0 0.0
        %2379 = vmatpush2.msra.mxu0 0.0
        %2380 = vmatprep.subr.mxu0 0.0
        %2381 = vmatpush2.msra.mxu0 0.0
        %2382 = vmatprep.subr.mxu0 0.0
        %2383 = vmatpush2.msra.mxu0 0.0
        %2384 = vmatprep.mubr.f32.mxu0 0.0
        %2385 = vmatmul.mubr.f32.gmra.mxu0 %v2248
        %v2386 = vpop.f32.mrf.mxu0
        %v2387 = vadd.f32 %v1243, %v2386
        %v2388 = vpop.f32.mrf.mxu0
        %2389 = vdwg.mxu0
        %2390 = vmatprep.subr.mxu0 0.0
        %2391 = vmatpush1.msra.mxu0 0.0
        %2392 = vmatprep.subr.mxu0 0.0
        %2393 = vmatpush1.msra.mxu0 0.0
        %2394 = vmatprep.subr.mxu0 0.0
        %2395 = vmatpush1.msra.mxu0 0.0
        %2396 = vmatprep.subr.mxu0 0.0
        %2397 = vmatpush1.msra.mxu0 0.0
        %2398 = vmatprep.subr.mxu0 0.0
        %2399 = vmatpush1.msra.mxu0 0.0
        %2400 = vmatprep.subr.mxu0 0.0
        %2401 = vmatpush1.msra.mxu0 0.0
        %2402 = vmatprep.subr.mxu0 0.0
        %2403 = vmatpush1.msra.mxu0 0.0
        %2404 = vmatprep.subr.mxu0 0.0
        %2405 = vmatpush1.msra.mxu0 0.0
        %2406 = vmatprep.subr.mxu0 0.0
        %2407 = vmatpush1.msra.mxu0 0.0
        %2408 = vmatprep.subr.mxu0 0.0
        %2409 = vmatpush1.msra.mxu0 0.0
        %2410 = vmatprep.subr.mxu0 0.0
        %2411 = vmatpush1.msra.mxu0 0.0
        %2412 = vmatprep.subr.mxu0 0.0
        %2413 = vmatpush1.msra.mxu0 0.0
        %2414 = vmatprep.subr.mxu0 0.0
        %2415 = vmatpush1.msra.mxu0 0.0
        %2416 = vmatprep.subr.mxu0 0.0
        %2417 = vmatpush1.msra.mxu0 0.0
        %2418 = vmatprep.subr.mxu0 0.0
        %2419 = vmatpush1.msra.mxu0 %v1068
        %2420 = vmatprep.subr.mxu0 0.0
        %2421 = vmatpush1.msra.mxu0 %v1067
        %2422 = vmatprep.subr.mxu0 0.0
        %2423 = vmatpush2.msra.mxu0 0.0
        %2424 = vmatprep.subr.mxu0 0.0
        %2425 = vmatpush2.msra.mxu0 0.0
        %2426 = vmatprep.subr.mxu0 0.0
        %2427 = vmatpush2.msra.mxu0 0.0
        %2428 = vmatprep.subr.mxu0 0.0
        %2429 = vmatpush2.msra.mxu0 0.0
        %2430 = vmatprep.subr.mxu0 0.0
        %2431 = vmatpush2.msra.mxu0 0.0
        %2432 = vmatprep.subr.mxu0 0.0
        %2433 = vmatpush2.msra.mxu0 0.0
        %2434 = vmatprep.subr.mxu0 0.0
        %2435 = vmatpush2.msra.mxu0 0.0
        %2436 = vmatprep.subr.mxu0 0.0
        %2437 = vmatpush2.msra.mxu0 0.0
        %2438 = vmatprep.subr.mxu0 0.0
        %2439 = vmatpush2.msra.mxu0 0.0
        %2440 = vmatprep.subr.mxu0 0.0
        %2441 = vmatpush2.msra.mxu0 0.0
        %2442 = vmatprep.subr.mxu0 0.0
        %2443 = vmatpush2.msra.mxu0 0.0
        %2444 = vmatprep.subr.mxu0 0.0
        %2445 = vmatpush2.msra.mxu0 0.0
        %2446 = vmatprep.subr.mxu0 0.0
        %2447 = vmatpush2.msra.mxu0 0.0
        %2448 = vmatprep.subr.mxu0 0.0
        %2449 = vmatpush2.msra.mxu0 0.0
        %2450 = vmatprep.subr.mxu0 0.0
        %2451 = vmatpush2.msra.mxu0 0.0
        %2452 = vmatprep.subr.mxu0 0.0
        %2453 = vmatpush2.msra.mxu0 0.0
        %2454 = vmatprep.mubr.f32.mxu0 0.0
        %2455 = vmatmul.mubr.f32.gmra.mxu0 %v2248
        %v2456 = vpop.f32.mrf.mxu0
        %v2457 = vadd.f32 %v1319, %v2456
        %v2458 = vpop.f32.mrf.mxu0
        %2459 = vdwg.mxu0
        %v2460 = vadd.f32 %v2234, %v2317
        %v2461 = vxor.u32 %v2460, 2147483648
        %v2462 = vmul.f32 %v2461, 1.442695
        %v2463 = vpow.pop %v2462
        %v2464 = vadd.f32 %v2463, 1.0
        %v2465 = vrcp.pop %v2464
        %v2466 = vmul.f32 1.0, %v2465
        %v2467 = vadd.f32 %v2240, %v2387
        %v2468 = vxor.u32 %v2467, 2147483648
        %v2469 = vmul.f32 %v2468, 1.442695
        %v2470 = vpow.pop %v2469
        %v2471 = vadd.f32 %v2470, 1.0
        %v2472 = vrcp.pop %v2471
        %v2473 = vmul.f32 1.0, %v2472
        %v2474 = vmul.f32 %v2466, %v2457
        %v2475 = vadd.f32 %v2246, %v2474
        %v2476 = vtanh.pop %v2475
        %v2477 = vsub.f32 1.0, %v2473
        %v2478 = vmul.f32 %v2477, %v2476
        %v2479 = vmul.f32 %v2473, %v1962
        %v2480 = vadd.f32 %v2478, %v2479
        %v2481 = vlaneseq
        %v2482 = vshrl.u32 %v2481, 7
        %v2483 = vsub.s32 5, %v2482
        %v2484 = vrot.slane %v896, %v2483
        %2485 = vset.pattern.permute.xlu0 5
        %2486 = vperm.xlu0 %2485, %v574
        %v2487 = vpop.permute.xlu0 %2486
        %v2489 = vmul.f32 %v2487, %v2484
        %v2490 = vadd.f32 %v2489, %v1425
        %v2491 = vlaneseq
        %v2492 = vshrl.u32 %v2491, 7
        %v2493 = vsub.s32 5, %v2492
        %v2494 = vrot.slane %v977, %v2493
        %v2495 = vmul.f32 %v2487, %v2494
        %v2496 = vadd.f32 %v2495, %v1437
        %v2497 = vlaneseq
        %v2498 = vshrl.u32 %v2497, 7
        %v2499 = vsub.s32 5, %v2498
        %v2500 = vrot.slane %v1058, %v2499
        %v2501 = vmul.f32 %v2487, %v2500
        %v2502 = vadd.f32 %v2501, %v1449
        %v2504 = vsel %vm584, %v2218, 0
        %2506 = vmatprep.subr.mxu0 0.0
        %2507 = vmatpush1.msra.mxu0 0.0
        %2508 = vmatprep.subr.mxu0 0.0
        %2509 = vmatpush1.msra.mxu0 0.0
        %2510 = vmatprep.subr.mxu0 0.0
        %2511 = vmatpush1.msra.mxu0 0.0
        %2512 = vmatprep.subr.mxu0 0.0
        %2513 = vmatpush1.msra.mxu0 0.0
        %2514 = vmatprep.subr.mxu0 0.0
        %2515 = vmatpush1.msra.mxu0 0.0
        %2516 = vmatprep.subr.mxu0 0.0
        %2517 = vmatpush1.msra.mxu0 0.0
        %2518 = vmatprep.subr.mxu0 0.0
        %2519 = vmatpush1.msra.mxu0 0.0
        %2520 = vmatprep.subr.mxu0 0.0
        %2521 = vmatpush1.msra.mxu0 0.0
        %2522 = vmatprep.subr.mxu0 0.0
        %2523 = vmatpush1.msra.mxu0 0.0
        %2524 = vmatprep.subr.mxu0 0.0
        %2525 = vmatpush1.msra.mxu0 0.0
        %2526 = vmatprep.subr.mxu0 0.0
        %2527 = vmatpush1.msra.mxu0 0.0
        %2528 = vmatprep.subr.mxu0 0.0
        %2529 = vmatpush1.msra.mxu0 0.0
        %2530 = vmatprep.subr.mxu0 0.0
        %2531 = vmatpush1.msra.mxu0 0.0
        %2532 = vmatprep.subr.mxu0 0.0
        %2533 = vmatpush1.msra.mxu0 0.0
        %2534 = vmatprep.subr.mxu0 0.0
        %2535 = vmatpush1.msra.mxu0 %v1070
        %2536 = vmatprep.subr.mxu0 0.0
        %2537 = vmatpush1.msra.mxu0 %v1069
        %2538 = vmatprep.subr.mxu0 0.0
        %2539 = vmatpush2.msra.mxu0 0.0
        %2540 = vmatprep.subr.mxu0 0.0
        %2541 = vmatpush2.msra.mxu0 0.0
        %2542 = vmatprep.subr.mxu0 0.0
        %2543 = vmatpush2.msra.mxu0 0.0
        %2544 = vmatprep.subr.mxu0 0.0
        %2545 = vmatpush2.msra.mxu0 0.0
        %2546 = vmatprep.subr.mxu0 0.0
        %2547 = vmatpush2.msra.mxu0 0.0
        %2548 = vmatprep.subr.mxu0 0.0
        %2549 = vmatpush2.msra.mxu0 0.0
        %2550 = vmatprep.subr.mxu0 0.0
        %2551 = vmatpush2.msra.mxu0 0.0
        %2552 = vmatprep.subr.mxu0 0.0
        %2553 = vmatpush2.msra.mxu0 0.0
        %2554 = vmatprep.subr.mxu0 0.0
        %2555 = vmatpush2.msra.mxu0 0.0
        %2556 = vmatprep.subr.mxu0 0.0
        %2557 = vmatpush2.msra.mxu0 0.0
        %2558 = vmatprep.subr.mxu0 0.0
        %2559 = vmatpush2.msra.mxu0 0.0
        %2560 = vmatprep.subr.mxu0 0.0
        %2561 = vmatpush2.msra.mxu0 0.0
        %2562 = vmatprep.subr.mxu0 0.0
        %2563 = vmatpush2.msra.mxu0 0.0
        %2564 = vmatprep.subr.mxu0 0.0
        %2565 = vmatpush2.msra.mxu0 0.0
        %2566 = vmatprep.subr.mxu0 0.0
        %2567 = vmatpush2.msra.mxu0 0.0
        %2568 = vmatprep.subr.mxu0 0.0
        %2569 = vmatpush2.msra.mxu0 0.0
        %2570 = vmatprep.mubr.f32.mxu0 0.0
        %2571 = vmatmul.mubr.f32.gmra.mxu0 %v2504
        %v2572 = vpop.f32.mrf.mxu0
        %v2573 = vadd.f32 %v1456, %v2572
        %v2574 = vpop.f32.mrf.mxu0
        %2575 = vdwg.mxu0
        %2576 = vmatprep.subr.mxu0 0.0
        %2577 = vmatpush1.msra.mxu0 0.0
        %2578 = vmatprep.subr.mxu0 0.0
        %2579 = vmatpush1.msra.mxu0 0.0
        %2580 = vmatprep.subr.mxu0 0.0
        %2581 = vmatpush1.msra.mxu0 0.0
        %2582 = vmatprep.subr.mxu0 0.0
        %2583 = vmatpush1.msra.mxu0 0.0
        %2584 = vmatprep.subr.mxu0 0.0
        %2585 = vmatpush1.msra.mxu0 0.0
        %2586 = vmatprep.subr.mxu0 0.0
        %2587 = vmatpush1.msra.mxu0 0.0
        %2588 = vmatprep.subr.mxu0 0.0
        %2589 = vmatpush1.msra.mxu0 0.0
        %2590 = vmatprep.subr.mxu0 0.0
        %2591 = vmatpush1.msra.mxu0 0.0
        %2592 = vmatprep.subr.mxu0 0.0
        %2593 = vmatpush1.msra.mxu0 0.0
        %2594 = vmatprep.subr.mxu0 0.0
        %2595 = vmatpush1.msra.mxu0 0.0
        %2596 = vmatprep.subr.mxu0 0.0
        %2597 = vmatpush1.msra.mxu0 0.0
        %2598 = vmatprep.subr.mxu0 0.0
        %2599 = vmatpush1.msra.mxu0 0.0
        %2600 = vmatprep.subr.mxu0 0.0
        %2601 = vmatpush1.msra.mxu0 0.0
        %2602 = vmatprep.subr.mxu0 0.0
        %2603 = vmatpush1.msra.mxu0 0.0
        %2604 = vmatprep.subr.mxu0 0.0
        %2605 = vmatpush1.msra.mxu0 %v1073
        %2606 = vmatprep.subr.mxu0 0.0
        %2607 = vmatpush1.msra.mxu0 %v1072
        %2608 = vmatprep.subr.mxu0 0.0
        %2609 = vmatpush2.msra.mxu0 0.0
        %2610 = vmatprep.subr.mxu0 0.0
        %2611 = vmatpush2.msra.mxu0 0.0
        %2612 = vmatprep.subr.mxu0 0.0
        %2613 = vmatpush2.msra.mxu0 0.0
        %2614 = vmatprep.subr.mxu0 0.0
        %2615 = vmatpush2.msra.mxu0 0.0
        %2616 = vmatprep.subr.mxu0 0.0
        %2617 = vmatpush2.msra.mxu0 0.0
        %2618 = vmatprep.subr.mxu0 0.0
        %2619 = vmatpush2.msra.mxu0 0.0
        %2620 = vmatprep.subr.mxu0 0.0
        %2621 = vmatpush2.msra.mxu0 0.0
        %2622 = vmatprep.subr.mxu0 0.0
        %2623 = vmatpush2.msra.mxu0 0.0
        %2624 = vmatprep.subr.mxu0 0.0
        %2625 = vmatpush2.msra.mxu0 0.0
        %2626 = vmatprep.subr.mxu0 0.0
        %2627 = vmatpush2.msra.mxu0 0.0
        %2628 = vmatprep.subr.mxu0 0.0
        %2629 = vmatpush2.msra.mxu0 0.0
        %2630 = vmatprep.subr.mxu0 0.0
        %2631 = vmatpush2.msra.mxu0 0.0
        %2632 = vmatprep.subr.mxu0 0.0
        %2633 = vmatpush2.msra.mxu0 0.0
        %2634 = vmatprep.subr.mxu0 0.0
        %2635 = vmatpush2.msra.mxu0 0.0
        %2636 = vmatprep.subr.mxu0 0.0
        %2637 = vmatpush2.msra.mxu0 0.0
        %2638 = vmatprep.subr.mxu0 0.0
        %2639 = vmatpush2.msra.mxu0 0.0
        %2640 = vmatprep.mubr.f32.mxu0 0.0
        %2641 = vmatmul.mubr.f32.gmra.mxu0 %v2504
        %v2642 = vpop.f32.mrf.mxu0
        %v2643 = vadd.f32 %v1532, %v2642
        %v2644 = vpop.f32.mrf.mxu0
        %2645 = vdwg.mxu0
        %2646 = vmatprep.subr.mxu0 0.0
        %2647 = vmatpush1.msra.mxu0 0.0
        %2648 = vmatprep.subr.mxu0 0.0
        %2649 = vmatpush1.msra.mxu0 0.0
        %2650 = vmatprep.subr.mxu0 0.0
        %2651 = vmatpush1.msra.mxu0 0.0
        %2652 = vmatprep.subr.mxu0 0.0
        %2653 = vmatpush1.msra.mxu0 0.0
        %2654 = vmatprep.subr.mxu0 0.0
        %2655 = vmatpush1.msra.mxu0 0.0
        %2656 = vmatprep.subr.mxu0 0.0
        %2657 = vmatpush1.msra.mxu0 0.0
        %2658 = vmatprep.subr.mxu0 0.0
        %2659 = vmatpush1.msra.mxu0 0.0
        %2660 = vmatprep.subr.mxu0 0.0
        %2661 = vmatpush1.msra.mxu0 0.0
        %2662 = vmatprep.subr.mxu0 0.0
        %2663 = vmatpush1.msra.mxu0 0.0
        %2664 = vmatprep.subr.mxu0 0.0
        %2665 = vmatpush1.msra.mxu0 0.0
        %2666 = vmatprep.subr.mxu0 0.0
        %2667 = vmatpush1.msra.mxu0 0.0
        %2668 = vmatprep.subr.mxu0 0.0
        %2669 = vmatpush1.msra.mxu0 0.0
        %2670 = vmatprep.subr.mxu0 0.0
        %2671 = vmatpush1.msra.mxu0 0.0
        %2672 = vmatprep.subr.mxu0 0.0
        %2673 = vmatpush1.msra.mxu0 0.0
        %2674 = vmatprep.subr.mxu0 0.0
        %2675 = vmatpush1.msra.mxu0 %v1076
        %2676 = vmatprep.subr.mxu0 0.0
        %2677 = vmatpush1.msra.mxu0 %v1075
        %2678 = vmatprep.subr.mxu0 0.0
        %2679 = vmatpush2.msra.mxu0 0.0
        %2680 = vmatprep.subr.mxu0 0.0
        %2681 = vmatpush2.msra.mxu0 0.0
        %2682 = vmatprep.subr.mxu0 0.0
        %2683 = vmatpush2.msra.mxu0 0.0
        %2684 = vmatprep.subr.mxu0 0.0
        %2685 = vmatpush2.msra.mxu0 0.0
        %2686 = vmatprep.subr.mxu0 0.0
        %2687 = vmatpush2.msra.mxu0 0.0
        %2688 = vmatprep.subr.mxu0 0.0
        %2689 = vmatpush2.msra.mxu0 0.0
        %2690 = vmatprep.subr.mxu0 0.0
        %2691 = vmatpush2.msra.mxu0 0.0
        %2692 = vmatprep.subr.mxu0 0.0
        %2693 = vmatpush2.msra.mxu0 0.0
        %2694 = vmatprep.subr.mxu0 0.0
        %2695 = vmatpush2.msra.mxu0 0.0
        %2696 = vmatprep.subr.mxu0 0.0
        %2697 = vmatpush2.msra.mxu0 0.0
        %2698 = vmatprep.subr.mxu0 0.0
        %2699 = vmatpush2.msra.mxu0 0.0
        %2700 = vmatprep.subr.mxu0 0.0
        %2701 = vmatpush2.msra.mxu0 0.0
        %2702 = vmatprep.subr.mxu0 0.0
        %2703 = vmatpush2.msra.mxu0 0.0
        %2704 = vmatprep.subr.mxu0 0.0
        %2705 = vmatpush2.msra.mxu0 0.0
        %2706 = vmatprep.subr.mxu0 0.0
        %2707 = vmatpush2.msra.mxu0 0.0
        %2708 = vmatprep.subr.mxu0 0.0
        %2709 = vmatpush2.msra.mxu0 0.0
        %2710 = vmatprep.mubr.f32.mxu0 0.0
        %2711 = vmatmul.mubr.f32.gmra.mxu0 %v2504
        %v2712 = vpop.f32.mrf.mxu0
        %v2713 = vadd.f32 %v1608, %v2712
        %v2714 = vpop.f32.mrf.mxu0
        %2715 = vdwg.mxu0
        %v2716 = vadd.f32 %v2490, %v2573
        %v2717 = vxor.u32 %v2716, 2147483648
        %v2718 = vmul.f32 %v2717, 1.442695
        %v2719 = vpow.pop %v2718
        %v2720 = vadd.f32 %v2719, 1.0
        %v2721 = vrcp.pop %v2720
        %v2722 = vmul.f32 1.0, %v2721
        %v2723 = vadd.f32 %v2496, %v2643
        %v2724 = vxor.u32 %v2723, 2147483648
        %v2725 = vmul.f32 %v2724, 1.442695
        %v2726 = vpow.pop %v2725
        %v2727 = vadd.f32 %v2726, 1.0
        %v2728 = vrcp.pop %v2727
        %v2729 = vmul.f32 1.0, %v2728
        %v2730 = vmul.f32 %v2722, %v2713
        %v2731 = vadd.f32 %v2502, %v2730
        %v2732 = vtanh.pop %v2731
        %v2733 = vsub.f32 1.0, %v2729
        %v2734 = vmul.f32 %v2733, %v2732
        %v2735 = vmul.f32 %v2729, %v2218
        %v2736 = vadd.f32 %v2734, %v2735
        %v2737 = vsel %vm1113, 1, 0
        %vm2738 = vcmp.eq.s32.totalorder %v2737, 1
        %v2739 = vsel %vm2738, %v2480, %v2221
        %v2740 = vsel %vm1116, 1, 0
        %vm2741 = vcmp.eq.s32.totalorder %v2740, 1
        %v2742 = vsel %vm2741, %v2736, %v2224
        %v2743 = vlaneseq
        %v2744 = vshrl.u32 %v2743, 7
        %v2745 = vsub.s32 3, %v2744
        %v2746 = vrot.slane %v655, %v2745
        %2747 = vset.pattern.permute.xlu0 3
        %2748 = vperm.xlu0 %2747, %v574
        %v2749 = vpop.permute.xlu0 %2748
        %v2751 = vmul.f32 %v2749, %v2746
        %v2752 = vadd.f32 %v2751, %v1133
        %v2753 = vlaneseq
        %v2754 = vshrl.u32 %v2753, 7
        %v2755 = vsub.s32 3, %v2754
        %v2756 = vrot.slane %v736, %v2755
        %v2757 = vmul.f32 %v2749, %v2756
        %v2758 = vadd.f32 %v2757, %v1145
        %v2759 = vlaneseq
        %v2760 = vshrl.u32 %v2759, 7
        %v2761 = vsub.s32 3, %v2760
        %v2762 = vrot.slane %v817, %v2761
        %v2763 = vmul.f32 %v2749, %v2762
        %v2764 = vadd.f32 %v2763, %v1157
        %v2766 = vsel %vm584, %v2480, 0
        %2768 = vmatprep.subr.mxu0 0.0
        %2769 = vmatpush1.msra.mxu0 0.0
        %2770 = vmatprep.subr.mxu0 0.0
        %2771 = vmatpush1.msra.mxu0 0.0
        %2772 = vmatprep.subr.mxu0 0.0
        %2773 = vmatpush1.msra.mxu0 0.0
        %2774 = vmatprep.subr.mxu0 0.0
        %2775 = vmatpush1.msra.mxu0 0.0
        %2776 = vmatprep.subr.mxu0 0.0
        %2777 = vmatpush1.msra.mxu0 0.0
        %2778 = vmatprep.subr.mxu0 0.0
        %2779 = vmatpush1.msra.mxu0 0.0
        %2780 = vmatprep.subr.mxu0 0.0
        %2781 = vmatpush1.msra.mxu0 0.0
        %2782 = vmatprep.subr.mxu0 0.0
        %2783 = vmatpush1.msra.mxu0 0.0
        %2784 = vmatprep.subr.mxu0 0.0
        %2785 = vmatpush1.msra.mxu0 0.0
        %2786 = vmatprep.subr.mxu0 0.0
        %2787 = vmatpush1.msra.mxu0 0.0
        %2788 = vmatprep.subr.mxu0 0.0
        %2789 = vmatpush1.msra.mxu0 0.0
        %2790 = vmatprep.subr.mxu0 0.0
        %2791 = vmatpush1.msra.mxu0 0.0
        %2792 = vmatprep.subr.mxu0 0.0
        %2793 = vmatpush1.msra.mxu0 0.0
        %2794 = vmatprep.subr.mxu0 0.0
        %2795 = vmatpush1.msra.mxu0 0.0
        %2796 = vmatprep.subr.mxu0 0.0
        %2797 = vmatpush1.msra.mxu0 %v1062
        %2798 = vmatprep.subr.mxu0 0.0
        %2799 = vmatpush1.msra.mxu0 %v1061
        %2800 = vmatprep.subr.mxu0 0.0
        %2801 = vmatpush2.msra.mxu0 0.0
        %2802 = vmatprep.subr.mxu0 0.0
        %2803 = vmatpush2.msra.mxu0 0.0
        %2804 = vmatprep.subr.mxu0 0.0
        %2805 = vmatpush2.msra.mxu0 0.0
        %2806 = vmatprep.subr.mxu0 0.0
        %2807 = vmatpush2.msra.mxu0 0.0
        %2808 = vmatprep.subr.mxu0 0.0
        %2809 = vmatpush2.msra.mxu0 0.0
        %2810 = vmatprep.subr.mxu0 0.0
        %2811 = vmatpush2.msra.mxu0 0.0
        %2812 = vmatprep.subr.mxu0 0.0
        %2813 = vmatpush2.msra.mxu0 0.0
        %2814 = vmatprep.subr.mxu0 0.0
        %2815 = vmatpush2.msra.mxu0 0.0
        %2816 = vmatprep.subr.mxu0 0.0
        %2817 = vmatpush2.msra.mxu0 0.0
        %2818 = vmatprep.subr.mxu0 0.0
        %2819 = vmatpush2.msra.mxu0 0.0
        %2820 = vmatprep.subr.mxu0 0.0
        %2821 = vmatpush2.msra.mxu0 0.0
        %2822 = vmatprep.subr.mxu0 0.0
        %2823 = vmatpush2.msra.mxu0 0.0
        %2824 = vmatprep.subr.mxu0 0.0
        %2825 = vmatpush2.msra.mxu0 0.0
        %2826 = vmatprep.subr.mxu0 0.0
        %2827 = vmatpush2.msra.mxu0 0.0
        %2828 = vmatprep.subr.mxu0 0.0
        %2829 = vmatpush2.msra.mxu0 0.0
        %2830 = vmatprep.subr.mxu0 0.0
        %2831 = vmatpush2.msra.mxu0 0.0
        %2832 = vmatprep.mubr.f32.mxu0 0.0
        %2833 = vmatmul.mubr.f32.gmra.mxu0 %v2766
        %v2834 = vpop.f32.mrf.mxu0
        %v2835 = vadd.f32 %v1164, %v2834
        %v2836 = vpop.f32.mrf.mxu0
        %2837 = vdwg.mxu0
        %2838 = vmatprep.subr.mxu0 0.0
        %2839 = vmatpush1.msra.mxu0 0.0
        %2840 = vmatprep.subr.mxu0 0.0
        %2841 = vmatpush1.msra.mxu0 0.0
        %2842 = vmatprep.subr.mxu0 0.0
        %2843 = vmatpush1.msra.mxu0 0.0
        %2844 = vmatprep.subr.mxu0 0.0
        %2845 = vmatpush1.msra.mxu0 0.0
        %2846 = vmatprep.subr.mxu0 0.0
        %2847 = vmatpush1.msra.mxu0 0.0
        %2848 = vmatprep.subr.mxu0 0.0
        %2849 = vmatpush1.msra.mxu0 0.0
        %2850 = vmatprep.subr.mxu0 0.0
        %2851 = vmatpush1.msra.mxu0 0.0
        %2852 = vmatprep.subr.mxu0 0.0
        %2853 = vmatpush1.msra.mxu0 0.0
        %2854 = vmatprep.subr.mxu0 0.0
        %2855 = vmatpush1.msra.mxu0 0.0
        %2856 = vmatprep.subr.mxu0 0.0
        %2857 = vmatpush1.msra.mxu0 0.0
        %2858 = vmatprep.subr.mxu0 0.0
        %2859 = vmatpush1.msra.mxu0 0.0
        %2860 = vmatprep.subr.mxu0 0.0
        %2861 = vmatpush1.msra.mxu0 0.0
        %2862 = vmatprep.subr.mxu0 0.0
        %2863 = vmatpush1.msra.mxu0 0.0
        %2864 = vmatprep.subr.mxu0 0.0
        %2865 = vmatpush1.msra.mxu0 0.0
        %2866 = vmatprep.subr.mxu0 0.0
        %2867 = vmatpush1.msra.mxu0 %v1065
        %2868 = vmatprep.subr.mxu0 0.0
        %2869 = vmatpush1.msra.mxu0 %v1064
        %2870 = vmatprep.subr.mxu0 0.0
        %2871 = vmatpush2.msra.mxu0 0.0
        %2872 = vmatprep.subr.mxu0 0.0
        %2873 = vmatpush2.msra.mxu0 0.0
        %2874 = vmatprep.subr.mxu0 0.0
        %2875 = vmatpush2.msra.mxu0 0.0
        %2876 = vmatprep.subr.mxu0 0.0
        %2877 = vmatpush2.msra.mxu0 0.0
        %2878 = vmatprep.subr.mxu0 0.0
        %2879 = vmatpush2.msra.mxu0 0.0
        %2880 = vmatprep.subr.mxu0 0.0
        %2881 = vmatpush2.msra.mxu0 0.0
        %2882 = vmatprep.subr.mxu0 0.0
        %2883 = vmatpush2.msra.mxu0 0.0
        %2884 = vmatprep.subr.mxu0 0.0
        %2885 = vmatpush2.msra.mxu0 0.0
        %2886 = vmatprep.subr.mxu0 0.0
        %2887 = vmatpush2.msra.mxu0 0.0
        %2888 = vmatprep.subr.mxu0 0.0
        %2889 = vmatpush2.msra.mxu0 0.0
        %2890 = vmatprep.subr.mxu0 0.0
        %2891 = vmatpush2.msra.mxu0 0.0
        %2892 = vmatprep.subr.mxu0 0.0
        %2893 = vmatpush2.msra.mxu0 0.0
        %2894 = vmatprep.subr.mxu0 0.0
        %2895 = vmatpush2.msra.mxu0 0.0
        %2896 = vmatprep.subr.mxu0 0.0
        %2897 = vmatpush2.msra.mxu0 0.0
        %2898 = vmatprep.subr.mxu0 0.0
        %2899 = vmatpush2.msra.mxu0 0.0
        %2900 = vmatprep.subr.mxu0 0.0
        %2901 = vmatpush2.msra.mxu0 0.0
        %2902 = vmatprep.mubr.f32.mxu0 0.0
        %2903 = vmatmul.mubr.f32.gmra.mxu0 %v2766
        %v2904 = vpop.f32.mrf.mxu0
        %v2905 = vadd.f32 %v1243, %v2904
        %v2906 = vpop.f32.mrf.mxu0
        %2907 = vdwg.mxu0
        %2908 = vmatprep.subr.mxu0 0.0
        %2909 = vmatpush1.msra.mxu0 0.0
        %2910 = vmatprep.subr.mxu0 0.0
        %2911 = vmatpush1.msra.mxu0 0.0
        %2912 = vmatprep.subr.mxu0 0.0
        %2913 = vmatpush1.msra.mxu0 0.0
        %2914 = vmatprep.subr.mxu0 0.0
        %2915 = vmatpush1.msra.mxu0 0.0
        %2916 = vmatprep.subr.mxu0 0.0
        %2917 = vmatpush1.msra.mxu0 0.0
        %2918 = vmatprep.subr.mxu0 0.0
        %2919 = vmatpush1.msra.mxu0 0.0
        %2920 = vmatprep.subr.mxu0 0.0
        %2921 = vmatpush1.msra.mxu0 0.0
        %2922 = vmatprep.subr.mxu0 0.0
        %2923 = vmatpush1.msra.mxu0 0.0
        %2924 = vmatprep.subr.mxu0 0.0
        %2925 = vmatpush1.msra.mxu0 0.0
        %2926 = vmatprep.subr.mxu0 0.0
        %2927 = vmatpush1.msra.mxu0 0.0
        %2928 = vmatprep.subr.mxu0 0.0
        %2929 = vmatpush1.msra.mxu0 0.0
        %2930 = vmatprep.subr.mxu0 0.0
        %2931 = vmatpush1.msra.mxu0 0.0
        %2932 = vmatprep.subr.mxu0 0.0
        %2933 = vmatpush1.msra.mxu0 0.0
        %2934 = vmatprep.subr.mxu0 0.0
        %2935 = vmatpush1.msra.mxu0 0.0
        %2936 = vmatprep.subr.mxu0 0.0
        %2937 = vmatpush1.msra.mxu0 %v1068
        %2938 = vmatprep.subr.mxu0 0.0
        %2939 = vmatpush1.msra.mxu0 %v1067
        %2940 = vmatprep.subr.mxu0 0.0
        %2941 = vmatpush2.msra.mxu0 0.0
        %2942 = vmatprep.subr.mxu0 0.0
        %2943 = vmatpush2.msra.mxu0 0.0
        %2944 = vmatprep.subr.mxu0 0.0
        %2945 = vmatpush2.msra.mxu0 0.0
        %2946 = vmatprep.subr.mxu0 0.0
        %2947 = vmatpush2.msra.mxu0 0.0
        %2948 = vmatprep.subr.mxu0 0.0
        %2949 = vmatpush2.msra.mxu0 0.0
        %2950 = vmatprep.subr.mxu0 0.0
        %2951 = vmatpush2.msra.mxu0 0.0
        %2952 = vmatprep.subr.mxu0 0.0
        %2953 = vmatpush2.msra.mxu0 0.0
        %2954 = vmatprep.subr.mxu0 0.0
        %2955 = vmatpush2.msra.mxu0 0.0
        %2956 = vmatprep.subr.mxu0 0.0
        %2957 = vmatpush2.msra.mxu0 0.0
        %2958 = vmatprep.subr.mxu0 0.0
        %2959 = vmatpush2.msra.mxu0 0.0
        %2960 = vmatprep.subr.mxu0 0.0
        %2961 = vmatpush2.msra.mxu0 0.0
        %2962 = vmatprep.subr.mxu0 0.0
        %2963 = vmatpush2.msra.mxu0 0.0
        %2964 = vmatprep.subr.mxu0 0.0
        %2965 = vmatpush2.msra.mxu0 0.0
        %2966 = vmatprep.subr.mxu0 0.0
        %2967 = vmatpush2.msra.mxu0 0.0
        %2968 = vmatprep.subr.mxu0 0.0
        %2969 = vmatpush2.msra.mxu0 0.0
        %2970 = vmatprep.subr.mxu0 0.0
        %2971 = vmatpush2.msra.mxu0 0.0
        %2972 = vmatprep.mubr.f32.mxu0 0.0
        %2973 = vmatmul.mubr.f32.gmra.mxu0 %v2766
        %v2974 = vpop.f32.mrf.mxu0
        %v2975 = vadd.f32 %v1319, %v2974
        %v2976 = vpop.f32.mrf.mxu0
        %2977 = vdwg.mxu0
        %v2978 = vadd.f32 %v2752, %v2835
        %v2979 = vxor.u32 %v2978, 2147483648
        %v2980 = vmul.f32 %v2979, 1.442695
        %v2981 = vpow.pop %v2980
        %v2982 = vadd.f32 %v2981, 1.0
        %v2983 = vrcp.pop %v2982
        %v2984 = vmul.f32 1.0, %v2983
        %v2985 = vadd.f32 %v2758, %v2905
        %v2986 = vxor.u32 %v2985, 2147483648
        %v2987 = vmul.f32 %v2986, 1.442695
        %v2988 = vpow.pop %v2987
        %v2989 = vadd.f32 %v2988, 1.0
        %v2990 = vrcp.pop %v2989
        %v2991 = vmul.f32 1.0, %v2990
        %v2992 = vmul.f32 %v2984, %v2975
        %v2993 = vadd.f32 %v2764, %v2992
        %v2994 = vtanh.pop %v2993
        %v2995 = vsub.f32 1.0, %v2991
        %v2996 = vmul.f32 %v2995, %v2994
        %v2997 = vmul.f32 %v2991, %v2480
        %v2998 = vadd.f32 %v2996, %v2997
        %v2999 = vlaneseq
        %v3000 = vshrl.u32 %v2999, 7
        %v3001 = vsub.s32 4, %v3000
        %v3002 = vrot.slane %v896, %v3001
        %3003 = vset.pattern.permute.xlu0 4
        %3004 = vperm.xlu0 %3003, %v574
        %v3005 = vpop.permute.xlu0 %3004
        %v3007 = vmul.f32 %v3005, %v3002
        %v3008 = vadd.f32 %v3007, %v1425
        %v3009 = vlaneseq
        %v3010 = vshrl.u32 %v3009, 7
        %v3011 = vsub.s32 4, %v3010
        %v3012 = vrot.slane %v977, %v3011
        %v3013 = vmul.f32 %v3005, %v3012
        %v3014 = vadd.f32 %v3013, %v1437
        %v3015 = vlaneseq
        %v3016 = vshrl.u32 %v3015, 7
        %v3017 = vsub.s32 4, %v3016
        %v3018 = vrot.slane %v1058, %v3017
        %v3019 = vmul.f32 %v3005, %v3018
        %v3020 = vadd.f32 %v3019, %v1449
        %v3022 = vsel %vm584, %v2736, 0
        %3024 = vmatprep.subr.mxu0 0.0
        %3025 = vmatpush1.msra.mxu0 0.0
        %3026 = vmatprep.subr.mxu0 0.0
        %3027 = vmatpush1.msra.mxu0 0.0
        %3028 = vmatprep.subr.mxu0 0.0
        %3029 = vmatpush1.msra.mxu0 0.0
        %3030 = vmatprep.subr.mxu0 0.0
        %3031 = vmatpush1.msra.mxu0 0.0
        %3032 = vmatprep.subr.mxu0 0.0
        %3033 = vmatpush1.msra.mxu0 0.0
        %3034 = vmatprep.subr.mxu0 0.0
        %3035 = vmatpush1.msra.mxu0 0.0
        %3036 = vmatprep.subr.mxu0 0.0
        %3037 = vmatpush1.msra.mxu0 0.0
        %3038 = vmatprep.subr.mxu0 0.0
        %3039 = vmatpush1.msra.mxu0 0.0
        %3040 = vmatprep.subr.mxu0 0.0
        %3041 = vmatpush1.msra.mxu0 0.0
        %3042 = vmatprep.subr.mxu0 0.0
        %3043 = vmatpush1.msra.mxu0 0.0
        %3044 = vmatprep.subr.mxu0 0.0
        %3045 = vmatpush1.msra.mxu0 0.0
        %3046 = vmatprep.subr.mxu0 0.0
        %3047 = vmatpush1.msra.mxu0 0.0
        %3048 = vmatprep.subr.mxu0 0.0
        %3049 = vmatpush1.msra.mxu0 0.0
        %3050 = vmatprep.subr.mxu0 0.0
        %3051 = vmatpush1.msra.mxu0 0.0
        %3052 = vmatprep.subr.mxu0 0.0
        %3053 = vmatpush1.msra.mxu0 %v1070
        %3054 = vmatprep.subr.mxu0 0.0
        %3055 = vmatpush1.msra.mxu0 %v1069
        %3056 = vmatprep.subr.mxu0 0.0
        %3057 = vmatpush2.msra.mxu0 0.0
        %3058 = vmatprep.subr.mxu0 0.0
        %3059 = vmatpush2.msra.mxu0 0.0
        %3060 = vmatprep.subr.mxu0 0.0
        %3061 = vmatpush2.msra.mxu0 0.0
        %3062 = vmatprep.subr.mxu0 0.0
        %3063 = vmatpush2.msra.mxu0 0.0
        %3064 = vmatprep.subr.mxu0 0.0
        %3065 = vmatpush2.msra.mxu0 0.0
        %3066 = vmatprep.subr.mxu0 0.0
        %3067 = vmatpush2.msra.mxu0 0.0
        %3068 = vmatprep.subr.mxu0 0.0
        %3069 = vmatpush2.msra.mxu0 0.0
        %3070 = vmatprep.subr.mxu0 0.0
        %3071 = vmatpush2.msra.mxu0 0.0
        %3072 = vmatprep.subr.mxu0 0.0
        %3073 = vmatpush2.msra.mxu0 0.0
        %3074 = vmatprep.subr.mxu0 0.0
        %3075 = vmatpush2.msra.mxu0 0.0
        %3076 = vmatprep.subr.mxu0 0.0
        %3077 = vmatpush2.msra.mxu0 0.0
        %3078 = vmatprep.subr.mxu0 0.0
        %3079 = vmatpush2.msra.mxu0 0.0
        %3080 = vmatprep.subr.mxu0 0.0
        %3081 = vmatpush2.msra.mxu0 0.0
        %3082 = vmatprep.subr.mxu0 0.0
        %3083 = vmatpush2.msra.mxu0 0.0
        %3084 = vmatprep.subr.mxu0 0.0
        %3085 = vmatpush2.msra.mxu0 0.0
        %3086 = vmatprep.subr.mxu0 0.0
        %3087 = vmatpush2.msra.mxu0 0.0
        %3088 = vmatprep.mubr.f32.mxu0 0.0
        %3089 = vmatmul.mubr.f32.gmra.mxu0 %v3022
        %v3090 = vpop.f32.mrf.mxu0
        %v3091 = vadd.f32 %v1456, %v3090
        %v3092 = vpop.f32.mrf.mxu0
        %3093 = vdwg.mxu0
        %3094 = vmatprep.subr.mxu0 0.0
        %3095 = vmatpush1.msra.mxu0 0.0
        %3096 = vmatprep.subr.mxu0 0.0
        %3097 = vmatpush1.msra.mxu0 0.0
        %3098 = vmatprep.subr.mxu0 0.0
        %3099 = vmatpush1.msra.mxu0 0.0
        %3100 = vmatprep.subr.mxu0 0.0
        %3101 = vmatpush1.msra.mxu0 0.0
        %3102 = vmatprep.subr.mxu0 0.0
        %3103 = vmatpush1.msra.mxu0 0.0
        %3104 = vmatprep.subr.mxu0 0.0
        %3105 = vmatpush1.msra.mxu0 0.0
        %3106 = vmatprep.subr.mxu0 0.0
        %3107 = vmatpush1.msra.mxu0 0.0
        %3108 = vmatprep.subr.mxu0 0.0
        %3109 = vmatpush1.msra.mxu0 0.0
        %3110 = vmatprep.subr.mxu0 0.0
        %3111 = vmatpush1.msra.mxu0 0.0
        %3112 = vmatprep.subr.mxu0 0.0
        %3113 = vmatpush1.msra.mxu0 0.0
        %3114 = vmatprep.subr.mxu0 0.0
        %3115 = vmatpush1.msra.mxu0 0.0
        %3116 = vmatprep.subr.mxu0 0.0
        %3117 = vmatpush1.msra.mxu0 0.0
        %3118 = vmatprep.subr.mxu0 0.0
        %3119 = vmatpush1.msra.mxu0 0.0
        %3120 = vmatprep.subr.mxu0 0.0
        %3121 = vmatpush1.msra.mxu0 0.0
        %3122 = vmatprep.subr.mxu0 0.0
        %3123 = vmatpush1.msra.mxu0 %v1073
        %3124 = vmatprep.subr.mxu0 0.0
        %3125 = vmatpush1.msra.mxu0 %v1072
        %3126 = vmatprep.subr.mxu0 0.0
        %3127 = vmatpush2.msra.mxu0 0.0
        %3128 = vmatprep.subr.mxu0 0.0
        %3129 = vmatpush2.msra.mxu0 0.0
        %3130 = vmatprep.subr.mxu0 0.0
        %3131 = vmatpush2.msra.mxu0 0.0
        %3132 = vmatprep.subr.mxu0 0.0
        %3133 = vmatpush2.msra.mxu0 0.0
        %3134 = vmatprep.subr.mxu0 0.0
        %3135 = vmatpush2.msra.mxu0 0.0
        %3136 = vmatprep.subr.mxu0 0.0
        %3137 = vmatpush2.msra.mxu0 0.0
        %3138 = vmatprep.subr.mxu0 0.0
        %3139 = vmatpush2.msra.mxu0 0.0
        %3140 = vmatprep.subr.mxu0 0.0
        %3141 = vmatpush2.msra.mxu0 0.0
        %3142 = vmatprep.subr.mxu0 0.0
        %3143 = vmatpush2.msra.mxu0 0.0
        %3144 = vmatprep.subr.mxu0 0.0
        %3145 = vmatpush2.msra.mxu0 0.0
        %3146 = vmatprep.subr.mxu0 0.0
        %3147 = vmatpush2.msra.mxu0 0.0
        %3148 = vmatprep.subr.mxu0 0.0
        %3149 = vmatpush2.msra.mxu0 0.0
        %3150 = vmatprep.subr.mxu0 0.0
        %3151 = vmatpush2.msra.mxu0 0.0
        %3152 = vmatprep.subr.mxu0 0.0
        %3153 = vmatpush2.msra.mxu0 0.0
        %3154 = vmatprep.subr.mxu0 0.0
        %3155 = vmatpush2.msra.mxu0 0.0
        %3156 = vmatprep.subr.mxu0 0.0
        %3157 = vmatpush2.msra.mxu0 0.0
        %3158 = vmatprep.mubr.f32.mxu0 0.0
        %3159 = vmatmul.mubr.f32.gmra.mxu0 %v3022
        %v3160 = vpop.f32.mrf.mxu0
        %v3161 = vadd.f32 %v1532, %v3160
        %v3162 = vpop.f32.mrf.mxu0
        %3163 = vdwg.mxu0
        %3164 = vmatprep.subr.mxu0 0.0
        %3165 = vmatpush1.msra.mxu0 0.0
        %3166 = vmatprep.subr.mxu0 0.0
        %3167 = vmatpush1.msra.mxu0 0.0
        %3168 = vmatprep.subr.mxu0 0.0
        %3169 = vmatpush1.msra.mxu0 0.0
        %3170 = vmatprep.subr.mxu0 0.0
        %3171 = vmatpush1.msra.mxu0 0.0
        %3172 = vmatprep.subr.mxu0 0.0
        %3173 = vmatpush1.msra.mxu0 0.0
        %3174 = vmatprep.subr.mxu0 0.0
        %3175 = vmatpush1.msra.mxu0 0.0
        %3176 = vmatprep.subr.mxu0 0.0
        %3177 = vmatpush1.msra.mxu0 0.0
        %3178 = vmatprep.subr.mxu0 0.0
        %3179 = vmatpush1.msra.mxu0 0.0
        %3180 = vmatprep.subr.mxu0 0.0
        %3181 = vmatpush1.msra.mxu0 0.0
        %3182 = vmatprep.subr.mxu0 0.0
        %3183 = vmatpush1.msra.mxu0 0.0
        %3184 = vmatprep.subr.mxu0 0.0
        %3185 = vmatpush1.msra.mxu0 0.0
        %3186 = vmatprep.subr.mxu0 0.0
        %3187 = vmatpush1.msra.mxu0 0.0
        %3188 = vmatprep.subr.mxu0 0.0
        %3189 = vmatpush1.msra.mxu0 0.0
        %3190 = vmatprep.subr.mxu0 0.0
        %3191 = vmatpush1.msra.mxu0 0.0
        %3192 = vmatprep.subr.mxu0 0.0
        %3193 = vmatpush1.msra.mxu0 %v1076
        %3194 = vmatprep.subr.mxu0 0.0
        %3195 = vmatpush1.msra.mxu0 %v1075
        %3196 = vmatprep.subr.mxu0 0.0
        %3197 = vmatpush2.msra.mxu0 0.0
        %3198 = vmatprep.subr.mxu0 0.0
        %3199 = vmatpush2.msra.mxu0 0.0
        %3200 = vmatprep.subr.mxu0 0.0
        %3201 = vmatpush2.msra.mxu0 0.0
        %3202 = vmatprep.subr.mxu0 0.0
        %3203 = vmatpush2.msra.mxu0 0.0
        %3204 = vmatprep.subr.mxu0 0.0
        %3205 = vmatpush2.msra.mxu0 0.0
        %3206 = vmatprep.subr.mxu0 0.0
        %3207 = vmatpush2.msra.mxu0 0.0
        %3208 = vmatprep.subr.mxu0 0.0
        %3209 = vmatpush2.msra.mxu0 0.0
        %3210 = vmatprep.subr.mxu0 0.0
        %3211 = vmatpush2.msra.mxu0 0.0
        %3212 = vmatprep.subr.mxu0 0.0
        %3213 = vmatpush2.msra.mxu0 0.0
        %3214 = vmatprep.subr.mxu0 0.0
        %3215 = vmatpush2.msra.mxu0 0.0
        %3216 = vmatprep.subr.mxu0 0.0
        %3217 = vmatpush2.msra.mxu0 0.0
        %3218 = vmatprep.subr.mxu0 0.0
        %3219 = vmatpush2.msra.mxu0 0.0
        %3220 = vmatprep.subr.mxu0 0.0
        %3221 = vmatpush2.msra.mxu0 0.0
        %3222 = vmatprep.subr.mxu0 0.0
        %3223 = vmatpush2.msra.mxu0 0.0
        %3224 = vmatprep.subr.mxu0 0.0
        %3225 = vmatpush2.msra.mxu0 0.0
        %3226 = vmatprep.subr.mxu0 0.0
        %3227 = vmatpush2.msra.mxu0 0.0
        %3228 = vmatprep.mubr.f32.mxu0 0.0
        %3229 = vmatmul.mubr.f32.gmra.mxu0 %v3022
        %v3230 = vpop.f32.mrf.mxu0
        %v3231 = vadd.f32 %v1608, %v3230
        %v3232 = vpop.f32.mrf.mxu0
        %3233 = vdwg.mxu0
        %v3234 = vadd.f32 %v3008, %v3091
        %v3235 = vxor.u32 %v3234, 2147483648
        %v3236 = vmul.f32 %v3235, 1.442695
        %v3237 = vpow.pop %v3236
        %v3238 = vadd.f32 %v3237, 1.0
        %v3239 = vrcp.pop %v3238
        %v3240 = vmul.f32 1.0, %v3239
        %v3241 = vadd.f32 %v3014, %v3161
        %v3242 = vxor.u32 %v3241, 2147483648
        %v3243 = vmul.f32 %v3242, 1.442695
        %v3244 = vpow.pop %v3243
        %v3245 = vadd.f32 %v3244, 1.0
        %v3246 = vrcp.pop %v3245
        %v3247 = vmul.f32 1.0, %v3246
        %v3248 = vmul.f32 %v3240, %v3231
        %v3249 = vadd.f32 %v3020, %v3248
        %v3250 = vtanh.pop %v3249
        %v3251 = vsub.f32 1.0, %v3247
        %v3252 = vmul.f32 %v3251, %v3250
        %v3253 = vmul.f32 %v3247, %v2736
        %v3254 = vadd.f32 %v3252, %v3253
        %v3255 = vsel %vm1114, 1, 0
        %vm3256 = vcmp.eq.s32.totalorder %v3255, 1
        %v3257 = vsel %vm3256, %v2998, %v2739
        %v3258 = vsel %vm1115, 1, 0
        %vm3259 = vcmp.eq.s32.totalorder %v3258, 1
        %v3260 = vsel %vm3259, %v3254, %v2742
        %v3261 = vlaneseq
        %v3262 = vshrl.u32 %v3261, 7
        %v3263 = vsub.s32 4, %v3262
        %v3264 = vrot.slane %v655, %v3263
        %v3265 = vmul.f32 %v3005, %v3264
        %v3266 = vadd.f32 %v3265, %v1133
        %v3267 = vlaneseq
        %v3268 = vshrl.u32 %v3267, 7
        %v3269 = vsub.s32 4, %v3268
        %v3270 = vrot.slane %v736, %v3269
        %v3271 = vmul.f32 %v3005, %v3270
        %v3272 = vadd.f32 %v3271, %v1145
        %v3273 = vlaneseq
        %v3274 = vshrl.u32 %v3273, 7
        %v3275 = vsub.s32 4, %v3274
        %v3276 = vrot.slane %v817, %v3275
        %v3277 = vmul.f32 %v3005, %v3276
        %v3278 = vadd.f32 %v3277, %v1157
        %v3280 = vsel %vm584, %v2998, 0
        %3282 = vmatprep.subr.mxu0 0.0
        %3283 = vmatpush1.msra.mxu0 0.0
        %3284 = vmatprep.subr.mxu0 0.0
        %3285 = vmatpush1.msra.mxu0 0.0
        %3286 = vmatprep.subr.mxu0 0.0
        %3287 = vmatpush1.msra.mxu0 0.0
        %3288 = vmatprep.subr.mxu0 0.0
        %3289 = vmatpush1.msra.mxu0 0.0
        %3290 = vmatprep.subr.mxu0 0.0
        %3291 = vmatpush1.msra.mxu0 0.0
        %3292 = vmatprep.subr.mxu0 0.0
        %3293 = vmatpush1.msra.mxu0 0.0
        %3294 = vmatprep.subr.mxu0 0.0
        %3295 = vmatpush1.msra.mxu0 0.0
        %3296 = vmatprep.subr.mxu0 0.0
        %3297 = vmatpush1.msra.mxu0 0.0
        %3298 = vmatprep.subr.mxu0 0.0
        %3299 = vmatpush1.msra.mxu0 0.0
        %3300 = vmatprep.subr.mxu0 0.0
        %3301 = vmatpush1.msra.mxu0 0.0
        %3302 = vmatprep.subr.mxu0 0.0
        %3303 = vmatpush1.msra.mxu0 0.0
        %3304 = vmatprep.subr.mxu0 0.0
        %3305 = vmatpush1.msra.mxu0 0.0
        %3306 = vmatprep.subr.mxu0 0.0
        %3307 = vmatpush1.msra.mxu0 0.0
        %3308 = vmatprep.subr.mxu0 0.0
        %3309 = vmatpush1.msra.mxu0 0.0
        %3310 = vmatprep.subr.mxu0 0.0
        %3311 = vmatpush1.msra.mxu0 %v1062
        %3312 = vmatprep.subr.mxu0 0.0
        %3313 = vmatpush1.msra.mxu0 %v1061
        %3314 = vmatprep.subr.mxu0 0.0
        %3315 = vmatpush2.msra.mxu0 0.0
        %3316 = vmatprep.subr.mxu0 0.0
        %3317 = vmatpush2.msra.mxu0 0.0
        %3318 = vmatprep.subr.mxu0 0.0
        %3319 = vmatpush2.msra.mxu0 0.0
        %3320 = vmatprep.subr.mxu0 0.0
        %3321 = vmatpush2.msra.mxu0 0.0
        %3322 = vmatprep.subr.mxu0 0.0
        %3323 = vmatpush2.msra.mxu0 0.0
        %3324 = vmatprep.subr.mxu0 0.0
        %3325 = vmatpush2.msra.mxu0 0.0
        %3326 = vmatprep.subr.mxu0 0.0
        %3327 = vmatpush2.msra.mxu0 0.0
        %3328 = vmatprep.subr.mxu0 0.0
        %3329 = vmatpush2.msra.mxu0 0.0
        %3330 = vmatprep.subr.mxu0 0.0
        %3331 = vmatpush2.msra.mxu0 0.0
        %3332 = vmatprep.subr.mxu0 0.0
        %3333 = vmatpush2.msra.mxu0 0.0
        %3334 = vmatprep.subr.mxu0 0.0
        %3335 = vmatpush2.msra.mxu0 0.0
        %3336 = vmatprep.subr.mxu0 0.0
        %3337 = vmatpush2.msra.mxu0 0.0
        %3338 = vmatprep.subr.mxu0 0.0
        %3339 = vmatpush2.msra.mxu0 0.0
        %3340 = vmatprep.subr.mxu0 0.0
        %3341 = vmatpush2.msra.mxu0 0.0
        %3342 = vmatprep.subr.mxu0 0.0
        %3343 = vmatpush2.msra.mxu0 0.0
        %3344 = vmatprep.subr.mxu0 0.0
        %3345 = vmatpush2.msra.mxu0 0.0
        %3346 = vmatprep.mubr.f32.mxu0 0.0
        %3347 = vmatmul.mubr.f32.gmra.mxu0 %v3280
        %v3348 = vpop.f32.mrf.mxu0
        %v3349 = vadd.f32 %v1164, %v3348
        %v3350 = vpop.f32.mrf.mxu0
        %3351 = vdwg.mxu0
        %3352 = vmatprep.subr.mxu0 0.0
        %3353 = vmatpush1.msra.mxu0 0.0
        %3354 = vmatprep.subr.mxu0 0.0
        %3355 = vmatpush1.msra.mxu0 0.0
        %3356 = vmatprep.subr.mxu0 0.0
        %3357 = vmatpush1.msra.mxu0 0.0
        %3358 = vmatprep.subr.mxu0 0.0
        %3359 = vmatpush1.msra.mxu0 0.0
        %3360 = vmatprep.subr.mxu0 0.0
        %3361 = vmatpush1.msra.mxu0 0.0
        %3362 = vmatprep.subr.mxu0 0.0
        %3363 = vmatpush1.msra.mxu0 0.0
        %3364 = vmatprep.subr.mxu0 0.0
        %3365 = vmatpush1.msra.mxu0 0.0
        %3366 = vmatprep.subr.mxu0 0.0
        %3367 = vmatpush1.msra.mxu0 0.0
        %3368 = vmatprep.subr.mxu0 0.0
        %3369 = vmatpush1.msra.mxu0 0.0
        %3370 = vmatprep.subr.mxu0 0.0
        %3371 = vmatpush1.msra.mxu0 0.0
        %3372 = vmatprep.subr.mxu0 0.0
        %3373 = vmatpush1.msra.mxu0 0.0
        %3374 = vmatprep.subr.mxu0 0.0
        %3375 = vmatpush1.msra.mxu0 0.0
        %3376 = vmatprep.subr.mxu0 0.0
        %3377 = vmatpush1.msra.mxu0 0.0
        %3378 = vmatprep.subr.mxu0 0.0
        %3379 = vmatpush1.msra.mxu0 0.0
        %3380 = vmatprep.subr.mxu0 0.0
        %3381 = vmatpush1.msra.mxu0 %v1065
        %3382 = vmatprep.subr.mxu0 0.0
        %3383 = vmatpush1.msra.mxu0 %v1064
        %3384 = vmatprep.subr.mxu0 0.0
        %3385 = vmatpush2.msra.mxu0 0.0
        %3386 = vmatprep.subr.mxu0 0.0
        %3387 = vmatpush2.msra.mxu0 0.0
        %3388 = vmatprep.subr.mxu0 0.0
        %3389 = vmatpush2.msra.mxu0 0.0
        %3390 = vmatprep.subr.mxu0 0.0
        %3391 = vmatpush2.msra.mxu0 0.0
        %3392 = vmatprep.subr.mxu0 0.0
        %3393 = vmatpush2.msra.mxu0 0.0
        %3394 = vmatprep.subr.mxu0 0.0
        %3395 = vmatpush2.msra.mxu0 0.0
        %3396 = vmatprep.subr.mxu0 0.0
        %3397 = vmatpush2.msra.mxu0 0.0
        %3398 = vmatprep.subr.mxu0 0.0
        %3399 = vmatpush2.msra.mxu0 0.0
        %3400 = vmatprep.subr.mxu0 0.0
        %3401 = vmatpush2.msra.mxu0 0.0
        %3402 = vmatprep.subr.mxu0 0.0
        %3403 = vmatpush2.msra.mxu0 0.0
        %3404 = vmatprep.subr.mxu0 0.0
        %3405 = vmatpush2.msra.mxu0 0.0
        %3406 = vmatprep.subr.mxu0 0.0
        %3407 = vmatpush2.msra.mxu0 0.0
        %3408 = vmatprep.subr.mxu0 0.0
        %3409 = vmatpush2.msra.mxu0 0.0
        %3410 = vmatprep.subr.mxu0 0.0
        %3411 = vmatpush2.msra.mxu0 0.0
        %3412 = vmatprep.subr.mxu0 0.0
        %3413 = vmatpush2.msra.mxu0 0.0
        %3414 = vmatprep.subr.mxu0 0.0
        %3415 = vmatpush2.msra.mxu0 0.0
        %3416 = vmatprep.mubr.f32.mxu0 0.0
        %3417 = vmatmul.mubr.f32.gmra.mxu0 %v3280
        %v3418 = vpop.f32.mrf.mxu0
        %v3419 = vadd.f32 %v1243, %v3418
        %v3420 = vpop.f32.mrf.mxu0
        %3421 = vdwg.mxu0
        %3422 = vmatprep.subr.mxu0 0.0
        %3423 = vmatpush1.msra.mxu0 0.0
        %3424 = vmatprep.subr.mxu0 0.0
        %3425 = vmatpush1.msra.mxu0 0.0
        %3426 = vmatprep.subr.mxu0 0.0
        %3427 = vmatpush1.msra.mxu0 0.0
        %3428 = vmatprep.subr.mxu0 0.0
        %3429 = vmatpush1.msra.mxu0 0.0
        %3430 = vmatprep.subr.mxu0 0.0
        %3431 = vmatpush1.msra.mxu0 0.0
        %3432 = vmatprep.subr.mxu0 0.0
        %3433 = vmatpush1.msra.mxu0 0.0
        %3434 = vmatprep.subr.mxu0 0.0
        %3435 = vmatpush1.msra.mxu0 0.0
        %3436 = vmatprep.subr.mxu0 0.0
        %3437 = vmatpush1.msra.mxu0 0.0
        %3438 = vmatprep.subr.mxu0 0.0
        %3439 = vmatpush1.msra.mxu0 0.0
        %3440 = vmatprep.subr.mxu0 0.0
        %3441 = vmatpush1.msra.mxu0 0.0
        %3442 = vmatprep.subr.mxu0 0.0
        %3443 = vmatpush1.msra.mxu0 0.0
        %3444 = vmatprep.subr.mxu0 0.0
        %3445 = vmatpush1.msra.mxu0 0.0
        %3446 = vmatprep.subr.mxu0 0.0
        %3447 = vmatpush1.msra.mxu0 0.0
        %3448 = vmatprep.subr.mxu0 0.0
        %3449 = vmatpush1.msra.mxu0 0.0
        %3450 = vmatprep.subr.mxu0 0.0
        %3451 = vmatpush1.msra.mxu0 %v1068
        %3452 = vmatprep.subr.mxu0 0.0
        %3453 = vmatpush1.msra.mxu0 %v1067
        %3454 = vmatprep.subr.mxu0 0.0
        %3455 = vmatpush2.msra.mxu0 0.0
        %3456 = vmatprep.subr.mxu0 0.0
        %3457 = vmatpush2.msra.mxu0 0.0
        %3458 = vmatprep.subr.mxu0 0.0
        %3459 = vmatpush2.msra.mxu0 0.0
        %3460 = vmatprep.subr.mxu0 0.0
        %3461 = vmatpush2.msra.mxu0 0.0
        %3462 = vmatprep.subr.mxu0 0.0
        %3463 = vmatpush2.msra.mxu0 0.0
        %3464 = vmatprep.subr.mxu0 0.0
        %3465 = vmatpush2.msra.mxu0 0.0
        %3466 = vmatprep.subr.mxu0 0.0
        %3467 = vmatpush2.msra.mxu0 0.0
        %3468 = vmatprep.subr.mxu0 0.0
        %3469 = vmatpush2.msra.mxu0 0.0
        %3470 = vmatprep.subr.mxu0 0.0
        %3471 = vmatpush2.msra.mxu0 0.0
        %3472 = vmatprep.subr.mxu0 0.0
        %3473 = vmatpush2.msra.mxu0 0.0
        %3474 = vmatprep.subr.mxu0 0.0
        %3475 = vmatpush2.msra.mxu0 0.0
        %3476 = vmatprep.subr.mxu0 0.0
        %3477 = vmatpush2.msra.mxu0 0.0
        %3478 = vmatprep.subr.mxu0 0.0
        %3479 = vmatpush2.msra.mxu0 0.0
        %3480 = vmatprep.subr.mxu0 0.0
        %3481 = vmatpush2.msra.mxu0 0.0
        %3482 = vmatprep.subr.mxu0 0.0
        %3483 = vmatpush2.msra.mxu0 0.0
        %3484 = vmatprep.subr.mxu0 0.0
        %3485 = vmatpush2.msra.mxu0 0.0
        %3486 = vmatprep.mubr.f32.mxu0 0.0
        %3487 = vmatmul.mubr.f32.gmra.mxu0 %v3280
        %v3488 = vpop.f32.mrf.mxu0
        %v3489 = vadd.f32 %v1319, %v3488
        %v3490 = vpop.f32.mrf.mxu0
        %3491 = vdwg.mxu0
        %v3492 = vadd.f32 %v3266, %v3349
        %v3493 = vxor.u32 %v3492, 2147483648
        %v3494 = vmul.f32 %v3493, 1.442695
        %v3495 = vpow.pop %v3494
        %v3496 = vadd.f32 %v3495, 1.0
        %v3497 = vrcp.pop %v3496
        %v3498 = vmul.f32 1.0, %v3497
        %v3499 = vadd.f32 %v3272, %v3419
        %v3500 = vxor.u32 %v3499, 2147483648
        %v3501 = vmul.f32 %v3500, 1.442695
        %v3502 = vpow.pop %v3501
        %v3503 = vadd.f32 %v3502, 1.0
        %v3504 = vrcp.pop %v3503
        %v3505 = vmul.f32 1.0, %v3504
        %v3506 = vmul.f32 %v3498, %v3489
        %v3507 = vadd.f32 %v3278, %v3506
        %v3508 = vtanh.pop %v3507
        %v3509 = vsub.f32 1.0, %v3505
        %v3510 = vmul.f32 %v3509, %v3508
        %v3511 = vmul.f32 %v3505, %v2998
        %v3512 = vadd.f32 %v3510, %v3511
        %v3513 = vlaneseq
        %v3514 = vshrl.u32 %v3513, 7
        %v3515 = vsub.s32 3, %v3514
        %v3516 = vrot.slane %v896, %v3515
        %v3517 = vmul.f32 %v2749, %v3516
        %v3518 = vadd.f32 %v3517, %v1425
        %v3519 = vlaneseq
        %v3520 = vshrl.u32 %v3519, 7
        %v3521 = vsub.s32 3, %v3520
        %v3522 = vrot.slane %v977, %v3521
        %v3523 = vmul.f32 %v2749, %v3522
        %v3524 = vadd.f32 %v3523, %v1437
        %v3525 = vlaneseq
        %v3526 = vshrl.u32 %v3525, 7
        %v3527 = vsub.s32 3, %v3526
        %v3528 = vrot.slane %v1058, %v3527
        %v3529 = vmul.f32 %v2749, %v3528
        %v3530 = vadd.f32 %v3529, %v1449
        %v3532 = vsel %vm584, %v3254, 0
        %3534 = vmatprep.subr.mxu0 0.0
        %3535 = vmatpush1.msra.mxu0 0.0
        %3536 = vmatprep.subr.mxu0 0.0
        %3537 = vmatpush1.msra.mxu0 0.0
        %3538 = vmatprep.subr.mxu0 0.0
        %3539 = vmatpush1.msra.mxu0 0.0
        %3540 = vmatprep.subr.mxu0 0.0
        %3541 = vmatpush1.msra.mxu0 0.0
        %3542 = vmatprep.subr.mxu0 0.0
        %3543 = vmatpush1.msra.mxu0 0.0
        %3544 = vmatprep.subr.mxu0 0.0
        %3545 = vmatpush1.msra.mxu0 0.0
        %3546 = vmatprep.subr.mxu0 0.0
        %3547 = vmatpush1.msra.mxu0 0.0
        %3548 = vmatprep.subr.mxu0 0.0
        %3549 = vmatpush1.msra.mxu0 0.0
        %3550 = vmatprep.subr.mxu0 0.0
        %3551 = vmatpush1.msra.mxu0 0.0
        %3552 = vmatprep.subr.mxu0 0.0
        %3553 = vmatpush1.msra.mxu0 0.0
        %3554 = vmatprep.subr.mxu0 0.0
        %3555 = vmatpush1.msra.mxu0 0.0
        %3556 = vmatprep.subr.mxu0 0.0
        %3557 = vmatpush1.msra.mxu0 0.0
        %3558 = vmatprep.subr.mxu0 0.0
        %3559 = vmatpush1.msra.mxu0 0.0
        %3560 = vmatprep.subr.mxu0 0.0
        %3561 = vmatpush1.msra.mxu0 0.0
        %3562 = vmatprep.subr.mxu0 0.0
        %3563 = vmatpush1.msra.mxu0 %v1070
        %3564 = vmatprep.subr.mxu0 0.0
        %3565 = vmatpush1.msra.mxu0 %v1069
        %3566 = vmatprep.subr.mxu0 0.0
        %3567 = vmatpush2.msra.mxu0 0.0
        %3568 = vmatprep.subr.mxu0 0.0
        %3569 = vmatpush2.msra.mxu0 0.0
        %3570 = vmatprep.subr.mxu0 0.0
        %3571 = vmatpush2.msra.mxu0 0.0
        %3572 = vmatprep.subr.mxu0 0.0
        %3573 = vmatpush2.msra.mxu0 0.0
        %3574 = vmatprep.subr.mxu0 0.0
        %3575 = vmatpush2.msra.mxu0 0.0
        %3576 = vmatprep.subr.mxu0 0.0
        %3577 = vmatpush2.msra.mxu0 0.0
        %3578 = vmatprep.subr.mxu0 0.0
        %3579 = vmatpush2.msra.mxu0 0.0
        %3580 = vmatprep.subr.mxu0 0.0
        %3581 = vmatpush2.msra.mxu0 0.0
        %3582 = vmatprep.subr.mxu0 0.0
        %3583 = vmatpush2.msra.mxu0 0.0
        %3584 = vmatprep.subr.mxu0 0.0
        %3585 = vmatpush2.msra.mxu0 0.0
        %3586 = vmatprep.subr.mxu0 0.0
        %3587 = vmatpush2.msra.mxu0 0.0
        %3588 = vmatprep.subr.mxu0 0.0
        %3589 = vmatpush2.msra.mxu0 0.0
        %3590 = vmatprep.subr.mxu0 0.0
        %3591 = vmatpush2.msra.mxu0 0.0
        %3592 = vmatprep.subr.mxu0 0.0
        %3593 = vmatpush2.msra.mxu0 0.0
        %3594 = vmatprep.subr.mxu0 0.0
        %3595 = vmatpush2.msra.mxu0 0.0
        %3596 = vmatprep.subr.mxu0 0.0
        %3597 = vmatpush2.msra.mxu0 0.0
        %3598 = vmatprep.mubr.f32.mxu0 0.0
        %3599 = vmatmul.mubr.f32.gmra.mxu0 %v3532
        %v3600 = vpop.f32.mrf.mxu0
        %v3601 = vadd.f32 %v1456, %v3600
        %v3602 = vpop.f32.mrf.mxu0
        %3603 = vdwg.mxu0
        %3604 = vmatprep.subr.mxu0 0.0
        %3605 = vmatpush1.msra.mxu0 0.0
        %3606 = vmatprep.subr.mxu0 0.0
        %3607 = vmatpush1.msra.mxu0 0.0
        %3608 = vmatprep.subr.mxu0 0.0
        %3609 = vmatpush1.msra.mxu0 0.0
        %3610 = vmatprep.subr.mxu0 0.0
        %3611 = vmatpush1.msra.mxu0 0.0
        %3612 = vmatprep.subr.mxu0 0.0
        %3613 = vmatpush1.msra.mxu0 0.0
        %3614 = vmatprep.subr.mxu0 0.0
        %3615 = vmatpush1.msra.mxu0 0.0
        %3616 = vmatprep.subr.mxu0 0.0
        %3617 = vmatpush1.msra.mxu0 0.0
        %3618 = vmatprep.subr.mxu0 0.0
        %3619 = vmatpush1.msra.mxu0 0.0
        %3620 = vmatprep.subr.mxu0 0.0
        %3621 = vmatpush1.msra.mxu0 0.0
        %3622 = vmatprep.subr.mxu0 0.0
        %3623 = vmatpush1.msra.mxu0 0.0
        %3624 = vmatprep.subr.mxu0 0.0
        %3625 = vmatpush1.msra.mxu0 0.0
        %3626 = vmatprep.subr.mxu0 0.0
        %3627 = vmatpush1.msra.mxu0 0.0
        %3628 = vmatprep.subr.mxu0 0.0
        %3629 = vmatpush1.msra.mxu0 0.0
        %3630 = vmatprep.subr.mxu0 0.0
        %3631 = vmatpush1.msra.mxu0 0.0
        %3632 = vmatprep.subr.mxu0 0.0
        %3633 = vmatpush1.msra.mxu0 %v1073
        %3634 = vmatprep.subr.mxu0 0.0
        %3635 = vmatpush1.msra.mxu0 %v1072
        %3636 = vmatprep.subr.mxu0 0.0
        %3637 = vmatpush2.msra.mxu0 0.0
        %3638 = vmatprep.subr.mxu0 0.0
        %3639 = vmatpush2.msra.mxu0 0.0
        %3640 = vmatprep.subr.mxu0 0.0
        %3641 = vmatpush2.msra.mxu0 0.0
        %3642 = vmatprep.subr.mxu0 0.0
        %3643 = vmatpush2.msra.mxu0 0.0
        %3644 = vmatprep.subr.mxu0 0.0
        %3645 = vmatpush2.msra.mxu0 0.0
        %3646 = vmatprep.subr.mxu0 0.0
        %3647 = vmatpush2.msra.mxu0 0.0
        %3648 = vmatprep.subr.mxu0 0.0
        %3649 = vmatpush2.msra.mxu0 0.0
        %3650 = vmatprep.subr.mxu0 0.0
        %3651 = vmatpush2.msra.mxu0 0.0
        %3652 = vmatprep.subr.mxu0 0.0
        %3653 = vmatpush2.msra.mxu0 0.0
        %3654 = vmatprep.subr.mxu0 0.0
        %3655 = vmatpush2.msra.mxu0 0.0
        %3656 = vmatprep.subr.mxu0 0.0
        %3657 = vmatpush2.msra.mxu0 0.0
        %3658 = vmatprep.subr.mxu0 0.0
        %3659 = vmatpush2.msra.mxu0 0.0
        %3660 = vmatprep.subr.mxu0 0.0
        %3661 = vmatpush2.msra.mxu0 0.0
        %3662 = vmatprep.subr.mxu0 0.0
        %3663 = vmatpush2.msra.mxu0 0.0
        %3664 = vmatprep.subr.mxu0 0.0
        %3665 = vmatpush2.msra.mxu0 0.0
        %3666 = vmatprep.subr.mxu0 0.0
        %3667 = vmatpush2.msra.mxu0 0.0
        %3668 = vmatprep.mubr.f32.mxu0 0.0
        %3669 = vmatmul.mubr.f32.gmra.mxu0 %v3532
        %v3670 = vpop.f32.mrf.mxu0
        %v3671 = vadd.f32 %v1532, %v3670
        %v3672 = vpop.f32.mrf.mxu0
        %3673 = vdwg.mxu0
        %3674 = vmatprep.subr.mxu0 0.0
        %3675 = vmatpush1.msra.mxu0 0.0
        %3676 = vmatprep.subr.mxu0 0.0
        %3677 = vmatpush1.msra.mxu0 0.0
        %3678 = vmatprep.subr.mxu0 0.0
        %3679 = vmatpush1.msra.mxu0 0.0
        %3680 = vmatprep.subr.mxu0 0.0
        %3681 = vmatpush1.msra.mxu0 0.0
        %3682 = vmatprep.subr.mxu0 0.0
        %3683 = vmatpush1.msra.mxu0 0.0
        %3684 = vmatprep.subr.mxu0 0.0
        %3685 = vmatpush1.msra.mxu0 0.0
        %3686 = vmatprep.subr.mxu0 0.0
        %3687 = vmatpush1.msra.mxu0 0.0
        %3688 = vmatprep.subr.mxu0 0.0
        %3689 = vmatpush1.msra.mxu0 0.0
        %3690 = vmatprep.subr.mxu0 0.0
        %3691 = vmatpush1.msra.mxu0 0.0
        %3692 = vmatprep.subr.mxu0 0.0
        %3693 = vmatpush1.msra.mxu0 0.0
        %3694 = vmatprep.subr.mxu0 0.0
        %3695 = vmatpush1.msra.mxu0 0.0
        %3696 = vmatprep.subr.mxu0 0.0
        %3697 = vmatpush1.msra.mxu0 0.0
        %3698 = vmatprep.subr.mxu0 0.0
        %3699 = vmatpush1.msra.mxu0 0.0
        %3700 = vmatprep.subr.mxu0 0.0
        %3701 = vmatpush1.msra.mxu0 0.0
        %3702 = vmatprep.subr.mxu0 0.0
        %3703 = vmatpush1.msra.mxu0 %v1076
        %3704 = vmatprep.subr.mxu0 0.0
        %3705 = vmatpush1.msra.mxu0 %v1075
        %3706 = vmatprep.subr.mxu0 0.0
        %3707 = vmatpush2.msra.mxu0 0.0
        %3708 = vmatprep.subr.mxu0 0.0
        %3709 = vmatpush2.msra.mxu0 0.0
        %3710 = vmatprep.subr.mxu0 0.0
        %3711 = vmatpush2.msra.mxu0 0.0
        %3712 = vmatprep.subr.mxu0 0.0
        %3713 = vmatpush2.msra.mxu0 0.0
        %3714 = vmatprep.subr.mxu0 0.0
        %3715 = vmatpush2.msra.mxu0 0.0
        %3716 = vmatprep.subr.mxu0 0.0
        %3717 = vmatpush2.msra.mxu0 0.0
        %3718 = vmatprep.subr.mxu0 0.0
        %3719 = vmatpush2.msra.mxu0 0.0
        %3720 = vmatprep.subr.mxu0 0.0
        %3721 = vmatpush2.msra.mxu0 0.0
        %3722 = vmatprep.subr.mxu0 0.0
        %3723 = vmatpush2.msra.mxu0 0.0
        %3724 = vmatprep.subr.mxu0 0.0
        %3725 = vmatpush2.msra.mxu0 0.0
        %3726 = vmatprep.subr.mxu0 0.0
        %3727 = vmatpush2.msra.mxu0 0.0
        %3728 = vmatprep.subr.mxu0 0.0
        %3729 = vmatpush2.msra.mxu0 0.0
        %3730 = vmatprep.subr.mxu0 0.0
        %3731 = vmatpush2.msra.mxu0 0.0
        %3732 = vmatprep.subr.mxu0 0.0
        %3733 = vmatpush2.msra.mxu0 0.0
        %3734 = vmatprep.subr.mxu0 0.0
        %3735 = vmatpush2.msra.mxu0 0.0
        %3736 = vmatprep.subr.mxu0 0.0
        %3737 = vmatpush2.msra.mxu0 0.0
        %3738 = vmatprep.mubr.f32.mxu0 0.0
        %3739 = vmatmul.mubr.f32.gmra.mxu0 %v3532
        %v3740 = vpop.f32.mrf.mxu0
        %v3741 = vadd.f32 %v1608, %v3740
        %v3742 = vpop.f32.mrf.mxu0
        %3743 = vdwg.mxu0
        %v3744 = vadd.f32 %v3518, %v3601
        %v3745 = vxor.u32 %v3744, 2147483648
        %v3746 = vmul.f32 %v3745, 1.442695
        %v3747 = vpow.pop %v3746
        %v3748 = vadd.f32 %v3747, 1.0
        %v3749 = vrcp.pop %v3748
        %v3750 = vmul.f32 1.0, %v3749
        %v3751 = vadd.f32 %v3524, %v3671
        %v3752 = vxor.u32 %v3751, 2147483648
        %v3753 = vmul.f32 %v3752, 1.442695
        %v3754 = vpow.pop %v3753
        %v3755 = vadd.f32 %v3754, 1.0
        %v3756 = vrcp.pop %v3755
        %v3757 = vmul.f32 1.0, %v3756
        %v3758 = vmul.f32 %v3750, %v3741
        %v3759 = vadd.f32 %v3530, %v3758
        %v3760 = vtanh.pop %v3759
        %v3761 = vsub.f32 1.0, %v3757
        %v3762 = vmul.f32 %v3761, %v3760
        %v3763 = vmul.f32 %v3757, %v3254
        %v3764 = vadd.f32 %v3762, %v3763
        %v3765 = vsel %vm3259, %v3512, %v3257
        %v3766 = vsel %vm3256, %v3764, %v3260
        %v3767 = vlaneseq
        %v3768 = vshrl.u32 %v3767, 7
        %v3769 = vsub.s32 5, %v3768
        %v3770 = vrot.slane %v655, %v3769
        %v3771 = vmul.f32 %v2487, %v3770
        %v3772 = vadd.f32 %v3771, %v1133
        %v3773 = vlaneseq
        %v3774 = vshrl.u32 %v3773, 7
        %v3775 = vsub.s32 5, %v3774
        %v3776 = vrot.slane %v736, %v3775
        %v3777 = vmul.f32 %v2487, %v3776
        %v3778 = vadd.f32 %v3777, %v1145
        %v3779 = vlaneseq
        %v3780 = vshrl.u32 %v3779, 7
        %v3781 = vsub.s32 5, %v3780
        %v3782 = vrot.slane %v817, %v3781
        %v3783 = vmul.f32 %v2487, %v3782
        %v3784 = vadd.f32 %v3783, %v1157
        %v3786 = vsel %vm584, %v3512, 0
        %3788 = vmatprep.subr.mxu0 0.0
        %3789 = vmatpush1.msra.mxu0 0.0
        %3790 = vmatprep.subr.mxu0 0.0
        %3791 = vmatpush1.msra.mxu0 0.0
        %3792 = vmatprep.subr.mxu0 0.0
        %3793 = vmatpush1.msra.mxu0 0.0
        %3794 = vmatprep.subr.mxu0 0.0
        %3795 = vmatpush1.msra.mxu0 0.0
        %3796 = vmatprep.subr.mxu0 0.0
        %3797 = vmatpush1.msra.mxu0 0.0
        %3798 = vmatprep.subr.mxu0 0.0
        %3799 = vmatpush1.msra.mxu0 0.0
        %3800 = vmatprep.subr.mxu0 0.0
        %3801 = vmatpush1.msra.mxu0 0.0
        %3802 = vmatprep.subr.mxu0 0.0
        %3803 = vmatpush1.msra.mxu0 0.0
        %3804 = vmatprep.subr.mxu0 0.0
        %3805 = vmatpush1.msra.mxu0 0.0
        %3806 = vmatprep.subr.mxu0 0.0
        %3807 = vmatpush1.msra.mxu0 0.0
        %3808 = vmatprep.subr.mxu0 0.0
        %3809 = vmatpush1.msra.mxu0 0.0
        %3810 = vmatprep.subr.mxu0 0.0
        %3811 = vmatpush1.msra.mxu0 0.0
        %3812 = vmatprep.subr.mxu0 0.0
        %3813 = vmatpush1.msra.mxu0 0.0
        %3814 = vmatprep.subr.mxu0 0.0
        %3815 = vmatpush1.msra.mxu0 0.0
        %3816 = vmatprep.subr.mxu0 0.0
        %3817 = vmatpush1.msra.mxu0 %v1062
        %3818 = vmatprep.subr.mxu0 0.0
        %3819 = vmatpush1.msra.mxu0 %v1061
        %3820 = vmatprep.subr.mxu0 0.0
        %3821 = vmatpush2.msra.mxu0 0.0
        %3822 = vmatprep.subr.mxu0 0.0
        %3823 = vmatpush2.msra.mxu0 0.0
        %3824 = vmatprep.subr.mxu0 0.0
        %3825 = vmatpush2.msra.mxu0 0.0
        %3826 = vmatprep.subr.mxu0 0.0
        %3827 = vmatpush2.msra.mxu0 0.0
        %3828 = vmatprep.subr.mxu0 0.0
        %3829 = vmatpush2.msra.mxu0 0.0
        %3830 = vmatprep.subr.mxu0 0.0
        %3831 = vmatpush2.msra.mxu0 0.0
        %3832 = vmatprep.subr.mxu0 0.0
        %3833 = vmatpush2.msra.mxu0 0.0
        %3834 = vmatprep.subr.mxu0 0.0
        %3835 = vmatpush2.msra.mxu0 0.0
        %3836 = vmatprep.subr.mxu0 0.0
        %3837 = vmatpush2.msra.mxu0 0.0
        %3838 = vmatprep.subr.mxu0 0.0
        %3839 = vmatpush2.msra.mxu0 0.0
        %3840 = vmatprep.subr.mxu0 0.0
        %3841 = vmatpush2.msra.mxu0 0.0
        %3842 = vmatprep.subr.mxu0 0.0
        %3843 = vmatpush2.msra.mxu0 0.0
        %3844 = vmatprep.subr.mxu0 0.0
        %3845 = vmatpush2.msra.mxu0 0.0
        %3846 = vmatprep.subr.mxu0 0.0
        %3847 = vmatpush2.msra.mxu0 0.0
        %3848 = vmatprep.subr.mxu0 0.0
        %3849 = vmatpush2.msra.mxu0 0.0
        %3850 = vmatprep.subr.mxu0 0.0
        %3851 = vmatpush2.msra.mxu0 0.0
        %3852 = vmatprep.mubr.f32.mxu0 0.0
        %3853 = vmatmul.mubr.f32.gmra.mxu0 %v3786
        %v3854 = vpop.f32.mrf.mxu0
        %v3855 = vadd.f32 %v1164, %v3854
        %v3856 = vpop.f32.mrf.mxu0
        %3857 = vdwg.mxu0
        %3858 = vmatprep.subr.mxu0 0.0
        %3859 = vmatpush1.msra.mxu0 0.0
        %3860 = vmatprep.subr.mxu0 0.0
        %3861 = vmatpush1.msra.mxu0 0.0
        %3862 = vmatprep.subr.mxu0 0.0
        %3863 = vmatpush1.msra.mxu0 0.0
        %3864 = vmatprep.subr.mxu0 0.0
        %3865 = vmatpush1.msra.mxu0 0.0
        %3866 = vmatprep.subr.mxu0 0.0
        %3867 = vmatpush1.msra.mxu0 0.0
        %3868 = vmatprep.subr.mxu0 0.0
        %3869 = vmatpush1.msra.mxu0 0.0
        %3870 = vmatprep.subr.mxu0 0.0
        %3871 = vmatpush1.msra.mxu0 0.0
        %3872 = vmatprep.subr.mxu0 0.0
        %3873 = vmatpush1.msra.mxu0 0.0
        %3874 = vmatprep.subr.mxu0 0.0
        %3875 = vmatpush1.msra.mxu0 0.0
        %3876 = vmatprep.subr.mxu0 0.0
        %3877 = vmatpush1.msra.mxu0 0.0
        %3878 = vmatprep.subr.mxu0 0.0
        %3879 = vmatpush1.msra.mxu0 0.0
        %3880 = vmatprep.subr.mxu0 0.0
        %3881 = vmatpush1.msra.mxu0 0.0
        %3882 = vmatprep.subr.mxu0 0.0
        %3883 = vmatpush1.msra.mxu0 0.0
        %3884 = vmatprep.subr.mxu0 0.0
        %3885 = vmatpush1.msra.mxu0 0.0
        %3886 = vmatprep.subr.mxu0 0.0
        %3887 = vmatpush1.msra.mxu0 %v1065
        %3888 = vmatprep.subr.mxu0 0.0
        %3889 = vmatpush1.msra.mxu0 %v1064
        %3890 = vmatprep.subr.mxu0 0.0
        %3891 = vmatpush2.msra.mxu0 0.0
        %3892 = vmatprep.subr.mxu0 0.0
        %3893 = vmatpush2.msra.mxu0 0.0
        %3894 = vmatprep.subr.mxu0 0.0
        %3895 = vmatpush2.msra.mxu0 0.0
        %3896 = vmatprep.subr.mxu0 0.0
        %3897 = vmatpush2.msra.mxu0 0.0
        %3898 = vmatprep.subr.mxu0 0.0
        %3899 = vmatpush2.msra.mxu0 0.0
        %3900 = vmatprep.subr.mxu0 0.0
        %3901 = vmatpush2.msra.mxu0 0.0
        %3902 = vmatprep.subr.mxu0 0.0
        %3903 = vmatpush2.msra.mxu0 0.0
        %3904 = vmatprep.subr.mxu0 0.0
        %3905 = vmatpush2.msra.mxu0 0.0
        %3906 = vmatprep.subr.mxu0 0.0
        %3907 = vmatpush2.msra.mxu0 0.0
        %3908 = vmatprep.subr.mxu0 0.0
        %3909 = vmatpush2.msra.mxu0 0.0
        %3910 = vmatprep.subr.mxu0 0.0
        %3911 = vmatpush2.msra.mxu0 0.0
        %3912 = vmatprep.subr.mxu0 0.0
        %3913 = vmatpush2.msra.mxu0 0.0
        %3914 = vmatprep.subr.mxu0 0.0
        %3915 = vmatpush2.msra.mxu0 0.0
        %3916 = vmatprep.subr.mxu0 0.0
        %3917 = vmatpush2.msra.mxu0 0.0
        %3918 = vmatprep.subr.mxu0 0.0
        %3919 = vmatpush2.msra.mxu0 0.0
        %3920 = vmatprep.subr.mxu0 0.0
        %3921 = vmatpush2.msra.mxu0 0.0
        %3922 = vmatprep.mubr.f32.mxu0 0.0
        %3923 = vmatmul.mubr.f32.gmra.mxu0 %v3786
        %v3924 = vpop.f32.mrf.mxu0
        %v3925 = vadd.f32 %v1243, %v3924
        %v3926 = vpop.f32.mrf.mxu0
        %3927 = vdwg.mxu0
        %3928 = vmatprep.subr.mxu0 0.0
        %3929 = vmatpush1.msra.mxu0 0.0
        %3930 = vmatprep.subr.mxu0 0.0
        %3931 = vmatpush1.msra.mxu0 0.0
        %3932 = vmatprep.subr.mxu0 0.0
        %3933 = vmatpush1.msra.mxu0 0.0
        %3934 = vmatprep.subr.mxu0 0.0
        %3935 = vmatpush1.msra.mxu0 0.0
        %3936 = vmatprep.subr.mxu0 0.0
        %3937 = vmatpush1.msra.mxu0 0.0
        %3938 = vmatprep.subr.mxu0 0.0
        %3939 = vmatpush1.msra.mxu0 0.0
        %3940 = vmatprep.subr.mxu0 0.0
        %3941 = vmatpush1.msra.mxu0 0.0
        %3942 = vmatprep.subr.mxu0 0.0
        %3943 = vmatpush1.msra.mxu0 0.0
        %3944 = vmatprep.subr.mxu0 0.0
        %3945 = vmatpush1.msra.mxu0 0.0
        %3946 = vmatprep.subr.mxu0 0.0
        %3947 = vmatpush1.msra.mxu0 0.0
        %3948 = vmatprep.subr.mxu0 0.0
        %3949 = vmatpush1.msra.mxu0 0.0
        %3950 = vmatprep.subr.mxu0 0.0
        %3951 = vmatpush1.msra.mxu0 0.0
        %3952 = vmatprep.subr.mxu0 0.0
        %3953 = vmatpush1.msra.mxu0 0.0
        %3954 = vmatprep.subr.mxu0 0.0
        %3955 = vmatpush1.msra.mxu0 0.0
        %3956 = vmatprep.subr.mxu0 0.0
        %3957 = vmatpush1.msra.mxu0 %v1068
        %3958 = vmatprep.subr.mxu0 0.0
        %3959 = vmatpush1.msra.mxu0 %v1067
        %3960 = vmatprep.subr.mxu0 0.0
        %3961 = vmatpush2.msra.mxu0 0.0
        %3962 = vmatprep.subr.mxu0 0.0
        %3963 = vmatpush2.msra.mxu0 0.0
        %3964 = vmatprep.subr.mxu0 0.0
        %3965 = vmatpush2.msra.mxu0 0.0
        %3966 = vmatprep.subr.mxu0 0.0
        %3967 = vmatpush2.msra.mxu0 0.0
        %3968 = vmatprep.subr.mxu0 0.0
        %3969 = vmatpush2.msra.mxu0 0.0
        %3970 = vmatprep.subr.mxu0 0.0
        %3971 = vmatpush2.msra.mxu0 0.0
        %3972 = vmatprep.subr.mxu0 0.0
        %3973 = vmatpush2.msra.mxu0 0.0
        %3974 = vmatprep.subr.mxu0 0.0
        %3975 = vmatpush2.msra.mxu0 0.0
        %3976 = vmatprep.subr.mxu0 0.0
        %3977 = vmatpush2.msra.mxu0 0.0
        %3978 = vmatprep.subr.mxu0 0.0
        %3979 = vmatpush2.msra.mxu0 0.0
        %3980 = vmatprep.subr.mxu0 0.0
        %3981 = vmatpush2.msra.mxu0 0.0
        %3982 = vmatprep.subr.mxu0 0.0
        %3983 = vmatpush2.msra.mxu0 0.0
        %3984 = vmatprep.subr.mxu0 0.0
        %3985 = vmatpush2.msra.mxu0 0.0
        %3986 = vmatprep.subr.mxu0 0.0
        %3987 = vmatpush2.msra.mxu0 0.0
        %3988 = vmatprep.subr.mxu0 0.0
        %3989 = vmatpush2.msra.mxu0 0.0
        %3990 = vmatprep.subr.mxu0 0.0
        %3991 = vmatpush2.msra.mxu0 0.0
        %3992 = vmatprep.mubr.f32.mxu0 0.0
        %3993 = vmatmul.mubr.f32.gmra.mxu0 %v3786
        %v3994 = vpop.f32.mrf.mxu0
        %v3995 = vadd.f32 %v1319, %v3994
        %v3996 = vpop.f32.mrf.mxu0
        %3997 = vdwg.mxu0
        %v3998 = vadd.f32 %v3772, %v3855
        %v3999 = vxor.u32 %v3998, 2147483648
        %v4000 = vmul.f32 %v3999, 1.442695
        %v4001 = vpow.pop %v4000
        %v4002 = vadd.f32 %v4001, 1.0
        %v4003 = vrcp.pop %v4002
        %v4004 = vmul.f32 1.0, %v4003
        %v4005 = vadd.f32 %v3778, %v3925
        %v4006 = vxor.u32 %v4005, 2147483648
        %v4007 = vmul.f32 %v4006, 1.442695
        %v4008 = vpow.pop %v4007
        %v4009 = vadd.f32 %v4008, 1.0
        %v4010 = vrcp.pop %v4009
        %v4011 = vmul.f32 1.0, %v4010
        %v4012 = vmul.f32 %v4004, %v3995
        %v4013 = vadd.f32 %v3784, %v4012
        %v4014 = vtanh.pop %v4013
        %v4015 = vsub.f32 1.0, %v4011
        %v4016 = vmul.f32 %v4015, %v4014
        %v4017 = vmul.f32 %v4011, %v3512
        %v4018 = vadd.f32 %v4016, %v4017
        %v4019 = vlaneseq
        %v4020 = vshrl.u32 %v4019, 7
        %v4021 = vsub.s32 2, %v4020
        %v4022 = vrot.slane %v896, %v4021
        %v4023 = vmul.f32 %v2231, %v4022
        %v4024 = vadd.f32 %v4023, %v1425
        %v4025 = vlaneseq
        %v4026 = vshrl.u32 %v4025, 7
        %v4027 = vsub.s32 2, %v4026
        %v4028 = vrot.slane %v977, %v4027
        %v4029 = vmul.f32 %v2231, %v4028
        %v4030 = vadd.f32 %v4029, %v1437
        %v4031 = vlaneseq
        %v4032 = vshrl.u32 %v4031, 7
        %v4033 = vsub.s32 2, %v4032
        %v4034 = vrot.slane %v1058, %v4033
        %v4035 = vmul.f32 %v2231, %v4034
        %v4036 = vadd.f32 %v4035, %v1449
        %v4038 = vsel %vm584, %v3764, 0
        %4040 = vmatprep.subr.mxu0 0.0
        %4041 = vmatpush1.msra.mxu0 0.0
        %4042 = vmatprep.subr.mxu0 0.0
        %4043 = vmatpush1.msra.mxu0 0.0
        %4044 = vmatprep.subr.mxu0 0.0
        %4045 = vmatpush1.msra.mxu0 0.0
        %4046 = vmatprep.subr.mxu0 0.0
        %4047 = vmatpush1.msra.mxu0 0.0
        %4048 = vmatprep.subr.mxu0 0.0
        %4049 = vmatpush1.msra.mxu0 0.0
        %4050 = vmatprep.subr.mxu0 0.0
        %4051 = vmatpush1.msra.mxu0 0.0
        %4052 = vmatprep.subr.mxu0 0.0
        %4053 = vmatpush1.msra.mxu0 0.0
        %4054 = vmatprep.subr.mxu0 0.0
        %4055 = vmatpush1.msra.mxu0 0.0
        %4056 = vmatprep.subr.mxu0 0.0
        %4057 = vmatpush1.msra.mxu0 0.0
        %4058 = vmatprep.subr.mxu0 0.0
        %4059 = vmatpush1.msra.mxu0 0.0
        %4060 = vmatprep.subr.mxu0 0.0
        %4061 = vmatpush1.msra.mxu0 0.0
        %4062 = vmatprep.subr.mxu0 0.0
        %4063 = vmatpush1.msra.mxu0 0.0
        %4064 = vmatprep.subr.mxu0 0.0
        %4065 = vmatpush1.msra.mxu0 0.0
        %4066 = vmatprep.subr.mxu0 0.0
        %4067 = vmatpush1.msra.mxu0 0.0
        %4068 = vmatprep.subr.mxu0 0.0
        %4069 = vmatpush1.msra.mxu0 %v1070
        %4070 = vmatprep.subr.mxu0 0.0
        %4071 = vmatpush1.msra.mxu0 %v1069
        %4072 = vmatprep.subr.mxu0 0.0
        %4073 = vmatpush2.msra.mxu0 0.0
        %4074 = vmatprep.subr.mxu0 0.0
        %4075 = vmatpush2.msra.mxu0 0.0
        %4076 = vmatprep.subr.mxu0 0.0
        %4077 = vmatpush2.msra.mxu0 0.0
        %4078 = vmatprep.subr.mxu0 0.0
        %4079 = vmatpush2.msra.mxu0 0.0
        %4080 = vmatprep.subr.mxu0 0.0
        %4081 = vmatpush2.msra.mxu0 0.0
        %4082 = vmatprep.subr.mxu0 0.0
        %4083 = vmatpush2.msra.mxu0 0.0
        %4084 = vmatprep.subr.mxu0 0.0
        %4085 = vmatpush2.msra.mxu0 0.0
        %4086 = vmatprep.subr.mxu0 0.0
        %4087 = vmatpush2.msra.mxu0 0.0
        %4088 = vmatprep.subr.mxu0 0.0
        %4089 = vmatpush2.msra.mxu0 0.0
        %4090 = vmatprep.subr.mxu0 0.0
        %4091 = vmatpush2.msra.mxu0 0.0
        %4092 = vmatprep.subr.mxu0 0.0
        %4093 = vmatpush2.msra.mxu0 0.0
        %4094 = vmatprep.subr.mxu0 0.0
        %4095 = vmatpush2.msra.mxu0 0.0
        %4096 = vmatprep.subr.mxu0 0.0
        %4097 = vmatpush2.msra.mxu0 0.0
        %4098 = vmatprep.subr.mxu0 0.0
        %4099 = vmatpush2.msra.mxu0 0.0
        %4100 = vmatprep.subr.mxu0 0.0
        %4101 = vmatpush2.msra.mxu0 0.0
        %4102 = vmatprep.subr.mxu0 0.0
        %4103 = vmatpush2.msra.mxu0 0.0
        %4104 = vmatprep.mubr.f32.mxu0 0.0
        %4105 = vmatmul.mubr.f32.gmra.mxu0 %v4038
        %v4106 = vpop.f32.mrf.mxu0
        %v4107 = vadd.f32 %v1456, %v4106
        %v4108 = vpop.f32.mrf.mxu0
        %4109 = vdwg.mxu0
        %4110 = vmatprep.subr.mxu0 0.0
        %4111 = vmatpush1.msra.mxu0 0.0
        %4112 = vmatprep.subr.mxu0 0.0
        %4113 = vmatpush1.msra.mxu0 0.0
        %4114 = vmatprep.subr.mxu0 0.0
        %4115 = vmatpush1.msra.mxu0 0.0
        %4116 = vmatprep.subr.mxu0 0.0
        %4117 = vmatpush1.msra.mxu0 0.0
        %4118 = vmatprep.subr.mxu0 0.0
        %4119 = vmatpush1.msra.mxu0 0.0
        %4120 = vmatprep.subr.mxu0 0.0
        %4121 = vmatpush1.msra.mxu0 0.0
        %4122 = vmatprep.subr.mxu0 0.0
        %4123 = vmatpush1.msra.mxu0 0.0
        %4124 = vmatprep.subr.mxu0 0.0
        %4125 = vmatpush1.msra.mxu0 0.0
        %4126 = vmatprep.subr.mxu0 0.0
        %4127 = vmatpush1.msra.mxu0 0.0
        %4128 = vmatprep.subr.mxu0 0.0
        %4129 = vmatpush1.msra.mxu0 0.0
        %4130 = vmatprep.subr.mxu0 0.0
        %4131 = vmatpush1.msra.mxu0 0.0
        %4132 = vmatprep.subr.mxu0 0.0
        %4133 = vmatpush1.msra.mxu0 0.0
        %4134 = vmatprep.subr.mxu0 0.0
        %4135 = vmatpush1.msra.mxu0 0.0
        %4136 = vmatprep.subr.mxu0 0.0
        %4137 = vmatpush1.msra.mxu0 0.0
        %4138 = vmatprep.subr.mxu0 0.0
        %4139 = vmatpush1.msra.mxu0 %v1073
        %4140 = vmatprep.subr.mxu0 0.0
        %4141 = vmatpush1.msra.mxu0 %v1072
        %4142 = vmatprep.subr.mxu0 0.0
        %4143 = vmatpush2.msra.mxu0 0.0
        %4144 = vmatprep.subr.mxu0 0.0
        %4145 = vmatpush2.msra.mxu0 0.0
        %4146 = vmatprep.subr.mxu0 0.0
        %4147 = vmatpush2.msra.mxu0 0.0
        %4148 = vmatprep.subr.mxu0 0.0
        %4149 = vmatpush2.msra.mxu0 0.0
        %4150 = vmatprep.subr.mxu0 0.0
        %4151 = vmatpush2.msra.mxu0 0.0
        %4152 = vmatprep.subr.mxu0 0.0
        %4153 = vmatpush2.msra.mxu0 0.0
        %4154 = vmatprep.subr.mxu0 0.0
        %4155 = vmatpush2.msra.mxu0 0.0
        %4156 = vmatprep.subr.mxu0 0.0
        %4157 = vmatpush2.msra.mxu0 0.0
        %4158 = vmatprep.subr.mxu0 0.0
        %4159 = vmatpush2.msra.mxu0 0.0
        %4160 = vmatprep.subr.mxu0 0.0
        %4161 = vmatpush2.msra.mxu0 0.0
        %4162 = vmatprep.subr.mxu0 0.0
        %4163 = vmatpush2.msra.mxu0 0.0
        %4164 = vmatprep.subr.mxu0 0.0
        %4165 = vmatpush2.msra.mxu0 0.0
        %4166 = vmatprep.subr.mxu0 0.0
        %4167 = vmatpush2.msra.mxu0 0.0
        %4168 = vmatprep.subr.mxu0 0.0
        %4169 = vmatpush2.msra.mxu0 0.0
        %4170 = vmatprep.subr.mxu0 0.0
        %4171 = vmatpush2.msra.mxu0 0.0
        %4172 = vmatprep.subr.mxu0 0.0
        %4173 = vmatpush2.msra.mxu0 0.0
        %4174 = vmatprep.mubr.f32.mxu0 0.0
        %4175 = vmatmul.mubr.f32.gmra.mxu0 %v4038
        %v4176 = vpop.f32.mrf.mxu0
        %v4177 = vadd.f32 %v1532, %v4176
        %v4178 = vpop.f32.mrf.mxu0
        %4179 = vdwg.mxu0
        %4180 = vmatprep.subr.mxu0 0.0
        %4181 = vmatpush1.msra.mxu0 0.0
        %4182 = vmatprep.subr.mxu0 0.0
        %4183 = vmatpush1.msra.mxu0 0.0
        %4184 = vmatprep.subr.mxu0 0.0
        %4185 = vmatpush1.msra.mxu0 0.0
        %4186 = vmatprep.subr.mxu0 0.0
        %4187 = vmatpush1.msra.mxu0 0.0
        %4188 = vmatprep.subr.mxu0 0.0
        %4189 = vmatpush1.msra.mxu0 0.0
        %4190 = vmatprep.subr.mxu0 0.0
        %4191 = vmatpush1.msra.mxu0 0.0
        %4192 = vmatprep.subr.mxu0 0.0
        %4193 = vmatpush1.msra.mxu0 0.0
        %4194 = vmatprep.subr.mxu0 0.0
        %4195 = vmatpush1.msra.mxu0 0.0
        %4196 = vmatprep.subr.mxu0 0.0
        %4197 = vmatpush1.msra.mxu0 0.0
        %4198 = vmatprep.subr.mxu0 0.0
        %4199 = vmatpush1.msra.mxu0 0.0
        %4200 = vmatprep.subr.mxu0 0.0
        %4201 = vmatpush1.msra.mxu0 0.0
        %4202 = vmatprep.subr.mxu0 0.0
        %4203 = vmatpush1.msra.mxu0 0.0
        %4204 = vmatprep.subr.mxu0 0.0
        %4205 = vmatpush1.msra.mxu0 0.0
        %4206 = vmatprep.subr.mxu0 0.0
        %4207 = vmatpush1.msra.mxu0 0.0
        %4208 = vmatprep.subr.mxu0 0.0
        %4209 = vmatpush1.msra.mxu0 %v1076
        %4210 = vmatprep.subr.mxu0 0.0
        %4211 = vmatpush1.msra.mxu0 %v1075
        %4212 = vmatprep.subr.mxu0 0.0
        %4213 = vmatpush2.msra.mxu0 0.0
        %4214 = vmatprep.subr.mxu0 0.0
        %4215 = vmatpush2.msra.mxu0 0.0
        %4216 = vmatprep.subr.mxu0 0.0
        %4217 = vmatpush2.msra.mxu0 0.0
        %4218 = vmatprep.subr.mxu0 0.0
        %4219 = vmatpush2.msra.mxu0 0.0
        %4220 = vmatprep.subr.mxu0 0.0
        %4221 = vmatpush2.msra.mxu0 0.0
        %4222 = vmatprep.subr.mxu0 0.0
        %4223 = vmatpush2.msra.mxu0 0.0
        %4224 = vmatprep.subr.mxu0 0.0
        %4225 = vmatpush2.msra.mxu0 0.0
        %4226 = vmatprep.subr.mxu0 0.0
        %4227 = vmatpush2.msra.mxu0 0.0
        %4228 = vmatprep.subr.mxu0 0.0
        %4229 = vmatpush2.msra.mxu0 0.0
        %4230 = vmatprep.subr.mxu0 0.0
        %4231 = vmatpush2.msra.mxu0 0.0
        %4232 = vmatprep.subr.mxu0 0.0
        %4233 = vmatpush2.msra.mxu0 0.0
        %4234 = vmatprep.subr.mxu0 0.0
        %4235 = vmatpush2.msra.mxu0 0.0
        %4236 = vmatprep.subr.mxu0 0.0
        %4237 = vmatpush2.msra.mxu0 0.0
        %4238 = vmatprep.subr.mxu0 0.0
        %4239 = vmatpush2.msra.mxu0 0.0
        %4240 = vmatprep.subr.mxu0 0.0
        %4241 = vmatpush2.msra.mxu0 0.0
        %4242 = vmatprep.subr.mxu0 0.0
        %4243 = vmatpush2.msra.mxu0 0.0
        %4244 = vmatprep.mubr.f32.mxu0 0.0
        %4245 = vmatmul.mubr.f32.gmra.mxu0 %v4038
        %v4246 = vpop.f32.mrf.mxu0
        %v4247 = vadd.f32 %v1608, %v4246
        %v4248 = vpop.f32.mrf.mxu0
        %4249 = vdwg.mxu0
        %v4250 = vadd.f32 %v4024, %v4107
        %v4251 = vxor.u32 %v4250, 2147483648
        %v4252 = vmul.f32 %v4251, 1.442695
        %v4253 = vpow.pop %v4252
        %v4254 = vadd.f32 %v4253, 1.0
        %v4255 = vrcp.pop %v4254
        %v4256 = vmul.f32 1.0, %v4255
        %v4257 = vadd.f32 %v4030, %v4177
        %v4258 = vxor.u32 %v4257, 2147483648
        %v4259 = vmul.f32 %v4258, 1.442695
        %v4260 = vpow.pop %v4259
        %v4261 = vadd.f32 %v4260, 1.0
        %v4262 = vrcp.pop %v4261
        %v4263 = vmul.f32 1.0, %v4262
        %v4264 = vmul.f32 %v4256, %v4247
        %v4265 = vadd.f32 %v4036, %v4264
        %v4266 = vtanh.pop %v4265
        %v4267 = vsub.f32 1.0, %v4263
        %v4268 = vmul.f32 %v4267, %v4266
        %v4269 = vmul.f32 %v4263, %v3764
        %v4270 = vadd.f32 %v4268, %v4269
        %v4271 = vsel %vm2741, %v4018, %v3765
        %v4272 = vsel %vm2738, %v4270, %v3766
        %v4273 = vlaneseq
        %v4274 = vshrl.u32 %v4273, 7
        %v4275 = vsub.s32 6, %v4274
        %v4276 = vrot.slane %v655, %v4275
        %v4277 = vmul.f32 %v1969, %v4276
        %v4278 = vadd.f32 %v4277, %v1133
        %v4279 = vlaneseq
        %v4280 = vshrl.u32 %v4279, 7
        %v4281 = vsub.s32 6, %v4280
        %v4282 = vrot.slane %v736, %v4281
        %v4283 = vmul.f32 %v1969, %v4282
        %v4284 = vadd.f32 %v4283, %v1145
        %v4285 = vlaneseq
        %v4286 = vshrl.u32 %v4285, 7
        %v4287 = vsub.s32 6, %v4286
        %v4288 = vrot.slane %v817, %v4287
        %v4289 = vmul.f32 %v1969, %v4288
        %v4290 = vadd.f32 %v4289, %v1157
        %v4292 = vsel %vm584, %v4018, 0
        %4294 = vmatprep.subr.mxu0 0.0
        %4295 = vmatpush1.msra.mxu0 0.0
        %4296 = vmatprep.subr.mxu0 0.0
        %4297 = vmatpush1.msra.mxu0 0.0
        %4298 = vmatprep.subr.mxu0 0.0
        %4299 = vmatpush1.msra.mxu0 0.0
        %4300 = vmatprep.subr.mxu0 0.0
        %4301 = vmatpush1.msra.mxu0 0.0
        %4302 = vmatprep.subr.mxu0 0.0
        %4303 = vmatpush1.msra.mxu0 0.0
        %4304 = vmatprep.subr.mxu0 0.0
        %4305 = vmatpush1.msra.mxu0 0.0
        %4306 = vmatprep.subr.mxu0 0.0
        %4307 = vmatpush1.msra.mxu0 0.0
        %4308 = vmatprep.subr.mxu0 0.0
        %4309 = vmatpush1.msra.mxu0 0.0
        %4310 = vmatprep.subr.mxu0 0.0
        %4311 = vmatpush1.msra.mxu0 0.0
        %4312 = vmatprep.subr.mxu0 0.0
        %4313 = vmatpush1.msra.mxu0 0.0
        %4314 = vmatprep.subr.mxu0 0.0
        %4315 = vmatpush1.msra.mxu0 0.0
        %4316 = vmatprep.subr.mxu0 0.0
        %4317 = vmatpush1.msra.mxu0 0.0
        %4318 = vmatprep.subr.mxu0 0.0
        %4319 = vmatpush1.msra.mxu0 0.0
        %4320 = vmatprep.subr.mxu0 0.0
        %4321 = vmatpush1.msra.mxu0 0.0
        %4322 = vmatprep.subr.mxu0 0.0
        %4323 = vmatpush1.msra.mxu0 %v1062
        %4324 = vmatprep.subr.mxu0 0.0
        %4325 = vmatpush1.msra.mxu0 %v1061
        %4326 = vmatprep.subr.mxu0 0.0
        %4327 = vmatpush2.msra.mxu0 0.0
        %4328 = vmatprep.subr.mxu0 0.0
        %4329 = vmatpush2.msra.mxu0 0.0
        %4330 = vmatprep.subr.mxu0 0.0
        %4331 = vmatpush2.msra.mxu0 0.0
        %4332 = vmatprep.subr.mxu0 0.0
        %4333 = vmatpush2.msra.mxu0 0.0
        %4334 = vmatprep.subr.mxu0 0.0
        %4335 = vmatpush2.msra.mxu0 0.0
        %4336 = vmatprep.subr.mxu0 0.0
        %4337 = vmatpush2.msra.mxu0 0.0
        %4338 = vmatprep.subr.mxu0 0.0
        %4339 = vmatpush2.msra.mxu0 0.0
        %4340 = vmatprep.subr.mxu0 0.0
        %4341 = vmatpush2.msra.mxu0 0.0
        %4342 = vmatprep.subr.mxu0 0.0
        %4343 = vmatpush2.msra.mxu0 0.0
        %4344 = vmatprep.subr.mxu0 0.0
        %4345 = vmatpush2.msra.mxu0 0.0
        %4346 = vmatprep.subr.mxu0 0.0
        %4347 = vmatpush2.msra.mxu0 0.0
        %4348 = vmatprep.subr.mxu0 0.0
        %4349 = vmatpush2.msra.mxu0 0.0
        %4350 = vmatprep.subr.mxu0 0.0
        %4351 = vmatpush2.msra.mxu0 0.0
        %4352 = vmatprep.subr.mxu0 0.0
        %4353 = vmatpush2.msra.mxu0 0.0
        %4354 = vmatprep.subr.mxu0 0.0
        %4355 = vmatpush2.msra.mxu0 0.0
        %4356 = vmatprep.subr.mxu0 0.0
        %4357 = vmatpush2.msra.mxu0 0.0
        %4358 = vmatprep.mubr.f32.mxu0 0.0
        %4359 = vmatmul.mubr.f32.gmra.mxu0 %v4292
        %v4360 = vpop.f32.mrf.mxu0
        %v4361 = vadd.f32 %v1164, %v4360
        %v4362 = vpop.f32.mrf.mxu0
        %4363 = vdwg.mxu0
        %4364 = vmatprep.subr.mxu0 0.0
        %4365 = vmatpush1.msra.mxu0 0.0
        %4366 = vmatprep.subr.mxu0 0.0
        %4367 = vmatpush1.msra.mxu0 0.0
        %4368 = vmatprep.subr.mxu0 0.0
        %4369 = vmatpush1.msra.mxu0 0.0
        %4370 = vmatprep.subr.mxu0 0.0
        %4371 = vmatpush1.msra.mxu0 0.0
        %4372 = vmatprep.subr.mxu0 0.0
        %4373 = vmatpush1.msra.mxu0 0.0
        %4374 = vmatprep.subr.mxu0 0.0
        %4375 = vmatpush1.msra.mxu0 0.0
        %4376 = vmatprep.subr.mxu0 0.0
        %4377 = vmatpush1.msra.mxu0 0.0
        %4378 = vmatprep.subr.mxu0 0.0
        %4379 = vmatpush1.msra.mxu0 0.0
        %4380 = vmatprep.subr.mxu0 0.0
        %4381 = vmatpush1.msra.mxu0 0.0
        %4382 = vmatprep.subr.mxu0 0.0
        %4383 = vmatpush1.msra.mxu0 0.0
        %4384 = vmatprep.subr.mxu0 0.0
        %4385 = vmatpush1.msra.mxu0 0.0
        %4386 = vmatprep.subr.mxu0 0.0
        %4387 = vmatpush1.msra.mxu0 0.0
        %4388 = vmatprep.subr.mxu0 0.0
        %4389 = vmatpush1.msra.mxu0 0.0
        %4390 = vmatprep.subr.mxu0 0.0
        %4391 = vmatpush1.msra.mxu0 0.0
        %4392 = vmatprep.subr.mxu0 0.0
        %4393 = vmatpush1.msra.mxu0 %v1065
        %4394 = vmatprep.subr.mxu0 0.0
        %4395 = vmatpush1.msra.mxu0 %v1064
        %4396 = vmatprep.subr.mxu0 0.0
        %4397 = vmatpush2.msra.mxu0 0.0
        %4398 = vmatprep.subr.mxu0 0.0
        %4399 = vmatpush2.msra.mxu0 0.0
        %4400 = vmatprep.subr.mxu0 0.0
        %4401 = vmatpush2.msra.mxu0 0.0
        %4402 = vmatprep.subr.mxu0 0.0
        %4403 = vmatpush2.msra.mxu0 0.0
        %4404 = vmatprep.subr.mxu0 0.0
        %4405 = vmatpush2.msra.mxu0 0.0
        %4406 = vmatprep.subr.mxu0 0.0
        %4407 = vmatpush2.msra.mxu0 0.0
        %4408 = vmatprep.subr.mxu0 0.0
        %4409 = vmatpush2.msra.mxu0 0.0
        %4410 = vmatprep.subr.mxu0 0.0
        %4411 = vmatpush2.msra.mxu0 0.0
        %4412 = vmatprep.subr.mxu0 0.0
        %4413 = vmatpush2.msra.mxu0 0.0
        %4414 = vmatprep.subr.mxu0 0.0
        %4415 = vmatpush2.msra.mxu0 0.0
        %4416 = vmatprep.subr.mxu0 0.0
        %4417 = vmatpush2.msra.mxu0 0.0
        %4418 = vmatprep.subr.mxu0 0.0
        %4419 = vmatpush2.msra.mxu0 0.0
        %4420 = vmatprep.subr.mxu0 0.0
        %4421 = vmatpush2.msra.mxu0 0.0
        %4422 = vmatprep.subr.mxu0 0.0
        %4423 = vmatpush2.msra.mxu0 0.0
        %4424 = vmatprep.subr.mxu0 0.0
        %4425 = vmatpush2.msra.mxu0 0.0
        %4426 = vmatprep.subr.mxu0 0.0
        %4427 = vmatpush2.msra.mxu0 0.0
        %4428 = vmatprep.mubr.f32.mxu0 0.0
        %4429 = vmatmul.mubr.f32.gmra.mxu0 %v4292
        %v4430 = vpop.f32.mrf.mxu0
        %v4431 = vadd.f32 %v1243, %v4430
        %v4432 = vpop.f32.mrf.mxu0
        %4433 = vdwg.mxu0
        %4434 = vmatprep.subr.mxu0 0.0
        %4435 = vmatpush1.msra.mxu0 0.0
        %4436 = vmatprep.subr.mxu0 0.0
        %4437 = vmatpush1.msra.mxu0 0.0
        %4438 = vmatprep.subr.mxu0 0.0
        %4439 = vmatpush1.msra.mxu0 0.0
        %4440 = vmatprep.subr.mxu0 0.0
        %4441 = vmatpush1.msra.mxu0 0.0
        %4442 = vmatprep.subr.mxu0 0.0
        %4443 = vmatpush1.msra.mxu0 0.0
        %4444 = vmatprep.subr.mxu0 0.0
        %4445 = vmatpush1.msra.mxu0 0.0
        %4446 = vmatprep.subr.mxu0 0.0
        %4447 = vmatpush1.msra.mxu0 0.0
        %4448 = vmatprep.subr.mxu0 0.0
        %4449 = vmatpush1.msra.mxu0 0.0
        %4450 = vmatprep.subr.mxu0 0.0
        %4451 = vmatpush1.msra.mxu0 0.0
        %4452 = vmatprep.subr.mxu0 0.0
        %4453 = vmatpush1.msra.mxu0 0.0
        %4454 = vmatprep.subr.mxu0 0.0
        %4455 = vmatpush1.msra.mxu0 0.0
        %4456 = vmatprep.subr.mxu0 0.0
        %4457 = vmatpush1.msra.mxu0 0.0
        %4458 = vmatprep.subr.mxu0 0.0
        %4459 = vmatpush1.msra.mxu0 0.0
        %4460 = vmatprep.subr.mxu0 0.0
        %4461 = vmatpush1.msra.mxu0 0.0
        %4462 = vmatprep.subr.mxu0 0.0
        %4463 = vmatpush1.msra.mxu0 %v1068
        %4464 = vmatprep.subr.mxu0 0.0
        %4465 = vmatpush1.msra.mxu0 %v1067
        %4466 = vmatprep.subr.mxu0 0.0
        %4467 = vmatpush2.msra.mxu0 0.0
        %4468 = vmatprep.subr.mxu0 0.0
        %4469 = vmatpush2.msra.mxu0 0.0
        %4470 = vmatprep.subr.mxu0 0.0
        %4471 = vmatpush2.msra.mxu0 0.0
        %4472 = vmatprep.subr.mxu0 0.0
        %4473 = vmatpush2.msra.mxu0 0.0
        %4474 = vmatprep.subr.mxu0 0.0
        %4475 = vmatpush2.msra.mxu0 0.0
        %4476 = vmatprep.subr.mxu0 0.0
        %4477 = vmatpush2.msra.mxu0 0.0
        %4478 = vmatprep.subr.mxu0 0.0
        %4479 = vmatpush2.msra.mxu0 0.0
        %4480 = vmatprep.subr.mxu0 0.0
        %4481 = vmatpush2.msra.mxu0 0.0
        %4482 = vmatprep.subr.mxu0 0.0
        %4483 = vmatpush2.msra.mxu0 0.0
        %4484 = vmatprep.subr.mxu0 0.0
        %4485 = vmatpush2.msra.mxu0 0.0
        %4486 = vmatprep.subr.mxu0 0.0
        %4487 = vmatpush2.msra.mxu0 0.0
        %4488 = vmatprep.subr.mxu0 0.0
        %4489 = vmatpush2.msra.mxu0 0.0
        %4490 = vmatprep.subr.mxu0 0.0
        %4491 = vmatpush2.msra.mxu0 0.0
        %4492 = vmatprep.subr.mxu0 0.0
        %4493 = vmatpush2.msra.mxu0 0.0
        %4494 = vmatprep.subr.mxu0 0.0
        %4495 = vmatpush2.msra.mxu0 0.0
        %4496 = vmatprep.subr.mxu0 0.0
        %4497 = vmatpush2.msra.mxu0 0.0
        %4498 = vmatprep.mubr.f32.mxu0 0.0
        %4499 = vmatmul.mubr.f32.gmra.mxu0 %v4292
        %v4500 = vpop.f32.mrf.mxu0
        %v4501 = vadd.f32 %v1319, %v4500
        %v4502 = vpop.f32.mrf.mxu0
        %4503 = vdwg.mxu0
        %v4504 = vadd.f32 %v4278, %v4361
        %v4505 = vxor.u32 %v4504, 2147483648
        %v4506 = vmul.f32 %v4505, 1.442695
        %v4507 = vpow.pop %v4506
        %v4508 = vadd.f32 %v4507, 1.0
        %v4509 = vrcp.pop %v4508
        %v4510 = vmul.f32 1.0, %v4509
        %v4511 = vadd.f32 %v4284, %v4431
        %v4512 = vxor.u32 %v4511, 2147483648
        %v4513 = vmul.f32 %v4512, 1.442695
        %v4514 = vpow.pop %v4513
        %v4515 = vadd.f32 %v4514, 1.0
        %v4516 = vrcp.pop %v4515
        %v4517 = vmul.f32 1.0, %v4516
        %v4518 = vmul.f32 %v4510, %v4501
        %v4519 = vadd.f32 %v4290, %v4518
        %v4520 = vtanh.pop %v4519
        %v4521 = vsub.f32 1.0, %v4517
        %v4522 = vmul.f32 %v4521, %v4520
        %v4523 = vmul.f32 %v4517, %v4018
        %v4524 = vadd.f32 %v4522, %v4523
        %v4525 = vlaneseq
        %v4526 = vshrl.u32 %v4525, 7
        %v4527 = vsub.s32 1, %v4526
        %v4528 = vrot.slane %v896, %v4527
        %v4529 = vmul.f32 %v1713, %v4528
        %v4530 = vadd.f32 %v4529, %v1425
        %v4531 = vlaneseq
        %v4532 = vshrl.u32 %v4531, 7
        %v4533 = vsub.s32 1, %v4532
        %v4534 = vrot.slane %v977, %v4533
        %v4535 = vmul.f32 %v1713, %v4534
        %v4536 = vadd.f32 %v4535, %v1437
        %v4537 = vlaneseq
        %v4538 = vshrl.u32 %v4537, 7
        %v4539 = vsub.s32 1, %v4538
        %v4540 = vrot.slane %v1058, %v4539
        %v4541 = vmul.f32 %v1713, %v4540
        %v4542 = vadd.f32 %v4541, %v1449
        %v4544 = vsel %vm584, %v4270, 0
        %4546 = vmatprep.subr.mxu0 0.0
        %4547 = vmatpush1.msra.mxu0 0.0
        %4548 = vmatprep.subr.mxu0 0.0
        %4549 = vmatpush1.msra.mxu0 0.0
        %4550 = vmatprep.subr.mxu0 0.0
        %4551 = vmatpush1.msra.mxu0 0.0
        %4552 = vmatprep.subr.mxu0 0.0
        %4553 = vmatpush1.msra.mxu0 0.0
        %4554 = vmatprep.subr.mxu0 0.0
        %4555 = vmatpush1.msra.mxu0 0.0
        %4556 = vmatprep.subr.mxu0 0.0
        %4557 = vmatpush1.msra.mxu0 0.0
        %4558 = vmatprep.subr.mxu0 0.0
        %4559 = vmatpush1.msra.mxu0 0.0
        %4560 = vmatprep.subr.mxu0 0.0
        %4561 = vmatpush1.msra.mxu0 0.0
        %4562 = vmatprep.subr.mxu0 0.0
        %4563 = vmatpush1.msra.mxu0 0.0
        %4564 = vmatprep.subr.mxu0 0.0
        %4565 = vmatpush1.msra.mxu0 0.0
        %4566 = vmatprep.subr.mxu0 0.0
        %4567 = vmatpush1.msra.mxu0 0.0
        %4568 = vmatprep.subr.mxu0 0.0
        %4569 = vmatpush1.msra.mxu0 0.0
        %4570 = vmatprep.subr.mxu0 0.0
        %4571 = vmatpush1.msra.mxu0 0.0
        %4572 = vmatprep.subr.mxu0 0.0
        %4573 = vmatpush1.msra.mxu0 0.0
        %4574 = vmatprep.subr.mxu0 0.0
        %4575 = vmatpush1.msra.mxu0 %v1070
        %4576 = vmatprep.subr.mxu0 0.0
        %4577 = vmatpush1.msra.mxu0 %v1069
        %4578 = vmatprep.subr.mxu0 0.0
        %4579 = vmatpush2.msra.mxu0 0.0
        %4580 = vmatprep.subr.mxu0 0.0
        %4581 = vmatpush2.msra.mxu0 0.0
        %4582 = vmatprep.subr.mxu0 0.0
        %4583 = vmatpush2.msra.mxu0 0.0
        %4584 = vmatprep.subr.mxu0 0.0
        %4585 = vmatpush2.msra.mxu0 0.0
        %4586 = vmatprep.subr.mxu0 0.0
        %4587 = vmatpush2.msra.mxu0 0.0
        %4588 = vmatprep.subr.mxu0 0.0
        %4589 = vmatpush2.msra.mxu0 0.0
        %4590 = vmatprep.subr.mxu0 0.0
        %4591 = vmatpush2.msra.mxu0 0.0
        %4592 = vmatprep.subr.mxu0 0.0
        %4593 = vmatpush2.msra.mxu0 0.0
        %4594 = vmatprep.subr.mxu0 0.0
        %4595 = vmatpush2.msra.mxu0 0.0
        %4596 = vmatprep.subr.mxu0 0.0
        %4597 = vmatpush2.msra.mxu0 0.0
        %4598 = vmatprep.subr.mxu0 0.0
        %4599 = vmatpush2.msra.mxu0 0.0
        %4600 = vmatprep.subr.mxu0 0.0
        %4601 = vmatpush2.msra.mxu0 0.0
        %4602 = vmatprep.subr.mxu0 0.0
        %4603 = vmatpush2.msra.mxu0 0.0
        %4604 = vmatprep.subr.mxu0 0.0
        %4605 = vmatpush2.msra.mxu0 0.0
        %4606 = vmatprep.subr.mxu0 0.0
        %4607 = vmatpush2.msra.mxu0 0.0
        %4608 = vmatprep.subr.mxu0 0.0
        %4609 = vmatpush2.msra.mxu0 0.0
        %4610 = vmatprep.mubr.f32.mxu0 0.0
        %4611 = vmatmul.mubr.f32.gmra.mxu0 %v4544
        %v4612 = vpop.f32.mrf.mxu0
        %v4613 = vadd.f32 %v1456, %v4612
        %v4614 = vpop.f32.mrf.mxu0
        %4615 = vdwg.mxu0
        %4616 = vmatprep.subr.mxu0 0.0
        %4617 = vmatpush1.msra.mxu0 0.0
        %4618 = vmatprep.subr.mxu0 0.0
        %4619 = vmatpush1.msra.mxu0 0.0
        %4620 = vmatprep.subr.mxu0 0.0
        %4621 = vmatpush1.msra.mxu0 0.0
        %4622 = vmatprep.subr.mxu0 0.0
        %4623 = vmatpush1.msra.mxu0 0.0
        %4624 = vmatprep.subr.mxu0 0.0
        %4625 = vmatpush1.msra.mxu0 0.0
        %4626 = vmatprep.subr.mxu0 0.0
        %4627 = vmatpush1.msra.mxu0 0.0
        %4628 = vmatprep.subr.mxu0 0.0
        %4629 = vmatpush1.msra.mxu0 0.0
        %4630 = vmatprep.subr.mxu0 0.0
        %4631 = vmatpush1.msra.mxu0 0.0
        %4632 = vmatprep.subr.mxu0 0.0
        %4633 = vmatpush1.msra.mxu0 0.0
        %4634 = vmatprep.subr.mxu0 0.0
        %4635 = vmatpush1.msra.mxu0 0.0
        %4636 = vmatprep.subr.mxu0 0.0
        %4637 = vmatpush1.msra.mxu0 0.0
        %4638 = vmatprep.subr.mxu0 0.0
        %4639 = vmatpush1.msra.mxu0 0.0
        %4640 = vmatprep.subr.mxu0 0.0
        %4641 = vmatpush1.msra.mxu0 0.0
        %4642 = vmatprep.subr.mxu0 0.0
        %4643 = vmatpush1.msra.mxu0 0.0
        %4644 = vmatprep.subr.mxu0 0.0
        %4645 = vmatpush1.msra.mxu0 %v1073
        %4646 = vmatprep.subr.mxu0 0.0
        %4647 = vmatpush1.msra.mxu0 %v1072
        %4648 = vmatprep.subr.mxu0 0.0
        %4649 = vmatpush2.msra.mxu0 0.0
        %4650 = vmatprep.subr.mxu0 0.0
        %4651 = vmatpush2.msra.mxu0 0.0
        %4652 = vmatprep.subr.mxu0 0.0
        %4653 = vmatpush2.msra.mxu0 0.0
        %4654 = vmatprep.subr.mxu0 0.0
        %4655 = vmatpush2.msra.mxu0 0.0
        %4656 = vmatprep.subr.mxu0 0.0
        %4657 = vmatpush2.msra.mxu0 0.0
        %4658 = vmatprep.subr.mxu0 0.0
        %4659 = vmatpush2.msra.mxu0 0.0
        %4660 = vmatprep.subr.mxu0 0.0
        %4661 = vmatpush2.msra.mxu0 0.0
        %4662 = vmatprep.subr.mxu0 0.0
        %4663 = vmatpush2.msra.mxu0 0.0
        %4664 = vmatprep.subr.mxu0 0.0
        %4665 = vmatpush2.msra.mxu0 0.0
        %4666 = vmatprep.subr.mxu0 0.0
        %4667 = vmatpush2.msra.mxu0 0.0
        %4668 = vmatprep.subr.mxu0 0.0
        %4669 = vmatpush2.msra.mxu0 0.0
        %4670 = vmatprep.subr.mxu0 0.0
        %4671 = vmatpush2.msra.mxu0 0.0
        %4672 = vmatprep.subr.mxu0 0.0
        %4673 = vmatpush2.msra.mxu0 0.0
        %4674 = vmatprep.subr.mxu0 0.0
        %4675 = vmatpush2.msra.mxu0 0.0
        %4676 = vmatprep.subr.mxu0 0.0
        %4677 = vmatpush2.msra.mxu0 0.0
        %4678 = vmatprep.subr.mxu0 0.0
        %4679 = vmatpush2.msra.mxu0 0.0
        %4680 = vmatprep.mubr.f32.mxu0 0.0
        %4681 = vmatmul.mubr.f32.gmra.mxu0 %v4544
        %v4682 = vpop.f32.mrf.mxu0
        %v4683 = vadd.f32 %v1532, %v4682
        %v4684 = vpop.f32.mrf.mxu0
        %4685 = vdwg.mxu0
        %4686 = vmatprep.subr.mxu0 0.0
        %4687 = vmatpush1.msra.mxu0 0.0
        %4688 = vmatprep.subr.mxu0 0.0
        %4689 = vmatpush1.msra.mxu0 0.0
        %4690 = vmatprep.subr.mxu0 0.0
        %4691 = vmatpush1.msra.mxu0 0.0
        %4692 = vmatprep.subr.mxu0 0.0
        %4693 = vmatpush1.msra.mxu0 0.0
        %4694 = vmatprep.subr.mxu0 0.0
        %4695 = vmatpush1.msra.mxu0 0.0
        %4696 = vmatprep.subr.mxu0 0.0
        %4697 = vmatpush1.msra.mxu0 0.0
        %4698 = vmatprep.subr.mxu0 0.0
        %4699 = vmatpush1.msra.mxu0 0.0
        %4700 = vmatprep.subr.mxu0 0.0
        %4701 = vmatpush1.msra.mxu0 0.0
        %4702 = vmatprep.subr.mxu0 0.0
        %4703 = vmatpush1.msra.mxu0 0.0
        %4704 = vmatprep.subr.mxu0 0.0
        %4705 = vmatpush1.msra.mxu0 0.0
        %4706 = vmatprep.subr.mxu0 0.0
        %4707 = vmatpush1.msra.mxu0 0.0
        %4708 = vmatprep.subr.mxu0 0.0
        %4709 = vmatpush1.msra.mxu0 0.0
        %4710 = vmatprep.subr.mxu0 0.0
        %4711 = vmatpush1.msra.mxu0 0.0
        %4712 = vmatprep.subr.mxu0 0.0
        %4713 = vmatpush1.msra.mxu0 0.0
        %4714 = vmatprep.subr.mxu0 0.0
        %4715 = vmatpush1.msra.mxu0 %v1076
        %4716 = vmatprep.subr.mxu0 0.0
        %4717 = vmatpush1.msra.mxu0 %v1075
        %4718 = vmatprep.subr.mxu0 0.0
        %4719 = vmatpush2.msra.mxu0 0.0
        %4720 = vmatprep.subr.mxu0 0.0
        %4721 = vmatpush2.msra.mxu0 0.0
        %4722 = vmatprep.subr.mxu0 0.0
        %4723 = vmatpush2.msra.mxu0 0.0
        %4724 = vmatprep.subr.mxu0 0.0
        %4725 = vmatpush2.msra.mxu0 0.0
        %4726 = vmatprep.subr.mxu0 0.0
        %4727 = vmatpush2.msra.mxu0 0.0
        %4728 = vmatprep.subr.mxu0 0.0
        %4729 = vmatpush2.msra.mxu0 0.0
        %4730 = vmatprep.subr.mxu0 0.0
        %4731 = vmatpush2.msra.mxu0 0.0
        %4732 = vmatprep.subr.mxu0 0.0
        %4733 = vmatpush2.msra.mxu0 0.0
        %4734 = vmatprep.subr.mxu0 0.0
        %4735 = vmatpush2.msra.mxu0 0.0
        %4736 = vmatprep.subr.mxu0 0.0
        %4737 = vmatpush2.msra.mxu0 0.0
        %4738 = vmatprep.subr.mxu0 0.0
        %4739 = vmatpush2.msra.mxu0 0.0
        %4740 = vmatprep.subr.mxu0 0.0
        %4741 = vmatpush2.msra.mxu0 0.0
        %4742 = vmatprep.subr.mxu0 0.0
        %4743 = vmatpush2.msra.mxu0 0.0
        %4744 = vmatprep.subr.mxu0 0.0
        %4745 = vmatpush2.msra.mxu0 0.0
        %4746 = vmatprep.subr.mxu0 0.0
        %4747 = vmatpush2.msra.mxu0 0.0
        %4748 = vmatprep.subr.mxu0 0.0
        %4749 = vmatpush2.msra.mxu0 0.0
        %4750 = vmatprep.mubr.f32.mxu0 0.0
        %4751 = vmatmul.mubr.f32.gmra.mxu0 %v4544
        %v4752 = vpop.f32.mrf.mxu0
        %v4753 = vadd.f32 %v1608, %v4752
        %v4754 = vpop.f32.mrf.mxu0
        %4755 = vdwg.mxu0
        %v4756 = vadd.f32 %v4530, %v4613
        %v4757 = vxor.u32 %v4756, 2147483648
        %v4758 = vmul.f32 %v4757, 1.442695
        %v4759 = vpow.pop %v4758
        %v4760 = vadd.f32 %v4759, 1.0
        %v4761 = vrcp.pop %v4760
        %v4762 = vmul.f32 1.0, %v4761
        %v4763 = vadd.f32 %v4536, %v4683
        %v4764 = vxor.u32 %v4763, 2147483648
        %v4765 = vmul.f32 %v4764, 1.442695
        %v4766 = vpow.pop %v4765
        %v4767 = vadd.f32 %v4766, 1.0
        %v4768 = vrcp.pop %v4767
        %v4769 = vmul.f32 1.0, %v4768
        %v4770 = vmul.f32 %v4762, %v4753
        %v4771 = vadd.f32 %v4542, %v4770
        %v4772 = vtanh.pop %v4771
        %v4773 = vsub.f32 1.0, %v4769
        %v4774 = vmul.f32 %v4773, %v4772
        %v4775 = vmul.f32 %v4769, %v4270
        %v4776 = vadd.f32 %v4774, %v4775
        %v4777 = vsel %vm2223, %v4524, %v4271
        %v4778 = vsel %vm2220, %v4776, %v4272
        %v4779 = vlaneseq
        %v4780 = vshrl.u32 %v4779, 7
        %v4781 = vsub.s32 7, %v4780
        %v4782 = vrot.slane %v655, %v4781
        %v4783 = vmul.f32 %v1418, %v4782
        %v4784 = vadd.f32 %v4783, %v1133
        %v4785 = vlaneseq
        %v4786 = vshrl.u32 %v4785, 7
        %v4787 = vsub.s32 7, %v4786
        %v4788 = vrot.slane %v736, %v4787
        %v4789 = vmul.f32 %v1418, %v4788
        %v4790 = vadd.f32 %v4789, %v1145
        %v4791 = vlaneseq
        %v4792 = vshrl.u32 %v4791, 7
        %v4793 = vsub.s32 7, %v4792
        %v4794 = vrot.slane %v817, %v4793
        %v4795 = vmul.f32 %v1418, %v4794
        %v4796 = vadd.f32 %v4795, %v1157
        %v4798 = vsel %vm584, %v4524, 0
        %4800 = vmatprep.subr.mxu0 0.0
        %4801 = vmatpush1.msra.mxu0 0.0
        %4802 = vmatprep.subr.mxu0 0.0
        %4803 = vmatpush1.msra.mxu0 0.0
        %4804 = vmatprep.subr.mxu0 0.0
        %4805 = vmatpush1.msra.mxu0 0.0
        %4806 = vmatprep.subr.mxu0 0.0
        %4807 = vmatpush1.msra.mxu0 0.0
        %4808 = vmatprep.subr.mxu0 0.0
        %4809 = vmatpush1.msra.mxu0 0.0
        %4810 = vmatprep.subr.mxu0 0.0
        %4811 = vmatpush1.msra.mxu0 0.0
        %4812 = vmatprep.subr.mxu0 0.0
        %4813 = vmatpush1.msra.mxu0 0.0
        %4814 = vmatprep.subr.mxu0 0.0
        %4815 = vmatpush1.msra.mxu0 0.0
        %4816 = vmatprep.subr.mxu0 0.0
        %4817 = vmatpush1.msra.mxu0 0.0
        %4818 = vmatprep.subr.mxu0 0.0
        %4819 = vmatpush1.msra.mxu0 0.0
        %4820 = vmatprep.subr.mxu0 0.0
        %4821 = vmatpush1.msra.mxu0 0.0
        %4822 = vmatprep.subr.mxu0 0.0
        %4823 = vmatpush1.msra.mxu0 0.0
        %4824 = vmatprep.subr.mxu0 0.0
        %4825 = vmatpush1.msra.mxu0 0.0
        %4826 = vmatprep.subr.mxu0 0.0
        %4827 = vmatpush1.msra.mxu0 0.0
        %4828 = vmatprep.subr.mxu0 0.0
        %4829 = vmatpush1.msra.mxu0 %v1062
        %4830 = vmatprep.subr.mxu0 0.0
        %4831 = vmatpush1.msra.mxu0 %v1061
        %4832 = vmatprep.subr.mxu0 0.0
        %4833 = vmatpush2.msra.mxu0 0.0
        %4834 = vmatprep.subr.mxu0 0.0
        %4835 = vmatpush2.msra.mxu0 0.0
        %4836 = vmatprep.subr.mxu0 0.0
        %4837 = vmatpush2.msra.mxu0 0.0
        %4838 = vmatprep.subr.mxu0 0.0
        %4839 = vmatpush2.msra.mxu0 0.0
        %4840 = vmatprep.subr.mxu0 0.0
        %4841 = vmatpush2.msra.mxu0 0.0
        %4842 = vmatprep.subr.mxu0 0.0
        %4843 = vmatpush2.msra.mxu0 0.0
        %4844 = vmatprep.subr.mxu0 0.0
        %4845 = vmatpush2.msra.mxu0 0.0
        %4846 = vmatprep.subr.mxu0 0.0
        %4847 = vmatpush2.msra.mxu0 0.0
        %4848 = vmatprep.subr.mxu0 0.0
        %4849 = vmatpush2.msra.mxu0 0.0
        %4850 = vmatprep.subr.mxu0 0.0
        %4851 = vmatpush2.msra.mxu0 0.0
        %4852 = vmatprep.subr.mxu0 0.0
        %4853 = vmatpush2.msra.mxu0 0.0
        %4854 = vmatprep.subr.mxu0 0.0
        %4855 = vmatpush2.msra.mxu0 0.0
        %4856 = vmatprep.subr.mxu0 0.0
        %4857 = vmatpush2.msra.mxu0 0.0
        %4858 = vmatprep.subr.mxu0 0.0
        %4859 = vmatpush2.msra.mxu0 0.0
        %4860 = vmatprep.subr.mxu0 0.0
        %4861 = vmatpush2.msra.mxu0 0.0
        %4862 = vmatprep.subr.mxu0 0.0
        %4863 = vmatpush2.msra.mxu0 0.0
        %4864 = vmatprep.mubr.f32.mxu0 0.0
        %4865 = vmatmul.mubr.f32.gmra.mxu0 %v4798
        %v4866 = vpop.f32.mrf.mxu0
        %v4867 = vadd.f32 %v1164, %v4866
        %v4868 = vpop.f32.mrf.mxu0
        %4869 = vdwg.mxu0
        %4870 = vmatprep.subr.mxu0 0.0
        %4871 = vmatpush1.msra.mxu0 0.0
        %4872 = vmatprep.subr.mxu0 0.0
        %4873 = vmatpush1.msra.mxu0 0.0
        %4874 = vmatprep.subr.mxu0 0.0
        %4875 = vmatpush1.msra.mxu0 0.0
        %4876 = vmatprep.subr.mxu0 0.0
        %4877 = vmatpush1.msra.mxu0 0.0
        %4878 = vmatprep.subr.mxu0 0.0
        %4879 = vmatpush1.msra.mxu0 0.0
        %4880 = vmatprep.subr.mxu0 0.0
        %4881 = vmatpush1.msra.mxu0 0.0
        %4882 = vmatprep.subr.mxu0 0.0
        %4883 = vmatpush1.msra.mxu0 0.0
        %4884 = vmatprep.subr.mxu0 0.0
        %4885 = vmatpush1.msra.mxu0 0.0
        %4886 = vmatprep.subr.mxu0 0.0
        %4887 = vmatpush1.msra.mxu0 0.0
        %4888 = vmatprep.subr.mxu0 0.0
        %4889 = vmatpush1.msra.mxu0 0.0
        %4890 = vmatprep.subr.mxu0 0.0
        %4891 = vmatpush1.msra.mxu0 0.0
        %4892 = vmatprep.subr.mxu0 0.0
        %4893 = vmatpush1.msra.mxu0 0.0
        %4894 = vmatprep.subr.mxu0 0.0
        %4895 = vmatpush1.msra.mxu0 0.0
        %4896 = vmatprep.subr.mxu0 0.0
        %4897 = vmatpush1.msra.mxu0 0.0
        %4898 = vmatprep.subr.mxu0 0.0
        %4899 = vmatpush1.msra.mxu0 %v1065
        %4900 = vmatprep.subr.mxu0 0.0
        %4901 = vmatpush1.msra.mxu0 %v1064
        %4902 = vmatprep.subr.mxu0 0.0
        %4903 = vmatpush2.msra.mxu0 0.0
        %4904 = vmatprep.subr.mxu0 0.0
        %4905 = vmatpush2.msra.mxu0 0.0
        %4906 = vmatprep.subr.mxu0 0.0
        %4907 = vmatpush2.msra.mxu0 0.0
        %4908 = vmatprep.subr.mxu0 0.0
        %4909 = vmatpush2.msra.mxu0 0.0
        %4910 = vmatprep.subr.mxu0 0.0
        %4911 = vmatpush2.msra.mxu0 0.0
        %4912 = vmatprep.subr.mxu0 0.0
        %4913 = vmatpush2.msra.mxu0 0.0
        %4914 = vmatprep.subr.mxu0 0.0
        %4915 = vmatpush2.msra.mxu0 0.0
        %4916 = vmatprep.subr.mxu0 0.0
        %4917 = vmatpush2.msra.mxu0 0.0
        %4918 = vmatprep.subr.mxu0 0.0
        %4919 = vmatpush2.msra.mxu0 0.0
        %4920 = vmatprep.subr.mxu0 0.0
        %4921 = vmatpush2.msra.mxu0 0.0
        %4922 = vmatprep.subr.mxu0 0.0
        %4923 = vmatpush2.msra.mxu0 0.0
        %4924 = vmatprep.subr.mxu0 0.0
        %4925 = vmatpush2.msra.mxu0 0.0
        %4926 = vmatprep.subr.mxu0 0.0
        %4927 = vmatpush2.msra.mxu0 0.0
        %4928 = vmatprep.subr.mxu0 0.0
        %4929 = vmatpush2.msra.mxu0 0.0
        %4930 = vmatprep.subr.mxu0 0.0
        %4931 = vmatpush2.msra.mxu0 0.0
        %4932 = vmatprep.subr.mxu0 0.0
        %4933 = vmatpush2.msra.mxu0 0.0
        %4934 = vmatprep.mubr.f32.mxu0 0.0
        %4935 = vmatmul.mubr.f32.gmra.mxu0 %v4798
        %v4936 = vpop.f32.mrf.mxu0
        %v4937 = vadd.f32 %v1243, %v4936
        %v4938 = vpop.f32.mrf.mxu0
        %4939 = vdwg.mxu0
        %4940 = vmatprep.subr.mxu0 0.0
        %4941 = vmatpush1.msra.mxu0 0.0
        %4942 = vmatprep.subr.mxu0 0.0
        %4943 = vmatpush1.msra.mxu0 0.0
        %4944 = vmatprep.subr.mxu0 0.0
        %4945 = vmatpush1.msra.mxu0 0.0
        %4946 = vmatprep.subr.mxu0 0.0
        %4947 = vmatpush1.msra.mxu0 0.0
        %4948 = vmatprep.subr.mxu0 0.0
        %4949 = vmatpush1.msra.mxu0 0.0
        %4950 = vmatprep.subr.mxu0 0.0
        %4951 = vmatpush1.msra.mxu0 0.0
        %4952 = vmatprep.subr.mxu0 0.0
        %4953 = vmatpush1.msra.mxu0 0.0
        %4954 = vmatprep.subr.mxu0 0.0
        %4955 = vmatpush1.msra.mxu0 0.0
        %4956 = vmatprep.subr.mxu0 0.0
        %4957 = vmatpush1.msra.mxu0 0.0
        %4958 = vmatprep.subr.mxu0 0.0
        %4959 = vmatpush1.msra.mxu0 0.0
        %4960 = vmatprep.subr.mxu0 0.0
        %4961 = vmatpush1.msra.mxu0 0.0
        %4962 = vmatprep.subr.mxu0 0.0
        %4963 = vmatpush1.msra.mxu0 0.0
        %4964 = vmatprep.subr.mxu0 0.0
        %4965 = vmatpush1.msra.mxu0 0.0
        %4966 = vmatprep.subr.mxu0 0.0
        %4967 = vmatpush1.msra.mxu0 0.0
        %4968 = vmatprep.subr.mxu0 0.0
        %4969 = vmatpush1.msra.mxu0 %v1068
        %4970 = vmatprep.subr.mxu0 0.0
        %4971 = vmatpush1.msra.mxu0 %v1067
        %4972 = vmatprep.subr.mxu0 0.0
        %4973 = vmatpush2.msra.mxu0 0.0
        %4974 = vmatprep.subr.mxu0 0.0
        %4975 = vmatpush2.msra.mxu0 0.0
        %4976 = vmatprep.subr.mxu0 0.0
        %4977 = vmatpush2.msra.mxu0 0.0
        %4978 = vmatprep.subr.mxu0 0.0
        %4979 = vmatpush2.msra.mxu0 0.0
        %4980 = vmatprep.subr.mxu0 0.0
        %4981 = vmatpush2.msra.mxu0 0.0
        %4982 = vmatprep.subr.mxu0 0.0
        %4983 = vmatpush2.msra.mxu0 0.0
        %4984 = vmatprep.subr.mxu0 0.0
        %4985 = vmatpush2.msra.mxu0 0.0
        %4986 = vmatprep.subr.mxu0 0.0
        %4987 = vmatpush2.msra.mxu0 0.0
        %4988 = vmatprep.subr.mxu0 0.0
        %4989 = vmatpush2.msra.mxu0 0.0
        %4990 = vmatprep.subr.mxu0 0.0
        %4991 = vmatpush2.msra.mxu0 0.0
        %4992 = vmatprep.subr.mxu0 0.0
        %4993 = vmatpush2.msra.mxu0 0.0
        %4994 = vmatprep.subr.mxu0 0.0
        %4995 = vmatpush2.msra.mxu0 0.0
        %4996 = vmatprep.subr.mxu0 0.0
        %4997 = vmatpush2.msra.mxu0 0.0
        %4998 = vmatprep.subr.mxu0 0.0
        %4999 = vmatpush2.msra.mxu0 0.0
        %5000 = vmatprep.subr.mxu0 0.0
        %5001 = vmatpush2.msra.mxu0 0.0
        %5002 = vmatprep.subr.mxu0 0.0
        %5003 = vmatpush2.msra.mxu0 0.0
        %5004 = vmatprep.mubr.f32.mxu0 0.0
        %5005 = vmatmul.mubr.f32.gmra.mxu0 %v4798
        %v5006 = vpop.f32.mrf.mxu0
        %v5007 = vadd.f32 %v1319, %v5006
        %v5008 = vpop.f32.mrf.mxu0
        %5009 = vdwg.mxu0
        %v5010 = vadd.f32 %v4784, %v4867
        %v5011 = vxor.u32 %v5010, 2147483648
        %v5012 = vmul.f32 %v5011, 1.442695
        %v5013 = vpow.pop %v5012
        %v5014 = vadd.f32 %v5013, 1.0
        %v5015 = vrcp.pop %v5014
        %v5016 = vmul.f32 1.0, %v5015
        %v5017 = vadd.f32 %v4790, %v4937
        %v5018 = vxor.u32 %v5017, 2147483648
        %v5019 = vmul.f32 %v5018, 1.442695
        %v5020 = vpow.pop %v5019
        %v5021 = vadd.f32 %v5020, 1.0
        %v5022 = vrcp.pop %v5021
        %v5023 = vmul.f32 1.0, %v5022
        %v5024 = vmul.f32 %v5016, %v5007
        %v5025 = vadd.f32 %v4796, %v5024
        %v5026 = vtanh.pop %v5025
        %v5027 = vsub.f32 1.0, %v5023
        %v5028 = vmul.f32 %v5027, %v5026
        %v5029 = vmul.f32 %v5023, %v4524
        %v5030 = vadd.f32 %v5028, %v5029
        %v5031 = vlaneseq
        %v5032 = vshrl.u32 %v5031, 7
        %v5033 = vsub.s32 0, %v5032
        %v5034 = vrot.slane %v896, %v5033
        %v5035 = vmul.f32 %v1126, %v5034
        %v5036 = vadd.f32 %v5035, %v1425
        %v5037 = vlaneseq
        %v5038 = vshrl.u32 %v5037, 7
        %v5039 = vsub.s32 0, %v5038
        %v5040 = vrot.slane %v977, %v5039
        %v5041 = vmul.f32 %v1126, %v5040
        %v5042 = vadd.f32 %v5041, %v1437
        %v5043 = vlaneseq
        %v5044 = vshrl.u32 %v5043, 7
        %v5045 = vsub.s32 0, %v5044
        %v5046 = vrot.slane %v1058, %v5045
        %v5047 = vmul.f32 %v1126, %v5046
        %v5048 = vadd.f32 %v5047, %v1449
        %v5050 = vsel %vm584, %v4776, 0
        %5052 = vmatprep.subr.mxu0 0.0
        %5053 = vmatpush1.msra.mxu0 0.0
        %5054 = vmatprep.subr.mxu0 0.0
        %5055 = vmatpush1.msra.mxu0 0.0
        %5056 = vmatprep.subr.mxu0 0.0
        %5057 = vmatpush1.msra.mxu0 0.0
        %5058 = vmatprep.subr.mxu0 0.0
        %5059 = vmatpush1.msra.mxu0 0.0
        %5060 = vmatprep.subr.mxu0 0.0
        %5061 = vmatpush1.msra.mxu0 0.0
        %5062 = vmatprep.subr.mxu0 0.0
        %5063 = vmatpush1.msra.mxu0 0.0
        %5064 = vmatprep.subr.mxu0 0.0
        %5065 = vmatpush1.msra.mxu0 0.0
        %5066 = vmatprep.subr.mxu0 0.0
        %5067 = vmatpush1.msra.mxu0 0.0
        %5068 = vmatprep.subr.mxu0 0.0
        %5069 = vmatpush1.msra.mxu0 0.0
        %5070 = vmatprep.subr.mxu0 0.0
        %5071 = vmatpush1.msra.mxu0 0.0
        %5072 = vmatprep.subr.mxu0 0.0
        %5073 = vmatpush1.msra.mxu0 0.0
        %5074 = vmatprep.subr.mxu0 0.0
        %5075 = vmatpush1.msra.mxu0 0.0
        %5076 = vmatprep.subr.mxu0 0.0
        %5077 = vmatpush1.msra.mxu0 0.0
        %5078 = vmatprep.subr.mxu0 0.0
        %5079 = vmatpush1.msra.mxu0 0.0
        %5080 = vmatprep.subr.mxu0 0.0
        %5081 = vmatpush1.msra.mxu0 %v1070
        %5082 = vmatprep.subr.mxu0 0.0
        %5083 = vmatpush1.msra.mxu0 %v1069
        %5084 = vmatprep.subr.mxu0 0.0
        %5085 = vmatpush2.msra.mxu0 0.0
        %5086 = vmatprep.subr.mxu0 0.0
        %5087 = vmatpush2.msra.mxu0 0.0
        %5088 = vmatprep.subr.mxu0 0.0
        %5089 = vmatpush2.msra.mxu0 0.0
        %5090 = vmatprep.subr.mxu0 0.0
        %5091 = vmatpush2.msra.mxu0 0.0
        %5092 = vmatprep.subr.mxu0 0.0
        %5093 = vmatpush2.msra.mxu0 0.0
        %5094 = vmatprep.subr.mxu0 0.0
        %5095 = vmatpush2.msra.mxu0 0.0
        %5096 = vmatprep.subr.mxu0 0.0
        %5097 = vmatpush2.msra.mxu0 0.0
        %5098 = vmatprep.subr.mxu0 0.0
        %5099 = vmatpush2.msra.mxu0 0.0
        %5100 = vmatprep.subr.mxu0 0.0
        %5101 = vmatpush2.msra.mxu0 0.0
        %5102 = vmatprep.subr.mxu0 0.0
        %5103 = vmatpush2.msra.mxu0 0.0
        %5104 = vmatprep.subr.mxu0 0.0
        %5105 = vmatpush2.msra.mxu0 0.0
        %5106 = vmatprep.subr.mxu0 0.0
        %5107 = vmatpush2.msra.mxu0 0.0
        %5108 = vmatprep.subr.mxu0 0.0
        %5109 = vmatpush2.msra.mxu0 0.0
        %5110 = vmatprep.subr.mxu0 0.0
        %5111 = vmatpush2.msra.mxu0 0.0
        %5112 = vmatprep.subr.mxu0 0.0
        %5113 = vmatpush2.msra.mxu0 0.0
        %5114 = vmatprep.subr.mxu0 0.0
        %5115 = vmatpush2.msra.mxu0 0.0
        %5116 = vmatprep.mubr.f32.mxu0 0.0
        %5117 = vmatmul.mubr.f32.gmra.mxu0 %v5050
        %v5118 = vpop.f32.mrf.mxu0
        %v5119 = vadd.f32 %v1456, %v5118
        %v5120 = vpop.f32.mrf.mxu0
        %5121 = vdwg.mxu0
        %5122 = vmatprep.subr.mxu0 0.0
        %5123 = vmatpush1.msra.mxu0 0.0
        %5124 = vmatprep.subr.mxu0 0.0
        %5125 = vmatpush1.msra.mxu0 0.0
        %5126 = vmatprep.subr.mxu0 0.0
        %5127 = vmatpush1.msra.mxu0 0.0
        %5128 = vmatprep.subr.mxu0 0.0
        %5129 = vmatpush1.msra.mxu0 0.0
        %5130 = vmatprep.subr.mxu0 0.0
        %5131 = vmatpush1.msra.mxu0 0.0
        %5132 = vmatprep.subr.mxu0 0.0
        %5133 = vmatpush1.msra.mxu0 0.0
        %5134 = vmatprep.subr.mxu0 0.0
        %5135 = vmatpush1.msra.mxu0 0.0
        %5136 = vmatprep.subr.mxu0 0.0
        %5137 = vmatpush1.msra.mxu0 0.0
        %5138 = vmatprep.subr.mxu0 0.0
        %5139 = vmatpush1.msra.mxu0 0.0
        %5140 = vmatprep.subr.mxu0 0.0
        %5141 = vmatpush1.msra.mxu0 0.0
        %5142 = vmatprep.subr.mxu0 0.0
        %5143 = vmatpush1.msra.mxu0 0.0
        %5144 = vmatprep.subr.mxu0 0.0
        %5145 = vmatpush1.msra.mxu0 0.0
        %5146 = vmatprep.subr.mxu0 0.0
        %5147 = vmatpush1.msra.mxu0 0.0
        %5148 = vmatprep.subr.mxu0 0.0
        %5149 = vmatpush1.msra.mxu0 0.0
        %5150 = vmatprep.subr.mxu0 0.0
        %5151 = vmatpush1.msra.mxu0 %v1073
        %5152 = vmatprep.subr.mxu0 0.0
        %5153 = vmatpush1.msra.mxu0 %v1072
        %5154 = vmatprep.subr.mxu0 0.0
        %5155 = vmatpush2.msra.mxu0 0.0
        %5156 = vmatprep.subr.mxu0 0.0
        %5157 = vmatpush2.msra.mxu0 0.0
        %5158 = vmatprep.subr.mxu0 0.0
        %5159 = vmatpush2.msra.mxu0 0.0
        %5160 = vmatprep.subr.mxu0 0.0
        %5161 = vmatpush2.msra.mxu0 0.0
        %5162 = vmatprep.subr.mxu0 0.0
        %5163 = vmatpush2.msra.mxu0 0.0
        %5164 = vmatprep.subr.mxu0 0.0
        %5165 = vmatpush2.msra.mxu0 0.0
        %5166 = vmatprep.subr.mxu0 0.0
        %5167 = vmatpush2.msra.mxu0 0.0
        %5168 = vmatprep.subr.mxu0 0.0
        %5169 = vmatpush2.msra.mxu0 0.0
        %5170 = vmatprep.subr.mxu0 0.0
        %5171 = vmatpush2.msra.mxu0 0.0
        %5172 = vmatprep.subr.mxu0 0.0
        %5173 = vmatpush2.msra.mxu0 0.0
        %5174 = vmatprep.subr.mxu0 0.0
        %5175 = vmatpush2.msra.mxu0 0.0
        %5176 = vmatprep.subr.mxu0 0.0
        %5177 = vmatpush2.msra.mxu0 0.0
        %5178 = vmatprep.subr.mxu0 0.0
        %5179 = vmatpush2.msra.mxu0 0.0
        %5180 = vmatprep.subr.mxu0 0.0
        %5181 = vmatpush2.msra.mxu0 0.0
        %5182 = vmatprep.subr.mxu0 0.0
        %5183 = vmatpush2.msra.mxu0 0.0
        %5184 = vmatprep.subr.mxu0 0.0
        %5185 = vmatpush2.msra.mxu0 0.0
        %5186 = vmatprep.mubr.f32.mxu0 0.0
        %5187 = vmatmul.mubr.f32.gmra.mxu0 %v5050
        %v5188 = vpop.f32.mrf.mxu0
        %v5189 = vadd.f32 %v1532, %v5188
        %v5190 = vpop.f32.mrf.mxu0
        %5191 = vdwg.mxu0
        %5192 = vmatprep.subr.mxu0 0.0
        %5193 = vmatpush1.msra.mxu0 0.0
        %5194 = vmatprep.subr.mxu0 0.0
        %5195 = vmatpush1.msra.mxu0 0.0
        %5196 = vmatprep.subr.mxu0 0.0
        %5197 = vmatpush1.msra.mxu0 0.0
        %5198 = vmatprep.subr.mxu0 0.0
        %5199 = vmatpush1.msra.mxu0 0.0
        %5200 = vmatprep.subr.mxu0 0.0
        %5201 = vmatpush1.msra.mxu0 0.0
        %5202 = vmatprep.subr.mxu0 0.0
        %5203 = vmatpush1.msra.mxu0 0.0
        %5204 = vmatprep.subr.mxu0 0.0
        %5205 = vmatpush1.msra.mxu0 0.0
        %5206 = vmatprep.subr.mxu0 0.0
        %5207 = vmatpush1.msra.mxu0 0.0
        %5208 = vmatprep.subr.mxu0 0.0
        %5209 = vmatpush1.msra.mxu0 0.0
        %5210 = vmatprep.subr.mxu0 0.0
        %5211 = vmatpush1.msra.mxu0 0.0
        %5212 = vmatprep.subr.mxu0 0.0
        %5213 = vmatpush1.msra.mxu0 0.0
        %5214 = vmatprep.subr.mxu0 0.0
        %5215 = vmatpush1.msra.mxu0 0.0
        %5216 = vmatprep.subr.mxu0 0.0
        %5217 = vmatpush1.msra.mxu0 0.0
        %5218 = vmatprep.subr.mxu0 0.0
        %5219 = vmatpush1.msra.mxu0 0.0
        %5220 = vmatprep.subr.mxu0 0.0
        %5221 = vmatpush1.msra.mxu0 %v1076
        %5222 = vmatprep.subr.mxu0 0.0
        %5223 = vmatpush1.msra.mxu0 %v1075
        %5224 = vmatprep.subr.mxu0 0.0
        %5225 = vmatpush2.msra.mxu0 0.0
        %5226 = vmatprep.subr.mxu0 0.0
        %5227 = vmatpush2.msra.mxu0 0.0
        %5228 = vmatprep.subr.mxu0 0.0
        %5229 = vmatpush2.msra.mxu0 0.0
        %5230 = vmatprep.subr.mxu0 0.0
        %5231 = vmatpush2.msra.mxu0 0.0
        %5232 = vmatprep.subr.mxu0 0.0
        %5233 = vmatpush2.msra.mxu0 0.0
        %5234 = vmatprep.subr.mxu0 0.0
        %5235 = vmatpush2.msra.mxu0 0.0
        %5236 = vmatprep.subr.mxu0 0.0
        %5237 = vmatpush2.msra.mxu0 0.0
        %5238 = vmatprep.subr.mxu0 0.0
        %5239 = vmatpush2.msra.mxu0 0.0
        %5240 = vmatprep.subr.mxu0 0.0
        %5241 = vmatpush2.msra.mxu0 0.0
        %5242 = vmatprep.subr.mxu0 0.0
        %5243 = vmatpush2.msra.mxu0 0.0
        %5244 = vmatprep.subr.mxu0 0.0
        %5245 = vmatpush2.msra.mxu0 0.0
        %5246 = vmatprep.subr.mxu0 0.0
        %5247 = vmatpush2.msra.mxu0 0.0
        %5248 = vmatprep.subr.mxu0 0.0
        %5249 = vmatpush2.msra.mxu0 0.0
        %5250 = vmatprep.subr.mxu0 0.0
        %5251 = vmatpush2.msra.mxu0 0.0
        %5252 = vmatprep.subr.mxu0 0.0
        %5253 = vmatpush2.msra.mxu0 0.0
        %5254 = vmatprep.subr.mxu0 0.0
        %5255 = vmatpush2.msra.mxu0 0.0
        %5256 = vmatprep.mubr.f32.mxu0 0.0
        %5257 = vmatmul.mubr.f32.gmra.mxu0 %v5050
        %v5258 = vpop.f32.mrf.mxu0
        %v5259 = vadd.f32 %v1608, %v5258
        %v5260 = vpop.f32.mrf.mxu0
        %5261 = vdwg.mxu0
        %v5262 = vadd.f32 %v5036, %v5119
        %v5263 = vxor.u32 %v5262, 2147483648
        %v5264 = vmul.f32 %v5263, 1.442695
        %v5265 = vpow.pop %v5264
        %v5266 = vadd.f32 %v5265, 1.0
        %v5267 = vrcp.pop %v5266
        %v5268 = vmul.f32 1.0, %v5267
        %v5269 = vadd.f32 %v5042, %v5189
        %v5270 = vxor.u32 %v5269, 2147483648
        %v5271 = vmul.f32 %v5270, 1.442695
        %v5272 = vpow.pop %v5271
        %v5273 = vadd.f32 %v5272, 1.0
        %v5274 = vrcp.pop %v5273
        %v5275 = vmul.f32 1.0, %v5274
        %v5276 = vmul.f32 %v5268, %v5259
        %v5277 = vadd.f32 %v5048, %v5276
        %v5278 = vtanh.pop %v5277
        %v5279 = vsub.f32 1.0, %v5275
        %v5280 = vmul.f32 %v5279, %v5278
        %v5281 = vmul.f32 %v5275, %v4776
        %v5282 = vadd.f32 %v5280, %v5281
        %v5283 = vsel %vm1705, %v5030, %v4777
        %v5284 = vsel %vm1702, %v5282, %v4778
        %v5285 = vld [vmem:[%s12] sm:$0xff]
        %v5286 = vld [vmem:[%s12 + $0x8] sm:$0xff]
        %v5287 = vld [vmem:[%s13] sm:$0xff]
        %v5288 = vld [vmem:[%s13 + $0x8] sm:$0xff]
        %v5290 = vsel %vm584, %v5284, 0
        %5292 = vmatprep.subr.mxu0 0.0
        %5293 = vmatpush1.msra.mxu0 0.0
        %5294 = vmatprep.subr.mxu0 0.0
        %5295 = vmatpush1.msra.mxu0 0.0
        %5296 = vmatprep.subr.mxu0 0.0
        %5297 = vmatpush1.msra.mxu0 0.0
        %5298 = vmatprep.subr.mxu0 0.0
        %5299 = vmatpush1.msra.mxu0 0.0
        %5300 = vmatprep.subr.mxu0 0.0
        %5301 = vmatpush1.msra.mxu0 0.0
        %5302 = vmatprep.subr.mxu0 0.0
        %5303 = vmatpush1.msra.mxu0 0.0
        %5304 = vmatprep.subr.mxu0 0.0
        %5305 = vmatpush1.msra.mxu0 0.0
        %5306 = vmatprep.subr.mxu0 0.0
        %5307 = vmatpush1.msra.mxu0 0.0
        %5308 = vmatprep.subr.mxu0 0.0
        %5309 = vmatpush1.msra.mxu0 0.0
        %5310 = vmatprep.subr.mxu0 0.0
        %5311 = vmatpush1.msra.mxu0 0.0
        %5312 = vmatprep.subr.mxu0 0.0
        %5313 = vmatpush1.msra.mxu0 0.0
        %5314 = vmatprep.subr.mxu0 0.0
        %5315 = vmatpush1.msra.mxu0 0.0
        %5316 = vmatprep.subr.mxu0 0.0
        %5317 = vmatpush1.msra.mxu0 0.0
        %5318 = vmatprep.subr.mxu0 0.0
        %5319 = vmatpush1.msra.mxu0 0.0
        %5320 = vmatprep.subr.mxu0 0.0
        %5321 = vmatpush1.msra.mxu0 %v5288
        %5322 = vmatprep.subr.mxu0 0.0
        %5323 = vmatpush1.msra.mxu0 %v5287
        %5324 = vmatprep.subr.mxu0 0.0
        %5325 = vmatpush2.msra.mxu0 0.0
        %5326 = vmatprep.subr.mxu0 0.0
        %5327 = vmatpush2.msra.mxu0 0.0
        %5328 = vmatprep.subr.mxu0 0.0
        %5329 = vmatpush2.msra.mxu0 0.0
        %5330 = vmatprep.subr.mxu0 0.0
        %5331 = vmatpush2.msra.mxu0 0.0
        %5332 = vmatprep.subr.mxu0 0.0
        %5333 = vmatpush2.msra.mxu0 0.0
        %5334 = vmatprep.subr.mxu0 0.0
        %5335 = vmatpush2.msra.mxu0 0.0
        %5336 = vmatprep.subr.mxu0 0.0
        %5337 = vmatpush2.msra.mxu0 0.0
        %5338 = vmatprep.subr.mxu0 0.0
        %5339 = vmatpush2.msra.mxu0 0.0
        %5340 = vmatprep.subr.mxu0 0.0
        %5341 = vmatpush2.msra.mxu0 0.0
        %5342 = vmatprep.subr.mxu0 0.0
        %5343 = vmatpush2.msra.mxu0 0.0
        %5344 = vmatprep.subr.mxu0 0.0
        %5345 = vmatpush2.msra.mxu0 0.0
        %5346 = vmatprep.subr.mxu0 0.0
        %5347 = vmatpush2.msra.mxu0 0.0
        %5348 = vmatprep.subr.mxu0 0.0
        %5349 = vmatpush2.msra.mxu0 0.0
        %5350 = vmatprep.subr.mxu0 0.0
        %5351 = vmatpush2.msra.mxu0 0.0
        %5352 = vmatprep.subr.mxu0 0.0
        %5353 = vmatpush2.msra.mxu0 0.0
        %5354 = vmatprep.subr.mxu0 0.0
        %5355 = vmatpush2.msra.mxu0 0.0
        %5356 = vmatprep.mubr.f32.mxu0 0.0
        %5357 = vmatmul.mubr.f32.gmra.mxu0 %v5290
        %v5358 = vpop.f32.mrf.mxu0
        %v5359 = vadd.f32 0.0, %v5358
        %v5360 = vpop.f32.mrf.mxu0
        %5361 = vdwg.mxu0
        %v5363 = vsel %vm584, %v5283, 0
        %5365 = vmatprep.subr.mxu0 0.0
        %5366 = vmatpush1.msra.mxu0 0.0
        %5367 = vmatprep.subr.mxu0 0.0
        %5368 = vmatpush1.msra.mxu0 0.0
        %5369 = vmatprep.subr.mxu0 0.0
        %5370 = vmatpush1.msra.mxu0 0.0
        %5371 = vmatprep.subr.mxu0 0.0
        %5372 = vmatpush1.msra.mxu0 0.0
        %5373 = vmatprep.subr.mxu0 0.0
        %5374 = vmatpush1.msra.mxu0 0.0
        %5375 = vmatprep.subr.mxu0 0.0
        %5376 = vmatpush1.msra.mxu0 0.0
        %5377 = vmatprep.subr.mxu0 0.0
        %5378 = vmatpush1.msra.mxu0 0.0
        %5379 = vmatprep.subr.mxu0 0.0
        %5380 = vmatpush1.msra.mxu0 0.0
        %5381 = vmatprep.subr.mxu0 0.0
        %5382 = vmatpush1.msra.mxu0 0.0
        %5383 = vmatprep.subr.mxu0 0.0
        %5384 = vmatpush1.msra.mxu0 0.0
        %5385 = vmatprep.subr.mxu0 0.0
        %5386 = vmatpush1.msra.mxu0 0.0
        %5387 = vmatprep.subr.mxu0 0.0
        %5388 = vmatpush1.msra.mxu0 0.0
        %5389 = vmatprep.subr.mxu0 0.0
        %5390 = vmatpush1.msra.mxu0 0.0
        %5391 = vmatprep.subr.mxu0 0.0
        %5392 = vmatpush1.msra.mxu0 0.0
        %5393 = vmatprep.subr.mxu0 0.0
        %5394 = vmatpush1.msra.mxu0 %v5286
        %5395 = vmatprep.subr.mxu0 0.0
        %5396 = vmatpush1.msra.mxu0 %v5285
        %5397 = vmatprep.subr.mxu0 0.0
        %5398 = vmatpush2.msra.mxu0 0.0
        %5399 = vmatprep.subr.mxu0 0.0
        %5400 = vmatpush2.msra.mxu0 0.0
        %5401 = vmatprep.subr.mxu0 0.0
        %5402 = vmatpush2.msra.mxu0 0.0
        %5403 = vmatprep.subr.mxu0 0.0
        %5404 = vmatpush2.msra.mxu0 0.0
        %5405 = vmatprep.subr.mxu0 0.0
        %5406 = vmatpush2.msra.mxu0 0.0
        %5407 = vmatprep.subr.mxu0 0.0
        %5408 = vmatpush2.msra.mxu0 0.0
        %5409 = vmatprep.subr.mxu0 0.0
        %5410 = vmatpush2.msra.mxu0 0.0
        %5411 = vmatprep.subr.mxu0 0.0
        %5412 = vmatpush2.msra.mxu0 0.0
        %5413 = vmatprep.subr.mxu0 0.0
        %5414 = vmatpush2.msra.mxu0 0.0
        %5415 = vmatprep.subr.mxu0 0.0
        %5416 = vmatpush2.msra.mxu0 0.0
        %5417 = vmatprep.subr.mxu0 0.0
        %5418 = vmatpush2.msra.mxu0 0.0
        %5419 = vmatprep.subr.mxu0 0.0
        %5420 = vmatpush2.msra.mxu0 0.0
        %5421 = vmatprep.subr.mxu0 0.0
        %5422 = vmatpush2.msra.mxu0 0.0
        %5423 = vmatprep.subr.mxu0 0.0
        %5424 = vmatpush2.msra.mxu0 0.0
        %5425 = vmatprep.subr.mxu0 0.0
        %5426 = vmatpush2.msra.mxu0 0.0
        %5427 = vmatprep.subr.mxu0 0.0
        %5428 = vmatpush2.msra.mxu0 0.0
        %5429 = vmatprep.mubr.f32.mxu0 0.0
        %5430 = vmatmul.mubr.f32.gmra.mxu0 %v5363
        %v5431 = vpop.f32.mrf.mxu0
        %v5432 = vadd.f32 %v5359, %v5431
        %v5433 = vpop.f32.mrf.mxu0
        %5434 = vdwg.mxu0
        %v5435 = vld [vmem:[#allocation2] sm:$0x1]
        %v5437 = vlaneseq
        %v5438 = vshrl.u32 %v5437, 7
        %v5439 = vsub.s32 0, %v5438
        %v5440 = vrot.slane %v5435, %v5439
        %v5442 = vadd.f32 %v5432, %v5440
        %v5443 = vxor.u32 %v5442, 2147483648
        %v5444 = vmul.f32 %v5443, 1.442695
        %v5445 = vpow.pop %v5444
        %v5446 = vadd.f32 %v5445, 1.0
        %v5447 = vrcp.pop %v5446
        %v5448 = vmul.f32 1.0, %v5447
        %vm5449 = vcmask 7168
        %5450 = vst.msk [vmem:[%s572] sm:$0xff] %vm5449, %v5448
        %p5451 = scmp.lt.s32.totalorder %s33, 1
        %s5452 = scalar_select %p5451, %s33, 1
        %s5453 = smul.addr %s5452, 8
        %s5454 = scalar_lea.vmem %s15, %s5453
        // Predicated region
        $region97: #{tpu_custom_call.1} parent=79 // pred_check
          %p5455 = pneg %p376
        $region98: #{tpu_custom_call.1} parent=79 // pred_check_branch
          %5457 = sbr.rel (%p5455) target = $region100
        $region99: #{tpu_custom_call.1} parent=79 // pred_region
          _
        $region100: #{tpu_custom_call.1} parent=79 // pred_fallthru
          _
      $region80: #{tpu_custom_call.1} parent=5 // pred_fallthru
        _
      %p5458 = scmp.le.s32.totalorder 2, %s28
      // Predicated region
      $region101: #{tpu_custom_call.1} parent=5 // pred_check
        %p5459 = pneg %p5458
      $region102: #{tpu_custom_call.1} parent=5 // pred_check_branch
        %5461 = sbr.rel (%p5459) target = $region104
      $region103: #{tpu_custom_call.1} parent=5 // pred_region
        %s5462 = ssub.s32 %s28, 2
        // Predicated region
        $region105: #{tpu_custom_call.1} parent=103 // pred_check
          %p5463 = pneg %p382
        $region106: #{tpu_custom_call.1} parent=103 // pred_check_branch
          %5465 = sbr.rel (%p5463) target = $region108
        $region107: #{tpu_custom_call.1} parent=103 // pred_region
          %p5466 = scmp.lt.s32.totalorder %s34, 1
          %s5467 = scalar_select %p5466, %s34, 1
          %s5468 = smul.addr %s5467, 8
          %s5469 = scalar_lea.vmem %s15, %s5468
        $region108: #{tpu_custom_call.1} parent=103 // pred_fallthru
          _
      $region104: #{tpu_custom_call.1} parent=5 // pred_fallthru
        _
    $region6: #{tpu_custom_call.1} parent=1 // loop_footer
      %s32 = sadd.s32 1, %s28
    $region7: #{tpu_custom_call.1} parent=1 // loop_footer_branch
      %27 = sbr.rel target = $region3
    $region8: #{tpu_custom_call.1} parent=1 // loop_exit
      _
    %5470 = vsyncpa [#allocation4], 1
    %s5471 = scalar_lea.sflag [#allocation4], 1
    %5472 = vsyncpa %s5471, 1
    %5473 = vsyncpa [#allocation6], 1
    %5474 = vsyncpa [#allocation9], 1

</llo_original>
